<compile_context>
chip_gen: v7x
topology: tpu7x:2x2x1
jax: 0.10.0
libtpu: 0.0.40
codegen_flags: <defaults>
</compile_context>

<pallas_src>
from itertools import product

import jax
import jax.numpy as jnp
from jax.experimental import pallas as pl
from jax.experimental.pallas import tpu as pltpu


# ---------------------------------------------------------------------------
# Fused kernel: one batch element per grid step.
# ---------------------------------------------------------------------------
def _upsample_fused_kernel(x1_ref, x2_ref, wup_ref, bup_ref, w1_ref, b1_ref,
                           w2_ref, b2_ref, wid_ref, bid_ref, o_ref,
                           upp_ref, x2p_ref, midp_ref, col1_ref, col2_ref):
    H1 = upp_ref.shape[0] - 1
    W1 = upp_ref.shape[2] - 1
    Cmid = upp_ref.shape[4]
    H2, W2 = 2 * H1, 2 * W1
    HW2 = H2 * W2
    O = o_ref.shape[1]
    f32 = jnp.float32

    # ---------------- ConvTranspose2d(k=2, s=2): one MXU matmul --------------
    # up[:, (2a+b)*Cmid + o] is the upsampled pixel of row-phase a / col-phase b.
    up = jnp.dot(x1_ref[0], wup_ref[...], preferred_element_type=f32) + bup_ref[...]

    # ------------- scatter into a zero-padded image held in VMEM -------------
    # upp_ref dims (i, a, j, b, c) <-> padded pixel (2i + a, 2j + b, c).
    # image pixel (2i+ai, 2j+bi) lands at padded (2i+ai+1, 2j+bi+1):
    #   phase 0 -> slot (i, 1); phase 1 -> slot (i+1, 0)   (rows and columns alike)
    def phase(a, b):
        c0 = (2 * a + b) * Cmid
        return up[:, c0:c0 + Cmid].reshape(H1, 1, W1, 1, Cmid)

    upp_ref[0:H1, 1:2, 0:W1, 1:2, :] = phase(0, 0)
    upp_ref[0:H1, 1:2, 1:W1 + 1, 0:1, :] = phase(0, 1)
    upp_ref[1:H1 + 1, 0:1, 0:W1, 1:2, :] = phase(1, 0)
    upp_ref[1:H1 + 1, 0:1, 1:W1 + 1, 0:1, :] = phase(1, 1)
    # zero only the 1-pixel border, every step (safe with a "parallel" batch axis)
    upp_ref[0:1, 0:1, :, :, :] = jnp.zeros((1, 1, W1 + 1, 2, Cmid), f32)
    upp_ref[H1:H1 + 1, 1:2, :, :, :] = jnp.zeros((1, 1, W1 + 1, 2, Cmid), f32)
    upp_ref[:, :, 0:1, 0:1, :] = jnp.zeros((H1 + 1, 2, 1, 1, Cmid), f32)
    upp_ref[:, :, W1:W1 + 1, 1:2, :] = jnp.zeros((H1 + 1, 2, 1, 1, Cmid), f32)

    x2p_ref[1:H2 + 1, 1:W2 + 1, :] = x2_ref[0].reshape(H2, W2, Cmid)
    x2p_ref[0:1, :, :] = jnp.zeros((1, W2 + 2, Cmid), f32)
    x2p_ref[H2 + 1:H2 + 2, :, :] = jnp.zeros((1, W2 + 2, Cmid), f32)
    x2p_ref[:, 0:1, :] = jnp.zeros((H2 + 2, 1, Cmid), f32)
    x2p_ref[:, W2 + 1:W2 + 2, :] = jnp.zeros((H2 + 2, 1, Cmid), f32)

    up_img = upp_ref[...].reshape(H2 + 2, W2 + 2, Cmid)   # padded upsampled half
    x2_img = x2p_ref[...]                                 # padded skip half

    # -------- conv1 (3x3, pad=1): tap-stacked im2col + one MXU matmul --------
    # col1 columns: [9 up-taps | 9 x2-taps]; matches the packed w1 matrix, so a
    # single matmul equals the conv over torch.cat([up, x2], dim=1).
    for k, (dh, dw) in enumerate(product(range(3), range(3))):
        col1_ref[:, k * Cmid:(k + 1) * Cmid] = (
            up_img[dh:dh + H2, dw:dw + W2, :].reshape(HW2, Cmid))
        col1_ref[:, (9 + k) * Cmid:(10 + k) * Cmid] = (
            x2_img[dh:dh + H2, dw:dw + W2, :].reshape(HW2, Cmid))
    acc1 = jnp.dot(col1_ref[...], w1_ref[...], preferred_element_type=f32) + b1_ref[...]
    mid = jnp.maximum(acc1, 0.0)                          # ReLU

    # --------- identity 1x1 conv on the (unpadded) concatenated input --------
    wid = wid_ref[...]
    ident = (jnp.dot(up_img[1:H2 + 1, 1:W2 + 1, :].reshape(HW2, Cmid),
                     wid[:Cmid, :], preferred_element_type=f32)
             + jnp.dot(x2_img[1:H2 + 1, 1:W2 + 1, :].reshape(HW2, Cmid),
                       wid[Cmid:, :], preferred_element_type=f32)
             + bid_ref[...])

    # ------------------------- conv2 (3x3, pad=1) ----------------------------
    midp_ref[1:H2 + 1, 1:W2 + 1, :] = mid.reshape(H2, W2, O)
    midp_ref[0:1, :, :] = jnp.zeros((1, W2 + 2, O), f32)
    midp_ref[H2 + 1:H2 + 2, :, :] = jnp.zeros((1, W2 + 2, O), f32)
    midp_ref[:, 0:1, :] = jnp.zeros((H2 + 2, 1, O), f32)
    midp_ref[:, W2 + 1:W2 + 2, :] = jnp.zeros((H2 + 2, 1, O), f32)
    mid_img = midp_ref[...]
    for k, (dh, dw) in enumerate(product(range(3), range(3))):
        col2_ref[:, k * O:(k + 1) * O] = (
            mid_img[dh:dh + H2, dw:dw + W2, :].reshape(HW2, O))
    acc2 = jnp.dot(col2_ref[...], w2_ref[...], preferred_element_type=f32) + b2_ref[...]

    out = jnp.maximum(acc2 + ident, 0.0)                  # ReLU(conv2 + identity)
    # Store transposed: (O, H2*W2) is lane-dense (H2*W2 is a multiple of 128) and
    # is already NCHW, so the wrapper only needs a free reshape.
    o_ref[0] = out.T


# ---------------------------------------------------------------------------
# UpSample.forward(x1, x2) wrapper (NCHW in / NCHW out, PyTorch-layout params).
# ---------------------------------------------------------------------------
def upsample_forward(x1_nchw, x2_nchw, params):
    N, Cin, H1, W1 = x1_nchw.shape
    _, Cmid, H2, W2 = x2_nchw.shape
    assert Cmid == Cin // 2 and H2 == 2 * H1 and W2 == 2 * W1
    Ccat = 2 * Cmid
    O = params["w1"].shape[0]
    HW1, HW2 = H1 * W1, H2 * W2

    # --- one-time packing of PyTorch-layout params into matmul-ready form ---
    wup = jnp.transpose(params["wt"], (0, 2, 3, 1)).reshape(Cin, 4 * Cmid)
    bup = jnp.tile(params["bt"], 4).reshape(1, 4 * Cmid)

    def conv3x3_mat(w):  # (O, C, 3, 3) -> (9*C, O), rows ordered (dh, dw, c)
        return jnp.transpose(w, (2, 3, 1, 0)).reshape(-1, w.shape[0])

    # split conv1 / identity weights along input channels: [upsampled | skip]
    w1_mat = jnp.concatenate([conv3x3_mat(params["w1"][:, :Cmid]),
                              conv3x3_mat(params["w1"][:, Cmid:])], axis=0)
    w2_mat = conv3x3_mat(params["w2"])
    wid_mat = params["wid"].reshape(O, Ccat).T
    b1 = params["b1"].reshape(1, O)
    b2 = params["b2"].reshape(1, O)
    bid = params["bid"].reshape(1, O)

    # activations: NCHW -> (spatial, channel) matmul layout (only HBM glue left)
    x1_f = jnp.transpose(x1_nchw.reshape(N, Cin, HW1), (0, 2, 1))
    x2_f = jnp.transpose(x2_nchw.reshape(N, Cmid, HW2), (0, 2, 1))

    # NOTE: at these test shapes one image per grid step uses < 2 MiB of VMEM
    # scratch; realistic decoder sizes would add an H-row grid axis with a 1-row
    # halo and set vmem_limit_bytes explicitly for v7x's 64 MiB VMEM.
    out = pl.pallas_call(
        _upsample_fused_kernel,
        out_shape=jax.ShapeDtypeStruct((N, O, HW2), jnp.float32),
        grid=(N,),
        in_specs=[
            pl.BlockSpec((1, HW1, Cin), lambda n: (n, 0, 0)),
            pl.BlockSpec((1, HW2, Cmid), lambda n: (n, 0, 0)),
            pl.BlockSpec((Cin, 4 * Cmid), lambda n: (0, 0)),
            pl.BlockSpec((1, 4 * Cmid), lambda n: (0, 0)),
            pl.BlockSpec((9 * Ccat, O), lambda n: (0, 0)),
            pl.BlockSpec((1, O), lambda n: (0, 0)),
            pl.BlockSpec((9 * O, O), lambda n: (0, 0)),
            pl.BlockSpec((1, O), lambda n: (0, 0)),
            pl.BlockSpec((Ccat, O), lambda n: (0, 0)),
            pl.BlockSpec((1, O), lambda n: (0, 0)),
        ],
        out_specs=pl.BlockSpec((1, O, HW2), lambda n: (n, 0, 0)),
        scratch_shapes=[
            pltpu.VMEM((H1 + 1, 2, W1 + 1, 2, Cmid), jnp.float32),  # padded up half
            pltpu.VMEM((H2 + 2, W2 + 2, Cmid), jnp.float32),        # padded skip half
            pltpu.VMEM((H2 + 2, W2 + 2, O), jnp.float32),           # padded conv1 out
            pltpu.VMEM((HW2, 9 * Ccat), jnp.float32),               # im2col for conv1
            pltpu.VMEM((HW2, 9 * O), jnp.float32),                  # im2col for conv2
        ],
        compiler_params=pltpu.CompilerParams(dimension_semantics=("parallel",)),
    )(x1_f, x2_f, wup, bup, w1_mat, b1, w2_mat, b2, wid_mat, bid)

    # (N, O, H2*W2) is already channel-first; the reshape is free (no HBM transpose).
    return out.reshape(N, O, H2, W2)


# ---------------------------------------------------------------------------
# Pure-JAX reference (same math, no Pallas) for validation.
# ---------------------------------------------------------------------------
def _conv3x3_ref(x, w, b):
    xp = jnp.pad(x, ((0, 0), (1, 1), (1, 1), (0, 0)))
    N, H, W, C = x.shape
    O = w.shape[0]
    acc = jnp.zeros((N, H, W, O), jnp.float32)
    for dh in range(3):
        for dw in range(3):
            acc = acc + jnp.einsum("nhwc,oc->nhwo",
                                   xp[:, dh:dh + H, dw:dw + W, :], w[:, :, dh, dw])
    return acc + b


def _reference(x1_nchw, x2_nchw, p):
    x1 = jnp.transpose(x1_nchw, (0, 2, 3, 1))
    x2 = jnp.transpose(x2_nchw, (0, 2, 3, 1))
    N, H, W, Cin = x1.shape
    Cmid = p["wt"].shape[1]
    up = jnp.einsum("nijc,coab->niajbo", x1, p["wt"]).reshape(N, 2 * H, 2 * W, Cmid)
    up = up + p["bt"]
    x = jnp.concatenate([up, x2], axis=-1)
    O = p["w1"].shape[0]
    ident = jnp.einsum("nhwc,oc->nhwo", x, p["wid"].reshape(O, -1)) + p["bid"]
    out = jnp.maximum(_conv3x3_ref(x, p["w1"], p["b1"]), 0.0)
    out = _conv3x3_ref(out, p["w2"], p["b2"])
    out = jnp.maximum(out + ident, 0.0)
    return jnp.transpose(out, (0, 3, 1, 2))


if __name__ == "__main__":
    # UpSample(in_channels=4, out_channels=4)
    # x1: (N, 4, 8, 8); up -> (N, 2, 16, 16); x2: (N, 2, 16, 16); out: (N, 4, 16, 16)
    N, Cin, H1, W1 = 2, 4, 8, 8
    Cmid, Cout = Cin // 2, 4

    key = jax.random.PRNGKey(0)
    ks = jax.random.split(key, 10)
    params = {
        "wt":  jax.random.normal(ks[0], (Cin, Cmid, 2, 2), jnp.float32) * 0.1,
        "bt":  jax.random.normal(ks[1], (Cmid,), jnp.float32) * 0.1,
        "w1":  jax.random.normal(ks[2], (Cout, Cin, 3, 3), jnp.float32) * 0.1,
        "b1":  jax.random.normal(ks[3], (Cout,), jnp.float32) * 0.1,
        "w2":  jax.random.normal(ks[4], (Cout, Cout, 3, 3), jnp.float32) * 0.1,
        "b2":  jax.random.normal(ks[5], (Cout,), jnp.float32) * 0.1,
        "wid": jax.random.normal(ks[6], (Cout, Cin, 1, 1), jnp.float32) * 0.1,
        "bid": jax.random.normal(ks[7], (Cout,), jnp.float32) * 0.1,
    }
    x1 = jax.random.normal(ks[8], (N, Cin, H1, W1), jnp.float32)
    x2 = jax.random.normal(ks[9], (N, Cmid, 2 * H1, 2 * W1), jnp.float32)

    out = jax.block_until_ready(upsample_forward(x1, x2, params))
    ref = jax.block_until_ready(_reference(x1, x2, params))

    assert out.shape == (N, Cout, 2 * H1, 2 * W1), out.shape
    assert jnp.allclose(out, ref, rtol=1e-4, atol=1e-4), float(jnp.max(jnp.abs(out - ref)))
    print("KERNEL_OK")
</pallas_src>

<mosaic_0001>
module attributes {stable_mosaic.version = 11 : i64} {
  func.func @_upsample_fused_kernel(%arg0: i32, %arg1: memref<1x64x4xf32, #tpu.memory_space<vmem>>, %arg2: memref<1x256x2xf32, #tpu.memory_space<vmem>>, %arg3: memref<4x8xf32, #tpu.memory_space<vmem>>, %arg4: memref<1x8xf32, #tpu.memory_space<vmem>>, %arg5: memref<36x4xf32, #tpu.memory_space<vmem>>, %arg6: memref<1x4xf32, #tpu.memory_space<vmem>>, %arg7: memref<36x4xf32, #tpu.memory_space<vmem>>, %arg8: memref<1x4xf32, #tpu.memory_space<vmem>>, %arg9: memref<4x4xf32, #tpu.memory_space<vmem>>, %arg10: memref<1x4xf32, #tpu.memory_space<vmem>>, %arg11: memref<1x4x256xf32, #tpu.memory_space<vmem>>, %arg12: memref<9x2x9x2x2xf32, #tpu.memory_space<vmem>>, %arg13: memref<18x18x2xf32, #tpu.memory_space<vmem>>, %arg14: memref<18x18x4xf32, #tpu.memory_space<vmem>>, %arg15: memref<256x36xf32, #tpu.memory_space<vmem>>, %arg16: memref<256x36xf32, #tpu.memory_space<vmem>>) attributes {dimension_semantics = [#tpu.dimension_semantics<parallel>], iteration_bounds = array<i64: 2>, scalar_prefetch = 0 : i64, scratch_operands = 5 : i64, tpu.core_type = #tpu.core_type<tc>, window_params = [{transform_indices = @transform_0, window_bounds = array<i64: 1, 64, 4>}, {transform_indices = @transform_1, window_bounds = array<i64: 1, 256, 2>}, {pipeline_mode = #tpu.pipeline_mode<synchronous>, transform_indices = @transform_2, window_bounds = array<i64: 4, 8>}, {pipeline_mode = #tpu.pipeline_mode<synchronous>, transform_indices = @transform_3, window_bounds = array<i64: 1, 8>}, {pipeline_mode = #tpu.pipeline_mode<synchronous>, transform_indices = @transform_4, window_bounds = array<i64: 36, 4>}, {pipeline_mode = #tpu.pipeline_mode<synchronous>, transform_indices = @transform_5, window_bounds = array<i64: 1, 4>}, {pipeline_mode = #tpu.pipeline_mode<synchronous>, transform_indices = @transform_6, window_bounds = array<i64: 36, 4>}, {pipeline_mode = #tpu.pipeline_mode<synchronous>, transform_indices = @transform_7, window_bounds = array<i64: 1, 4>}, {pipeline_mode = #tpu.pipeline_mode<synchronous>, transform_indices = @transform_8, window_bounds = array<i64: 4, 4>}, {pipeline_mode = #tpu.pipeline_mode<synchronous>, transform_indices = @transform_9, window_bounds = array<i64: 1, 4>}, {transform_indices = @transform_10, window_bounds = array<i64: 1, 4, 256>}]} {
    %c0 = arith.constant 0 : index
    %c0_0 = arith.constant 0 : index
    %c0_1 = arith.constant 0 : index
    %0 = vector.load %arg1[%c0, %c0_0, %c0_1] : memref<1x64x4xf32, #tpu.memory_space<vmem>>, vector<1x64x4xf32>
    %1 = vector.shape_cast %0 : vector<1x64x4xf32> to vector<64x4xf32>
    %c0_2 = arith.constant 0 : index
    %c0_3 = arith.constant 0 : index
    %2 = vector.load %arg3[%c0_2, %c0_3] : memref<4x8xf32, #tpu.memory_space<vmem>>, vector<4x8xf32>
    %cst = arith.constant dense<0.000000e+00> : vector<64x8xf32>
    %3 = tpu.matmul %1, %2, %cst {dimension_numbers = #tpu.dot_dimension_numbers<[1], [0], [0], [1], [0, 0, 1, 1], [], []>} : vector<64x4xf32>, vector<4x8xf32>, vector<64x8xf32> -> vector<64x8xf32>
    %c0_4 = arith.constant 0 : index
    %c0_5 = arith.constant 0 : index
    %4 = vector.load %arg4[%c0_4, %c0_5] : memref<1x8xf32, #tpu.memory_space<vmem>>, vector<1x8xf32>
    %5 = vector.broadcast %4 : vector<1x8xf32> to vector<64x8xf32>
    %6 = arith.addf %3, %5 : vector<64x8xf32>
    %7 = vector.extract_strided_slice %6 {offsets = [0, 0], sizes = [64, 2], strides = [1, 1]} : vector<64x8xf32> to vector<64x2xf32>
    %8 = vector.shape_cast %7 : vector<64x2xf32> to vector<8x1x8x1x2xf32>
    %c0_6 = arith.constant 0 : index
    %c1 = arith.constant 1 : index
    %c0_7 = arith.constant 0 : index
    %c1_8 = arith.constant 1 : index
    %c0_9 = arith.constant 0 : index
    %9 = vector.load %arg12[%c0_6, %c1, %c0_7, %c1_8, %c0_9] : memref<9x2x9x2x2xf32, #tpu.memory_space<vmem>>, vector<8x1x8x1x2xf32>
    tpu.vector_store %arg12[%c0_6, %c1, %c0_7, %c1_8, %c0_9], %8 {strides = array<i32>} : memref<9x2x9x2x2xf32, #tpu.memory_space<vmem>>, vector<8x1x8x1x2xf32>,
    %10 = vector.extract_strided_slice %6 {offsets = [0, 2], sizes = [64, 2], strides = [1, 1]} : vector<64x8xf32> to vector<64x2xf32>
    %11 = vector.shape_cast %10 : vector<64x2xf32> to vector<8x1x8x1x2xf32>
    %c0_10 = arith.constant 0 : index
    %c1_11 = arith.constant 1 : index
    %c1_12 = arith.constant 1 : index
    %c0_13 = arith.constant 0 : index
    %c0_14 = arith.constant 0 : index
    %12 = vector.load %arg12[%c0_10, %c1_11, %c1_12, %c0_13, %c0_14] : memref<9x2x9x2x2xf32, #tpu.memory_space<vmem>>, vector<8x1x8x1x2xf32>
    tpu.vector_store %arg12[%c0_10, %c1_11, %c1_12, %c0_13, %c0_14], %11 {strides = array<i32>} : memref<9x2x9x2x2xf32, #tpu.memory_space<vmem>>, vector<8x1x8x1x2xf32>,
    %13 = vector.extract_strided_slice %6 {offsets = [0, 4], sizes = [64, 2], strides = [1, 1]} : vector<64x8xf32> to vector<64x2xf32>
    %14 = vector.shape_cast %13 : vector<64x2xf32> to vector<8x1x8x1x2xf32>
    %c1_15 = arith.constant 1 : index
    %c0_16 = arith.constant 0 : index
    %c0_17 = arith.constant 0 : index
    %c1_18 = arith.constant 1 : index
    %c0_19 = arith.constant 0 : index
    %15 = vector.load %arg12[%c1_15, %c0_16, %c0_17, %c1_18, %c0_19] : memref<9x2x9x2x2xf32, #tpu.memory_space<vmem>>, vector<8x1x8x1x2xf32>
    tpu.vector_store %arg12[%c1_15, %c0_16, %c0_17, %c1_18, %c0_19], %14 {strides = array<i32>} : memref<9x2x9x2x2xf32, #tpu.memory_space<vmem>>, vector<8x1x8x1x2xf32>,
    %16 = vector.extract_strided_slice %6 {offsets = [0, 6], sizes = [64, 2], strides = [1, 1]} : vector<64x8xf32> to vector<64x2xf32>
    %17 = vector.shape_cast %16 : vector<64x2xf32> to vector<8x1x8x1x2xf32>
    %c1_20 = arith.constant 1 : index
    %c0_21 = arith.constant 0 : index
    %c1_22 = arith.constant 1 : index
    %c0_23 = arith.constant 0 : index
    %c0_24 = arith.constant 0 : index
    %18 = vector.load %arg12[%c1_20, %c0_21, %c1_22, %c0_23, %c0_24] : memref<9x2x9x2x2xf32, #tpu.memory_space<vmem>>, vector<8x1x8x1x2xf32>
    tpu.vector_store %arg12[%c1_20, %c0_21, %c1_22, %c0_23, %c0_24], %17 {strides = array<i32>} : memref<9x2x9x2x2xf32, #tpu.memory_space<vmem>>, vector<8x1x8x1x2xf32>,
    %cst_25 = arith.constant 0.000000e+00 : f32
    %19 = vector.broadcast %cst_25 : f32 to vector<1x1x9x2x2xf32>
    %c0_26 = arith.constant 0 : index
    %c0_27 = arith.constant 0 : index
    %c0_28 = arith.constant 0 : index
    %c0_29 = arith.constant 0 : index
    %c0_30 = arith.constant 0 : index
    %20 = vector.load %arg12[%c0_26, %c0_27, %c0_28, %c0_29, %c0_30] : memref<9x2x9x2x2xf32, #tpu.memory_space<vmem>>, vector<1x1x9x2x2xf32>
    tpu.vector_store %arg12[%c0_26, %c0_27, %c0_28, %c0_29, %c0_30], %19 {strides = array<i32>} : memref<9x2x9x2x2xf32, #tpu.memory_space<vmem>>, vector<1x1x9x2x2xf32>,
    %cst_31 = arith.constant 0.000000e+00 : f32
    %21 = vector.broadcast %cst_31 : f32 to vector<1x1x9x2x2xf32>
    %c8 = arith.constant 8 : index
    %c1_32 = arith.constant 1 : index
    %c0_33 = arith.constant 0 : index
    %c0_34 = arith.constant 0 : index
    %c0_35 = arith.constant 0 : index
    %22 = vector.load %arg12[%c8, %c1_32, %c0_33, %c0_34, %c0_35] : memref<9x2x9x2x2xf32, #tpu.memory_space<vmem>>, vector<1x1x9x2x2xf32>
    tpu.vector_store %arg12[%c8, %c1_32, %c0_33, %c0_34, %c0_35], %21 {strides = array<i32>} : memref<9x2x9x2x2xf32, #tpu.memory_space<vmem>>, vector<1x1x9x2x2xf32>,
    %cst_36 = arith.constant 0.000000e+00 : f32
    %23 = vector.broadcast %cst_36 : f32 to vector<9x2x1x1x2xf32>
    %c0_37 = arith.constant 0 : index
    %c0_38 = arith.constant 0 : index
    %c0_39 = arith.constant 0 : index
    %c0_40 = arith.constant 0 : index
    %c0_41 = arith.constant 0 : index
    %24 = vector.load %arg12[%c0_37, %c0_38, %c0_39, %c0_40, %c0_41] : memref<9x2x9x2x2xf32, #tpu.memory_space<vmem>>, vector<9x2x1x1x2xf32>
    tpu.vector_store %arg12[%c0_37, %c0_38, %c0_39, %c0_40, %c0_41], %23 {strides = array<i32>} : memref<9x2x9x2x2xf32, #tpu.memory_space<vmem>>, vector<9x2x1x1x2xf32>,
    %cst_42 = arith.constant 0.000000e+00 : f32
    %25 = vector.broadcast %cst_42 : f32 to vector<9x2x1x1x2xf32>
    %c0_43 = arith.constant 0 : index
    %c0_44 = arith.constant 0 : index
    %c8_45 = arith.constant 8 : index
    %c1_46 = arith.constant 1 : index
    %c0_47 = arith.constant 0 : index
    %26 = vector.load %arg12[%c0_43, %c0_44, %c8_45, %c1_46, %c0_47] : memref<9x2x9x2x2xf32, #tpu.memory_space<vmem>>, vector<9x2x1x1x2xf32>
    tpu.vector_store %arg12[%c0_43, %c0_44, %c8_45, %c1_46, %c0_47], %25 {strides = array<i32>} : memref<9x2x9x2x2xf32, #tpu.memory_space<vmem>>, vector<9x2x1x1x2xf32>,
    %c0_48 = arith.constant 0 : index
    %c0_49 = arith.constant 0 : index
    %c0_50 = arith.constant 0 : index
    %27 = vector.load %arg2[%c0_48, %c0_49, %c0_50] : memref<1x256x2xf32, #tpu.memory_space<vmem>>, vector<1x256x2xf32>
    %28 = vector.shape_cast %27 : vector<1x256x2xf32> to vector<256x2xf32>
    %29 = vector.shape_cast %28 : vector<256x2xf32> to vector<16x16x2xf32>
    %c1_51 = arith.constant 1 : index
    %c1_52 = arith.constant 1 : index
    %c0_53 = arith.constant 0 : index
    %30 = vector.load %arg13[%c1_51, %c1_52, %c0_53] : memref<18x18x2xf32, #tpu.memory_space<vmem>>, vector<16x16x2xf32>
    tpu.vector_store %arg13[%c1_51, %c1_52, %c0_53], %29 {strides = array<i32>} : memref<18x18x2xf32, #tpu.memory_space<vmem>>, vector<16x16x2xf32>,
    %cst_54 = arith.constant 0.000000e+00 : f32
    %31 = vector.broadcast %cst_54 : f32 to vector<1x18x2xf32>
    %c0_55 = arith.constant 0 : index
    %c0_56 = arith.constant 0 : index
    %c0_57 = arith.constant 0 : index
    %32 = vector.load %arg13[%c0_55, %c0_56, %c0_57] : memref<18x18x2xf32, #tpu.memory_space<vmem>>, vector<1x18x2xf32>
    tpu.vector_store %arg13[%c0_55, %c0_56, %c0_57], %31 {strides = array<i32>} : memref<18x18x2xf32, #tpu.memory_space<vmem>>, vector<1x18x2xf32>,
    %cst_58 = arith.constant 0.000000e+00 : f32
    %33 = vector.broadcast %cst_58 : f32 to vector<1x18x2xf32>
    %c17 = arith.constant 17 : index
    %c0_59 = arith.constant 0 : index
    %c0_60 = arith.constant 0 : index
    %34 = vector.load %arg13[%c17, %c0_59, %c0_60] : memref<18x18x2xf32, #tpu.memory_space<vmem>>, vector<1x18x2xf32>
    tpu.vector_store %arg13[%c17, %c0_59, %c0_60], %33 {strides = array<i32>} : memref<18x18x2xf32, #tpu.memory_space<vmem>>, vector<1x18x2xf32>,
    %cst_61 = arith.constant 0.000000e+00 : f32
    %35 = vector.broadcast %cst_61 : f32 to vector<18x1x2xf32>
    %c0_62 = arith.constant 0 : index
    %c0_63 = arith.constant 0 : index
    %c0_64 = arith.constant 0 : index
    %36 = vector.load %arg13[%c0_62, %c0_63, %c0_64] : memref<18x18x2xf32, #tpu.memory_space<vmem>>, vector<18x1x2xf32>
    tpu.vector_store %arg13[%c0_62, %c0_63, %c0_64], %35 {strides = array<i32>} : memref<18x18x2xf32, #tpu.memory_space<vmem>>, vector<18x1x2xf32>,
    %cst_65 = arith.constant 0.000000e+00 : f32
    %37 = vector.broadcast %cst_65 : f32 to vector<18x1x2xf32>
    %c0_66 = arith.constant 0 : index
    %c17_67 = arith.constant 17 : index
    %c0_68 = arith.constant 0 : index
    %38 = vector.load %arg13[%c0_66, %c17_67, %c0_68] : memref<18x18x2xf32, #tpu.memory_space<vmem>>, vector<18x1x2xf32>
    tpu.vector_store %arg13[%c0_66, %c17_67, %c0_68], %37 {strides = array<i32>} : memref<18x18x2xf32, #tpu.memory_space<vmem>>, vector<18x1x2xf32>,
    %c0_69 = arith.constant 0 : index
    %c0_70 = arith.constant 0 : index
    %c0_71 = arith.constant 0 : index
    %c0_72 = arith.constant 0 : index
    %c0_73 = arith.constant 0 : index
    %39 = vector.load %arg12[%c0_69, %c0_70, %c0_71, %c0_72, %c0_73] : memref<9x2x9x2x2xf32, #tpu.memory_space<vmem>>, vector<9x2x9x2x2xf32>
    %40 = vector.shape_cast %39 : vector<9x2x9x2x2xf32> to vector<18x18x2xf32>
    %c0_74 = arith.constant 0 : index
    %c0_75 = arith.constant 0 : index
    %c0_76 = arith.constant 0 : index
    %41 = vector.load %arg13[%c0_74, %c0_75, %c0_76] : memref<18x18x2xf32, #tpu.memory_space<vmem>>, vector<18x18x2xf32>
    %42 = vector.extract_strided_slice %40 {offsets = [0, 0, 0], sizes = [16, 16, 2], strides = [1, 1, 1]} : vector<18x18x2xf32> to vector<16x16x2xf32>
    %43 = vector.shape_cast %42 : vector<16x16x2xf32> to vector<256x2xf32>
    %c0_77 = arith.constant 0 : index
    %c0_78 = arith.constant 0 : index
    %44 = vector.load %arg15[%c0_77, %c0_78] : memref<256x36xf32, #tpu.memory_space<vmem>>, vector<256x2xf32>
    tpu.vector_store %arg15[%c0_77, %c0_78], %43 {strides = array<i32>} : memref<256x36xf32, #tpu.memory_space<vmem>>, vector<256x2xf32>,
    %45 = vector.extract_strided_slice %41 {offsets = [0, 0, 0], sizes = [16, 16, 2], strides = [1, 1, 1]} : vector<18x18x2xf32> to vector<16x16x2xf32>
    %46 = vector.shape_cast %45 : vector<16x16x2xf32> to vector<256x2xf32>
    %c0_79 = arith.constant 0 : index
    %c18 = arith.constant 18 : index
    %47 = vector.load %arg15[%c0_79, %c18] : memref<256x36xf32, #tpu.memory_space<vmem>>, vector<256x2xf32>
    tpu.vector_store %arg15[%c0_79, %c18], %46 {strides = array<i32>} : memref<256x36xf32, #tpu.memory_space<vmem>>, vector<256x2xf32>,
    %48 = vector.extract_strided_slice %40 {offsets = [0, 1, 0], sizes = [16, 16, 2], strides = [1, 1, 1]} : vector<18x18x2xf32> to vector<16x16x2xf32>
    %49 = vector.shape_cast %48 : vector<16x16x2xf32> to vector<256x2xf32>
    %c0_80 = arith.constant 0 : index
    %c2 = arith.constant 2 : index
    %50 = vector.load %arg15[%c0_80, %c2] : memref<256x36xf32, #tpu.memory_space<vmem>>, vector<256x2xf32>
    tpu.vector_store %arg15[%c0_80, %c2], %49 {strides = array<i32>} : memref<256x36xf32, #tpu.memory_space<vmem>>, vector<256x2xf32>,
    %51 = vector.extract_strided_slice %41 {offsets = [0, 1, 0], sizes = [16, 16, 2], strides = [1, 1, 1]} : vector<18x18x2xf32> to vector<16x16x2xf32>
    %52 = vector.shape_cast %51 : vector<16x16x2xf32> to vector<256x2xf32>
    %c0_81 = arith.constant 0 : index
    %c20 = arith.constant 20 : index
    %53 = vector.load %arg15[%c0_81, %c20] : memref<256x36xf32, #tpu.memory_space<vmem>>, vector<256x2xf32>
    tpu.vector_store %arg15[%c0_81, %c20], %52 {strides = array<i32>} : memref<256x36xf32, #tpu.memory_space<vmem>>, vector<256x2xf32>,
    %54 = vector.extract_strided_slice %40 {offsets = [0, 2, 0], sizes = [16, 16, 2], strides = [1, 1, 1]} : vector<18x18x2xf32> to vector<16x16x2xf32>
    %55 = vector.shape_cast %54 : vector<16x16x2xf32> to vector<256x2xf32>
    %c0_82 = arith.constant 0 : index
    %c4 = arith.constant 4 : index
    %56 = vector.load %arg15[%c0_82, %c4] : memref<256x36xf32, #tpu.memory_space<vmem>>, vector<256x2xf32>
    tpu.vector_store %arg15[%c0_82, %c4], %55 {strides = array<i32>} : memref<256x36xf32, #tpu.memory_space<vmem>>, vector<256x2xf32>,
    %57 = vector.extract_strided_slice %41 {offsets = [0, 2, 0], sizes = [16, 16, 2], strides = [1, 1, 1]} : vector<18x18x2xf32> to vector<16x16x2xf32>
    %58 = vector.shape_cast %57 : vector<16x16x2xf32> to vector<256x2xf32>
    %c0_83 = arith.constant 0 : index
    %c22 = arith.constant 22 : index
    %59 = vector.load %arg15[%c0_83, %c22] : memref<256x36xf32, #tpu.memory_space<vmem>>, vector<256x2xf32>
    tpu.vector_store %arg15[%c0_83, %c22], %58 {strides = array<i32>} : memref<256x36xf32, #tpu.memory_space<vmem>>, vector<256x2xf32>,
    %60 = vector.extract_strided_slice %40 {offsets = [1, 0, 0], sizes = [16, 16, 2], strides = [1, 1, 1]} : vector<18x18x2xf32> to vector<16x16x2xf32>
    %61 = vector.shape_cast %60 : vector<16x16x2xf32> to vector<256x2xf32>
    %c0_84 = arith.constant 0 : index
    %c6 = arith.constant 6 : index
    %62 = vector.load %arg15[%c0_84, %c6] : memref<256x36xf32, #tpu.memory_space<vmem>>, vector<256x2xf32>
    tpu.vector_store %arg15[%c0_84, %c6], %61 {strides = array<i32>} : memref<256x36xf32, #tpu.memory_space<vmem>>, vector<256x2xf32>,
    %63 = vector.extract_strided_slice %41 {offsets = [1, 0, 0], sizes = [16, 16, 2], strides = [1, 1, 1]} : vector<18x18x2xf32> to vector<16x16x2xf32>
    %64 = vector.shape_cast %63 : vector<16x16x2xf32> to vector<256x2xf32>
    %c0_85 = arith.constant 0 : index
    %c24 = arith.constant 24 : index
    %65 = vector.load %arg15[%c0_85, %c24] : memref<256x36xf32, #tpu.memory_space<vmem>>, vector<256x2xf32>
    tpu.vector_store %arg15[%c0_85, %c24], %64 {strides = array<i32>} : memref<256x36xf32, #tpu.memory_space<vmem>>, vector<256x2xf32>,
    %66 = vector.extract_strided_slice %40 {offsets = [1, 1, 0], sizes = [16, 16, 2], strides = [1, 1, 1]} : vector<18x18x2xf32> to vector<16x16x2xf32>
    %67 = vector.shape_cast %66 : vector<16x16x2xf32> to vector<256x2xf32>
    %c0_86 = arith.constant 0 : index
    %c8_87 = arith.constant 8 : index
    %68 = vector.load %arg15[%c0_86, %c8_87] : memref<256x36xf32, #tpu.memory_space<vmem>>, vector<256x2xf32>
    tpu.vector_store %arg15[%c0_86, %c8_87], %67 {strides = array<i32>} : memref<256x36xf32, #tpu.memory_space<vmem>>, vector<256x2xf32>,
    %69 = vector.extract_strided_slice %41 {offsets = [1, 1, 0], sizes = [16, 16, 2], strides = [1, 1, 1]} : vector<18x18x2xf32> to vector<16x16x2xf32>
    %70 = vector.shape_cast %69 : vector<16x16x2xf32> to vector<256x2xf32>
    %c0_88 = arith.constant 0 : index
    %c26 = arith.constant 26 : index
    %71 = vector.load %arg15[%c0_88, %c26] : memref<256x36xf32, #tpu.memory_space<vmem>>, vector<256x2xf32>
    tpu.vector_store %arg15[%c0_88, %c26], %70 {strides = array<i32>} : memref<256x36xf32, #tpu.memory_space<vmem>>, vector<256x2xf32>,
    %72 = vector.extract_strided_slice %40 {offsets = [1, 2, 0], sizes = [16, 16, 2], strides = [1, 1, 1]} : vector<18x18x2xf32> to vector<16x16x2xf32>
    %73 = vector.shape_cast %72 : vector<16x16x2xf32> to vector<256x2xf32>
    %c0_89 = arith.constant 0 : index
    %c10 = arith.constant 10 : index
    %74 = vector.load %arg15[%c0_89, %c10] : memref<256x36xf32, #tpu.memory_space<vmem>>, vector<256x2xf32>
    tpu.vector_store %arg15[%c0_89, %c10], %73 {strides = array<i32>} : memref<256x36xf32, #tpu.memory_space<vmem>>, vector<256x2xf32>,
    %75 = vector.extract_strided_slice %41 {offsets = [1, 2, 0], sizes = [16, 16, 2], strides = [1, 1, 1]} : vector<18x18x2xf32> to vector<16x16x2xf32>
    %76 = vector.shape_cast %75 : vector<16x16x2xf32> to vector<256x2xf32>
    %c0_90 = arith.constant 0 : index
    %c28 = arith.constant 28 : index
    %77 = vector.load %arg15[%c0_90, %c28] : memref<256x36xf32, #tpu.memory_space<vmem>>, vector<256x2xf32>
    tpu.vector_store %arg15[%c0_90, %c28], %76 {strides = array<i32>} : memref<256x36xf32, #tpu.memory_space<vmem>>, vector<256x2xf32>,
    %78 = vector.extract_strided_slice %40 {offsets = [2, 0, 0], sizes = [16, 16, 2], strides = [1, 1, 1]} : vector<18x18x2xf32> to vector<16x16x2xf32>
    %79 = vector.shape_cast %78 : vector<16x16x2xf32> to vector<256x2xf32>
    %c0_91 = arith.constant 0 : index
    %c12 = arith.constant 12 : index
    %80 = vector.load %arg15[%c0_91, %c12] : memref<256x36xf32, #tpu.memory_space<vmem>>, vector<256x2xf32>
    tpu.vector_store %arg15[%c0_91, %c12], %79 {strides = array<i32>} : memref<256x36xf32, #tpu.memory_space<vmem>>, vector<256x2xf32>,
    %81 = vector.extract_strided_slice %41 {offsets = [2, 0, 0], sizes = [16, 16, 2], strides = [1, 1, 1]} : vector<18x18x2xf32> to vector<16x16x2xf32>
    %82 = vector.shape_cast %81 : vector<16x16x2xf32> to vector<256x2xf32>
    %c0_92 = arith.constant 0 : index
    %c30 = arith.constant 30 : index
    %83 = vector.load %arg15[%c0_92, %c30] : memref<256x36xf32, #tpu.memory_space<vmem>>, vector<256x2xf32>
    tpu.vector_store %arg15[%c0_92, %c30], %82 {strides = array<i32>} : memref<256x36xf32, #tpu.memory_space<vmem>>, vector<256x2xf32>,
    %84 = vector.extract_strided_slice %40 {offsets = [2, 1, 0], sizes = [16, 16, 2], strides = [1, 1, 1]} : vector<18x18x2xf32> to vector<16x16x2xf32>
    %85 = vector.shape_cast %84 : vector<16x16x2xf32> to vector<256x2xf32>
    %c0_93 = arith.constant 0 : index
    %c14 = arith.constant 14 : index
    %86 = vector.load %arg15[%c0_93, %c14] : memref<256x36xf32, #tpu.memory_space<vmem>>, vector<256x2xf32>
    tpu.vector_store %arg15[%c0_93, %c14], %85 {strides = array<i32>} : memref<256x36xf32, #tpu.memory_space<vmem>>, vector<256x2xf32>,
    %87 = vector.extract_strided_slice %41 {offsets = [2, 1, 0], sizes = [16, 16, 2], strides = [1, 1, 1]} : vector<18x18x2xf32> to vector<16x16x2xf32>
    %88 = vector.shape_cast %87 : vector<16x16x2xf32> to vector<256x2xf32>
    %c0_94 = arith.constant 0 : index
    %c32 = arith.constant 32 : index
    %89 = vector.load %arg15[%c0_94, %c32] : memref<256x36xf32, #tpu.memory_space<vmem>>, vector<256x2xf32>
    tpu.vector_store %arg15[%c0_94, %c32], %88 {strides = array<i32>} : memref<256x36xf32, #tpu.memory_space<vmem>>, vector<256x2xf32>,
    %90 = vector.extract_strided_slice %40 {offsets = [2, 2, 0], sizes = [16, 16, 2], strides = [1, 1, 1]} : vector<18x18x2xf32> to vector<16x16x2xf32>
    %91 = vector.shape_cast %90 : vector<16x16x2xf32> to vector<256x2xf32>
    %c0_95 = arith.constant 0 : index
    %c16 = arith.constant 16 : index
    %92 = vector.load %arg15[%c0_95, %c16] : memref<256x36xf32, #tpu.memory_space<vmem>>, vector<256x2xf32>
    tpu.vector_store %arg15[%c0_95, %c16], %91 {strides = array<i32>} : memref<256x36xf32, #tpu.memory_space<vmem>>, vector<256x2xf32>,
    %93 = vector.extract_strided_slice %41 {offsets = [2, 2, 0], sizes = [16, 16, 2], strides = [1, 1, 1]} : vector<18x18x2xf32> to vector<16x16x2xf32>
    %94 = vector.shape_cast %93 : vector<16x16x2xf32> to vector<256x2xf32>
    %c0_96 = arith.constant 0 : index
    %c34 = arith.constant 34 : index
    %95 = vector.load %arg15[%c0_96, %c34] : memref<256x36xf32, #tpu.memory_space<vmem>>, vector<256x2xf32>
    tpu.vector_store %arg15[%c0_96, %c34], %94 {strides = array<i32>} : memref<256x36xf32, #tpu.memory_space<vmem>>, vector<256x2xf32>,
    %c0_97 = arith.constant 0 : index
    %c0_98 = arith.constant 0 : index
    %96 = vector.load %arg15[%c0_97, %c0_98] : memref<256x36xf32, #tpu.memory_space<vmem>>, vector<256x36xf32>
    %c0_99 = arith.constant 0 : index
    %c0_100 = arith.constant 0 : index
    %97 = vector.load %arg5[%c0_99, %c0_100] : memref<36x4xf32, #tpu.memory_space<vmem>>, vector<36x4xf32>
    %cst_101 = arith.constant dense<0.000000e+00> : vector<256x4xf32>
    %98 = tpu.matmul %96, %97, %cst_101 {dimension_numbers = #tpu.dot_dimension_numbers<[1], [0], [0], [1], [0, 0, 1, 1], [], []>} : vector<256x36xf32>, vector<36x4xf32>, vector<256x4xf32> -> vector<256x4xf32>
    %c0_102 = arith.constant 0 : index
    %c0_103 = arith.constant 0 : index
    %99 = vector.load %arg6[%c0_102, %c0_103] : memref<1x4xf32, #tpu.memory_space<vmem>>, vector<1x4xf32>
    %100 = vector.broadcast %99 : vector<1x4xf32> to vector<256x4xf32>
    %101 = arith.addf %98, %100 : vector<256x4xf32>
    %cst_104 = arith.constant 0.000000e+00 : f32
    %102 = vector.broadcast %cst_104 : f32 to vector<256x4xf32>
    %103 = arith.maximumf %101, %102 : vector<256x4xf32>
    %c0_105 = arith.constant 0 : index
    %c0_106 = arith.constant 0 : index
    %104 = vector.load %arg9[%c0_105, %c0_106] : memref<4x4xf32, #tpu.memory_space<vmem>>, vector<4x4xf32>
    %105 = vector.extract_strided_slice %40 {offsets = [1, 1, 0], sizes = [16, 16, 2], strides = [1, 1, 1]} : vector<18x18x2xf32> to vector<16x16x2xf32>
    %106 = vector.shape_cast %105 : vector<16x16x2xf32> to vector<256x2xf32>
    %107 = vector.extract_strided_slice %104 {offsets = [0, 0], sizes = [2, 4], strides = [1, 1]} : vector<4x4xf32> to vector<2x4xf32>
    %cst_107 = arith.constant dense<0.000000e+00> : vector<256x4xf32>
    %108 = tpu.matmul %106, %107, %cst_107 {dimension_numbers = #tpu.dot_dimension_numbers<[1], [0], [0], [1], [0, 0, 1, 1], [], []>} : vector<256x2xf32>, vector<2x4xf32>, vector<256x4xf32> -> vector<256x4xf32>
    %109 = vector.extract_strided_slice %41 {offsets = [1, 1, 0], sizes = [16, 16, 2], strides = [1, 1, 1]} : vector<18x18x2xf32> to vector<16x16x2xf32>
    %110 = vector.shape_cast %109 : vector<16x16x2xf32> to vector<256x2xf32>
    %111 = vector.extract_strided_slice %104 {offsets = [2, 0], sizes = [2, 4], strides = [1, 1]} : vector<4x4xf32> to vector<2x4xf32>
    %cst_108 = arith.constant dense<0.000000e+00> : vector<256x4xf32>
    %112 = tpu.matmul %110, %111, %cst_108 {dimension_numbers = #tpu.dot_dimension_numbers<[1], [0], [0], [1], [0, 0, 1, 1], [], []>} : vector<256x2xf32>, vector<2x4xf32>, vector<256x4xf32> -> vector<256x4xf32>
    %113 = arith.addf %108, %112 : vector<256x4xf32>
    %c0_109 = arith.constant 0 : index
    %c0_110 = arith.constant 0 : index
    %114 = vector.load %arg10[%c0_109, %c0_110] : memref<1x4xf32, #tpu.memory_space<vmem>>, vector<1x4xf32>
    %115 = vector.broadcast %114 : vector<1x4xf32> to vector<256x4xf32>
    %116 = arith.addf %113, %115 : vector<256x4xf32>
    %117 = vector.shape_cast %103 : vector<256x4xf32> to vector<16x16x4xf32>
    %c1_111 = arith.constant 1 : index
    %c1_112 = arith.constant 1 : index
    %c0_113 = arith.constant 0 : index
    %118 = vector.load %arg14[%c1_111, %c1_112, %c0_113] : memref<18x18x4xf32, #tpu.memory_space<vmem>>, vector<16x16x4xf32>
    tpu.vector_store %arg14[%c1_111, %c1_112, %c0_113], %117 {strides = array<i32>} : memref<18x18x4xf32, #tpu.memory_space<vmem>>, vector<16x16x4xf32>,
    %cst_114 = arith.constant 0.000000e+00 : f32
    %119 = vector.broadcast %cst_114 : f32 to vector<1x18x4xf32>
    %c0_115 = arith.constant 0 : index
    %c0_116 = arith.constant 0 : index
    %c0_117 = arith.constant 0 : index
    %120 = vector.load %arg14[%c0_115, %c0_116, %c0_117] : memref<18x18x4xf32, #tpu.memory_space<vmem>>, vector<1x18x4xf32>
    tpu.vector_store %arg14[%c0_115, %c0_116, %c0_117], %119 {strides = array<i32>} : memref<18x18x4xf32, #tpu.memory_space<vmem>>, vector<1x18x4xf32>,
    %cst_118 = arith.constant 0.000000e+00 : f32
    %121 = vector.broadcast %cst_118 : f32 to vector<1x18x4xf32>
    %c17_119 = arith.constant 17 : index
    %c0_120 = arith.constant 0 : index
    %c0_121 = arith.constant 0 : index
    %122 = vector.load %arg14[%c17_119, %c0_120, %c0_121] : memref<18x18x4xf32, #tpu.memory_space<vmem>>, vector<1x18x4xf32>
    tpu.vector_store %arg14[%c17_119, %c0_120, %c0_121], %121 {strides = array<i32>} : memref<18x18x4xf32, #tpu.memory_space<vmem>>, vector<1x18x4xf32>,
    %cst_122 = arith.constant 0.000000e+00 : f32
    %123 = vector.broadcast %cst_122 : f32 to vector<18x1x4xf32>
    %c0_123 = arith.constant 0 : index
    %c0_124 = arith.constant 0 : index
    %c0_125 = arith.constant 0 : index
    %124 = vector.load %arg14[%c0_123, %c0_124, %c0_125] : memref<18x18x4xf32, #tpu.memory_space<vmem>>, vector<18x1x4xf32>
    tpu.vector_store %arg14[%c0_123, %c0_124, %c0_125], %123 {strides = array<i32>} : memref<18x18x4xf32, #tpu.memory_space<vmem>>, vector<18x1x4xf32>,
    %cst_126 = arith.constant 0.000000e+00 : f32
    %125 = vector.broadcast %cst_126 : f32 to vector<18x1x4xf32>
    %c0_127 = arith.constant 0 : index
    %c17_128 = arith.constant 17 : index
    %c0_129 = arith.constant 0 : index
    %126 = vector.load %arg14[%c0_127, %c17_128, %c0_129] : memref<18x18x4xf32, #tpu.memory_space<vmem>>, vector<18x1x4xf32>
    tpu.vector_store %arg14[%c0_127, %c17_128, %c0_129], %125 {strides = array<i32>} : memref<18x18x4xf32, #tpu.memory_space<vmem>>, vector<18x1x4xf32>,
    %c0_130 = arith.constant 0 : index
    %c0_131 = arith.constant 0 : index
    %c0_132 = arith.constant 0 : index
    %127 = vector.load %arg14[%c0_130, %c0_131, %c0_132] : memref<18x18x4xf32, #tpu.memory_space<vmem>>, vector<18x18x4xf32>
    %128 = vector.extract_strided_slice %127 {offsets = [0, 0, 0], sizes = [16, 16, 4], strides = [1, 1, 1]} : vector<18x18x4xf32> to vector<16x16x4xf32>
    %129 = vector.shape_cast %128 : vector<16x16x4xf32> to vector<256x4xf32>
    %c0_133 = arith.constant 0 : index
    %c0_134 = arith.constant 0 : index
    %130 = vector.load %arg16[%c0_133, %c0_134] : memref<256x36xf32, #tpu.memory_space<vmem>>, vector<256x4xf32>
    tpu.vector_store %arg16[%c0_133, %c0_134], %129 {strides = array<i32>} : memref<256x36xf32, #tpu.memory_space<vmem>>, vector<256x4xf32>,
    %131 = vector.extract_strided_slice %127 {offsets = [0, 1, 0], sizes = [16, 16, 4], strides = [1, 1, 1]} : vector<18x18x4xf32> to vector<16x16x4xf32>
    %132 = vector.shape_cast %131 : vector<16x16x4xf32> to vector<256x4xf32>
    %c0_135 = arith.constant 0 : index
    %c4_136 = arith.constant 4 : index
    %133 = vector.load %arg16[%c0_135, %c4_136] : memref<256x36xf32, #tpu.memory_space<vmem>>, vector<256x4xf32>
    tpu.vector_store %arg16[%c0_135, %c4_136], %132 {strides = array<i32>} : memref<256x36xf32, #tpu.memory_space<vmem>>, vector<256x4xf32>,
    %134 = vector.extract_strided_slice %127 {offsets = [0, 2, 0], sizes = [16, 16, 4], strides = [1, 1, 1]} : vector<18x18x4xf32> to vector<16x16x4xf32>
    %135 = vector.shape_cast %134 : vector<16x16x4xf32> to vector<256x4xf32>
    %c0_137 = arith.constant 0 : index
    %c8_138 = arith.constant 8 : index
    %136 = vector.load %arg16[%c0_137, %c8_138] : memref<256x36xf32, #tpu.memory_space<vmem>>, vector<256x4xf32>
    tpu.vector_store %arg16[%c0_137, %c8_138], %135 {strides = array<i32>} : memref<256x36xf32, #tpu.memory_space<vmem>>, vector<256x4xf32>,
    %137 = vector.extract_strided_slice %127 {offsets = [1, 0, 0], sizes = [16, 16, 4], strides = [1, 1, 1]} : vector<18x18x4xf32> to vector<16x16x4xf32>
    %138 = vector.shape_cast %137 : vector<16x16x4xf32> to vector<256x4xf32>
    %c0_139 = arith.constant 0 : index
    %c12_140 = arith.constant 12 : index
    %139 = vector.load %arg16[%c0_139, %c12_140] : memref<256x36xf32, #tpu.memory_space<vmem>>, vector<256x4xf32>
    tpu.vector_store %arg16[%c0_139, %c12_140], %138 {strides = array<i32>} : memref<256x36xf32, #tpu.memory_space<vmem>>, vector<256x4xf32>,
    %140 = vector.extract_strided_slice %127 {offsets = [1, 1, 0], sizes = [16, 16, 4], strides = [1, 1, 1]} : vector<18x18x4xf32> to vector<16x16x4xf32>
    %141 = vector.shape_cast %140 : vector<16x16x4xf32> to vector<256x4xf32>
    %c0_141 = arith.constant 0 : index
    %c16_142 = arith.constant 16 : index
    %142 = vector.load %arg16[%c0_141, %c16_142] : memref<256x36xf32, #tpu.memory_space<vmem>>, vector<256x4xf32>
    tpu.vector_store %arg16[%c0_141, %c16_142], %141 {strides = array<i32>} : memref<256x36xf32, #tpu.memory_space<vmem>>, vector<256x4xf32>,
    %143 = vector.extract_strided_slice %127 {offsets = [1, 2, 0], sizes = [16, 16, 4], strides = [1, 1, 1]} : vector<18x18x4xf32> to vector<16x16x4xf32>
    %144 = vector.shape_cast %143 : vector<16x16x4xf32> to vector<256x4xf32>
    %c0_143 = arith.constant 0 : index
    %c20_144 = arith.constant 20 : index
    %145 = vector.load %arg16[%c0_143, %c20_144] : memref<256x36xf32, #tpu.memory_space<vmem>>, vector<256x4xf32>
    tpu.vector_store %arg16[%c0_143, %c20_144], %144 {strides = array<i32>} : memref<256x36xf32, #tpu.memory_space<vmem>>, vector<256x4xf32>,
    %146 = vector.extract_strided_slice %127 {offsets = [2, 0, 0], sizes = [16, 16, 4], strides = [1, 1, 1]} : vector<18x18x4xf32> to vector<16x16x4xf32>
    %147 = vector.shape_cast %146 : vector<16x16x4xf32> to vector<256x4xf32>
    %c0_145 = arith.constant 0 : index
    %c24_146 = arith.constant 24 : index
    %148 = vector.load %arg16[%c0_145, %c24_146] : memref<256x36xf32, #tpu.memory_space<vmem>>, vector<256x4xf32>
    tpu.vector_store %arg16[%c0_145, %c24_146], %147 {strides = array<i32>} : memref<256x36xf32, #tpu.memory_space<vmem>>, vector<256x4xf32>,
    %149 = vector.extract_strided_slice %127 {offsets = [2, 1, 0], sizes = [16, 16, 4], strides = [1, 1, 1]} : vector<18x18x4xf32> to vector<16x16x4xf32>
    %150 = vector.shape_cast %149 : vector<16x16x4xf32> to vector<256x4xf32>
    %c0_147 = arith.constant 0 : index
    %c28_148 = arith.constant 28 : index
    %151 = vector.load %arg16[%c0_147, %c28_148] : memref<256x36xf32, #tpu.memory_space<vmem>>, vector<256x4xf32>
    tpu.vector_store %arg16[%c0_147, %c28_148], %150 {strides = array<i32>} : memref<256x36xf32, #tpu.memory_space<vmem>>, vector<256x4xf32>,
    %152 = vector.extract_strided_slice %127 {offsets = [2, 2, 0], sizes = [16, 16, 4], strides = [1, 1, 1]} : vector<18x18x4xf32> to vector<16x16x4xf32>
    %153 = vector.shape_cast %152 : vector<16x16x4xf32> to vector<256x4xf32>
    %c0_149 = arith.constant 0 : index
    %c32_150 = arith.constant 32 : index
    %154 = vector.load %arg16[%c0_149, %c32_150] : memref<256x36xf32, #tpu.memory_space<vmem>>, vector<256x4xf32>
    tpu.vector_store %arg16[%c0_149, %c32_150], %153 {strides = array<i32>} : memref<256x36xf32, #tpu.memory_space<vmem>>, vector<256x4xf32>,
    %c0_151 = arith.constant 0 : index
    %c0_152 = arith.constant 0 : index
    %155 = vector.load %arg16[%c0_151, %c0_152] : memref<256x36xf32, #tpu.memory_space<vmem>>, vector<256x36xf32>
    %c0_153 = arith.constant 0 : index
    %c0_154 = arith.constant 0 : index
    %156 = vector.load %arg7[%c0_153, %c0_154] : memref<36x4xf32, #tpu.memory_space<vmem>>, vector<36x4xf32>
    %cst_155 = arith.constant dense<0.000000e+00> : vector<256x4xf32>
    %157 = tpu.matmul %155, %156, %cst_155 {dimension_numbers = #tpu.dot_dimension_numbers<[1], [0], [0], [1], [0, 0, 1, 1], [], []>} : vector<256x36xf32>, vector<36x4xf32>, vector<256x4xf32> -> vector<256x4xf32>
    %c0_156 = arith.constant 0 : index
    %c0_157 = arith.constant 0 : index
    %158 = vector.load %arg8[%c0_156, %c0_157] : memref<1x4xf32, #tpu.memory_space<vmem>>, vector<1x4xf32>
    %159 = vector.broadcast %158 : vector<1x4xf32> to vector<256x4xf32>
    %160 = arith.addf %157, %159 : vector<256x4xf32>
    %161 = arith.addf %160, %116 : vector<256x4xf32>
    %cst_158 = arith.constant 0.000000e+00 : f32
    %162 = vector.broadcast %cst_158 : f32 to vector<256x4xf32>
    %163 = arith.maximumf %161, %162 : vector<256x4xf32>
    %164 = tpu.transpose %163, [1, 0] : vector<256x4xf32> -> vector<4x256xf32>
    %c0_159 = arith.constant 0 : index
    %c0_160 = arith.constant 0 : index
    %c0_161 = arith.constant 0 : index
    %165 = vector.load %arg11[%c0_159, %c0_160, %c0_161] : memref<1x4x256xf32, #tpu.memory_space<vmem>>, vector<1x4x256xf32>
    %166 = vector.shape_cast %165 : vector<1x4x256xf32> to vector<4x256xf32>
    %167 = vector.shape_cast %164 : vector<4x256xf32> to vector<1x4x256xf32>
    tpu.vector_store %arg11[%c0_159, %c0_160, %c0_161], %167 {strides = array<i32>} : memref<1x4x256xf32, #tpu.memory_space<vmem>>, vector<1x4x256xf32>,
    return
  }
  func.func @transform_0(%arg0: i32) -> (i32, i32, i32) {
    %c0_i32 = arith.constant 0 : i32
    %c0_i32_0 = arith.constant 0 : i32
    %c0_i32_1 = arith.constant 0 : i32
    return %arg0, %c0_i32, %c0_i32_0 : i32, i32, i32
  }
  func.func @transform_1(%arg0: i32) -> (i32, i32, i32) {
    %c0_i32 = arith.constant 0 : i32
    %c0_i32_0 = arith.constant 0 : i32
    %c0_i32_1 = arith.constant 0 : i32
    return %arg0, %c0_i32, %c0_i32_0 : i32, i32, i32
  }
  func.func @transform_2(%arg0: i32) -> (i32, i32) {
    %c0_i32 = arith.constant 0 : i32
    %c0_i32_0 = arith.constant 0 : i32
    %c0_i32_1 = arith.constant 0 : i32
    return %c0_i32, %c0_i32_0 : i32, i32
  }
  func.func @transform_3(%arg0: i32) -> (i32, i32) {
    %c0_i32 = arith.constant 0 : i32
    %c0_i32_0 = arith.constant 0 : i32
    %c0_i32_1 = arith.constant 0 : i32
    return %c0_i32, %c0_i32_0 : i32, i32
  }
  func.func @transform_4(%arg0: i32) -> (i32, i32) {
    %c0_i32 = arith.constant 0 : i32
    %c0_i32_0 = arith.constant 0 : i32
    %c0_i32_1 = arith.constant 0 : i32
    return %c0_i32, %c0_i32_0 : i32, i32
  }
  func.func @transform_5(%arg0: i32) -> (i32, i32) {
    %c0_i32 = arith.constant 0 : i32
    %c0_i32_0 = arith.constant 0 : i32
    %c0_i32_1 = arith.constant 0 : i32
    return %c0_i32, %c0_i32_0 : i32, i32
  }
  func.func @transform_6(%arg0: i32) -> (i32, i32) {
    %c0_i32 = arith.constant 0 : i32
    %c0_i32_0 = arith.constant 0 : i32
    %c0_i32_1 = arith.constant 0 : i32
    return %c0_i32, %c0_i32_0 : i32, i32
  }
  func.func @transform_7(%arg0: i32) -> (i32, i32) {
    %c0_i32 = arith.constant 0 : i32
    %c0_i32_0 = arith.constant 0 : i32
    %c0_i32_1 = arith.constant 0 : i32
    return %c0_i32, %c0_i32_0 : i32, i32
  }
  func.func @transform_8(%arg0: i32) -> (i32, i32) {
    %c0_i32 = arith.constant 0 : i32
    %c0_i32_0 = arith.constant 0 : i32
    %c0_i32_1 = arith.constant 0 : i32
    return %c0_i32, %c0_i32_0 : i32, i32
  }
  func.func @transform_9(%arg0: i32) -> (i32, i32) {
    %c0_i32 = arith.constant 0 : i32
    %c0_i32_0 = arith.constant 0 : i32
    %c0_i32_1 = arith.constant 0 : i32
    return %c0_i32, %c0_i32_0 : i32, i32
  }
  func.func @transform_10(%arg0: i32) -> (i32, i32, i32) {
    %c0_i32 = arith.constant 0 : i32
    %c0_i32_0 = arith.constant 0 : i32
    %c0_i32_1 = arith.constant 0 : i32
    return %arg0, %c0_i32, %c0_i32_0 : i32, i32, i32
  }
}

</mosaic_0001>

<llo_original>
// kernel: tpu_custom_call.1
$region0: #{tpu_custom_call.1}
  #allocation0 [shape = 'u32[]', space=smem, size = 0x4, offset = 0x4, fixed_abs, tag = 'smem constant byte address 0x4 - core index']
  #allocation1 [shape = 'u32[144,128]{1,0:T(1,128)}', space=vmem, size = 0x12000, scoped, tag = 'internal scratch']
  #allocation2 [shape = 'f32[9,2,9,2,2]{4,3,2,1,0:T(2,128)}', space=vmem, size = 0x28800, scoped, tag = 'scratch operand']
  #allocation3 [shape = 'f32[18,18,2]{2,1,0:T(8,128)}', space=vmem, size = 0x36000, scoped, tag = 'scratch operand']
  #allocation4 [shape = 'f32[18,18,4]{2,1,0:T(8,128)}', space=vmem, size = 0x36000, scoped, tag = 'scratch operand']
  #allocation5 [shape = 'f32[256,36]{1,0:T(8,128)}', space=vmem, size = 0x20000, scoped, tag = 'scratch operand']
  #allocation6 [shape = 'f32[256,36]{1,0:T(8,128)}', space=vmem, size = 0x20000, scoped, tag = 'scratch operand']
  %s0 = inlined_call_operand.vmem [shape: f32[2,64,4], index: 0, kind: input, shape index: {}]
  %s1 = inlined_call_operand.vmem [shape: f32[2,256,2], index: 1, kind: input, shape index: {}]
  %s2 = inlined_call_operand.vmem [shape: f32[4,8], index: 2, kind: input, shape index: {}]
  %s3 = inlined_call_operand.vmem [shape: f32[1,8], index: 3, kind: input, shape index: {}]
  %s4 = inlined_call_operand.vmem [shape: f32[36,4], index: 4, kind: input, shape index: {}]
  %s5 = inlined_call_operand.vmem [shape: f32[1,4], index: 5, kind: input, shape index: {}]
  %s6 = inlined_call_operand.vmem [shape: f32[36,4], index: 6, kind: input, shape index: {}]
  %s7 = inlined_call_operand.vmem [shape: f32[1,4], index: 7, kind: input, shape index: {}]
  %s8 = inlined_call_operand.vmem [shape: f32[4,4], index: 8, kind: input, shape index: {}]
  %s9 = inlined_call_operand.vmem [shape: f32[1,4], index: 9, kind: input, shape index: {}]
  %s10 = inlined_call_operand.hbm [shape: f32[2,4,256], index: 10, kind: output, shape index: {}]
  %s11 = sld [smem:[#allocation0]]
  $region73: #{tpu_custom_call.1} parent=0
    _
  %s13 = ssub.s32 1, %s11
  %s14 = scalar_select 0, %s13, %s11
  $region1: #{tpu_custom_call.1} parent=0
    #allocation7 [shape = 'u8[8192]{0}', space=vmem, size = 0x2000, scoped, tag = 'output window, operand 0']
    #allocation8 [shape = 's32[2]{0}', space=sflag, size = 0x8, scoped, tag = 'scoped memory for tpu_custom_call.1']
    %15 = vsyncpa [#allocation8], 0
    %s16 = scalar_lea.sflag [#allocation8], 1
    %17 = vsyncpa %s16, 0
    loop: start=0, step=1, limit=4
    $region2: #{tpu_custom_call.1} parent=1 // loop_pre_header
      _
    $region3: #{tpu_custom_call.1} parent=1 // loop_header
      %s19 = sphi 0, %s23
      %p20 = scmp.ge.s32.totalorder %s19, 4
      %s29 = sphi 0, %s31
      %s32 = sphi 0, %s29
      %s33 = sphi 0, %s32
      %s49 = sphi 0, %s33
      %s55 = sphi 0, %s57
      %s58 = sphi 0, %s55
      %s59 = sphi 0, %s58
      %s75 = sphi 0, %s59
      %s79 = sphi 0, %s79
      %s81 = sphi 0, %s79
      %s82 = sphi 0, %s81
      %s96 = sphi 0, %s82
      %s100 = sphi 0, %s100
      %s102 = sphi 0, %s100
      %s103 = sphi 0, %s102
      %s117 = sphi 0, %s103
      %s121 = sphi 0, %s121
      %s123 = sphi 0, %s121
      %s124 = sphi 0, %s123
      %s138 = sphi 0, %s124
      %s142 = sphi 0, %s142
      %s144 = sphi 0, %s142
      %s145 = sphi 0, %s144
      %s159 = sphi 0, %s145
      %s163 = sphi 0, %s163
      %s165 = sphi 0, %s163
      %s166 = sphi 0, %s165
      %s180 = sphi 0, %s166
      %s184 = sphi 0, %s184
      %s186 = sphi 0, %s184
      %s187 = sphi 0, %s186
      %s201 = sphi 0, %s187
      %s205 = sphi 0, %s205
      %s207 = sphi 0, %s205
      %s208 = sphi 0, %s207
      %s222 = sphi 0, %s208
      %s226 = sphi 0, %s226
      %s228 = sphi 0, %s226
      %s229 = sphi 0, %s228
      %s243 = sphi 0, %s229
      %s249 = sphi 0, %s251
      %s252 = sphi 0, %s249
      %s253 = sphi 0, %s252
      %s269 = sphi 0, %s253
    $region4: #{tpu_custom_call.1} parent=1 // loop_header_branch
      %22 = sbr.rel (%p20) target = $region8
    $region5: #{tpu_custom_call.1} parent=1 // loop_body
      %s24 = ssub.s32 %s19, 1
      %s25 = ssub.s32 %s19, 2
      %s26 = sadd.s32 %s19, 1
      %s27 = ssub.s32 %s19, %s26
      %p28 = scmp.eq.s32.totalorder %s27, 0
      %s30 = sadd.s32 %s29, 1
      %s31 = scalar_select %p28, %s29, %s30
      %p34 = pneg %p28
      %p35 = scmp.eq.s32.totalorder %s19, 1
      %p36 = por %p34, %p35
      %p37 = scmp.ne.s32.totalorder %s29, %s32
      %p38 = scmp.eq.s32.totalorder %s19, 0
      %p39 = por %p37, %p38
      %p40 = scmp.ne.s32.totalorder %s29, %s32
      %p41 = scmp.eq.s32.totalorder %s24, 1
      %p42 = por %p40, %p41
      %p43 = scmp.ne.s32.totalorder %s32, %s33
      %p44 = scmp.eq.s32.totalorder %s24, 0
      %p45 = por %p43, %p44
      %p46 = scmp.ne.s32.totalorder %s32, %s33
      %p47 = scmp.eq.s32.totalorder %s25, 1
      %p48 = por %p46, %p47
      %p50 = scmp.ne.s32.totalorder %s33, %s49
      %p51 = scmp.eq.s32.totalorder %s25, 0
      %p52 = por %p50, %p51
      %s53 = ssub.s32 %s19, %s26
      %p54 = scmp.eq.s32.totalorder %s53, 0
      %s56 = sadd.s32 %s55, 1
      %s57 = scalar_select %p54, %s55, %s56
      %p60 = pneg %p54
      %p61 = scmp.eq.s32.totalorder %s19, 1
      %p62 = por %p60, %p61
      %p63 = scmp.ne.s32.totalorder %s55, %s58
      %p64 = scmp.eq.s32.totalorder %s19, 0
      %p65 = por %p63, %p64
      %p66 = scmp.ne.s32.totalorder %s55, %s58
      %p67 = scmp.eq.s32.totalorder %s24, 1
      %p68 = por %p66, %p67
      %p69 = scmp.ne.s32.totalorder %s58, %s59
      %p70 = scmp.eq.s32.totalorder %s24, 0
      %p71 = por %p69, %p70
      %p72 = scmp.ne.s32.totalorder %s58, %s59
      %p73 = scmp.eq.s32.totalorder %s25, 1
      %p74 = por %p72, %p73
      %p76 = scmp.ne.s32.totalorder %s59, %s75
      %p77 = scmp.eq.s32.totalorder %s25, 0
      %p78 = por %p76, %p77
      %s80 = sadd.s32 %s79, 1
      %p83 = scmp.eq.s32.totalorder %s19, 1
      %p84 = scmp.ne.s32.totalorder %s79, %s81
      %p85 = scmp.eq.s32.totalorder %s19, 0
      %p86 = por %p84, %p85
      %p87 = scmp.ne.s32.totalorder %s79, %s81
      %p88 = scmp.eq.s32.totalorder %s24, 1
      %p89 = por %p87, %p88
      %p90 = scmp.ne.s32.totalorder %s81, %s82
      %p91 = scmp.eq.s32.totalorder %s24, 0
      %p92 = por %p90, %p91
      %p93 = scmp.ne.s32.totalorder %s81, %s82
      %p94 = scmp.eq.s32.totalorder %s25, 1
      %p95 = por %p93, %p94
      %p97 = scmp.ne.s32.totalorder %s82, %s96
      %p98 = scmp.eq.s32.totalorder %s25, 0
      %p99 = por %p97, %p98
      %s101 = sadd.s32 %s100, 1
      %p104 = scmp.eq.s32.totalorder %s19, 1
      %p105 = scmp.ne.s32.totalorder %s100, %s102
      %p106 = scmp.eq.s32.totalorder %s19, 0
      %p107 = por %p105, %p106
      %p108 = scmp.ne.s32.totalorder %s100, %s102
      %p109 = scmp.eq.s32.totalorder %s24, 1
      %p110 = por %p108, %p109
      %p111 = scmp.ne.s32.totalorder %s102, %s103
      %p112 = scmp.eq.s32.totalorder %s24, 0
      %p113 = por %p111, %p112
      %p114 = scmp.ne.s32.totalorder %s102, %s103
      %p115 = scmp.eq.s32.totalorder %s25, 1
      %p116 = por %p114, %p115
      %p118 = scmp.ne.s32.totalorder %s103, %s117
      %p119 = scmp.eq.s32.totalorder %s25, 0
      %p120 = por %p118, %p119
      %s122 = sadd.s32 %s121, 1
      %p125 = scmp.eq.s32.totalorder %s19, 1
      %p126 = scmp.ne.s32.totalorder %s121, %s123
      %p127 = scmp.eq.s32.totalorder %s19, 0
      %p128 = por %p126, %p127
      %p129 = scmp.ne.s32.totalorder %s121, %s123
      %p130 = scmp.eq.s32.totalorder %s24, 1
      %p131 = por %p129, %p130
      %p132 = scmp.ne.s32.totalorder %s123, %s124
      %p133 = scmp.eq.s32.totalorder %s24, 0
      %p134 = por %p132, %p133
      %p135 = scmp.ne.s32.totalorder %s123, %s124
      %p136 = scmp.eq.s32.totalorder %s25, 1
      %p137 = por %p135, %p136
      %p139 = scmp.ne.s32.totalorder %s124, %s138
      %p140 = scmp.eq.s32.totalorder %s25, 0
      %p141 = por %p139, %p140
      %s143 = sadd.s32 %s142, 1
      %p146 = scmp.eq.s32.totalorder %s19, 1
      %p147 = scmp.ne.s32.totalorder %s142, %s144
      %p148 = scmp.eq.s32.totalorder %s19, 0
      %p149 = por %p147, %p148
      %p150 = scmp.ne.s32.totalorder %s142, %s144
      %p151 = scmp.eq.s32.totalorder %s24, 1
      %p152 = por %p150, %p151
      %p153 = scmp.ne.s32.totalorder %s144, %s145
      %p154 = scmp.eq.s32.totalorder %s24, 0
      %p155 = por %p153, %p154
      %p156 = scmp.ne.s32.totalorder %s144, %s145
      %p157 = scmp.eq.s32.totalorder %s25, 1
      %p158 = por %p156, %p157
      %p160 = scmp.ne.s32.totalorder %s145, %s159
      %p161 = scmp.eq.s32.totalorder %s25, 0
      %p162 = por %p160, %p161
      %s164 = sadd.s32 %s163, 1
      %p167 = scmp.eq.s32.totalorder %s19, 1
      %p168 = scmp.ne.s32.totalorder %s163, %s165
      %p169 = scmp.eq.s32.totalorder %s19, 0
      %p170 = por %p168, %p169
      %p171 = scmp.ne.s32.totalorder %s163, %s165
      %p172 = scmp.eq.s32.totalorder %s24, 1
      %p173 = por %p171, %p172
      %p174 = scmp.ne.s32.totalorder %s165, %s166
      %p175 = scmp.eq.s32.totalorder %s24, 0
      %p176 = por %p174, %p175
      %p177 = scmp.ne.s32.totalorder %s165, %s166
      %p178 = scmp.eq.s32.totalorder %s25, 1
      %p179 = por %p177, %p178
      %p181 = scmp.ne.s32.totalorder %s166, %s180
      %p182 = scmp.eq.s32.totalorder %s25, 0
      %p183 = por %p181, %p182
      %s185 = sadd.s32 %s184, 1
      %p188 = scmp.eq.s32.totalorder %s19, 1
      %p189 = scmp.ne.s32.totalorder %s184, %s186
      %p190 = scmp.eq.s32.totalorder %s19, 0
      %p191 = por %p189, %p190
      %p192 = scmp.ne.s32.totalorder %s184, %s186
      %p193 = scmp.eq.s32.totalorder %s24, 1
      %p194 = por %p192, %p193
      %p195 = scmp.ne.s32.totalorder %s186, %s187
      %p196 = scmp.eq.s32.totalorder %s24, 0
      %p197 = por %p195, %p196
      %p198 = scmp.ne.s32.totalorder %s186, %s187
      %p199 = scmp.eq.s32.totalorder %s25, 1
      %p200 = por %p198, %p199
      %p202 = scmp.ne.s32.totalorder %s187, %s201
      %p203 = scmp.eq.s32.totalorder %s25, 0
      %p204 = por %p202, %p203
      %s206 = sadd.s32 %s205, 1
      %p209 = scmp.eq.s32.totalorder %s19, 1
      %p210 = scmp.ne.s32.totalorder %s205, %s207
      %p211 = scmp.eq.s32.totalorder %s19, 0
      %p212 = por %p210, %p211
      %p213 = scmp.ne.s32.totalorder %s205, %s207
      %p214 = scmp.eq.s32.totalorder %s24, 1
      %p215 = por %p213, %p214
      %p216 = scmp.ne.s32.totalorder %s207, %s208
      %p217 = scmp.eq.s32.totalorder %s24, 0
      %p218 = por %p216, %p217
      %p219 = scmp.ne.s32.totalorder %s207, %s208
      %p220 = scmp.eq.s32.totalorder %s25, 1
      %p221 = por %p219, %p220
      %p223 = scmp.ne.s32.totalorder %s208, %s222
      %p224 = scmp.eq.s32.totalorder %s25, 0
      %p225 = por %p223, %p224
      %s227 = sadd.s32 %s226, 1
      %p230 = scmp.eq.s32.totalorder %s19, 1
      %p231 = scmp.ne.s32.totalorder %s226, %s228
      %p232 = scmp.eq.s32.totalorder %s19, 0
      %p233 = por %p231, %p232
      %p234 = scmp.ne.s32.totalorder %s226, %s228
      %p235 = scmp.eq.s32.totalorder %s24, 1
      %p236 = por %p234, %p235
      %p237 = scmp.ne.s32.totalorder %s228, %s229
      %p238 = scmp.eq.s32.totalorder %s24, 0
      %p239 = por %p237, %p238
      %p240 = scmp.ne.s32.totalorder %s228, %s229
      %p241 = scmp.eq.s32.totalorder %s25, 1
      %p242 = por %p240, %p241
      %p244 = scmp.ne.s32.totalorder %s229, %s243
      %p245 = scmp.eq.s32.totalorder %s25, 0
      %p246 = por %p244, %p245
      %s247 = ssub.s32 %s19, %s26
      %p248 = scmp.eq.s32.totalorder %s247, 0
      %s250 = sadd.s32 %s249, 1
      %s251 = scalar_select %p248, %s249, %s250
      %p254 = pneg %p248
      %p255 = scmp.eq.s32.totalorder %s19, 1
      %p256 = por %p254, %p255
      %p257 = scmp.ne.s32.totalorder %s249, %s252
      %p258 = scmp.eq.s32.totalorder %s19, 0
      %p259 = por %p257, %p258
      %p260 = scmp.ne.s32.totalorder %s249, %s252
      %p261 = scmp.eq.s32.totalorder %s24, 1
      %p262 = por %p260, %p261
      %p263 = scmp.ne.s32.totalorder %s252, %s253
      %p264 = scmp.eq.s32.totalorder %s24, 0
      %p265 = por %p263, %p264
      %p266 = scmp.ne.s32.totalorder %s252, %s253
      %p267 = scmp.eq.s32.totalorder %s25, 1
      %p268 = por %p266, %p267
      %p270 = scmp.ne.s32.totalorder %s253, %s269
      %p271 = scmp.eq.s32.totalorder %s25, 0
      %p272 = por %p270, %p271
      %p273 = scmp.le.s32.totalorder 1, %s19
      %p274 = scmp.lt.s32.totalorder %s19, 3
      %p275 = pnand %p273, %p274
      %p276 = pneg %p275
      // Predicated region
      $region9: #{tpu_custom_call.1} parent=5 // pred_check
        _
      $region10: #{tpu_custom_call.1} parent=5 // pred_check_branch
        %278 = sbr.rel (%p275) target = $region12
      $region11: #{tpu_custom_call.1} parent=5 // pred_region
        %s279 = ssub.s32 %s19, 1
        // Predicated region
        $region13: #{tpu_custom_call.1} parent=11 // pred_check
          %p280 = pneg %p92
        $region14: #{tpu_custom_call.1} parent=11 // pred_check_branch
          %282 = sbr.rel (%p280) target = $region16
        $region15: #{tpu_custom_call.1} parent=11 // pred_region
          _
        $region16: #{tpu_custom_call.1} parent=11 // pred_fallthru
          _
        // Predicated region
        $region17: #{tpu_custom_call.1} parent=11 // pred_check
          %p283 = pneg %p113
        $region18: #{tpu_custom_call.1} parent=11 // pred_check_branch
          %285 = sbr.rel (%p283) target = $region20
        $region19: #{tpu_custom_call.1} parent=11 // pred_region
          _
        $region20: #{tpu_custom_call.1} parent=11 // pred_fallthru
          _
        // Predicated region
        $region21: #{tpu_custom_call.1} parent=11 // pred_check
          %p286 = pneg %p134
        $region22: #{tpu_custom_call.1} parent=11 // pred_check_branch
          %288 = sbr.rel (%p286) target = $region24
        $region23: #{tpu_custom_call.1} parent=11 // pred_region
          _
        $region24: #{tpu_custom_call.1} parent=11 // pred_fallthru
          _
        // Predicated region
        $region25: #{tpu_custom_call.1} parent=11 // pred_check
          %p289 = pneg %p155
        $region26: #{tpu_custom_call.1} parent=11 // pred_check_branch
          %291 = sbr.rel (%p289) target = $region28
        $region27: #{tpu_custom_call.1} parent=11 // pred_region
          _
        $region28: #{tpu_custom_call.1} parent=11 // pred_fallthru
          _
        // Predicated region
        $region29: #{tpu_custom_call.1} parent=11 // pred_check
          %p292 = pneg %p176
        $region30: #{tpu_custom_call.1} parent=11 // pred_check_branch
          %294 = sbr.rel (%p292) target = $region32
        $region31: #{tpu_custom_call.1} parent=11 // pred_region
          _
        $region32: #{tpu_custom_call.1} parent=11 // pred_fallthru
          _
        // Predicated region
        $region33: #{tpu_custom_call.1} parent=11 // pred_check
          %p295 = pneg %p197
        $region34: #{tpu_custom_call.1} parent=11 // pred_check_branch
          %297 = sbr.rel (%p295) target = $region36
        $region35: #{tpu_custom_call.1} parent=11 // pred_region
          _
        $region36: #{tpu_custom_call.1} parent=11 // pred_fallthru
          _
        // Predicated region
        $region37: #{tpu_custom_call.1} parent=11 // pred_check
          %p298 = pneg %p218
        $region38: #{tpu_custom_call.1} parent=11 // pred_check_branch
          %300 = sbr.rel (%p298) target = $region40
        $region39: #{tpu_custom_call.1} parent=11 // pred_region
          _
        $region40: #{tpu_custom_call.1} parent=11 // pred_fallthru
          _
        // Predicated region
        $region41: #{tpu_custom_call.1} parent=11 // pred_check
          %p301 = pneg %p239
        $region42: #{tpu_custom_call.1} parent=11 // pred_check_branch
          %303 = sbr.rel (%p301) target = $region44
        $region43: #{tpu_custom_call.1} parent=11 // pred_region
          _
        $region44: #{tpu_custom_call.1} parent=11 // pred_fallthru
          _
      $region12: #{tpu_custom_call.1} parent=5 // pred_fallthru
        _
      %p304 = scmp.lt.s32.totalorder %s19, 2
      // Predicated region
      $region45: #{tpu_custom_call.1} parent=5 // pred_check
        %p305 = pneg %p304
      $region46: #{tpu_custom_call.1} parent=5 // pred_check_branch
        %307 = sbr.rel (%p305) target = $region48
      $region47: #{tpu_custom_call.1} parent=5 // pred_region
        // Predicated region
        $region49: #{tpu_custom_call.1} parent=47 // pred_check
          %p308 = pneg %p39
        $region50: #{tpu_custom_call.1} parent=47 // pred_check_branch
          %310 = sbr.rel (%p308) target = $region52
        $region51: #{tpu_custom_call.1} parent=47 // pred_region
          %p311 = scmp.lt.s32.totalorder %s19, 1
          %s312 = scalar_select %p311, %s19, 1
          %s313 = smul.addr %s312, 8
          %s314 = smul.addr %s313, 8
          %s315 = scalar_lea.vmem %s0, %s314
        $region52: #{tpu_custom_call.1} parent=47 // pred_fallthru
          _
        // Predicated region
        $region53: #{tpu_custom_call.1} parent=47 // pred_check
          %p316 = pneg %p65
        $region54: #{tpu_custom_call.1} parent=47 // pred_check_branch
          %318 = sbr.rel (%p316) target = $region56
        $region55: #{tpu_custom_call.1} parent=47 // pred_region
          %p319 = scmp.lt.s32.totalorder %s19, 1
          %s320 = scalar_select %p319, %s19, 1
          %s321 = smul.addr %s320, 32
          %s322 = smul.addr %s321, 8
          %s323 = scalar_lea.vmem %s1, %s322
        $region56: #{tpu_custom_call.1} parent=47 // pred_fallthru
          _
      $region48: #{tpu_custom_call.1} parent=5 // pred_fallthru
        _
      %p324 = scmp.le.s32.totalorder 1, %s19
      %p325 = scmp.lt.s32.totalorder %s19, 3
      %p326 = pnand %p324, %p325
      %p327 = pneg %p326
      // Predicated region
      $region57: #{tpu_custom_call.1} parent=5 // pred_check
        _
      $region58: #{tpu_custom_call.1} parent=5 // pred_check_branch
        %329 = sbr.rel (%p326) target = $region60
      $region59: #{tpu_custom_call.1} parent=5 // pred_region
        %s330 = ssub.s32 %s19, 1
        %p331 = scmp.lt.s32.totalorder %s24, 1
        %s332 = scalar_select %p331, %s24, 1
        %s333 = smul.addr %s332, 8
        %s334 = smul.addr %s333, 8
        %s335 = scalar_lea.vmem %s0, %s334
        %p336 = pneg %p45
        %p337 = pneg %p42
        %p338 = scmp.lt.s32.totalorder %s24, 1
        %s339 = scalar_select %p338, %s24, 1
        %s340 = smul.addr %s339, 32
        %s341 = smul.addr %s340, 8
        %s342 = scalar_lea.vmem %s1, %s341
        %p343 = pneg %p71
        %p344 = pneg %p68
        %p345 = pneg %p92
        %p346 = pneg %p89
        %p347 = pneg %p113
        %p348 = pneg %p110
        %p349 = pneg %p134
        %p350 = pneg %p131
        %p351 = pneg %p155
        %p352 = pneg %p152
        %p353 = pneg %p176
        %p354 = pneg %p173
        %p355 = pneg %p197
        %p356 = pneg %p194
        %p357 = pneg %p218
        %p358 = pneg %p215
        %p359 = pneg %p239
        %p360 = pneg %p236
        %p361 = pneg %p265
        %p362 = pneg %p262
        %s363 = sand.u32 %s252, 1
        %s364 = scalar_lea.sflag [#allocation8], %s363
        %s365 = sand.u32 %s252, 1
        %s366 = smul.addr %s365, 8
        %s367 = scalar_lea.vmem [#allocation7], %s366
        %p368 = scmp.lt.s32.totalorder %s24, 1
        %s369 = scalar_select %p368, %s24, 1
        %s370 = smul.addr %s369, 8
        %s371 = smul.addr %s370, 8
        %s372 = scalar_lea.vmem %s0, %s371
        %p373 = scmp.lt.s32.totalorder %s24, 1
        %s374 = scalar_select %p373, %s24, 1
        %s375 = smul.addr %s374, 32
        %s376 = smul.addr %s375, 8
        %s377 = scalar_lea.vmem %s1, %s376
        %v378 = vld [vmem:[%s372] sm:$0xff]
        %v379 = vld [vmem:[%s372 + $0x8] sm:$0xff]
        %v380 = vld [vmem:[%s372 + $0x10] sm:$0xff]
        %v381 = vld [vmem:[%s372 + $0x18] sm:$0xff]
        %v382 = vld [vmem:[%s372 + $0x20] sm:$0xff]
        %v383 = vld [vmem:[%s372 + $0x28] sm:$0xff]
        %v384 = vld [vmem:[%s372 + $0x30] sm:$0xff]
        %v385 = vld [vmem:[%s372 + $0x38] sm:$0xff]
        %v386 = vld [vmem:[%s2] sm:$0xf]
        %v387 = vld [vmem:[%s3] sm:$0x1]
        %v389 = vlaneseq
        %v390 = vshrl.u32 %v389, 7
        %v391 = vsub.s32 0, %v390
        %v392 = vrot.slane %v387, %v391
        %vm394 = vcmask 31744
        %v396 = vsel %vm394, %v378, 0
        %v399 = vsel %vm394, %v379, 0
        %v402 = vsel %vm394, %v380, 0
        %v405 = vsel %vm394, %v381, 0
        %v408 = vsel %vm394, %v382, 0
        %v411 = vsel %vm394, %v383, 0
        %v414 = vsel %vm394, %v384, 0
        %v417 = vsel %vm394, %v385, 0
        %vm419 = vcmask 1043456
        %v421 = vsel %vm419, %v386, 0
        %423 = vmatprep.subr.mxu0 0.0
        %424 = vmatpush1.msra.mxu0 %v421
        %425 = vmatprep.subr.mxu0 0.0
        %426 = vmatpush1.msra.mxu0 0.0
        %427 = vmatprep.subr.mxu0 0.0
        %428 = vmatpush1.msra.mxu0 0.0
        %429 = vmatprep.subr.mxu0 0.0
        %430 = vmatpush1.msra.mxu0 0.0
        %431 = vmatprep.subr.mxu0 0.0
        %432 = vmatpush1.msra.mxu0 0.0
        %433 = vmatprep.subr.mxu0 0.0
        %434 = vmatpush1.msra.mxu0 0.0
        %435 = vmatprep.subr.mxu0 0.0
        %436 = vmatpush1.msra.mxu0 0.0
        %437 = vmatprep.subr.mxu0 0.0
        %438 = vmatpush1.msra.mxu0 0.0
        %439 = vmatprep.subr.mxu0 0.0
        %440 = vmatpush1.msra.mxu0 0.0
        %441 = vmatprep.subr.mxu0 0.0
        %442 = vmatpush1.msra.mxu0 0.0
        %443 = vmatprep.subr.mxu0 0.0
        %444 = vmatpush1.msra.mxu0 0.0
        %445 = vmatprep.subr.mxu0 0.0
        %446 = vmatpush1.msra.mxu0 0.0
        %447 = vmatprep.subr.mxu0 0.0
        %448 = vmatpush1.msra.mxu0 0.0
        %449 = vmatprep.subr.mxu0 0.0
        %450 = vmatpush1.msra.mxu0 0.0
        %451 = vmatprep.subr.mxu0 0.0
        %452 = vmatpush1.msra.mxu0 0.0
        %453 = vmatprep.subr.mxu0 0.0
        %454 = vmatpush1.msra.mxu0 0.0
        %455 = vmatprep.subr.mxu0 0.0
        %456 = vmatpush1.msra.mxu0 0.0
        %457 = vmatprep.subr.mxu0 0.0
        %458 = vmatpush1.msra.mxu0 0.0
        %459 = vmatprep.subr.mxu0 0.0
        %460 = vmatpush1.msra.mxu0 0.0
        %461 = vmatprep.subr.mxu0 0.0
        %462 = vmatpush1.msra.mxu0 0.0
        %463 = vmatprep.subr.mxu0 0.0
        %464 = vmatpush1.msra.mxu0 0.0
        %465 = vmatprep.subr.mxu0 0.0
        %466 = vmatpush1.msra.mxu0 0.0
        %467 = vmatprep.subr.mxu0 0.0
        %468 = vmatpush1.msra.mxu0 0.0
        %469 = vmatprep.subr.mxu0 0.0
        %470 = vmatpush1.msra.mxu0 0.0
        %471 = vmatprep.subr.mxu0 0.0
        %472 = vmatpush1.msra.mxu0 0.0
        %473 = vmatprep.subr.mxu0 0.0
        %474 = vmatpush1.msra.mxu0 0.0
        %475 = vmatprep.subr.mxu0 0.0
        %476 = vmatpush1.msra.mxu0 0.0
        %477 = vmatprep.subr.mxu0 0.0
        %478 = vmatpush1.msra.mxu0 0.0
        %479 = vmatprep.subr.mxu0 0.0
        %480 = vmatpush1.msra.mxu0 0.0
        %481 = vmatprep.subr.mxu0 0.0
        %482 = vmatpush1.msra.mxu0 0.0
        %483 = vmatprep.subr.mxu0 0.0
        %484 = vmatpush1.msra.mxu0 0.0
        %485 = vmatprep.subr.mxu0 0.0
        %486 = vmatpush1.msra.mxu0 0.0
        %487 = vmatprep.mubr.f32.mxu0 0.0
        %488 = vmatmul.mubr.f32.gmra.mrb[0].mxu0 %v396
        %v489 = vpop.f32.mrb[0].mxu0
        %v490 = vadd.f32 %v392, %v489
        %v491 = vpop.f32.mrb[0].mxu0
        %492 = vmatprep.mubr.f32.mxu0 0.0
        %493 = vmatmul.mubr.f32.gmra.mrb[0].mxu0 %v399
        %v494 = vpop.f32.mrb[0].mxu0
        %v495 = vadd.f32 %v392, %v494
        %v496 = vpop.f32.mrb[0].mxu0
        %497 = vmatprep.mubr.f32.mxu0 0.0
        %498 = vmatmul.mubr.f32.gmra.mrb[0].mxu0 %v402
        %v499 = vpop.f32.mrb[0].mxu0
        %v500 = vadd.f32 %v392, %v499
        %v501 = vpop.f32.mrb[0].mxu0
        %502 = vmatprep.mubr.f32.mxu0 0.0
        %503 = vmatmul.mubr.f32.gmra.mrb[0].mxu0 %v405
        %v504 = vpop.f32.mrb[0].mxu0
        %v505 = vadd.f32 %v392, %v504
        %v506 = vpop.f32.mrb[0].mxu0
        %507 = vmatprep.mubr.f32.mxu0 0.0
        %508 = vmatmul.mubr.f32.gmra.mrb[0].mxu0 %v408
        %v509 = vpop.f32.mrb[0].mxu0
        %v510 = vadd.f32 %v392, %v509
        %v511 = vpop.f32.mrb[0].mxu0
        %512 = vmatprep.mubr.f32.mxu0 0.0
        %513 = vmatmul.mubr.f32.gmra.mrb[0].mxu0 %v411
        %v514 = vpop.f32.mrb[0].mxu0
        %v515 = vadd.f32 %v392, %v514
        %v516 = vpop.f32.mrb[0].mxu0
        %517 = vmatprep.mubr.f32.mxu0 0.0
        %518 = vmatmul.mubr.f32.gmra.mrb[0].mxu0 %v414
        %v519 = vpop.f32.mrb[0].mxu0
        %v520 = vadd.f32 %v392, %v519
        %v521 = vpop.f32.mrb[0].mxu0
        %522 = vmatprep.mubr.f32.mxu0 0.0
        %523 = vmatmul.mubr.f32.gmra.mrb[0].mxu0 %v417
        %v524 = vpop.f32.mrb[0].mxu0
        %v525 = vadd.f32 %v392, %v524
        %v526 = vpop.f32.mrb[0].mxu0
        %527 = vdwg.mxu0
        %v536 = vcombine.high %v490, %v490
        %v538 = vunpack.c.l.s4 1966171168
        %v539 = vunpack.c.0.s8 %v538
        %v540 = vlaneseq
        %v541 = vshrl.u32 %v540, 7
        %v542 = vsub.s32 %v539, %v541
        %v543 = vrot.slane %v490, %v542
        %v545 = vunpack.c.l.s4 1966171168
        %v546 = vunpack.c.0.s8 %v545
        %v547 = vlaneseq
        %v548 = vshrl.u32 %v547, 7
        %v549 = vsub.s32 %v546, %v548
        %v550 = vrot.slane %v536, %v549
        %v551 = vcombine.high %v543, %v543
        %v552 = vcombine.high %v550, %v550
        %v554 = vunpack.c.l.s4 1966171168
        %v555 = vunpack.c.0.s8 %v554
        %v556 = vlaneseq
        %v557 = vshrl.u32 %v556, 7
        %v558 = vsub.s32 %v555, %v557
        %v559 = vrot.slane %v543, %v558
        %v561 = vunpack.c.l.s4 1966171168
        %v562 = vunpack.c.0.s8 %v561
        %v563 = vlaneseq
        %v564 = vshrl.u32 %v563, 7
        %v565 = vsub.s32 %v562, %v564
        %v566 = vrot.slane %v550, %v565
        %v568 = vunpack.c.l.s4 1966171168
        %v569 = vunpack.c.0.s8 %v568
        %v570 = vlaneseq
        %v571 = vshrl.u32 %v570, 7
        %v572 = vsub.s32 %v569, %v571
        %v573 = vrot.slane %v551, %v572
        %v575 = vunpack.c.l.s4 1966171168
        %v576 = vunpack.c.0.s8 %v575
        %v577 = vlaneseq
        %v578 = vshrl.u32 %v577, 7
        %v579 = vsub.s32 %v576, %v578
        %v580 = vrot.slane %v552, %v579
        %v581 = vcombine.high %v559, %v559
        %v582 = vcombine.high %v566, %v566
        %v583 = vcombine.high %v573, %v573
        %v584 = vcombine.high %v580, %v580
        %v585 = vcombine.high %v495, %v495
        %v587 = vunpack.c.l.s4 1966171168
        %v588 = vunpack.c.0.s8 %v587
        %v589 = vlaneseq
        %v590 = vshrl.u32 %v589, 7
        %v591 = vsub.s32 %v588, %v590
        %v592 = vrot.slane %v495, %v591
        %v594 = vunpack.c.l.s4 1966171168
        %v595 = vunpack.c.0.s8 %v594
        %v596 = vlaneseq
        %v597 = vshrl.u32 %v596, 7
        %v598 = vsub.s32 %v595, %v597
        %v599 = vrot.slane %v585, %v598
        %v600 = vcombine.high %v592, %v592
        %v601 = vcombine.high %v599, %v599
        %v603 = vunpack.c.l.s4 1966171168
        %v604 = vunpack.c.0.s8 %v603
        %v605 = vlaneseq
        %v606 = vshrl.u32 %v605, 7
        %v607 = vsub.s32 %v604, %v606
        %v608 = vrot.slane %v592, %v607
        %v610 = vunpack.c.l.s4 1966171168
        %v611 = vunpack.c.0.s8 %v610
        %v612 = vlaneseq
        %v613 = vshrl.u32 %v612, 7
        %v614 = vsub.s32 %v611, %v613
        %v615 = vrot.slane %v599, %v614
        %v617 = vunpack.c.l.s4 1966171168
        %v618 = vunpack.c.0.s8 %v617
        %v619 = vlaneseq
        %v620 = vshrl.u32 %v619, 7
        %v621 = vsub.s32 %v618, %v620
        %v622 = vrot.slane %v600, %v621
        %v624 = vunpack.c.l.s4 1966171168
        %v625 = vunpack.c.0.s8 %v624
        %v626 = vlaneseq
        %v627 = vshrl.u32 %v626, 7
        %v628 = vsub.s32 %v625, %v627
        %v629 = vrot.slane %v601, %v628
        %v630 = vcombine.high %v608, %v608
        %v631 = vcombine.high %v615, %v615
        %v632 = vcombine.high %v622, %v622
        %v633 = vcombine.high %v629, %v629
        %v634 = vcombine.high %v500, %v500
        %v636 = vunpack.c.l.s4 1966171168
        %v637 = vunpack.c.0.s8 %v636
        %v638 = vlaneseq
        %v639 = vshrl.u32 %v638, 7
        %v640 = vsub.s32 %v637, %v639
        %v641 = vrot.slane %v500, %v640
        %v643 = vunpack.c.l.s4 1966171168
        %v644 = vunpack.c.0.s8 %v643
        %v645 = vlaneseq
        %v646 = vshrl.u32 %v645, 7
        %v647 = vsub.s32 %v644, %v646
        %v648 = vrot.slane %v634, %v647
        %v649 = vcombine.high %v641, %v641
        %v650 = vcombine.high %v648, %v648
        %v652 = vunpack.c.l.s4 1966171168
        %v653 = vunpack.c.0.s8 %v652
        %v654 = vlaneseq
        %v655 = vshrl.u32 %v654, 7
        %v656 = vsub.s32 %v653, %v655
        %v657 = vrot.slane %v641, %v656
        %v659 = vunpack.c.l.s4 1966171168
        %v660 = vunpack.c.0.s8 %v659
        %v661 = vlaneseq
        %v662 = vshrl.u32 %v661, 7
        %v663 = vsub.s32 %v660, %v662
        %v664 = vrot.slane %v648, %v663
        %v666 = vunpack.c.l.s4 1966171168
        %v667 = vunpack.c.0.s8 %v666
        %v668 = vlaneseq
        %v669 = vshrl.u32 %v668, 7
        %v670 = vsub.s32 %v667, %v669
        %v671 = vrot.slane %v649, %v670
        %v673 = vunpack.c.l.s4 1966171168
        %v674 = vunpack.c.0.s8 %v673
        %v675 = vlaneseq
        %v676 = vshrl.u32 %v675, 7
        %v677 = vsub.s32 %v674, %v676
        %v678 = vrot.slane %v650, %v677
        %v679 = vcombine.high %v657, %v657
        %v680 = vcombine.high %v664, %v664
        %v681 = vcombine.high %v671, %v671
        %v682 = vcombine.high %v678, %v678
        %v683 = vcombine.high %v505, %v505
        %v685 = vunpack.c.l.s4 1966171168
        %v686 = vunpack.c.0.s8 %v685
        %v687 = vlaneseq
        %v688 = vshrl.u32 %v687, 7
        %v689 = vsub.s32 %v686, %v688
        %v690 = vrot.slane %v505, %v689
        %v692 = vunpack.c.l.s4 1966171168
        %v693 = vunpack.c.0.s8 %v692
        %v694 = vlaneseq
        %v695 = vshrl.u32 %v694, 7
        %v696 = vsub.s32 %v693, %v695
        %v697 = vrot.slane %v683, %v696
        %v698 = vcombine.high %v690, %v690
        %v699 = vcombine.high %v697, %v697
        %v701 = vunpack.c.l.s4 1966171168
        %v702 = vunpack.c.0.s8 %v701
        %v703 = vlaneseq
        %v704 = vshrl.u32 %v703, 7
        %v705 = vsub.s32 %v702, %v704
        %v706 = vrot.slane %v690, %v705
        %v708 = vunpack.c.l.s4 1966171168
        %v709 = vunpack.c.0.s8 %v708
        %v710 = vlaneseq
        %v711 = vshrl.u32 %v710, 7
        %v712 = vsub.s32 %v709, %v711
        %v713 = vrot.slane %v697, %v712
        %v715 = vunpack.c.l.s4 1966171168
        %v716 = vunpack.c.0.s8 %v715
        %v717 = vlaneseq
        %v718 = vshrl.u32 %v717, 7
        %v719 = vsub.s32 %v716, %v718
        %v720 = vrot.slane %v698, %v719
        %v722 = vunpack.c.l.s4 1966171168
        %v723 = vunpack.c.0.s8 %v722
        %v724 = vlaneseq
        %v725 = vshrl.u32 %v724, 7
        %v726 = vsub.s32 %v723, %v725
        %v727 = vrot.slane %v699, %v726
        %v728 = vcombine.high %v706, %v706
        %v729 = vcombine.high %v713, %v713
        %v730 = vcombine.high %v720, %v720
        %v731 = vcombine.high %v727, %v727
        %v732 = vcombine.high %v510, %v510
        %v734 = vunpack.c.l.s4 1966171168
        %v735 = vunpack.c.0.s8 %v734
        %v736 = vlaneseq
        %v737 = vshrl.u32 %v736, 7
        %v738 = vsub.s32 %v735, %v737
        %v739 = vrot.slane %v510, %v738
        %v741 = vunpack.c.l.s4 1966171168
        %v742 = vunpack.c.0.s8 %v741
        %v743 = vlaneseq
        %v744 = vshrl.u32 %v743, 7
        %v745 = vsub.s32 %v742, %v744
        %v746 = vrot.slane %v732, %v745
        %v747 = vcombine.high %v739, %v739
        %v748 = vcombine.high %v746, %v746
        %v750 = vunpack.c.l.s4 1966171168
        %v751 = vunpack.c.0.s8 %v750
        %v752 = vlaneseq
        %v753 = vshrl.u32 %v752, 7
        %v754 = vsub.s32 %v751, %v753
        %v755 = vrot.slane %v739, %v754
        %v757 = vunpack.c.l.s4 1966171168
        %v758 = vunpack.c.0.s8 %v757
        %v759 = vlaneseq
        %v760 = vshrl.u32 %v759, 7
        %v761 = vsub.s32 %v758, %v760
        %v762 = vrot.slane %v746, %v761
        %v764 = vunpack.c.l.s4 1966171168
        %v765 = vunpack.c.0.s8 %v764
        %v766 = vlaneseq
        %v767 = vshrl.u32 %v766, 7
        %v768 = vsub.s32 %v765, %v767
        %v769 = vrot.slane %v747, %v768
        %v771 = vunpack.c.l.s4 1966171168
        %v772 = vunpack.c.0.s8 %v771
        %v773 = vlaneseq
        %v774 = vshrl.u32 %v773, 7
        %v775 = vsub.s32 %v772, %v774
        %v776 = vrot.slane %v748, %v775
        %v777 = vcombine.high %v755, %v755
        %v778 = vcombine.high %v762, %v762
        %v779 = vcombine.high %v769, %v769
        %v780 = vcombine.high %v776, %v776
        %v781 = vcombine.high %v515, %v515
        %v783 = vunpack.c.l.s4 1966171168
        %v784 = vunpack.c.0.s8 %v783
        %v785 = vlaneseq
        %v786 = vshrl.u32 %v785, 7
        %v787 = vsub.s32 %v784, %v786
        %v788 = vrot.slane %v515, %v787
        %v790 = vunpack.c.l.s4 1966171168
        %v791 = vunpack.c.0.s8 %v790
        %v792 = vlaneseq
        %v793 = vshrl.u32 %v792, 7
        %v794 = vsub.s32 %v791, %v793
        %v795 = vrot.slane %v781, %v794
        %v796 = vcombine.high %v788, %v788
        %v797 = vcombine.high %v795, %v795
        %v799 = vunpack.c.l.s4 1966171168
        %v800 = vunpack.c.0.s8 %v799
        %v801 = vlaneseq
        %v802 = vshrl.u32 %v801, 7
        %v803 = vsub.s32 %v800, %v802
        %v804 = vrot.slane %v788, %v803
        %v806 = vunpack.c.l.s4 1966171168
        %v807 = vunpack.c.0.s8 %v806
        %v808 = vlaneseq
        %v809 = vshrl.u32 %v808, 7
        %v810 = vsub.s32 %v807, %v809
        %v811 = vrot.slane %v795, %v810
        %v813 = vunpack.c.l.s4 1966171168
        %v814 = vunpack.c.0.s8 %v813
        %v815 = vlaneseq
        %v816 = vshrl.u32 %v815, 7
        %v817 = vsub.s32 %v814, %v816
        %v818 = vrot.slane %v796, %v817
        %v820 = vunpack.c.l.s4 1966171168
        %v821 = vunpack.c.0.s8 %v820
        %v822 = vlaneseq
        %v823 = vshrl.u32 %v822, 7
        %v824 = vsub.s32 %v821, %v823
        %v825 = vrot.slane %v797, %v824
        %v826 = vcombine.high %v804, %v804
        %v827 = vcombine.high %v811, %v811
        %v828 = vcombine.high %v818, %v818
        %v829 = vcombine.high %v825, %v825
        %v830 = vcombine.high %v520, %v520
        %v832 = vunpack.c.l.s4 1966171168
        %v833 = vunpack.c.0.s8 %v832
        %v834 = vlaneseq
        %v835 = vshrl.u32 %v834, 7
        %v836 = vsub.s32 %v833, %v835
        %v837 = vrot.slane %v520, %v836
        %v839 = vunpack.c.l.s4 1966171168
        %v840 = vunpack.c.0.s8 %v839
        %v841 = vlaneseq
        %v842 = vshrl.u32 %v841, 7
        %v843 = vsub.s32 %v840, %v842
        %v844 = vrot.slane %v830, %v843
        %v845 = vcombine.high %v837, %v837
        %v846 = vcombine.high %v844, %v844
        %v848 = vunpack.c.l.s4 1966171168
        %v849 = vunpack.c.0.s8 %v848
        %v850 = vlaneseq
        %v851 = vshrl.u32 %v850, 7
        %v852 = vsub.s32 %v849, %v851
        %v853 = vrot.slane %v837, %v852
        %v855 = vunpack.c.l.s4 1966171168
        %v856 = vunpack.c.0.s8 %v855
        %v857 = vlaneseq
        %v858 = vshrl.u32 %v857, 7
        %v859 = vsub.s32 %v856, %v858
        %v860 = vrot.slane %v844, %v859
        %v862 = vunpack.c.l.s4 1966171168
        %v863 = vunpack.c.0.s8 %v862
        %v864 = vlaneseq
        %v865 = vshrl.u32 %v864, 7
        %v866 = vsub.s32 %v863, %v865
        %v867 = vrot.slane %v845, %v866
        %v869 = vunpack.c.l.s4 1966171168
        %v870 = vunpack.c.0.s8 %v869
        %v871 = vlaneseq
        %v872 = vshrl.u32 %v871, 7
        %v873 = vsub.s32 %v870, %v872
        %v874 = vrot.slane %v846, %v873
        %v875 = vcombine.high %v853, %v853
        %v876 = vcombine.high %v860, %v860
        %v877 = vcombine.high %v867, %v867
        %v878 = vcombine.high %v874, %v874
        %v879 = vcombine.high %v525, %v525
        %v881 = vunpack.c.l.s4 1966171168
        %v882 = vunpack.c.0.s8 %v881
        %v883 = vlaneseq
        %v884 = vshrl.u32 %v883, 7
        %v885 = vsub.s32 %v882, %v884
        %v886 = vrot.slane %v525, %v885
        %v888 = vunpack.c.l.s4 1966171168
        %v889 = vunpack.c.0.s8 %v888
        %v890 = vlaneseq
        %v891 = vshrl.u32 %v890, 7
        %v892 = vsub.s32 %v889, %v891
        %v893 = vrot.slane %v879, %v892
        %v894 = vcombine.high %v886, %v886
        %v895 = vcombine.high %v893, %v893
        %v897 = vunpack.c.l.s4 1966171168
        %v898 = vunpack.c.0.s8 %v897
        %v899 = vlaneseq
        %v900 = vshrl.u32 %v899, 7
        %v901 = vsub.s32 %v898, %v900
        %v902 = vrot.slane %v886, %v901
        %v904 = vunpack.c.l.s4 1966171168
        %v905 = vunpack.c.0.s8 %v904
        %v906 = vlaneseq
        %v907 = vshrl.u32 %v906, 7
        %v908 = vsub.s32 %v905, %v907
        %v909 = vrot.slane %v893, %v908
        %v911 = vunpack.c.l.s4 1966171168
        %v912 = vunpack.c.0.s8 %v911
        %v913 = vlaneseq
        %v914 = vshrl.u32 %v913, 7
        %v915 = vsub.s32 %v912, %v914
        %v916 = vrot.slane %v894, %v915
        %v918 = vunpack.c.l.s4 1966171168
        %v919 = vunpack.c.0.s8 %v918
        %v920 = vlaneseq
        %v921 = vshrl.u32 %v920, 7
        %v922 = vsub.s32 %v919, %v921
        %v923 = vrot.slane %v895, %v922
        %v924 = vcombine.high %v902, %v902
        %v925 = vcombine.high %v909, %v909
        %v926 = vcombine.high %v916, %v916
        %v927 = vcombine.high %v923, %v923
        %s992 = scalar_lea.vmem [#allocation2], 18
        %vm993 = vcmask 8192
        %994 = vst.msk [vmem:[%s992 + $0x1] sm:$0x1] %vm993, %v559
        %995 = vst.msk [vmem:[%s992 + $0x3] sm:$0x1] %vm993, %v573
        %996 = vst.msk [vmem:[%s992 + $0x5] sm:$0x1] %vm993, %v581
        %997 = vst.msk [vmem:[%s992 + $0x7] sm:$0x1] %vm993, %v583
        %998 = vst.msk [vmem:[%s992 + $0x9] sm:$0x1] %vm993, %v566
        %999 = vst.msk [vmem:[%s992 + $0xb] sm:$0x1] %vm993, %v580
        %1000 = vst.msk [vmem:[%s992 + $0xd] sm:$0x1] %vm993, %v582
        %1001 = vst.msk [vmem:[%s992 + $0xf] sm:$0x1] %vm993, %v584
        %1002 = vst.msk [vmem:[%s992 + $0x25] sm:$0x1] %vm993, %v608
        %1003 = vst.msk [vmem:[%s992 + $0x27] sm:$0x1] %vm993, %v622
        %1004 = vst.msk [vmem:[%s992 + $0x29] sm:$0x1] %vm993, %v630
        %1005 = vst.msk [vmem:[%s992 + $0x2b] sm:$0x1] %vm993, %v632
        %1006 = vst.msk [vmem:[%s992 + $0x2d] sm:$0x1] %vm993, %v615
        %1007 = vst.msk [vmem:[%s992 + $0x2f] sm:$0x1] %vm993, %v629
        %1008 = vst.msk [vmem:[%s992 + $0x31] sm:$0x1] %vm993, %v631
        %1009 = vst.msk [vmem:[%s992 + $0x33] sm:$0x1] %vm993, %v633
        %1010 = vst.msk [vmem:[%s992 + $0x49] sm:$0x1] %vm993, %v657
        %1011 = vst.msk [vmem:[%s992 + $0x4b] sm:$0x1] %vm993, %v671
        %1012 = vst.msk [vmem:[%s992 + $0x4d] sm:$0x1] %vm993, %v679
        %1013 = vst.msk [vmem:[%s992 + $0x4f] sm:$0x1] %vm993, %v681
        %1014 = vst.msk [vmem:[%s992 + $0x51] sm:$0x1] %vm993, %v664
        %1015 = vst.msk [vmem:[%s992 + $0x53] sm:$0x1] %vm993, %v678
        %1016 = vst.msk [vmem:[%s992 + $0x55] sm:$0x1] %vm993, %v680
        %1017 = vst.msk [vmem:[%s992 + $0x57] sm:$0x1] %vm993, %v682
        %1018 = vst.msk [vmem:[%s992 + $0x6d] sm:$0x1] %vm993, %v706
        %1019 = vst.msk [vmem:[%s992 + $0x6f] sm:$0x1] %vm993, %v720
        %1020 = vst.msk [vmem:[%s992 + $0x71] sm:$0x1] %vm993, %v728
        %1021 = vst.msk [vmem:[%s992 + $0x73] sm:$0x1] %vm993, %v730
        %1022 = vst.msk [vmem:[%s992 + $0x75] sm:$0x1] %vm993, %v713
        %1023 = vst.msk [vmem:[%s992 + $0x77] sm:$0x1] %vm993, %v727
        %1024 = vst.msk [vmem:[%s992 + $0x79] sm:$0x1] %vm993, %v729
        %1025 = vst.msk [vmem:[%s992 + $0x7b] sm:$0x1] %vm993, %v731
        %1026 = vst.msk [vmem:[%s992 + $0x91] sm:$0x1] %vm993, %v755
        %1027 = vst.msk [vmem:[%s992 + $0x93] sm:$0x1] %vm993, %v769
        %1028 = vst.msk [vmem:[%s992 + $0x95] sm:$0x1] %vm993, %v777
        %1029 = vst.msk [vmem:[%s992 + $0x97] sm:$0x1] %vm993, %v779
        %1030 = vst.msk [vmem:[%s992 + $0x99] sm:$0x1] %vm993, %v762
        %1031 = vst.msk [vmem:[%s992 + $0x9b] sm:$0x1] %vm993, %v776
        %1032 = vst.msk [vmem:[%s992 + $0x9d] sm:$0x1] %vm993, %v778
        %1033 = vst.msk [vmem:[%s992 + $0x9f] sm:$0x1] %vm993, %v780
        %1034 = vst.msk [vmem:[%s992 + $0xb5] sm:$0x1] %vm993, %v804
        %1035 = vst.msk [vmem:[%s992 + $0xb7] sm:$0x1] %vm993, %v818
        %1036 = vst.msk [vmem:[%s992 + $0xb9] sm:$0x1] %vm993, %v826
        %1037 = vst.msk [vmem:[%s992 + $0xbb] sm:$0x1] %vm993, %v828
        %1038 = vst.msk [vmem:[%s992 + $0xbd] sm:$0x1] %vm993, %v811
        %1039 = vst.msk [vmem:[%s992 + $0xbf] sm:$0x1] %vm993, %v825
        %1040 = vst.msk [vmem:[%s992 + $0xc1] sm:$0x1] %vm993, %v827
        %1041 = vst.msk [vmem:[%s992 + $0xc3] sm:$0x1] %vm993, %v829
        %1042 = vst.msk [vmem:[%s992 + $0xd9] sm:$0x1] %vm993, %v853
        %1043 = vst.msk [vmem:[%s992 + $0xdb] sm:$0x1] %vm993, %v867
        %1044 = vst.msk [vmem:[%s992 + $0xdd] sm:$0x1] %vm993, %v875
        %1045 = vst.msk [vmem:[%s992 + $0xdf] sm:$0x1] %vm993, %v877
        %1046 = vst.msk [vmem:[%s992 + $0xe1] sm:$0x1] %vm993, %v860
        %1047 = vst.msk [vmem:[%s992 + $0xe3] sm:$0x1] %vm993, %v874
        %1048 = vst.msk [vmem:[%s992 + $0xe5] sm:$0x1] %vm993, %v876
        %1049 = vst.msk [vmem:[%s992 + $0xe7] sm:$0x1] %vm993, %v878
        %1050 = vst.msk [vmem:[%s992 + $0xfd] sm:$0x1] %vm993, %v902
        %1051 = vst.msk [vmem:[%s992 + $0xff] sm:$0x1] %vm993, %v916
        %1052 = vst.msk [vmem:[%s992 + $0x101] sm:$0x1] %vm993, %v924
        %1053 = vst.msk [vmem:[%s992 + $0x103] sm:$0x1] %vm993, %v926
        %1054 = vst.msk [vmem:[%s992 + $0x105] sm:$0x1] %vm993, %v909
        %1055 = vst.msk [vmem:[%s992 + $0x107] sm:$0x1] %vm993, %v923
        %1056 = vst.msk [vmem:[%s992 + $0x109] sm:$0x1] %vm993, %v925
        %1057 = vst.msk [vmem:[%s992 + $0x10b] sm:$0x1] %vm993, %v927
        %v1058 = vlaneseq
        %v1059 = vshrl.u32 %v1058, 7
        %v1060 = vsub.s32 0, %v1059
        %v1061 = vrot.slane %v559, %v1060
        %v1062 = vlaneseq
        %v1063 = vshrl.u32 %v1062, 7
        %v1064 = vsub.s32 0, %v1063
        %v1065 = vrot.slane %v573, %v1064
        %v1066 = vlaneseq
        %v1067 = vshrl.u32 %v1066, 7
        %v1068 = vsub.s32 0, %v1067
        %v1069 = vrot.slane %v581, %v1068
        %v1070 = vlaneseq
        %v1071 = vshrl.u32 %v1070, 7
        %v1072 = vsub.s32 0, %v1071
        %v1073 = vrot.slane %v583, %v1072
        %v1074 = vlaneseq
        %v1075 = vshrl.u32 %v1074, 7
        %v1076 = vsub.s32 0, %v1075
        %v1077 = vrot.slane %v566, %v1076
        %v1078 = vlaneseq
        %v1079 = vshrl.u32 %v1078, 7
        %v1080 = vsub.s32 0, %v1079
        %v1081 = vrot.slane %v580, %v1080
        %v1082 = vlaneseq
        %v1083 = vshrl.u32 %v1082, 7
        %v1084 = vsub.s32 0, %v1083
        %v1085 = vrot.slane %v582, %v1084
        %v1086 = vlaneseq
        %v1087 = vshrl.u32 %v1086, 7
        %v1088 = vsub.s32 0, %v1087
        %v1089 = vrot.slane %v584, %v1088
        %v1090 = vlaneseq
        %v1091 = vshrl.u32 %v1090, 7
        %v1092 = vsub.s32 0, %v1091
        %v1093 = vrot.slane %v608, %v1092
        %v1094 = vlaneseq
        %v1095 = vshrl.u32 %v1094, 7
        %v1096 = vsub.s32 0, %v1095
        %v1097 = vrot.slane %v622, %v1096
        %v1098 = vlaneseq
        %v1099 = vshrl.u32 %v1098, 7
        %v1100 = vsub.s32 0, %v1099
        %v1101 = vrot.slane %v630, %v1100
        %v1102 = vlaneseq
        %v1103 = vshrl.u32 %v1102, 7
        %v1104 = vsub.s32 0, %v1103
        %v1105 = vrot.slane %v632, %v1104
        %v1106 = vlaneseq
        %v1107 = vshrl.u32 %v1106, 7
        %v1108 = vsub.s32 0, %v1107
        %v1109 = vrot.slane %v615, %v1108
        %v1110 = vlaneseq
        %v1111 = vshrl.u32 %v1110, 7
        %v1112 = vsub.s32 0, %v1111
        %v1113 = vrot.slane %v629, %v1112
        %v1114 = vlaneseq
        %v1115 = vshrl.u32 %v1114, 7
        %v1116 = vsub.s32 0, %v1115
        %v1117 = vrot.slane %v631, %v1116
        %v1118 = vlaneseq
        %v1119 = vshrl.u32 %v1118, 7
        %v1120 = vsub.s32 0, %v1119
        %v1121 = vrot.slane %v633, %v1120
        %v1122 = vlaneseq
        %v1123 = vshrl.u32 %v1122, 7
        %v1124 = vsub.s32 0, %v1123
        %v1125 = vrot.slane %v657, %v1124
        %v1126 = vlaneseq
        %v1127 = vshrl.u32 %v1126, 7
        %v1128 = vsub.s32 0, %v1127
        %v1129 = vrot.slane %v671, %v1128
        %v1130 = vlaneseq
        %v1131 = vshrl.u32 %v1130, 7
        %v1132 = vsub.s32 0, %v1131
        %v1133 = vrot.slane %v679, %v1132
        %v1134 = vlaneseq
        %v1135 = vshrl.u32 %v1134, 7
        %v1136 = vsub.s32 0, %v1135
        %v1137 = vrot.slane %v681, %v1136
        %v1138 = vlaneseq
        %v1139 = vshrl.u32 %v1138, 7
        %v1140 = vsub.s32 0, %v1139
        %v1141 = vrot.slane %v664, %v1140
        %v1142 = vlaneseq
        %v1143 = vshrl.u32 %v1142, 7
        %v1144 = vsub.s32 0, %v1143
        %v1145 = vrot.slane %v678, %v1144
        %v1146 = vlaneseq
        %v1147 = vshrl.u32 %v1146, 7
        %v1148 = vsub.s32 0, %v1147
        %v1149 = vrot.slane %v680, %v1148
        %v1150 = vlaneseq
        %v1151 = vshrl.u32 %v1150, 7
        %v1152 = vsub.s32 0, %v1151
        %v1153 = vrot.slane %v682, %v1152
        %v1154 = vlaneseq
        %v1155 = vshrl.u32 %v1154, 7
        %v1156 = vsub.s32 0, %v1155
        %v1157 = vrot.slane %v706, %v1156
        %v1158 = vlaneseq
        %v1159 = vshrl.u32 %v1158, 7
        %v1160 = vsub.s32 0, %v1159
        %v1161 = vrot.slane %v720, %v1160
        %v1162 = vlaneseq
        %v1163 = vshrl.u32 %v1162, 7
        %v1164 = vsub.s32 0, %v1163
        %v1165 = vrot.slane %v728, %v1164
        %v1166 = vlaneseq
        %v1167 = vshrl.u32 %v1166, 7
        %v1168 = vsub.s32 0, %v1167
        %v1169 = vrot.slane %v730, %v1168
        %v1170 = vlaneseq
        %v1171 = vshrl.u32 %v1170, 7
        %v1172 = vsub.s32 0, %v1171
        %v1173 = vrot.slane %v713, %v1172
        %v1174 = vlaneseq
        %v1175 = vshrl.u32 %v1174, 7
        %v1176 = vsub.s32 0, %v1175
        %v1177 = vrot.slane %v727, %v1176
        %v1178 = vlaneseq
        %v1179 = vshrl.u32 %v1178, 7
        %v1180 = vsub.s32 0, %v1179
        %v1181 = vrot.slane %v729, %v1180
        %v1182 = vlaneseq
        %v1183 = vshrl.u32 %v1182, 7
        %v1184 = vsub.s32 0, %v1183
        %v1185 = vrot.slane %v731, %v1184
        %v1186 = vlaneseq
        %v1187 = vshrl.u32 %v1186, 7
        %v1188 = vsub.s32 0, %v1187
        %v1189 = vrot.slane %v755, %v1188
        %v1190 = vlaneseq
        %v1191 = vshrl.u32 %v1190, 7
        %v1192 = vsub.s32 0, %v1191
        %v1193 = vrot.slane %v769, %v1192
        %v1194 = vlaneseq
        %v1195 = vshrl.u32 %v1194, 7
        %v1196 = vsub.s32 0, %v1195
        %v1197 = vrot.slane %v777, %v1196
        %v1198 = vlaneseq
        %v1199 = vshrl.u32 %v1198, 7
        %v1200 = vsub.s32 0, %v1199
        %v1201 = vrot.slane %v779, %v1200
        %v1202 = vlaneseq
        %v1203 = vshrl.u32 %v1202, 7
        %v1204 = vsub.s32 0, %v1203
        %v1205 = vrot.slane %v762, %v1204
        %v1206 = vlaneseq
        %v1207 = vshrl.u32 %v1206, 7
        %v1208 = vsub.s32 0, %v1207
        %v1209 = vrot.slane %v776, %v1208
        %v1210 = vlaneseq
        %v1211 = vshrl.u32 %v1210, 7
        %v1212 = vsub.s32 0, %v1211
        %v1213 = vrot.slane %v778, %v1212
        %v1214 = vlaneseq
        %v1215 = vshrl.u32 %v1214, 7
        %v1216 = vsub.s32 0, %v1215
        %v1217 = vrot.slane %v780, %v1216
        %v1218 = vlaneseq
        %v1219 = vshrl.u32 %v1218, 7
        %v1220 = vsub.s32 0, %v1219
        %v1221 = vrot.slane %v804, %v1220
        %v1222 = vlaneseq
        %v1223 = vshrl.u32 %v1222, 7
        %v1224 = vsub.s32 0, %v1223
        %v1225 = vrot.slane %v818, %v1224
        %v1226 = vlaneseq
        %v1227 = vshrl.u32 %v1226, 7
        %v1228 = vsub.s32 0, %v1227
        %v1229 = vrot.slane %v826, %v1228
        %v1230 = vlaneseq
        %v1231 = vshrl.u32 %v1230, 7
        %v1232 = vsub.s32 0, %v1231
        %v1233 = vrot.slane %v828, %v1232
        %v1234 = vlaneseq
        %v1235 = vshrl.u32 %v1234, 7
        %v1236 = vsub.s32 0, %v1235
        %v1237 = vrot.slane %v811, %v1236
        %v1238 = vlaneseq
        %v1239 = vshrl.u32 %v1238, 7
        %v1240 = vsub.s32 0, %v1239
        %v1241 = vrot.slane %v825, %v1240
        %v1242 = vlaneseq
        %v1243 = vshrl.u32 %v1242, 7
        %v1244 = vsub.s32 0, %v1243
        %v1245 = vrot.slane %v827, %v1244
        %v1246 = vlaneseq
        %v1247 = vshrl.u32 %v1246, 7
        %v1248 = vsub.s32 0, %v1247
        %v1249 = vrot.slane %v829, %v1248
        %v1250 = vlaneseq
        %v1251 = vshrl.u32 %v1250, 7
        %v1252 = vsub.s32 0, %v1251
        %v1253 = vrot.slane %v853, %v1252
        %v1254 = vlaneseq
        %v1255 = vshrl.u32 %v1254, 7
        %v1256 = vsub.s32 0, %v1255
        %v1257 = vrot.slane %v867, %v1256
        %v1258 = vlaneseq
        %v1259 = vshrl.u32 %v1258, 7
        %v1260 = vsub.s32 0, %v1259
        %v1261 = vrot.slane %v875, %v1260
        %v1262 = vlaneseq
        %v1263 = vshrl.u32 %v1262, 7
        %v1264 = vsub.s32 0, %v1263
        %v1265 = vrot.slane %v877, %v1264
        %v1266 = vlaneseq
        %v1267 = vshrl.u32 %v1266, 7
        %v1268 = vsub.s32 0, %v1267
        %v1269 = vrot.slane %v860, %v1268
        %v1270 = vlaneseq
        %v1271 = vshrl.u32 %v1270, 7
        %v1272 = vsub.s32 0, %v1271
        %v1273 = vrot.slane %v874, %v1272
        %v1274 = vlaneseq
        %v1275 = vshrl.u32 %v1274, 7
        %v1276 = vsub.s32 0, %v1275
        %v1277 = vrot.slane %v876, %v1276
        %v1278 = vlaneseq
        %v1279 = vshrl.u32 %v1278, 7
        %v1280 = vsub.s32 0, %v1279
        %v1281 = vrot.slane %v878, %v1280
        %v1282 = vlaneseq
        %v1283 = vshrl.u32 %v1282, 7
        %v1284 = vsub.s32 0, %v1283
        %v1285 = vrot.slane %v902, %v1284
        %v1286 = vlaneseq
        %v1287 = vshrl.u32 %v1286, 7
        %v1288 = vsub.s32 0, %v1287
        %v1289 = vrot.slane %v916, %v1288
        %v1290 = vlaneseq
        %v1291 = vshrl.u32 %v1290, 7
        %v1292 = vsub.s32 0, %v1291
        %v1293 = vrot.slane %v924, %v1292
        %v1294 = vlaneseq
        %v1295 = vshrl.u32 %v1294, 7
        %v1296 = vsub.s32 0, %v1295
        %v1297 = vrot.slane %v926, %v1296
        %v1298 = vlaneseq
        %v1299 = vshrl.u32 %v1298, 7
        %v1300 = vsub.s32 0, %v1299
        %v1301 = vrot.slane %v909, %v1300
        %v1302 = vlaneseq
        %v1303 = vshrl.u32 %v1302, 7
        %v1304 = vsub.s32 0, %v1303
        %v1305 = vrot.slane %v923, %v1304
        %v1306 = vlaneseq
        %v1307 = vshrl.u32 %v1306, 7
        %v1308 = vsub.s32 0, %v1307
        %v1309 = vrot.slane %v925, %v1308
        %v1310 = vlaneseq
        %v1311 = vshrl.u32 %v1310, 7
        %v1312 = vsub.s32 0, %v1311
        %v1313 = vrot.slane %v927, %v1312
        %1314 = vrot.lane.b32.xlu0 %v1061, 126
        %v1315 = vpop.permute.xlu0 %1314
        %1316 = vrot.lane.b32.xlu0 %v1065, 126
        %v1317 = vpop.permute.xlu0 %1316
        %1318 = vrot.lane.b32.xlu0 %v1069, 126
        %v1319 = vpop.permute.xlu0 %1318
        %1320 = vrot.lane.b32.xlu0 %v1073, 126
        %v1321 = vpop.permute.xlu0 %1320
        %1322 = vrot.lane.b32.xlu0 %v1077, 126
        %v1323 = vpop.permute.xlu0 %1322
        %1324 = vrot.lane.b32.xlu0 %v1081, 126
        %v1325 = vpop.permute.xlu0 %1324
        %1326 = vrot.lane.b32.xlu0 %v1085, 126
        %v1327 = vpop.permute.xlu0 %1326
        %1328 = vrot.lane.b32.xlu0 %v1089, 126
        %v1329 = vpop.permute.xlu0 %1328
        %1330 = vrot.lane.b32.xlu0 %v1093, 126
        %v1331 = vpop.permute.xlu0 %1330
        %1332 = vrot.lane.b32.xlu0 %v1097, 126
        %v1333 = vpop.permute.xlu0 %1332
        %1334 = vrot.lane.b32.xlu0 %v1101, 126
        %v1335 = vpop.permute.xlu0 %1334
        %1336 = vrot.lane.b32.xlu0 %v1105, 126
        %v1337 = vpop.permute.xlu0 %1336
        %1338 = vrot.lane.b32.xlu0 %v1109, 126
        %v1339 = vpop.permute.xlu0 %1338
        %1340 = vrot.lane.b32.xlu0 %v1113, 126
        %v1341 = vpop.permute.xlu0 %1340
        %1342 = vrot.lane.b32.xlu0 %v1117, 126
        %v1343 = vpop.permute.xlu0 %1342
        %1344 = vrot.lane.b32.xlu0 %v1121, 126
        %v1345 = vpop.permute.xlu0 %1344
        %1346 = vrot.lane.b32.xlu0 %v1125, 126
        %v1347 = vpop.permute.xlu0 %1346
        %1348 = vrot.lane.b32.xlu0 %v1129, 126
        %v1349 = vpop.permute.xlu0 %1348
        %1350 = vrot.lane.b32.xlu0 %v1133, 126
        %v1351 = vpop.permute.xlu0 %1350
        %1352 = vrot.lane.b32.xlu0 %v1137, 126
        %v1353 = vpop.permute.xlu0 %1352
        %1354 = vrot.lane.b32.xlu0 %v1141, 126
        %v1355 = vpop.permute.xlu0 %1354
        %1356 = vrot.lane.b32.xlu0 %v1145, 126
        %v1357 = vpop.permute.xlu0 %1356
        %1358 = vrot.lane.b32.xlu0 %v1149, 126
        %v1359 = vpop.permute.xlu0 %1358
        %1360 = vrot.lane.b32.xlu0 %v1153, 126
        %v1361 = vpop.permute.xlu0 %1360
        %1362 = vrot.lane.b32.xlu0 %v1157, 126
        %v1363 = vpop.permute.xlu0 %1362
        %1364 = vrot.lane.b32.xlu0 %v1161, 126
        %v1365 = vpop.permute.xlu0 %1364
        %1366 = vrot.lane.b32.xlu0 %v1165, 126
        %v1367 = vpop.permute.xlu0 %1366
        %1368 = vrot.lane.b32.xlu0 %v1169, 126
        %v1369 = vpop.permute.xlu0 %1368
        %1370 = vrot.lane.b32.xlu0 %v1173, 126
        %v1371 = vpop.permute.xlu0 %1370
        %1372 = vrot.lane.b32.xlu0 %v1177, 126
        %v1373 = vpop.permute.xlu0 %1372
        %1374 = vrot.lane.b32.xlu0 %v1181, 126
        %v1375 = vpop.permute.xlu0 %1374
        %1376 = vrot.lane.b32.xlu0 %v1185, 126
        %v1377 = vpop.permute.xlu0 %1376
        %1378 = vrot.lane.b32.xlu0 %v1189, 126
        %v1379 = vpop.permute.xlu0 %1378
        %1380 = vrot.lane.b32.xlu0 %v1193, 126
        %v1381 = vpop.permute.xlu0 %1380
        %1382 = vrot.lane.b32.xlu0 %v1197, 126
        %v1383 = vpop.permute.xlu0 %1382
        %1384 = vrot.lane.b32.xlu0 %v1201, 126
        %v1385 = vpop.permute.xlu0 %1384
        %1386 = vrot.lane.b32.xlu0 %v1205, 126
        %v1387 = vpop.permute.xlu0 %1386
        %1388 = vrot.lane.b32.xlu0 %v1209, 126
        %v1389 = vpop.permute.xlu0 %1388
        %1390 = vrot.lane.b32.xlu0 %v1213, 126
        %v1391 = vpop.permute.xlu0 %1390
        %1392 = vrot.lane.b32.xlu0 %v1217, 126
        %v1393 = vpop.permute.xlu0 %1392
        %1394 = vrot.lane.b32.xlu0 %v1221, 126
        %v1395 = vpop.permute.xlu0 %1394
        %1396 = vrot.lane.b32.xlu0 %v1225, 126
        %v1397 = vpop.permute.xlu0 %1396
        %1398 = vrot.lane.b32.xlu0 %v1229, 126
        %v1399 = vpop.permute.xlu0 %1398
        %1400 = vrot.lane.b32.xlu0 %v1233, 126
        %v1401 = vpop.permute.xlu0 %1400
        %1402 = vrot.lane.b32.xlu0 %v1237, 126
        %v1403 = vpop.permute.xlu0 %1402
        %1404 = vrot.lane.b32.xlu0 %v1241, 126
        %v1405 = vpop.permute.xlu0 %1404
        %1406 = vrot.lane.b32.xlu0 %v1245, 126
        %v1407 = vpop.permute.xlu0 %1406
        %1408 = vrot.lane.b32.xlu0 %v1249, 126
        %v1409 = vpop.permute.xlu0 %1408
        %1410 = vrot.lane.b32.xlu0 %v1253, 126
        %v1411 = vpop.permute.xlu0 %1410
        %1412 = vrot.lane.b32.xlu0 %v1257, 126
        %v1413 = vpop.permute.xlu0 %1412
        %1414 = vrot.lane.b32.xlu0 %v1261, 126
        %v1415 = vpop.permute.xlu0 %1414
        %1416 = vrot.lane.b32.xlu0 %v1265, 126
        %v1417 = vpop.permute.xlu0 %1416
        %1418 = vrot.lane.b32.xlu0 %v1269, 126
        %v1419 = vpop.permute.xlu0 %1418
        %1420 = vrot.lane.b32.xlu0 %v1273, 126
        %v1421 = vpop.permute.xlu0 %1420
        %1422 = vrot.lane.b32.xlu0 %v1277, 126
        %v1423 = vpop.permute.xlu0 %1422
        %1424 = vrot.lane.b32.xlu0 %v1281, 126
        %v1425 = vpop.permute.xlu0 %1424
        %1426 = vrot.lane.b32.xlu0 %v1285, 126
        %v1427 = vpop.permute.xlu0 %1426
        %1428 = vrot.lane.b32.xlu0 %v1289, 126
        %v1429 = vpop.permute.xlu0 %1428
        %1430 = vrot.lane.b32.xlu0 %v1293, 126
        %v1431 = vpop.permute.xlu0 %1430
        %1432 = vrot.lane.b32.xlu0 %v1297, 126
        %v1433 = vpop.permute.xlu0 %1432
        %1434 = vrot.lane.b32.xlu0 %v1301, 126
        %v1435 = vpop.permute.xlu0 %1434
        %1436 = vrot.lane.b32.xlu0 %v1305, 126
        %v1437 = vpop.permute.xlu0 %1436
        %1438 = vrot.lane.b32.xlu0 %v1309, 126
        %v1439 = vpop.permute.xlu0 %1438
        %1440 = vrot.lane.b32.xlu0 %v1313, 126
        %v1441 = vpop.permute.xlu0 %1440
        %s1506 = scalar_lea.vmem [#allocation2], 20
        %1507 = vst.msk [vmem:[%s1506] sm:$0x1] %vm993, %v1315
        %1508 = vst.msk [vmem:[%s1506 + $0x2] sm:$0x1] %vm993, %v1317
        %1509 = vst.msk [vmem:[%s1506 + $0x4] sm:$0x1] %vm993, %v1319
        %1510 = vst.msk [vmem:[%s1506 + $0x6] sm:$0x1] %vm993, %v1321
        %1511 = vst.msk [vmem:[%s1506 + $0x8] sm:$0x1] %vm993, %v1323
        %1512 = vst.msk [vmem:[%s1506 + $0xa] sm:$0x1] %vm993, %v1325
        %1513 = vst.msk [vmem:[%s1506 + $0xc] sm:$0x1] %vm993, %v1327
        %1514 = vst.msk [vmem:[%s1506 + $0xe] sm:$0x1] %vm993, %v1329
        %1515 = vst.msk [vmem:[%s1506 + $0x24] sm:$0x1] %vm993, %v1331
        %1516 = vst.msk [vmem:[%s1506 + $0x26] sm:$0x1] %vm993, %v1333
        %1517 = vst.msk [vmem:[%s1506 + $0x28] sm:$0x1] %vm993, %v1335
        %1518 = vst.msk [vmem:[%s1506 + $0x2a] sm:$0x1] %vm993, %v1337
        %1519 = vst.msk [vmem:[%s1506 + $0x2c] sm:$0x1] %vm993, %v1339
        %1520 = vst.msk [vmem:[%s1506 + $0x2e] sm:$0x1] %vm993, %v1341
        %1521 = vst.msk [vmem:[%s1506 + $0x30] sm:$0x1] %vm993, %v1343
        %1522 = vst.msk [vmem:[%s1506 + $0x32] sm:$0x1] %vm993, %v1345
        %1523 = vst.msk [vmem:[%s1506 + $0x48] sm:$0x1] %vm993, %v1347
        %1524 = vst.msk [vmem:[%s1506 + $0x4a] sm:$0x1] %vm993, %v1349
        %1525 = vst.msk [vmem:[%s1506 + $0x4c] sm:$0x1] %vm993, %v1351
        %1526 = vst.msk [vmem:[%s1506 + $0x4e] sm:$0x1] %vm993, %v1353
        %1527 = vst.msk [vmem:[%s1506 + $0x50] sm:$0x1] %vm993, %v1355
        %1528 = vst.msk [vmem:[%s1506 + $0x52] sm:$0x1] %vm993, %v1357
        %1529 = vst.msk [vmem:[%s1506 + $0x54] sm:$0x1] %vm993, %v1359
        %1530 = vst.msk [vmem:[%s1506 + $0x56] sm:$0x1] %vm993, %v1361
        %1531 = vst.msk [vmem:[%s1506 + $0x6c] sm:$0x1] %vm993, %v1363
        %1532 = vst.msk [vmem:[%s1506 + $0x6e] sm:$0x1] %vm993, %v1365
        %1533 = vst.msk [vmem:[%s1506 + $0x70] sm:$0x1] %vm993, %v1367
        %1534 = vst.msk [vmem:[%s1506 + $0x72] sm:$0x1] %vm993, %v1369
        %1535 = vst.msk [vmem:[%s1506 + $0x74] sm:$0x1] %vm993, %v1371
        %1536 = vst.msk [vmem:[%s1506 + $0x76] sm:$0x1] %vm993, %v1373
        %1537 = vst.msk [vmem:[%s1506 + $0x78] sm:$0x1] %vm993, %v1375
        %1538 = vst.msk [vmem:[%s1506 + $0x7a] sm:$0x1] %vm993, %v1377
        %1539 = vst.msk [vmem:[%s1506 + $0x90] sm:$0x1] %vm993, %v1379
        %1540 = vst.msk [vmem:[%s1506 + $0x92] sm:$0x1] %vm993, %v1381
        %1541 = vst.msk [vmem:[%s1506 + $0x94] sm:$0x1] %vm993, %v1383
        %1542 = vst.msk [vmem:[%s1506 + $0x96] sm:$0x1] %vm993, %v1385
        %1543 = vst.msk [vmem:[%s1506 + $0x98] sm:$0x1] %vm993, %v1387
        %1544 = vst.msk [vmem:[%s1506 + $0x9a] sm:$0x1] %vm993, %v1389
        %1545 = vst.msk [vmem:[%s1506 + $0x9c] sm:$0x1] %vm993, %v1391
        %1546 = vst.msk [vmem:[%s1506 + $0x9e] sm:$0x1] %vm993, %v1393
        %1547 = vst.msk [vmem:[%s1506 + $0xb4] sm:$0x1] %vm993, %v1395
        %1548 = vst.msk [vmem:[%s1506 + $0xb6] sm:$0x1] %vm993, %v1397
        %1549 = vst.msk [vmem:[%s1506 + $0xb8] sm:$0x1] %vm993, %v1399
        %1550 = vst.msk [vmem:[%s1506 + $0xba] sm:$0x1] %vm993, %v1401
        %1551 = vst.msk [vmem:[%s1506 + $0xbc] sm:$0x1] %vm993, %v1403
        %1552 = vst.msk [vmem:[%s1506 + $0xbe] sm:$0x1] %vm993, %v1405
        %1553 = vst.msk [vmem:[%s1506 + $0xc0] sm:$0x1] %vm993, %v1407
        %1554 = vst.msk [vmem:[%s1506 + $0xc2] sm:$0x1] %vm993, %v1409
        %1555 = vst.msk [vmem:[%s1506 + $0xd8] sm:$0x1] %vm993, %v1411
        %1556 = vst.msk [vmem:[%s1506 + $0xda] sm:$0x1] %vm993, %v1413
        %1557 = vst.msk [vmem:[%s1506 + $0xdc] sm:$0x1] %vm993, %v1415
        %1558 = vst.msk [vmem:[%s1506 + $0xde] sm:$0x1] %vm993, %v1417
        %1559 = vst.msk [vmem:[%s1506 + $0xe0] sm:$0x1] %vm993, %v1419
        %1560 = vst.msk [vmem:[%s1506 + $0xe2] sm:$0x1] %vm993, %v1421
        %1561 = vst.msk [vmem:[%s1506 + $0xe4] sm:$0x1] %vm993, %v1423
        %1562 = vst.msk [vmem:[%s1506 + $0xe6] sm:$0x1] %vm993, %v1425
        %1563 = vst.msk [vmem:[%s1506 + $0xfc] sm:$0x1] %vm993, %v1427
        %1564 = vst.msk [vmem:[%s1506 + $0xfe] sm:$0x1] %vm993, %v1429
        %1565 = vst.msk [vmem:[%s1506 + $0x100] sm:$0x1] %vm993, %v1431
        %1566 = vst.msk [vmem:[%s1506 + $0x102] sm:$0x1] %vm993, %v1433
        %1567 = vst.msk [vmem:[%s1506 + $0x104] sm:$0x1] %vm993, %v1435
        %1568 = vst.msk [vmem:[%s1506 + $0x106] sm:$0x1] %vm993, %v1437
        %1569 = vst.msk [vmem:[%s1506 + $0x108] sm:$0x1] %vm993, %v1439
        %1570 = vst.msk [vmem:[%s1506 + $0x10a] sm:$0x1] %vm993, %v1441
        %1571 = vrot.lane.b32.xlu0 %v1061, 124
        %v1572 = vpop.permute.xlu0 %1571
        %1573 = vrot.lane.b32.xlu0 %v1065, 124
        %v1574 = vpop.permute.xlu0 %1573
        %1575 = vrot.lane.b32.xlu0 %v1069, 124
        %v1576 = vpop.permute.xlu0 %1575
        %1577 = vrot.lane.b32.xlu0 %v1073, 124
        %v1578 = vpop.permute.xlu0 %1577
        %1579 = vrot.lane.b32.xlu0 %v1077, 124
        %v1580 = vpop.permute.xlu0 %1579
        %1581 = vrot.lane.b32.xlu0 %v1081, 124
        %v1582 = vpop.permute.xlu0 %1581
        %1583 = vrot.lane.b32.xlu0 %v1085, 124
        %v1584 = vpop.permute.xlu0 %1583
        %1585 = vrot.lane.b32.xlu0 %v1089, 124
        %v1586 = vpop.permute.xlu0 %1585
        %1587 = vrot.lane.b32.xlu0 %v1093, 124
        %v1588 = vpop.permute.xlu0 %1587
        %1589 = vrot.lane.b32.xlu0 %v1097, 124
        %v1590 = vpop.permute.xlu0 %1589
        %1591 = vrot.lane.b32.xlu0 %v1101, 124
        %v1592 = vpop.permute.xlu0 %1591
        %1593 = vrot.lane.b32.xlu0 %v1105, 124
        %v1594 = vpop.permute.xlu0 %1593
        %1595 = vrot.lane.b32.xlu0 %v1109, 124
        %v1596 = vpop.permute.xlu0 %1595
        %1597 = vrot.lane.b32.xlu0 %v1113, 124
        %v1598 = vpop.permute.xlu0 %1597
        %1599 = vrot.lane.b32.xlu0 %v1117, 124
        %v1600 = vpop.permute.xlu0 %1599
        %1601 = vrot.lane.b32.xlu0 %v1121, 124
        %v1602 = vpop.permute.xlu0 %1601
        %1603 = vrot.lane.b32.xlu0 %v1125, 124
        %v1604 = vpop.permute.xlu0 %1603
        %1605 = vrot.lane.b32.xlu0 %v1129, 124
        %v1606 = vpop.permute.xlu0 %1605
        %1607 = vrot.lane.b32.xlu0 %v1133, 124
        %v1608 = vpop.permute.xlu0 %1607
        %1609 = vrot.lane.b32.xlu0 %v1137, 124
        %v1610 = vpop.permute.xlu0 %1609
        %1611 = vrot.lane.b32.xlu0 %v1141, 124
        %v1612 = vpop.permute.xlu0 %1611
        %1613 = vrot.lane.b32.xlu0 %v1145, 124
        %v1614 = vpop.permute.xlu0 %1613
        %1615 = vrot.lane.b32.xlu0 %v1149, 124
        %v1616 = vpop.permute.xlu0 %1615
        %1617 = vrot.lane.b32.xlu0 %v1153, 124
        %v1618 = vpop.permute.xlu0 %1617
        %1619 = vrot.lane.b32.xlu0 %v1157, 124
        %v1620 = vpop.permute.xlu0 %1619
        %1621 = vrot.lane.b32.xlu0 %v1161, 124
        %v1622 = vpop.permute.xlu0 %1621
        %1623 = vrot.lane.b32.xlu0 %v1165, 124
        %v1624 = vpop.permute.xlu0 %1623
        %1625 = vrot.lane.b32.xlu0 %v1169, 124
        %v1626 = vpop.permute.xlu0 %1625
        %1627 = vrot.lane.b32.xlu0 %v1173, 124
        %v1628 = vpop.permute.xlu0 %1627
        %1629 = vrot.lane.b32.xlu0 %v1177, 124
        %v1630 = vpop.permute.xlu0 %1629
        %1631 = vrot.lane.b32.xlu0 %v1181, 124
        %v1632 = vpop.permute.xlu0 %1631
        %1633 = vrot.lane.b32.xlu0 %v1185, 124
        %v1634 = vpop.permute.xlu0 %1633
        %1635 = vrot.lane.b32.xlu0 %v1189, 124
        %v1636 = vpop.permute.xlu0 %1635
        %1637 = vrot.lane.b32.xlu0 %v1193, 124
        %v1638 = vpop.permute.xlu0 %1637
        %1639 = vrot.lane.b32.xlu0 %v1197, 124
        %v1640 = vpop.permute.xlu0 %1639
        %1641 = vrot.lane.b32.xlu0 %v1201, 124
        %v1642 = vpop.permute.xlu0 %1641
        %1643 = vrot.lane.b32.xlu0 %v1205, 124
        %v1644 = vpop.permute.xlu0 %1643
        %1645 = vrot.lane.b32.xlu0 %v1209, 124
        %v1646 = vpop.permute.xlu0 %1645
        %1647 = vrot.lane.b32.xlu0 %v1213, 124
        %v1648 = vpop.permute.xlu0 %1647
        %1649 = vrot.lane.b32.xlu0 %v1217, 124
        %v1650 = vpop.permute.xlu0 %1649
        %1651 = vrot.lane.b32.xlu0 %v1221, 124
        %v1652 = vpop.permute.xlu0 %1651
        %1653 = vrot.lane.b32.xlu0 %v1225, 124
        %v1654 = vpop.permute.xlu0 %1653
        %1655 = vrot.lane.b32.xlu0 %v1229, 124
        %v1656 = vpop.permute.xlu0 %1655
        %1657 = vrot.lane.b32.xlu0 %v1233, 124
        %v1658 = vpop.permute.xlu0 %1657
        %1659 = vrot.lane.b32.xlu0 %v1237, 124
        %v1660 = vpop.permute.xlu0 %1659
        %1661 = vrot.lane.b32.xlu0 %v1241, 124
        %v1662 = vpop.permute.xlu0 %1661
        %1663 = vrot.lane.b32.xlu0 %v1245, 124
        %v1664 = vpop.permute.xlu0 %1663
        %1665 = vrot.lane.b32.xlu0 %v1249, 124
        %v1666 = vpop.permute.xlu0 %1665
        %1667 = vrot.lane.b32.xlu0 %v1253, 124
        %v1668 = vpop.permute.xlu0 %1667
        %1669 = vrot.lane.b32.xlu0 %v1257, 124
        %v1670 = vpop.permute.xlu0 %1669
        %1671 = vrot.lane.b32.xlu0 %v1261, 124
        %v1672 = vpop.permute.xlu0 %1671
        %1673 = vrot.lane.b32.xlu0 %v1265, 124
        %v1674 = vpop.permute.xlu0 %1673
        %1675 = vrot.lane.b32.xlu0 %v1269, 124
        %v1676 = vpop.permute.xlu0 %1675
        %1677 = vrot.lane.b32.xlu0 %v1273, 124
        %v1678 = vpop.permute.xlu0 %1677
        %1679 = vrot.lane.b32.xlu0 %v1277, 124
        %v1680 = vpop.permute.xlu0 %1679
        %1681 = vrot.lane.b32.xlu0 %v1281, 124
        %v1682 = vpop.permute.xlu0 %1681
        %1683 = vrot.lane.b32.xlu0 %v1285, 124
        %v1684 = vpop.permute.xlu0 %1683
        %1685 = vrot.lane.b32.xlu0 %v1289, 124
        %v1686 = vpop.permute.xlu0 %1685
        %1687 = vrot.lane.b32.xlu0 %v1293, 124
        %v1688 = vpop.permute.xlu0 %1687
        %1689 = vrot.lane.b32.xlu0 %v1297, 124
        %v1690 = vpop.permute.xlu0 %1689
        %1691 = vrot.lane.b32.xlu0 %v1301, 124
        %v1692 = vpop.permute.xlu0 %1691
        %1693 = vrot.lane.b32.xlu0 %v1305, 124
        %v1694 = vpop.permute.xlu0 %1693
        %1695 = vrot.lane.b32.xlu0 %v1309, 124
        %v1696 = vpop.permute.xlu0 %1695
        %1697 = vrot.lane.b32.xlu0 %v1313, 124
        %v1698 = vpop.permute.xlu0 %1697
        %s1763 = scalar_lea.vmem [#allocation2], 36
        %1764 = vst.msk [vmem:[%s1763 + $0x1] sm:$0x1] %vm993, %v1572
        %1765 = vst.msk [vmem:[%s1763 + $0x3] sm:$0x1] %vm993, %v1574
        %1766 = vst.msk [vmem:[%s1763 + $0x5] sm:$0x1] %vm993, %v1576
        %1767 = vst.msk [vmem:[%s1763 + $0x7] sm:$0x1] %vm993, %v1578
        %1768 = vst.msk [vmem:[%s1763 + $0x9] sm:$0x1] %vm993, %v1580
        %1769 = vst.msk [vmem:[%s1763 + $0xb] sm:$0x1] %vm993, %v1582
        %1770 = vst.msk [vmem:[%s1763 + $0xd] sm:$0x1] %vm993, %v1584
        %1771 = vst.msk [vmem:[%s1763 + $0xf] sm:$0x1] %vm993, %v1586
        %1772 = vst.msk [vmem:[%s1763 + $0x25] sm:$0x1] %vm993, %v1588
        %1773 = vst.msk [vmem:[%s1763 + $0x27] sm:$0x1] %vm993, %v1590
        %1774 = vst.msk [vmem:[%s1763 + $0x29] sm:$0x1] %vm993, %v1592
        %1775 = vst.msk [vmem:[%s1763 + $0x2b] sm:$0x1] %vm993, %v1594
        %1776 = vst.msk [vmem:[%s1763 + $0x2d] sm:$0x1] %vm993, %v1596
        %1777 = vst.msk [vmem:[%s1763 + $0x2f] sm:$0x1] %vm993, %v1598
        %1778 = vst.msk [vmem:[%s1763 + $0x31] sm:$0x1] %vm993, %v1600
        %1779 = vst.msk [vmem:[%s1763 + $0x33] sm:$0x1] %vm993, %v1602
        %1780 = vst.msk [vmem:[%s1763 + $0x49] sm:$0x1] %vm993, %v1604
        %1781 = vst.msk [vmem:[%s1763 + $0x4b] sm:$0x1] %vm993, %v1606
        %1782 = vst.msk [vmem:[%s1763 + $0x4d] sm:$0x1] %vm993, %v1608
        %1783 = vst.msk [vmem:[%s1763 + $0x4f] sm:$0x1] %vm993, %v1610
        %1784 = vst.msk [vmem:[%s1763 + $0x51] sm:$0x1] %vm993, %v1612
        %1785 = vst.msk [vmem:[%s1763 + $0x53] sm:$0x1] %vm993, %v1614
        %1786 = vst.msk [vmem:[%s1763 + $0x55] sm:$0x1] %vm993, %v1616
        %1787 = vst.msk [vmem:[%s1763 + $0x57] sm:$0x1] %vm993, %v1618
        %1788 = vst.msk [vmem:[%s1763 + $0x6d] sm:$0x1] %vm993, %v1620
        %1789 = vst.msk [vmem:[%s1763 + $0x6f] sm:$0x1] %vm993, %v1622
        %1790 = vst.msk [vmem:[%s1763 + $0x71] sm:$0x1] %vm993, %v1624
        %1791 = vst.msk [vmem:[%s1763 + $0x73] sm:$0x1] %vm993, %v1626
        %1792 = vst.msk [vmem:[%s1763 + $0x75] sm:$0x1] %vm993, %v1628
        %1793 = vst.msk [vmem:[%s1763 + $0x77] sm:$0x1] %vm993, %v1630
        %1794 = vst.msk [vmem:[%s1763 + $0x79] sm:$0x1] %vm993, %v1632
        %1795 = vst.msk [vmem:[%s1763 + $0x7b] sm:$0x1] %vm993, %v1634
        %1796 = vst.msk [vmem:[%s1763 + $0x91] sm:$0x1] %vm993, %v1636
        %1797 = vst.msk [vmem:[%s1763 + $0x93] sm:$0x1] %vm993, %v1638
        %1798 = vst.msk [vmem:[%s1763 + $0x95] sm:$0x1] %vm993, %v1640
        %1799 = vst.msk [vmem:[%s1763 + $0x97] sm:$0x1] %vm993, %v1642
        %1800 = vst.msk [vmem:[%s1763 + $0x99] sm:$0x1] %vm993, %v1644
        %1801 = vst.msk [vmem:[%s1763 + $0x9b] sm:$0x1] %vm993, %v1646
        %1802 = vst.msk [vmem:[%s1763 + $0x9d] sm:$0x1] %vm993, %v1648
        %1803 = vst.msk [vmem:[%s1763 + $0x9f] sm:$0x1] %vm993, %v1650
        %1804 = vst.msk [vmem:[%s1763 + $0xb5] sm:$0x1] %vm993, %v1652
        %1805 = vst.msk [vmem:[%s1763 + $0xb7] sm:$0x1] %vm993, %v1654
        %1806 = vst.msk [vmem:[%s1763 + $0xb9] sm:$0x1] %vm993, %v1656
        %1807 = vst.msk [vmem:[%s1763 + $0xbb] sm:$0x1] %vm993, %v1658
        %1808 = vst.msk [vmem:[%s1763 + $0xbd] sm:$0x1] %vm993, %v1660
        %1809 = vst.msk [vmem:[%s1763 + $0xbf] sm:$0x1] %vm993, %v1662
        %1810 = vst.msk [vmem:[%s1763 + $0xc1] sm:$0x1] %vm993, %v1664
        %1811 = vst.msk [vmem:[%s1763 + $0xc3] sm:$0x1] %vm993, %v1666
        %1812 = vst.msk [vmem:[%s1763 + $0xd9] sm:$0x1] %vm993, %v1668
        %1813 = vst.msk [vmem:[%s1763 + $0xdb] sm:$0x1] %vm993, %v1670
        %1814 = vst.msk [vmem:[%s1763 + $0xdd] sm:$0x1] %vm993, %v1672
        %1815 = vst.msk [vmem:[%s1763 + $0xdf] sm:$0x1] %vm993, %v1674
        %1816 = vst.msk [vmem:[%s1763 + $0xe1] sm:$0x1] %vm993, %v1676
        %1817 = vst.msk [vmem:[%s1763 + $0xe3] sm:$0x1] %vm993, %v1678
        %1818 = vst.msk [vmem:[%s1763 + $0xe5] sm:$0x1] %vm993, %v1680
        %1819 = vst.msk [vmem:[%s1763 + $0xe7] sm:$0x1] %vm993, %v1682
        %1820 = vst.msk [vmem:[%s1763 + $0xfd] sm:$0x1] %vm993, %v1684
        %1821 = vst.msk [vmem:[%s1763 + $0xff] sm:$0x1] %vm993, %v1686
        %1822 = vst.msk [vmem:[%s1763 + $0x101] sm:$0x1] %vm993, %v1688
        %1823 = vst.msk [vmem:[%s1763 + $0x103] sm:$0x1] %vm993, %v1690
        %1824 = vst.msk [vmem:[%s1763 + $0x105] sm:$0x1] %vm993, %v1692
        %1825 = vst.msk [vmem:[%s1763 + $0x107] sm:$0x1] %vm993, %v1694
        %1826 = vst.msk [vmem:[%s1763 + $0x109] sm:$0x1] %vm993, %v1696
        %1827 = vst.msk [vmem:[%s1763 + $0x10b] sm:$0x1] %vm993, %v1698
        %1828 = vrot.lane.b32.xlu0 %v1061, 122
        %v1829 = vpop.permute.xlu0 %1828
        %1830 = vrot.lane.b32.xlu0 %v1065, 122
        %v1831 = vpop.permute.xlu0 %1830
        %1832 = vrot.lane.b32.xlu0 %v1069, 122
        %v1833 = vpop.permute.xlu0 %1832
        %1834 = vrot.lane.b32.xlu0 %v1073, 122
        %v1835 = vpop.permute.xlu0 %1834
        %1836 = vrot.lane.b32.xlu0 %v1077, 122
        %v1837 = vpop.permute.xlu0 %1836
        %1838 = vrot.lane.b32.xlu0 %v1081, 122
        %v1839 = vpop.permute.xlu0 %1838
        %1840 = vrot.lane.b32.xlu0 %v1085, 122
        %v1841 = vpop.permute.xlu0 %1840
        %1842 = vrot.lane.b32.xlu0 %v1089, 122
        %v1843 = vpop.permute.xlu0 %1842
        %1844 = vrot.lane.b32.xlu0 %v1093, 122
        %v1845 = vpop.permute.xlu0 %1844
        %1846 = vrot.lane.b32.xlu0 %v1097, 122
        %v1847 = vpop.permute.xlu0 %1846
        %1848 = vrot.lane.b32.xlu0 %v1101, 122
        %v1849 = vpop.permute.xlu0 %1848
        %1850 = vrot.lane.b32.xlu0 %v1105, 122
        %v1851 = vpop.permute.xlu0 %1850
        %1852 = vrot.lane.b32.xlu0 %v1109, 122
        %v1853 = vpop.permute.xlu0 %1852
        %1854 = vrot.lane.b32.xlu0 %v1113, 122
        %v1855 = vpop.permute.xlu0 %1854
        %1856 = vrot.lane.b32.xlu0 %v1117, 122
        %v1857 = vpop.permute.xlu0 %1856
        %1858 = vrot.lane.b32.xlu0 %v1121, 122
        %v1859 = vpop.permute.xlu0 %1858
        %1860 = vrot.lane.b32.xlu0 %v1125, 122
        %v1861 = vpop.permute.xlu0 %1860
        %1862 = vrot.lane.b32.xlu0 %v1129, 122
        %v1863 = vpop.permute.xlu0 %1862
        %1864 = vrot.lane.b32.xlu0 %v1133, 122
        %v1865 = vpop.permute.xlu0 %1864
        %1866 = vrot.lane.b32.xlu0 %v1137, 122
        %v1867 = vpop.permute.xlu0 %1866
        %1868 = vrot.lane.b32.xlu0 %v1141, 122
        %v1869 = vpop.permute.xlu0 %1868
        %1870 = vrot.lane.b32.xlu0 %v1145, 122
        %v1871 = vpop.permute.xlu0 %1870
        %1872 = vrot.lane.b32.xlu0 %v1149, 122
        %v1873 = vpop.permute.xlu0 %1872
        %1874 = vrot.lane.b32.xlu0 %v1153, 122
        %v1875 = vpop.permute.xlu0 %1874
        %1876 = vrot.lane.b32.xlu0 %v1157, 122
        %v1877 = vpop.permute.xlu0 %1876
        %1878 = vrot.lane.b32.xlu0 %v1161, 122
        %v1879 = vpop.permute.xlu0 %1878
        %1880 = vrot.lane.b32.xlu0 %v1165, 122
        %v1881 = vpop.permute.xlu0 %1880
        %1882 = vrot.lane.b32.xlu0 %v1169, 122
        %v1883 = vpop.permute.xlu0 %1882
        %1884 = vrot.lane.b32.xlu0 %v1173, 122
        %v1885 = vpop.permute.xlu0 %1884
        %1886 = vrot.lane.b32.xlu0 %v1177, 122
        %v1887 = vpop.permute.xlu0 %1886
        %1888 = vrot.lane.b32.xlu0 %v1181, 122
        %v1889 = vpop.permute.xlu0 %1888
        %1890 = vrot.lane.b32.xlu0 %v1185, 122
        %v1891 = vpop.permute.xlu0 %1890
        %1892 = vrot.lane.b32.xlu0 %v1189, 122
        %v1893 = vpop.permute.xlu0 %1892
        %1894 = vrot.lane.b32.xlu0 %v1193, 122
        %v1895 = vpop.permute.xlu0 %1894
        %1896 = vrot.lane.b32.xlu0 %v1197, 122
        %v1897 = vpop.permute.xlu0 %1896
        %1898 = vrot.lane.b32.xlu0 %v1201, 122
        %v1899 = vpop.permute.xlu0 %1898
        %1900 = vrot.lane.b32.xlu0 %v1205, 122
        %v1901 = vpop.permute.xlu0 %1900
        %1902 = vrot.lane.b32.xlu0 %v1209, 122
        %v1903 = vpop.permute.xlu0 %1902
        %1904 = vrot.lane.b32.xlu0 %v1213, 122
        %v1905 = vpop.permute.xlu0 %1904
        %1906 = vrot.lane.b32.xlu0 %v1217, 122
        %v1907 = vpop.permute.xlu0 %1906
        %1908 = vrot.lane.b32.xlu0 %v1221, 122
        %v1909 = vpop.permute.xlu0 %1908
        %1910 = vrot.lane.b32.xlu0 %v1225, 122
        %v1911 = vpop.permute.xlu0 %1910
        %1912 = vrot.lane.b32.xlu0 %v1229, 122
        %v1913 = vpop.permute.xlu0 %1912
        %1914 = vrot.lane.b32.xlu0 %v1233, 122
        %v1915 = vpop.permute.xlu0 %1914
        %1916 = vrot.lane.b32.xlu0 %v1237, 122
        %v1917 = vpop.permute.xlu0 %1916
        %1918 = vrot.lane.b32.xlu0 %v1241, 122
        %v1919 = vpop.permute.xlu0 %1918
        %1920 = vrot.lane.b32.xlu0 %v1245, 122
        %v1921 = vpop.permute.xlu0 %1920
        %1922 = vrot.lane.b32.xlu0 %v1249, 122
        %v1923 = vpop.permute.xlu0 %1922
        %1924 = vrot.lane.b32.xlu0 %v1253, 122
        %v1925 = vpop.permute.xlu0 %1924
        %1926 = vrot.lane.b32.xlu0 %v1257, 122
        %v1927 = vpop.permute.xlu0 %1926
        %1928 = vrot.lane.b32.xlu0 %v1261, 122
        %v1929 = vpop.permute.xlu0 %1928
        %1930 = vrot.lane.b32.xlu0 %v1265, 122
        %v1931 = vpop.permute.xlu0 %1930
        %1932 = vrot.lane.b32.xlu0 %v1269, 122
        %v1933 = vpop.permute.xlu0 %1932
        %1934 = vrot.lane.b32.xlu0 %v1273, 122
        %v1935 = vpop.permute.xlu0 %1934
        %1936 = vrot.lane.b32.xlu0 %v1277, 122
        %v1937 = vpop.permute.xlu0 %1936
        %1938 = vrot.lane.b32.xlu0 %v1281, 122
        %v1939 = vpop.permute.xlu0 %1938
        %1940 = vrot.lane.b32.xlu0 %v1285, 122
        %v1941 = vpop.permute.xlu0 %1940
        %1942 = vrot.lane.b32.xlu0 %v1289, 122
        %v1943 = vpop.permute.xlu0 %1942
        %1944 = vrot.lane.b32.xlu0 %v1293, 122
        %v1945 = vpop.permute.xlu0 %1944
        %1946 = vrot.lane.b32.xlu0 %v1297, 122
        %v1947 = vpop.permute.xlu0 %1946
        %1948 = vrot.lane.b32.xlu0 %v1301, 122
        %v1949 = vpop.permute.xlu0 %1948
        %1950 = vrot.lane.b32.xlu0 %v1305, 122
        %v1951 = vpop.permute.xlu0 %1950
        %1952 = vrot.lane.b32.xlu0 %v1309, 122
        %v1953 = vpop.permute.xlu0 %1952
        %1954 = vrot.lane.b32.xlu0 %v1313, 122
        %v1955 = vpop.permute.xlu0 %1954
        %s2020 = scalar_lea.vmem [#allocation2], 38
        %2021 = vst.msk [vmem:[%s2020] sm:$0x1] %vm993, %v1829
        %2022 = vst.msk [vmem:[%s2020 + $0x2] sm:$0x1] %vm993, %v1831
        %2023 = vst.msk [vmem:[%s2020 + $0x4] sm:$0x1] %vm993, %v1833
        %2024 = vst.msk [vmem:[%s2020 + $0x6] sm:$0x1] %vm993, %v1835
        %2025 = vst.msk [vmem:[%s2020 + $0x8] sm:$0x1] %vm993, %v1837
        %2026 = vst.msk [vmem:[%s2020 + $0xa] sm:$0x1] %vm993, %v1839
        %2027 = vst.msk [vmem:[%s2020 + $0xc] sm:$0x1] %vm993, %v1841
        %2028 = vst.msk [vmem:[%s2020 + $0xe] sm:$0x1] %vm993, %v1843
        %2029 = vst.msk [vmem:[%s2020 + $0x24] sm:$0x1] %vm993, %v1845
        %2030 = vst.msk [vmem:[%s2020 + $0x26] sm:$0x1] %vm993, %v1847
        %2031 = vst.msk [vmem:[%s2020 + $0x28] sm:$0x1] %vm993, %v1849
        %2032 = vst.msk [vmem:[%s2020 + $0x2a] sm:$0x1] %vm993, %v1851
        %2033 = vst.msk [vmem:[%s2020 + $0x2c] sm:$0x1] %vm993, %v1853
        %2034 = vst.msk [vmem:[%s2020 + $0x2e] sm:$0x1] %vm993, %v1855
        %2035 = vst.msk [vmem:[%s2020 + $0x30] sm:$0x1] %vm993, %v1857
        %2036 = vst.msk [vmem:[%s2020 + $0x32] sm:$0x1] %vm993, %v1859
        %2037 = vst.msk [vmem:[%s2020 + $0x48] sm:$0x1] %vm993, %v1861
        %2038 = vst.msk [vmem:[%s2020 + $0x4a] sm:$0x1] %vm993, %v1863
        %2039 = vst.msk [vmem:[%s2020 + $0x4c] sm:$0x1] %vm993, %v1865
        %2040 = vst.msk [vmem:[%s2020 + $0x4e] sm:$0x1] %vm993, %v1867
        %2041 = vst.msk [vmem:[%s2020 + $0x50] sm:$0x1] %vm993, %v1869
        %2042 = vst.msk [vmem:[%s2020 + $0x52] sm:$0x1] %vm993, %v1871
        %2043 = vst.msk [vmem:[%s2020 + $0x54] sm:$0x1] %vm993, %v1873
        %2044 = vst.msk [vmem:[%s2020 + $0x56] sm:$0x1] %vm993, %v1875
        %2045 = vst.msk [vmem:[%s2020 + $0x6c] sm:$0x1] %vm993, %v1877
        %2046 = vst.msk [vmem:[%s2020 + $0x6e] sm:$0x1] %vm993, %v1879
        %2047 = vst.msk [vmem:[%s2020 + $0x70] sm:$0x1] %vm993, %v1881
        %2048 = vst.msk [vmem:[%s2020 + $0x72] sm:$0x1] %vm993, %v1883
        %2049 = vst.msk [vmem:[%s2020 + $0x74] sm:$0x1] %vm993, %v1885
        %2050 = vst.msk [vmem:[%s2020 + $0x76] sm:$0x1] %vm993, %v1887
        %2051 = vst.msk [vmem:[%s2020 + $0x78] sm:$0x1] %vm993, %v1889
        %2052 = vst.msk [vmem:[%s2020 + $0x7a] sm:$0x1] %vm993, %v1891
        %2053 = vst.msk [vmem:[%s2020 + $0x90] sm:$0x1] %vm993, %v1893
        %2054 = vst.msk [vmem:[%s2020 + $0x92] sm:$0x1] %vm993, %v1895
        %2055 = vst.msk [vmem:[%s2020 + $0x94] sm:$0x1] %vm993, %v1897
        %2056 = vst.msk [vmem:[%s2020 + $0x96] sm:$0x1] %vm993, %v1899
        %2057 = vst.msk [vmem:[%s2020 + $0x98] sm:$0x1] %vm993, %v1901
        %2058 = vst.msk [vmem:[%s2020 + $0x9a] sm:$0x1] %vm993, %v1903
        %2059 = vst.msk [vmem:[%s2020 + $0x9c] sm:$0x1] %vm993, %v1905
        %2060 = vst.msk [vmem:[%s2020 + $0x9e] sm:$0x1] %vm993, %v1907
        %2061 = vst.msk [vmem:[%s2020 + $0xb4] sm:$0x1] %vm993, %v1909
        %2062 = vst.msk [vmem:[%s2020 + $0xb6] sm:$0x1] %vm993, %v1911
        %2063 = vst.msk [vmem:[%s2020 + $0xb8] sm:$0x1] %vm993, %v1913
        %2064 = vst.msk [vmem:[%s2020 + $0xba] sm:$0x1] %vm993, %v1915
        %2065 = vst.msk [vmem:[%s2020 + $0xbc] sm:$0x1] %vm993, %v1917
        %2066 = vst.msk [vmem:[%s2020 + $0xbe] sm:$0x1] %vm993, %v1919
        %2067 = vst.msk [vmem:[%s2020 + $0xc0] sm:$0x1] %vm993, %v1921
        %2068 = vst.msk [vmem:[%s2020 + $0xc2] sm:$0x1] %vm993, %v1923
        %2069 = vst.msk [vmem:[%s2020 + $0xd8] sm:$0x1] %vm993, %v1925
        %2070 = vst.msk [vmem:[%s2020 + $0xda] sm:$0x1] %vm993, %v1927
        %2071 = vst.msk [vmem:[%s2020 + $0xdc] sm:$0x1] %vm993, %v1929
        %2072 = vst.msk [vmem:[%s2020 + $0xde] sm:$0x1] %vm993, %v1931
        %2073 = vst.msk [vmem:[%s2020 + $0xe0] sm:$0x1] %vm993, %v1933
        %2074 = vst.msk [vmem:[%s2020 + $0xe2] sm:$0x1] %vm993, %v1935
        %2075 = vst.msk [vmem:[%s2020 + $0xe4] sm:$0x1] %vm993, %v1937
        %2076 = vst.msk [vmem:[%s2020 + $0xe6] sm:$0x1] %vm993, %v1939
        %2077 = vst.msk [vmem:[%s2020 + $0xfc] sm:$0x1] %vm993, %v1941
        %2078 = vst.msk [vmem:[%s2020 + $0xfe] sm:$0x1] %vm993, %v1943
        %2079 = vst.msk [vmem:[%s2020 + $0x100] sm:$0x1] %vm993, %v1945
        %2080 = vst.msk [vmem:[%s2020 + $0x102] sm:$0x1] %vm993, %v1947
        %2081 = vst.msk [vmem:[%s2020 + $0x104] sm:$0x1] %vm993, %v1949
        %2082 = vst.msk [vmem:[%s2020 + $0x106] sm:$0x1] %vm993, %v1951
        %2083 = vst.msk [vmem:[%s2020 + $0x108] sm:$0x1] %vm993, %v1953
        %2084 = vst.msk [vmem:[%s2020 + $0x10a] sm:$0x1] %vm993, %v1955
        %vm2085 = vcmask 9216
        %2086 = vst.msk [vmem:[#allocation2] sm:$0x3] %vm2085, 0.0
        %2087 = vst.msk [vmem:[#allocation2 + $0x2] sm:$0x3] %vm2085, 0.0
        %2088 = vst.msk [vmem:[#allocation2 + $0x4] sm:$0x3] %vm2085, 0.0
        %2089 = vst.msk [vmem:[#allocation2 + $0x6] sm:$0x3] %vm2085, 0.0
        %2090 = vst.msk [vmem:[#allocation2 + $0x8] sm:$0x3] %vm2085, 0.0
        %2091 = vst.msk [vmem:[#allocation2 + $0xa] sm:$0x3] %vm2085, 0.0
        %2092 = vst.msk [vmem:[#allocation2 + $0xc] sm:$0x3] %vm2085, 0.0
        %2093 = vst.msk [vmem:[#allocation2 + $0xe] sm:$0x3] %vm2085, 0.0
        %2094 = vst.msk [vmem:[#allocation2 + $0x10] sm:$0x3] %vm2085, 0.0
        %s2095 = scalar_lea.vmem [#allocation2], 306
        %2096 = vst.msk [vmem:[%s2095] sm:$0x3] %vm2085, 0.0
        %2097 = vst.msk [vmem:[%s2095 + $0x2] sm:$0x3] %vm2085, 0.0
        %2098 = vst.msk [vmem:[%s2095 + $0x4] sm:$0x3] %vm2085, 0.0
        %2099 = vst.msk [vmem:[%s2095 + $0x6] sm:$0x3] %vm2085, 0.0
        %2100 = vst.msk [vmem:[%s2095 + $0x8] sm:$0x3] %vm2085, 0.0
        %2101 = vst.msk [vmem:[%s2095 + $0xa] sm:$0x3] %vm2085, 0.0
        %2102 = vst.msk [vmem:[%s2095 + $0xc] sm:$0x3] %vm2085, 0.0
        %2103 = vst.msk [vmem:[%s2095 + $0xe] sm:$0x3] %vm2085, 0.0
        %2104 = vst.msk [vmem:[%s2095 + $0x10] sm:$0x3] %vm2085, 0.0
        %2105 = vst.msk [vmem:[#allocation2] sm:$0x1] %vm993, 0.0
        %2106 = vst.msk [vmem:[#allocation2 + $0x12] sm:$0x1] %vm993, 0.0
        %2107 = vst.msk [vmem:[#allocation2 + $0x24] sm:$0x1] %vm993, 0.0
        %2108 = vst.msk [vmem:[#allocation2 + $0x36] sm:$0x1] %vm993, 0.0
        %2109 = vst.msk [vmem:[#allocation2 + $0x48] sm:$0x1] %vm993, 0.0
        %2110 = vst.msk [vmem:[#allocation2 + $0x5a] sm:$0x1] %vm993, 0.0
        %2111 = vst.msk [vmem:[#allocation2 + $0x6c] sm:$0x1] %vm993, 0.0
        %2112 = vst.msk [vmem:[#allocation2 + $0x7e] sm:$0x1] %vm993, 0.0
        %2113 = vst.msk [vmem:[#allocation2 + $0x90] sm:$0x1] %vm993, 0.0
        %2114 = vst.msk [vmem:[#allocation2 + $0xa2] sm:$0x1] %vm993, 0.0
        %2115 = vst.msk [vmem:[#allocation2 + $0xb4] sm:$0x1] %vm993, 0.0
        %2116 = vst.msk [vmem:[#allocation2 + $0xc6] sm:$0x1] %vm993, 0.0
        %2117 = vst.msk [vmem:[#allocation2 + $0xd8] sm:$0x1] %vm993, 0.0
        %2118 = vst.msk [vmem:[#allocation2 + $0xea] sm:$0x1] %vm993, 0.0
        %2119 = vst.msk [vmem:[#allocation2 + $0xfc] sm:$0x1] %vm993, 0.0
        %2120 = vst.msk [vmem:[#allocation2 + $0x10e] sm:$0x1] %vm993, 0.0
        %2121 = vst.msk [vmem:[#allocation2 + $0x120] sm:$0x1] %vm993, 0.0
        %2122 = vst.msk [vmem:[#allocation2 + $0x132] sm:$0x1] %vm993, 0.0
        %s2123 = scalar_lea.vmem [#allocation2], 16
        %2124 = vst.msk [vmem:[%s2123 + $0x1] sm:$0x1] %vm993, 0.0
        %2125 = vst.msk [vmem:[%s2123 + $0x13] sm:$0x1] %vm993, 0.0
        %2126 = vst.msk [vmem:[%s2123 + $0x25] sm:$0x1] %vm993, 0.0
        %2127 = vst.msk [vmem:[%s2123 + $0x37] sm:$0x1] %vm993, 0.0
        %2128 = vst.msk [vmem:[%s2123 + $0x49] sm:$0x1] %vm993, 0.0
        %2129 = vst.msk [vmem:[%s2123 + $0x5b] sm:$0x1] %vm993, 0.0
        %2130 = vst.msk [vmem:[%s2123 + $0x6d] sm:$0x1] %vm993, 0.0
        %2131 = vst.msk [vmem:[%s2123 + $0x7f] sm:$0x1] %vm993, 0.0
        %2132 = vst.msk [vmem:[%s2123 + $0x91] sm:$0x1] %vm993, 0.0
        %2133 = vst.msk [vmem:[%s2123 + $0xa3] sm:$0x1] %vm993, 0.0
        %2134 = vst.msk [vmem:[%s2123 + $0xb5] sm:$0x1] %vm993, 0.0
        %2135 = vst.msk [vmem:[%s2123 + $0xc7] sm:$0x1] %vm993, 0.0
        %2136 = vst.msk [vmem:[%s2123 + $0xd9] sm:$0x1] %vm993, 0.0
        %2137 = vst.msk [vmem:[%s2123 + $0xeb] sm:$0x1] %vm993, 0.0
        %2138 = vst.msk [vmem:[%s2123 + $0xfd] sm:$0x1] %vm993, 0.0
        %2139 = vst.msk [vmem:[%s2123 + $0x10f] sm:$0x1] %vm993, 0.0
        %2140 = vst.msk [vmem:[%s2123 + $0x121] sm:$0x1] %vm993, 0.0
        %2141 = vst.msk [vmem:[%s2123 + $0x133] sm:$0x1] %vm993, 0.0
        %v2142 = vld [vmem:[%s377] sm:$0xff]
        %v2143 = vld [vmem:[%s377 + $0x8] sm:$0xff]
        %v2144 = vld [vmem:[%s377 + $0x10] sm:$0xff]
        %v2145 = vld [vmem:[%s377 + $0x18] sm:$0xff]
        %v2146 = vld [vmem:[%s377 + $0x20] sm:$0xff]
        %v2147 = vld [vmem:[%s377 + $0x28] sm:$0xff]
        %v2148 = vld [vmem:[%s377 + $0x30] sm:$0xff]
        %v2149 = vld [vmem:[%s377 + $0x38] sm:$0xff]
        %v2150 = vld [vmem:[%s377 + $0x40] sm:$0xff]
        %v2151 = vld [vmem:[%s377 + $0x48] sm:$0xff]
        %v2152 = vld [vmem:[%s377 + $0x50] sm:$0xff]
        %v2153 = vld [vmem:[%s377 + $0x58] sm:$0xff]
        %v2154 = vld [vmem:[%s377 + $0x60] sm:$0xff]
        %v2155 = vld [vmem:[%s377 + $0x68] sm:$0xff]
        %v2156 = vld [vmem:[%s377 + $0x70] sm:$0xff]
        %v2157 = vld [vmem:[%s377 + $0x78] sm:$0xff]
        %v2158 = vld [vmem:[%s377 + $0x80] sm:$0xff]
        %v2159 = vld [vmem:[%s377 + $0x88] sm:$0xff]
        %v2160 = vld [vmem:[%s377 + $0x90] sm:$0xff]
        %v2161 = vld [vmem:[%s377 + $0x98] sm:$0xff]
        %v2162 = vld [vmem:[%s377 + $0xa0] sm:$0xff]
        %v2163 = vld [vmem:[%s377 + $0xa8] sm:$0xff]
        %v2164 = vld [vmem:[%s377 + $0xb0] sm:$0xff]
        %v2165 = vld [vmem:[%s377 + $0xb8] sm:$0xff]
        %v2166 = vld [vmem:[%s377 + $0xc0] sm:$0xff]
        %v2167 = vld [vmem:[%s377 + $0xc8] sm:$0xff]
        %v2168 = vld [vmem:[%s377 + $0xd0] sm:$0xff]
        %v2169 = vld [vmem:[%s377 + $0xd8] sm:$0xff]
        %v2170 = vld [vmem:[%s377 + $0xe0] sm:$0xff]
        %v2171 = vld [vmem:[%s377 + $0xe8] sm:$0xff]
        %v2172 = vld [vmem:[%s377 + $0xf0] sm:$0xff]
        %v2173 = vld [vmem:[%s377 + $0xf8] sm:$0xff]
        %s2174 = scalar_lea.vmem [#allocation3], 24
        %vm2175 = vcmask 15360
        %2176 = vst.msk [vmem:[%s2174 + $0x1] sm:$0xff] %vm2175, %v2142
        %2177 = vst.msk [vmem:[%s2174 + $0x9] sm:$0xff] %vm2175, %v2143
        %2178 = vst.msk [vmem:[%s2174 + $0x19] sm:$0xff] %vm2175, %v2144
        %2179 = vst.msk [vmem:[%s2174 + $0x21] sm:$0xff] %vm2175, %v2145
        %2180 = vst.msk [vmem:[%s2174 + $0x31] sm:$0xff] %vm2175, %v2146
        %2181 = vst.msk [vmem:[%s2174 + $0x39] sm:$0xff] %vm2175, %v2147
        %2182 = vst.msk [vmem:[%s2174 + $0x49] sm:$0xff] %vm2175, %v2148
        %2183 = vst.msk [vmem:[%s2174 + $0x51] sm:$0xff] %vm2175, %v2149
        %2184 = vst.msk [vmem:[%s2174 + $0x61] sm:$0xff] %vm2175, %v2150
        %2185 = vst.msk [vmem:[%s2174 + $0x69] sm:$0xff] %vm2175, %v2151
        %2186 = vst.msk [vmem:[%s2174 + $0x79] sm:$0xff] %vm2175, %v2152
        %2187 = vst.msk [vmem:[%s2174 + $0x81] sm:$0xff] %vm2175, %v2153
        %2188 = vst.msk [vmem:[%s2174 + $0x91] sm:$0xff] %vm2175, %v2154
        %2189 = vst.msk [vmem:[%s2174 + $0x99] sm:$0xff] %vm2175, %v2155
        %2190 = vst.msk [vmem:[%s2174 + $0xa9] sm:$0xff] %vm2175, %v2156
        %2191 = vst.msk [vmem:[%s2174 + $0xb1] sm:$0xff] %vm2175, %v2157
        %2192 = vst.msk [vmem:[%s2174 + $0xc1] sm:$0xff] %vm2175, %v2158
        %2193 = vst.msk [vmem:[%s2174 + $0xc9] sm:$0xff] %vm2175, %v2159
        %2194 = vst.msk [vmem:[%s2174 + $0xd9] sm:$0xff] %vm2175, %v2160
        %2195 = vst.msk [vmem:[%s2174 + $0xe1] sm:$0xff] %vm2175, %v2161
        %2196 = vst.msk [vmem:[%s2174 + $0xf1] sm:$0xff] %vm2175, %v2162
        %2197 = vst.msk [vmem:[%s2174 + $0xf9] sm:$0xff] %vm2175, %v2163
        %2198 = vst.msk [vmem:[%s2174 + $0x109] sm:$0xff] %vm2175, %v2164
        %2199 = vst.msk [vmem:[%s2174 + $0x111] sm:$0xff] %vm2175, %v2165
        %2200 = vst.msk [vmem:[%s2174 + $0x121] sm:$0xff] %vm2175, %v2166
        %2201 = vst.msk [vmem:[%s2174 + $0x129] sm:$0xff] %vm2175, %v2167
        %2202 = vst.msk [vmem:[%s2174 + $0x139] sm:$0xff] %vm2175, %v2168
        %2203 = vst.msk [vmem:[%s2174 + $0x141] sm:$0xff] %vm2175, %v2169
        %2204 = vst.msk [vmem:[%s2174 + $0x151] sm:$0xff] %vm2175, %v2170
        %2205 = vst.msk [vmem:[%s2174 + $0x159] sm:$0xff] %vm2175, %v2171
        %2206 = vst.msk [vmem:[%s2174 + $0x169] sm:$0xff] %vm2175, %v2172
        %2207 = vst.msk [vmem:[%s2174 + $0x171] sm:$0xff] %vm2175, %v2173
        %2208 = vst.msk [vmem:[#allocation3] sm:$0xff] %vm2175, 0.0
        %2209 = vst.msk [vmem:[#allocation3 + $0x8] sm:$0xff] %vm2175, 0.0
        %2210 = vst.msk [vmem:[#allocation3 + $0x10] sm:$0x3] %vm2085, 0.0
        %s2211 = scalar_lea.vmem [#allocation3], 408
        %2212 = vst.msk [vmem:[%s2211] sm:$0xff] %vm2175, 0.0
        %2213 = vst.msk [vmem:[%s2211 + $0x8] sm:$0xff] %vm2175, 0.0
        %2214 = vst.msk [vmem:[%s2211 + $0x10] sm:$0x3] %vm2085, 0.0
        %2215 = vst.msk [vmem:[#allocation3] sm:$0x1] %vm993, 0.0
        %2216 = vst.msk [vmem:[#allocation3 + $0x18] sm:$0x1] %vm993, 0.0
        %2217 = vst.msk [vmem:[#allocation3 + $0x30] sm:$0x1] %vm993, 0.0
        %2218 = vst.msk [vmem:[#allocation3 + $0x48] sm:$0x1] %vm993, 0.0
        %2219 = vst.msk [vmem:[#allocation3 + $0x60] sm:$0x1] %vm993, 0.0
        %2220 = vst.msk [vmem:[#allocation3 + $0x78] sm:$0x1] %vm993, 0.0
        %2221 = vst.msk [vmem:[#allocation3 + $0x90] sm:$0x1] %vm993, 0.0
        %2222 = vst.msk [vmem:[#allocation3 + $0xa8] sm:$0x1] %vm993, 0.0
        %2223 = vst.msk [vmem:[#allocation3 + $0xc0] sm:$0x1] %vm993, 0.0
        %2224 = vst.msk [vmem:[#allocation3 + $0xd8] sm:$0x1] %vm993, 0.0
        %2225 = vst.msk [vmem:[#allocation3 + $0xf0] sm:$0x1] %vm993, 0.0
        %2226 = vst.msk [vmem:[#allocation3 + $0x108] sm:$0x1] %vm993, 0.0
        %2227 = vst.msk [vmem:[#allocation3 + $0x120] sm:$0x1] %vm993, 0.0
        %2228 = vst.msk [vmem:[#allocation3 + $0x138] sm:$0x1] %vm993, 0.0
        %2229 = vst.msk [vmem:[#allocation3 + $0x150] sm:$0x1] %vm993, 0.0
        %2230 = vst.msk [vmem:[#allocation3 + $0x168] sm:$0x1] %vm993, 0.0
        %2231 = vst.msk [vmem:[#allocation3 + $0x180] sm:$0x1] %vm993, 0.0
        %2232 = vst.msk [vmem:[#allocation3 + $0x198] sm:$0x1] %vm993, 0.0
        %2233 = vst.msk [vmem:[#allocation3 + $0x11] sm:$0x1] %vm993, 0.0
        %2234 = vst.msk [vmem:[#allocation3 + $0x29] sm:$0x1] %vm993, 0.0
        %2235 = vst.msk [vmem:[#allocation3 + $0x41] sm:$0x1] %vm993, 0.0
        %2236 = vst.msk [vmem:[#allocation3 + $0x59] sm:$0x1] %vm993, 0.0
        %2237 = vst.msk [vmem:[#allocation3 + $0x71] sm:$0x1] %vm993, 0.0
        %2238 = vst.msk [vmem:[#allocation3 + $0x89] sm:$0x1] %vm993, 0.0
        %2239 = vst.msk [vmem:[#allocation3 + $0xa1] sm:$0x1] %vm993, 0.0
        %2240 = vst.msk [vmem:[#allocation3 + $0xb9] sm:$0x1] %vm993, 0.0
        %2241 = vst.msk [vmem:[#allocation3 + $0xd1] sm:$0x1] %vm993, 0.0
        %2242 = vst.msk [vmem:[#allocation3 + $0xe9] sm:$0x1] %vm993, 0.0
        %2243 = vst.msk [vmem:[#allocation3 + $0x101] sm:$0x1] %vm993, 0.0
        %2244 = vst.msk [vmem:[#allocation3 + $0x119] sm:$0x1] %vm993, 0.0
        %2245 = vst.msk [vmem:[#allocation3 + $0x131] sm:$0x1] %vm993, 0.0
        %2246 = vst.msk [vmem:[#allocation3 + $0x149] sm:$0x1] %vm993, 0.0
        %2247 = vst.msk [vmem:[#allocation3 + $0x161] sm:$0x1] %vm993, 0.0
        %2248 = vst.msk [vmem:[#allocation3 + $0x179] sm:$0x1] %vm993, 0.0
        %2249 = vst.msk [vmem:[#allocation3 + $0x191] sm:$0x1] %vm993, 0.0
        %2250 = vst.msk [vmem:[#allocation3 + $0x1a9] sm:$0x1] %vm993, 0.0
        %v2251 = vld [vmem:[#allocation2] sm:$0x3]
        %v2252 = vld [vmem:[#allocation2 + $0x2] sm:$0x3]
        %v2253 = vld [vmem:[#allocation2 + $0x4] sm:$0x3]
        %v2254 = vld [vmem:[#allocation2 + $0x6] sm:$0x3]
        %v2255 = vld [vmem:[#allocation2 + $0x8] sm:$0x3]
        %v2256 = vld [vmem:[#allocation2 + $0xa] sm:$0x3]
        %v2257 = vld [vmem:[#allocation2 + $0xc] sm:$0x3]
        %v2258 = vld [vmem:[#allocation2 + $0xe] sm:$0x3]
        %v2259 = vld [vmem:[#allocation2 + $0x10] sm:$0x3]
        %v2260 = vld [vmem:[#allocation2 + $0x12] sm:$0x3]
        %v2261 = vld [vmem:[#allocation2 + $0x14] sm:$0x3]
        %v2262 = vld [vmem:[#allocation2 + $0x16] sm:$0x3]
        %v2263 = vld [vmem:[#allocation2 + $0x18] sm:$0x3]
        %v2264 = vld [vmem:[#allocation2 + $0x1a] sm:$0x3]
        %v2265 = vld [vmem:[#allocation2 + $0x1c] sm:$0x3]
        %v2266 = vld [vmem:[#allocation2 + $0x1e] sm:$0x3]
        %v2267 = vld [vmem:[#allocation2 + $0x20] sm:$0x3]
        %v2268 = vld [vmem:[#allocation2 + $0x22] sm:$0x3]
        %v2269 = vld [vmem:[#allocation2 + $0x24] sm:$0x3]
        %v2270 = vld [vmem:[#allocation2 + $0x26] sm:$0x3]
        %v2271 = vld [vmem:[#allocation2 + $0x28] sm:$0x3]
        %v2272 = vld [vmem:[#allocation2 + $0x2a] sm:$0x3]
        %v2273 = vld [vmem:[#allocation2 + $0x2c] sm:$0x3]
        %v2274 = vld [vmem:[#allocation2 + $0x2e] sm:$0x3]
        %v2275 = vld [vmem:[#allocation2 + $0x30] sm:$0x3]
        %v2276 = vld [vmem:[#allocation2 + $0x32] sm:$0x3]
        %v2277 = vld [vmem:[#allocation2 + $0x34] sm:$0x3]
        %v2278 = vld [vmem:[#allocation2 + $0x36] sm:$0x3]
        %v2279 = vld [vmem:[#allocation2 + $0x38] sm:$0x3]
        %v2280 = vld [vmem:[#allocation2 + $0x3a] sm:$0x3]
        %v2281 = vld [vmem:[#allocation2 + $0x3c] sm:$0x3]
        %v2282 = vld [vmem:[#allocation2 + $0x3e] sm:$0x3]
        %v2283 = vld [vmem:[#allocation2 + $0x40] sm:$0x3]
        %v2284 = vld [vmem:[#allocation2 + $0x42] sm:$0x3]
        %v2285 = vld [vmem:[#allocation2 + $0x44] sm:$0x3]
        %v2286 = vld [vmem:[#allocation2 + $0x46] sm:$0x3]
        %v2287 = vld [vmem:[#allocation2 + $0x48] sm:$0x3]
        %v2288 = vld [vmem:[#allocation2 + $0x4a] sm:$0x3]
        %v2289 = vld [vmem:[#allocation2 + $0x4c] sm:$0x3]
        %v2290 = vld [vmem:[#allocation2 + $0x4e] sm:$0x3]
        %v2291 = vld [vmem:[#allocation2 + $0x50] sm:$0x3]
        %v2292 = vld [vmem:[#allocation2 + $0x52] sm:$0x3]
        %v2293 = vld [vmem:[#allocation2 + $0x54] sm:$0x3]
        %v2294 = vld [vmem:[#allocation2 + $0x56] sm:$0x3]
        %v2295 = vld [vmem:[#allocation2 + $0x58] sm:$0x3]
        %v2296 = vld [vmem:[#allocation2 + $0x5a] sm:$0x3]
        %v2297 = vld [vmem:[#allocation2 + $0x5c] sm:$0x3]
        %v2298 = vld [vmem:[#allocation2 + $0x5e] sm:$0x3]
        %v2299 = vld [vmem:[#allocation2 + $0x60] sm:$0x3]
        %v2300 = vld [vmem:[#allocation2 + $0x62] sm:$0x3]
        %v2301 = vld [vmem:[#allocation2 + $0x64] sm:$0x3]
        %v2302 = vld [vmem:[#allocation2 + $0x66] sm:$0x3]
        %v2303 = vld [vmem:[#allocation2 + $0x68] sm:$0x3]
        %v2304 = vld [vmem:[#allocation2 + $0x6a] sm:$0x3]
        %v2305 = vld [vmem:[#allocation2 + $0x6c] sm:$0x3]
        %v2306 = vld [vmem:[#allocation2 + $0x6e] sm:$0x3]
        %v2307 = vld [vmem:[#allocation2 + $0x70] sm:$0x3]
        %v2308 = vld [vmem:[#allocation2 + $0x72] sm:$0x3]
        %v2309 = vld [vmem:[#allocation2 + $0x74] sm:$0x3]
        %v2310 = vld [vmem:[#allocation2 + $0x76] sm:$0x3]
        %v2311 = vld [vmem:[#allocation2 + $0x78] sm:$0x3]
        %v2312 = vld [vmem:[#allocation2 + $0x7a] sm:$0x3]
        %v2313 = vld [vmem:[#allocation2 + $0x7c] sm:$0x3]
        %v2314 = vld [vmem:[#allocation2 + $0x7e] sm:$0x3]
        %v2315 = vld [vmem:[#allocation2 + $0x80] sm:$0x3]
        %v2316 = vld [vmem:[#allocation2 + $0x82] sm:$0x3]
        %v2317 = vld [vmem:[#allocation2 + $0x84] sm:$0x3]
        %v2318 = vld [vmem:[#allocation2 + $0x86] sm:$0x3]
        %v2319 = vld [vmem:[#allocation2 + $0x88] sm:$0x3]
        %v2320 = vld [vmem:[#allocation2 + $0x8a] sm:$0x3]
        %v2321 = vld [vmem:[#allocation2 + $0x8c] sm:$0x3]
        %v2322 = vld [vmem:[#allocation2 + $0x8e] sm:$0x3]
        %v2323 = vld [vmem:[#allocation2 + $0x90] sm:$0x3]
        %v2324 = vld [vmem:[#allocation2 + $0x92] sm:$0x3]
        %v2325 = vld [vmem:[#allocation2 + $0x94] sm:$0x3]
        %v2326 = vld [vmem:[#allocation2 + $0x96] sm:$0x3]
        %v2327 = vld [vmem:[#allocation2 + $0x98] sm:$0x3]
        %v2328 = vld [vmem:[#allocation2 + $0x9a] sm:$0x3]
        %v2329 = vld [vmem:[#allocation2 + $0x9c] sm:$0x3]
        %v2330 = vld [vmem:[#allocation2 + $0x9e] sm:$0x3]
        %v2331 = vld [vmem:[#allocation2 + $0xa0] sm:$0x3]
        %v2332 = vld [vmem:[#allocation2 + $0xa2] sm:$0x3]
        %v2333 = vld [vmem:[#allocation2 + $0xa4] sm:$0x3]
        %v2334 = vld [vmem:[#allocation2 + $0xa6] sm:$0x3]
        %v2335 = vld [vmem:[#allocation2 + $0xa8] sm:$0x3]
        %v2336 = vld [vmem:[#allocation2 + $0xaa] sm:$0x3]
        %v2337 = vld [vmem:[#allocation2 + $0xac] sm:$0x3]
        %v2338 = vld [vmem:[#allocation2 + $0xae] sm:$0x3]
        %v2339 = vld [vmem:[#allocation2 + $0xb0] sm:$0x3]
        %v2340 = vld [vmem:[#allocation2 + $0xb2] sm:$0x3]
        %v2341 = vld [vmem:[#allocation2 + $0xb4] sm:$0x3]
        %v2342 = vld [vmem:[#allocation2 + $0xb6] sm:$0x3]
        %v2343 = vld [vmem:[#allocation2 + $0xb8] sm:$0x3]
        %v2344 = vld [vmem:[#allocation2 + $0xba] sm:$0x3]
        %v2345 = vld [vmem:[#allocation2 + $0xbc] sm:$0x3]
        %v2346 = vld [vmem:[#allocation2 + $0xbe] sm:$0x3]
        %v2347 = vld [vmem:[#allocation2 + $0xc0] sm:$0x3]
        %v2348 = vld [vmem:[#allocation2 + $0xc2] sm:$0x3]
        %v2349 = vld [vmem:[#allocation2 + $0xc4] sm:$0x3]
        %v2350 = vld [vmem:[#allocation2 + $0xc6] sm:$0x3]
        %v2351 = vld [vmem:[#allocation2 + $0xc8] sm:$0x3]
        %v2352 = vld [vmem:[#allocation2 + $0xca] sm:$0x3]
        %v2353 = vld [vmem:[#allocation2 + $0xcc] sm:$0x3]
        %v2354 = vld [vmem:[#allocation2 + $0xce] sm:$0x3]
        %v2355 = vld [vmem:[#allocation2 + $0xd0] sm:$0x3]
        %v2356 = vld [vmem:[#allocation2 + $0xd2] sm:$0x3]
        %v2357 = vld [vmem:[#allocation2 + $0xd4] sm:$0x3]
        %v2358 = vld [vmem:[#allocation2 + $0xd6] sm:$0x3]
        %v2359 = vld [vmem:[#allocation2 + $0xd8] sm:$0x3]
        %v2360 = vld [vmem:[#allocation2 + $0xda] sm:$0x3]
        %v2361 = vld [vmem:[#allocation2 + $0xdc] sm:$0x3]
        %v2362 = vld [vmem:[#allocation2 + $0xde] sm:$0x3]
        %v2363 = vld [vmem:[#allocation2 + $0xe0] sm:$0x3]
        %v2364 = vld [vmem:[#allocation2 + $0xe2] sm:$0x3]
        %v2365 = vld [vmem:[#allocation2 + $0xe4] sm:$0x3]
        %v2366 = vld [vmem:[#allocation2 + $0xe6] sm:$0x3]
        %v2367 = vld [vmem:[#allocation2 + $0xe8] sm:$0x3]
        %v2368 = vld [vmem:[#allocation2 + $0xea] sm:$0x3]
        %v2369 = vld [vmem:[#allocation2 + $0xec] sm:$0x3]
        %v2370 = vld [vmem:[#allocation2 + $0xee] sm:$0x3]
        %v2371 = vld [vmem:[#allocation2 + $0xf0] sm:$0x3]
        %v2372 = vld [vmem:[#allocation2 + $0xf2] sm:$0x3]
        %v2373 = vld [vmem:[#allocation2 + $0xf4] sm:$0x3]
        %v2374 = vld [vmem:[#allocation2 + $0xf6] sm:$0x3]
        %v2375 = vld [vmem:[#allocation2 + $0xf8] sm:$0x3]
        %v2376 = vld [vmem:[#allocation2 + $0xfa] sm:$0x3]
        %v2377 = vld [vmem:[#allocation2 + $0xfc] sm:$0x3]
        %v2378 = vld [vmem:[#allocation2 + $0xfe] sm:$0x3]
        %v2379 = vld [vmem:[#allocation2 + $0x100] sm:$0x3]
        %v2380 = vld [vmem:[#allocation2 + $0x102] sm:$0x3]
        %v2381 = vld [vmem:[#allocation2 + $0x104] sm:$0x3]
        %v2382 = vld [vmem:[#allocation2 + $0x106] sm:$0x3]
        %v2383 = vld [vmem:[#allocation2 + $0x108] sm:$0x3]
        %v2384 = vld [vmem:[#allocation2 + $0x10a] sm:$0x3]
        %v2385 = vld [vmem:[#allocation2 + $0x10c] sm:$0x3]
        %v2386 = vld [vmem:[#allocation2 + $0x10e] sm:$0x3]
        %v2387 = vld [vmem:[#allocation2 + $0x110] sm:$0x3]
        %v2388 = vld [vmem:[#allocation2 + $0x112] sm:$0x3]
        %v2389 = vld [vmem:[#allocation2 + $0x114] sm:$0x3]
        %v2390 = vld [vmem:[#allocation2 + $0x116] sm:$0x3]
        %v2391 = vld [vmem:[#allocation2 + $0x118] sm:$0x3]
        %v2392 = vld [vmem:[#allocation2 + $0x11a] sm:$0x3]
        %v2393 = vld [vmem:[#allocation2 + $0x11c] sm:$0x3]
        %v2394 = vld [vmem:[#allocation2 + $0x11e] sm:$0x3]
        %v2395 = vld [vmem:[#allocation2 + $0x120] sm:$0x3]
        %v2396 = vld [vmem:[#allocation2 + $0x122] sm:$0x3]
        %v2397 = vld [vmem:[#allocation2 + $0x124] sm:$0x3]
        %v2398 = vld [vmem:[#allocation2 + $0x126] sm:$0x3]
        %v2399 = vld [vmem:[#allocation2 + $0x128] sm:$0x3]
        %v2400 = vld [vmem:[#allocation2 + $0x12a] sm:$0x3]
        %v2401 = vld [vmem:[#allocation2 + $0x12c] sm:$0x3]
        %v2402 = vld [vmem:[#allocation2 + $0x12e] sm:$0x3]
        %v2403 = vld [vmem:[#allocation2 + $0x130] sm:$0x3]
        %v2404 = vld [vmem:[#allocation2 + $0x132] sm:$0x3]
        %v2405 = vld [vmem:[#allocation2 + $0x134] sm:$0x3]
        %v2406 = vld [vmem:[#allocation2 + $0x136] sm:$0x3]
        %v2407 = vld [vmem:[#allocation2 + $0x138] sm:$0x3]
        %v2408 = vld [vmem:[#allocation2 + $0x13a] sm:$0x3]
        %v2409 = vld [vmem:[#allocation2 + $0x13c] sm:$0x3]
        %v2410 = vld [vmem:[#allocation2 + $0x13e] sm:$0x3]
        %v2411 = vld [vmem:[#allocation2 + $0x140] sm:$0x3]
        %v2412 = vld [vmem:[#allocation2 + $0x142] sm:$0x3]
        %v2413 = vld [vmem:[#allocation3] sm:$0xff]
        %v2414 = vld [vmem:[#allocation3 + $0x8] sm:$0xff]
        %v2415 = vld [vmem:[#allocation3 + $0x10] sm:$0x3]
        %v2416 = vld [vmem:[#allocation3 + $0x18] sm:$0xff]
        %v2417 = vld [vmem:[#allocation3 + $0x20] sm:$0xff]
        %v2418 = vld [vmem:[#allocation3 + $0x28] sm:$0x3]
        %v2419 = vld [vmem:[#allocation3 + $0x30] sm:$0xff]
        %v2420 = vld [vmem:[#allocation3 + $0x38] sm:$0xff]
        %v2421 = vld [vmem:[#allocation3 + $0x40] sm:$0x3]
        %v2422 = vld [vmem:[#allocation3 + $0x48] sm:$0xff]
        %v2423 = vld [vmem:[#allocation3 + $0x50] sm:$0xff]
        %v2424 = vld [vmem:[#allocation3 + $0x58] sm:$0x3]
        %v2425 = vld [vmem:[#allocation3 + $0x60] sm:$0xff]
        %v2426 = vld [vmem:[#allocation3 + $0x68] sm:$0xff]
        %v2427 = vld [vmem:[#allocation3 + $0x70] sm:$0x3]
        %v2428 = vld [vmem:[#allocation3 + $0x78] sm:$0xff]
        %v2429 = vld [vmem:[#allocation3 + $0x80] sm:$0xff]
        %v2430 = vld [vmem:[#allocation3 + $0x88] sm:$0x3]
        %v2431 = vld [vmem:[#allocation3 + $0x90] sm:$0xff]
        %v2432 = vld [vmem:[#allocation3 + $0x98] sm:$0xff]
        %v2433 = vld [vmem:[#allocation3 + $0xa0] sm:$0x3]
        %v2434 = vld [vmem:[#allocation3 + $0xa8] sm:$0xff]
        %v2435 = vld [vmem:[#allocation3 + $0xb0] sm:$0xff]
        %v2436 = vld [vmem:[#allocation3 + $0xb8] sm:$0x3]
        %v2437 = vld [vmem:[#allocation3 + $0xc0] sm:$0xff]
        %v2438 = vld [vmem:[#allocation3 + $0xc8] sm:$0xff]
        %v2439 = vld [vmem:[#allocation3 + $0xd0] sm:$0x3]
        %v2440 = vld [vmem:[#allocation3 + $0xd8] sm:$0xff]
        %v2441 = vld [vmem:[#allocation3 + $0xe0] sm:$0xff]
        %v2442 = vld [vmem:[#allocation3 + $0xe8] sm:$0x3]
        %v2443 = vld [vmem:[#allocation3 + $0xf0] sm:$0xff]
        %v2444 = vld [vmem:[#allocation3 + $0xf8] sm:$0xff]
        %v2445 = vld [vmem:[#allocation3 + $0x100] sm:$0x3]
        %v2446 = vld [vmem:[#allocation3 + $0x108] sm:$0xff]
        %v2447 = vld [vmem:[#allocation3 + $0x110] sm:$0xff]
        %v2448 = vld [vmem:[#allocation3 + $0x118] sm:$0x3]
        %v2449 = vld [vmem:[#allocation3 + $0x120] sm:$0xff]
        %v2450 = vld [vmem:[#allocation3 + $0x128] sm:$0xff]
        %v2451 = vld [vmem:[#allocation3 + $0x130] sm:$0x3]
        %v2452 = vld [vmem:[#allocation3 + $0x138] sm:$0xff]
        %v2453 = vld [vmem:[#allocation3 + $0x140] sm:$0xff]
        %v2454 = vld [vmem:[#allocation3 + $0x148] sm:$0x3]
        %v2455 = vld [vmem:[#allocation3 + $0x150] sm:$0xff]
        %v2456 = vld [vmem:[#allocation3 + $0x158] sm:$0xff]
        %v2457 = vld [vmem:[#allocation3 + $0x160] sm:$0x3]
        %v2458 = vld [vmem:[#allocation3 + $0x168] sm:$0xff]
        %v2459 = vld [vmem:[#allocation3 + $0x170] sm:$0xff]
        %v2460 = vld [vmem:[#allocation3 + $0x178] sm:$0x3]
        %v2461 = vld [vmem:[#allocation3 + $0x180] sm:$0xff]
        %v2462 = vld [vmem:[#allocation3 + $0x188] sm:$0xff]
        %v2463 = vld [vmem:[#allocation3 + $0x190] sm:$0x3]
        %v2464 = vld [vmem:[#allocation3 + $0x198] sm:$0xff]
        %v2465 = vld [vmem:[#allocation3 + $0x1a0] sm:$0xff]
        %v2466 = vld [vmem:[#allocation3 + $0x1a8] sm:$0x3]
        %v2595 = vcombine.low %v2251, %v2252
        %v2596 = vcombine.low %v2253, %v2254
        %v2598 = vunpack.c.l.s4 1983009808
        %v2599 = vunpack.c.0.s8 %v2598
        %v2600 = vlaneseq
        %v2601 = vshrl.u32 %v2600, 7
        %v2602 = vsub.s32 %v2599, %v2601
        %v2603 = vrot.slane %v2595, %v2602
        %v2605 = vunpack.c.l.s4 1983009808
        %v2606 = vunpack.c.0.s8 %v2605
        %v2607 = vlaneseq
        %v2608 = vshrl.u32 %v2607, 7
        %v2609 = vsub.s32 %v2606, %v2608
        %v2610 = vrot.slane %v2596, %v2609
        %v2611 = vcombine.low %v2603, %v2610
        %v2612 = vcombine.low %v2255, %v2256
        %v2613 = vcombine.low %v2257, %v2258
        %v2615 = vunpack.c.l.s4 1983009808
        %v2616 = vunpack.c.0.s8 %v2615
        %v2617 = vlaneseq
        %v2618 = vshrl.u32 %v2617, 7
        %v2619 = vsub.s32 %v2616, %v2618
        %v2620 = vrot.slane %v2612, %v2619
        %v2622 = vunpack.c.l.s4 1983009808
        %v2623 = vunpack.c.0.s8 %v2622
        %v2624 = vlaneseq
        %v2625 = vshrl.u32 %v2624, 7
        %v2626 = vsub.s32 %v2623, %v2625
        %v2627 = vrot.slane %v2613, %v2626
        %v2628 = vcombine.low %v2620, %v2627
        %v2629 = vcombine.low %v2260, %v2261
        %v2630 = vcombine.low %v2262, %v2263
        %v2632 = vunpack.c.l.s4 1983009808
        %v2633 = vunpack.c.0.s8 %v2632
        %v2634 = vlaneseq
        %v2635 = vshrl.u32 %v2634, 7
        %v2636 = vsub.s32 %v2633, %v2635
        %v2637 = vrot.slane %v2629, %v2636
        %v2639 = vunpack.c.l.s4 1983009808
        %v2640 = vunpack.c.0.s8 %v2639
        %v2641 = vlaneseq
        %v2642 = vshrl.u32 %v2641, 7
        %v2643 = vsub.s32 %v2640, %v2642
        %v2644 = vrot.slane %v2630, %v2643
        %v2645 = vcombine.low %v2637, %v2644
        %v2646 = vcombine.low %v2264, %v2265
        %v2647 = vcombine.low %v2266, %v2267
        %v2649 = vunpack.c.l.s4 1983009808
        %v2650 = vunpack.c.0.s8 %v2649
        %v2651 = vlaneseq
        %v2652 = vshrl.u32 %v2651, 7
        %v2653 = vsub.s32 %v2650, %v2652
        %v2654 = vrot.slane %v2646, %v2653
        %v2656 = vunpack.c.l.s4 1983009808
        %v2657 = vunpack.c.0.s8 %v2656
        %v2658 = vlaneseq
        %v2659 = vshrl.u32 %v2658, 7
        %v2660 = vsub.s32 %v2657, %v2659
        %v2661 = vrot.slane %v2647, %v2660
        %v2662 = vcombine.low %v2654, %v2661
        %v2663 = vcombine.low %v2269, %v2270
        %v2664 = vcombine.low %v2271, %v2272
        %v2666 = vunpack.c.l.s4 1983009808
        %v2667 = vunpack.c.0.s8 %v2666
        %v2668 = vlaneseq
        %v2669 = vshrl.u32 %v2668, 7
        %v2670 = vsub.s32 %v2667, %v2669
        %v2671 = vrot.slane %v2663, %v2670
        %v2673 = vunpack.c.l.s4 1983009808
        %v2674 = vunpack.c.0.s8 %v2673
        %v2675 = vlaneseq
        %v2676 = vshrl.u32 %v2675, 7
        %v2677 = vsub.s32 %v2674, %v2676
        %v2678 = vrot.slane %v2664, %v2677
        %v2679 = vcombine.low %v2671, %v2678
        %v2680 = vcombine.low %v2273, %v2274
        %v2681 = vcombine.low %v2275, %v2276
        %v2683 = vunpack.c.l.s4 1983009808
        %v2684 = vunpack.c.0.s8 %v2683
        %v2685 = vlaneseq
        %v2686 = vshrl.u32 %v2685, 7
        %v2687 = vsub.s32 %v2684, %v2686
        %v2688 = vrot.slane %v2680, %v2687
        %v2690 = vunpack.c.l.s4 1983009808
        %v2691 = vunpack.c.0.s8 %v2690
        %v2692 = vlaneseq
        %v2693 = vshrl.u32 %v2692, 7
        %v2694 = vsub.s32 %v2691, %v2693
        %v2695 = vrot.slane %v2681, %v2694
        %v2696 = vcombine.low %v2688, %v2695
        %v2697 = vcombine.low %v2278, %v2279
        %v2698 = vcombine.low %v2280, %v2281
        %v2700 = vunpack.c.l.s4 1983009808
        %v2701 = vunpack.c.0.s8 %v2700
        %v2702 = vlaneseq
        %v2703 = vshrl.u32 %v2702, 7
        %v2704 = vsub.s32 %v2701, %v2703
        %v2705 = vrot.slane %v2697, %v2704
        %v2707 = vunpack.c.l.s4 1983009808
        %v2708 = vunpack.c.0.s8 %v2707
        %v2709 = vlaneseq
        %v2710 = vshrl.u32 %v2709, 7
        %v2711 = vsub.s32 %v2708, %v2710
        %v2712 = vrot.slane %v2698, %v2711
        %v2713 = vcombine.low %v2705, %v2712
        %v2714 = vcombine.low %v2282, %v2283
        %v2715 = vcombine.low %v2284, %v2285
        %v2717 = vunpack.c.l.s4 1983009808
        %v2718 = vunpack.c.0.s8 %v2717
        %v2719 = vlaneseq
        %v2720 = vshrl.u32 %v2719, 7
        %v2721 = vsub.s32 %v2718, %v2720
        %v2722 = vrot.slane %v2714, %v2721
        %v2724 = vunpack.c.l.s4 1983009808
        %v2725 = vunpack.c.0.s8 %v2724
        %v2726 = vlaneseq
        %v2727 = vshrl.u32 %v2726, 7
        %v2728 = vsub.s32 %v2725, %v2727
        %v2729 = vrot.slane %v2715, %v2728
        %v2730 = vcombine.low %v2722, %v2729
        %v2731 = vcombine.low %v2287, %v2288
        %v2732 = vcombine.low %v2289, %v2290
        %v2734 = vunpack.c.l.s4 1983009808
        %v2735 = vunpack.c.0.s8 %v2734
        %v2736 = vlaneseq
        %v2737 = vshrl.u32 %v2736, 7
        %v2738 = vsub.s32 %v2735, %v2737
        %v2739 = vrot.slane %v2731, %v2738
        %v2741 = vunpack.c.l.s4 1983009808
        %v2742 = vunpack.c.0.s8 %v2741
        %v2743 = vlaneseq
        %v2744 = vshrl.u32 %v2743, 7
        %v2745 = vsub.s32 %v2742, %v2744
        %v2746 = vrot.slane %v2732, %v2745
        %v2747 = vcombine.low %v2739, %v2746
        %v2748 = vcombine.low %v2291, %v2292
        %v2749 = vcombine.low %v2293, %v2294
        %v2751 = vunpack.c.l.s4 1983009808
        %v2752 = vunpack.c.0.s8 %v2751
        %v2753 = vlaneseq
        %v2754 = vshrl.u32 %v2753, 7
        %v2755 = vsub.s32 %v2752, %v2754
        %v2756 = vrot.slane %v2748, %v2755
        %v2758 = vunpack.c.l.s4 1983009808
        %v2759 = vunpack.c.0.s8 %v2758
        %v2760 = vlaneseq
        %v2761 = vshrl.u32 %v2760, 7
        %v2762 = vsub.s32 %v2759, %v2761
        %v2763 = vrot.slane %v2749, %v2762
        %v2764 = vcombine.low %v2756, %v2763
        %v2765 = vcombine.low %v2296, %v2297
        %v2766 = vcombine.low %v2298, %v2299
        %v2768 = vunpack.c.l.s4 1983009808
        %v2769 = vunpack.c.0.s8 %v2768
        %v2770 = vlaneseq
        %v2771 = vshrl.u32 %v2770, 7
        %v2772 = vsub.s32 %v2769, %v2771
        %v2773 = vrot.slane %v2765, %v2772
        %v2775 = vunpack.c.l.s4 1983009808
        %v2776 = vunpack.c.0.s8 %v2775
        %v2777 = vlaneseq
        %v2778 = vshrl.u32 %v2777, 7
        %v2779 = vsub.s32 %v2776, %v2778
        %v2780 = vrot.slane %v2766, %v2779
        %v2781 = vcombine.low %v2773, %v2780
        %v2782 = vcombine.low %v2300, %v2301
        %v2783 = vcombine.low %v2302, %v2303
        %v2785 = vunpack.c.l.s4 1983009808
        %v2786 = vunpack.c.0.s8 %v2785
        %v2787 = vlaneseq
        %v2788 = vshrl.u32 %v2787, 7
        %v2789 = vsub.s32 %v2786, %v2788
        %v2790 = vrot.slane %v2782, %v2789
        %v2792 = vunpack.c.l.s4 1983009808
        %v2793 = vunpack.c.0.s8 %v2792
        %v2794 = vlaneseq
        %v2795 = vshrl.u32 %v2794, 7
        %v2796 = vsub.s32 %v2793, %v2795
        %v2797 = vrot.slane %v2783, %v2796
        %v2798 = vcombine.low %v2790, %v2797
        %v2799 = vcombine.low %v2305, %v2306
        %v2800 = vcombine.low %v2307, %v2308
        %v2802 = vunpack.c.l.s4 1983009808
        %v2803 = vunpack.c.0.s8 %v2802
        %v2804 = vlaneseq
        %v2805 = vshrl.u32 %v2804, 7
        %v2806 = vsub.s32 %v2803, %v2805
        %v2807 = vrot.slane %v2799, %v2806
        %v2809 = vunpack.c.l.s4 1983009808
        %v2810 = vunpack.c.0.s8 %v2809
        %v2811 = vlaneseq
        %v2812 = vshrl.u32 %v2811, 7
        %v2813 = vsub.s32 %v2810, %v2812
        %v2814 = vrot.slane %v2800, %v2813
        %v2815 = vcombine.low %v2807, %v2814
        %v2816 = vcombine.low %v2309, %v2310
        %v2817 = vcombine.low %v2311, %v2312
        %v2819 = vunpack.c.l.s4 1983009808
        %v2820 = vunpack.c.0.s8 %v2819
        %v2821 = vlaneseq
        %v2822 = vshrl.u32 %v2821, 7
        %v2823 = vsub.s32 %v2820, %v2822
        %v2824 = vrot.slane %v2816, %v2823
        %v2826 = vunpack.c.l.s4 1983009808
        %v2827 = vunpack.c.0.s8 %v2826
        %v2828 = vlaneseq
        %v2829 = vshrl.u32 %v2828, 7
        %v2830 = vsub.s32 %v2827, %v2829
        %v2831 = vrot.slane %v2817, %v2830
        %v2832 = vcombine.low %v2824, %v2831
        %v2833 = vcombine.low %v2314, %v2315
        %v2834 = vcombine.low %v2316, %v2317
        %v2836 = vunpack.c.l.s4 1983009808
        %v2837 = vunpack.c.0.s8 %v2836
        %v2838 = vlaneseq
        %v2839 = vshrl.u32 %v2838, 7
        %v2840 = vsub.s32 %v2837, %v2839
        %v2841 = vrot.slane %v2833, %v2840
        %v2843 = vunpack.c.l.s4 1983009808
        %v2844 = vunpack.c.0.s8 %v2843
        %v2845 = vlaneseq
        %v2846 = vshrl.u32 %v2845, 7
        %v2847 = vsub.s32 %v2844, %v2846
        %v2848 = vrot.slane %v2834, %v2847
        %v2849 = vcombine.low %v2841, %v2848
        %v2850 = vcombine.low %v2318, %v2319
        %v2851 = vcombine.low %v2320, %v2321
        %v2853 = vunpack.c.l.s4 1983009808
        %v2854 = vunpack.c.0.s8 %v2853
        %v2855 = vlaneseq
        %v2856 = vshrl.u32 %v2855, 7
        %v2857 = vsub.s32 %v2854, %v2856
        %v2858 = vrot.slane %v2850, %v2857
        %v2860 = vunpack.c.l.s4 1983009808
        %v2861 = vunpack.c.0.s8 %v2860
        %v2862 = vlaneseq
        %v2863 = vshrl.u32 %v2862, 7
        %v2864 = vsub.s32 %v2861, %v2863
        %v2865 = vrot.slane %v2851, %v2864
        %v2866 = vcombine.low %v2858, %v2865
        %v2867 = vcombine.low %v2323, %v2324
        %v2868 = vcombine.low %v2325, %v2326
        %v2870 = vunpack.c.l.s4 1983009808
        %v2871 = vunpack.c.0.s8 %v2870
        %v2872 = vlaneseq
        %v2873 = vshrl.u32 %v2872, 7
        %v2874 = vsub.s32 %v2871, %v2873
        %v2875 = vrot.slane %v2867, %v2874
        %v2877 = vunpack.c.l.s4 1983009808
        %v2878 = vunpack.c.0.s8 %v2877
        %v2879 = vlaneseq
        %v2880 = vshrl.u32 %v2879, 7
        %v2881 = vsub.s32 %v2878, %v2880
        %v2882 = vrot.slane %v2868, %v2881
        %v2883 = vcombine.low %v2875, %v2882
        %v2884 = vcombine.low %v2327, %v2328
        %v2885 = vcombine.low %v2329, %v2330
        %v2887 = vunpack.c.l.s4 1983009808
        %v2888 = vunpack.c.0.s8 %v2887
        %v2889 = vlaneseq
        %v2890 = vshrl.u32 %v2889, 7
        %v2891 = vsub.s32 %v2888, %v2890
        %v2892 = vrot.slane %v2884, %v2891
        %v2894 = vunpack.c.l.s4 1983009808
        %v2895 = vunpack.c.0.s8 %v2894
        %v2896 = vlaneseq
        %v2897 = vshrl.u32 %v2896, 7
        %v2898 = vsub.s32 %v2895, %v2897
        %v2899 = vrot.slane %v2885, %v2898
        %v2900 = vcombine.low %v2892, %v2899
        %v2901 = vcombine.low %v2332, %v2333
        %v2902 = vcombine.low %v2334, %v2335
        %v2904 = vunpack.c.l.s4 1983009808
        %v2905 = vunpack.c.0.s8 %v2904
        %v2906 = vlaneseq
        %v2907 = vshrl.u32 %v2906, 7
        %v2908 = vsub.s32 %v2905, %v2907
        %v2909 = vrot.slane %v2901, %v2908
        %v2911 = vunpack.c.l.s4 1983009808
        %v2912 = vunpack.c.0.s8 %v2911
        %v2913 = vlaneseq
        %v2914 = vshrl.u32 %v2913, 7
        %v2915 = vsub.s32 %v2912, %v2914
        %v2916 = vrot.slane %v2902, %v2915
        %v2917 = vcombine.low %v2909, %v2916
        %v2918 = vcombine.low %v2336, %v2337
        %v2919 = vcombine.low %v2338, %v2339
        %v2921 = vunpack.c.l.s4 1983009808
        %v2922 = vunpack.c.0.s8 %v2921
        %v2923 = vlaneseq
        %v2924 = vshrl.u32 %v2923, 7
        %v2925 = vsub.s32 %v2922, %v2924
        %v2926 = vrot.slane %v2918, %v2925
        %v2928 = vunpack.c.l.s4 1983009808
        %v2929 = vunpack.c.0.s8 %v2928
        %v2930 = vlaneseq
        %v2931 = vshrl.u32 %v2930, 7
        %v2932 = vsub.s32 %v2929, %v2931
        %v2933 = vrot.slane %v2919, %v2932
        %v2934 = vcombine.low %v2926, %v2933
        %v2935 = vcombine.low %v2341, %v2342
        %v2936 = vcombine.low %v2343, %v2344
        %v2938 = vunpack.c.l.s4 1983009808
        %v2939 = vunpack.c.0.s8 %v2938
        %v2940 = vlaneseq
        %v2941 = vshrl.u32 %v2940, 7
        %v2942 = vsub.s32 %v2939, %v2941
        %v2943 = vrot.slane %v2935, %v2942
        %v2945 = vunpack.c.l.s4 1983009808
        %v2946 = vunpack.c.0.s8 %v2945
        %v2947 = vlaneseq
        %v2948 = vshrl.u32 %v2947, 7
        %v2949 = vsub.s32 %v2946, %v2948
        %v2950 = vrot.slane %v2936, %v2949
        %v2951 = vcombine.low %v2943, %v2950
        %v2952 = vcombine.low %v2345, %v2346
        %v2953 = vcombine.low %v2347, %v2348
        %v2955 = vunpack.c.l.s4 1983009808
        %v2956 = vunpack.c.0.s8 %v2955
        %v2957 = vlaneseq
        %v2958 = vshrl.u32 %v2957, 7
        %v2959 = vsub.s32 %v2956, %v2958
        %v2960 = vrot.slane %v2952, %v2959
        %v2962 = vunpack.c.l.s4 1983009808
        %v2963 = vunpack.c.0.s8 %v2962
        %v2964 = vlaneseq
        %v2965 = vshrl.u32 %v2964, 7
        %v2966 = vsub.s32 %v2963, %v2965
        %v2967 = vrot.slane %v2953, %v2966
        %v2968 = vcombine.low %v2960, %v2967
        %v2969 = vcombine.low %v2350, %v2351
        %v2970 = vcombine.low %v2352, %v2353
        %v2972 = vunpack.c.l.s4 1983009808
        %v2973 = vunpack.c.0.s8 %v2972
        %v2974 = vlaneseq
        %v2975 = vshrl.u32 %v2974, 7
        %v2976 = vsub.s32 %v2973, %v2975
        %v2977 = vrot.slane %v2969, %v2976
        %v2979 = vunpack.c.l.s4 1983009808
        %v2980 = vunpack.c.0.s8 %v2979
        %v2981 = vlaneseq
        %v2982 = vshrl.u32 %v2981, 7
        %v2983 = vsub.s32 %v2980, %v2982
        %v2984 = vrot.slane %v2970, %v2983
        %v2985 = vcombine.low %v2977, %v2984
        %v2986 = vcombine.low %v2354, %v2355
        %v2987 = vcombine.low %v2356, %v2357
        %v2989 = vunpack.c.l.s4 1983009808
        %v2990 = vunpack.c.0.s8 %v2989
        %v2991 = vlaneseq
        %v2992 = vshrl.u32 %v2991, 7
        %v2993 = vsub.s32 %v2990, %v2992
        %v2994 = vrot.slane %v2986, %v2993
        %v2996 = vunpack.c.l.s4 1983009808
        %v2997 = vunpack.c.0.s8 %v2996
        %v2998 = vlaneseq
        %v2999 = vshrl.u32 %v2998, 7
        %v3000 = vsub.s32 %v2997, %v2999
        %v3001 = vrot.slane %v2987, %v3000
        %v3002 = vcombine.low %v2994, %v3001
        %v3003 = vcombine.low %v2359, %v2360
        %v3004 = vcombine.low %v2361, %v2362
        %v3006 = vunpack.c.l.s4 1983009808
        %v3007 = vunpack.c.0.s8 %v3006
        %v3008 = vlaneseq
        %v3009 = vshrl.u32 %v3008, 7
        %v3010 = vsub.s32 %v3007, %v3009
        %v3011 = vrot.slane %v3003, %v3010
        %v3013 = vunpack.c.l.s4 1983009808
        %v3014 = vunpack.c.0.s8 %v3013
        %v3015 = vlaneseq
        %v3016 = vshrl.u32 %v3015, 7
        %v3017 = vsub.s32 %v3014, %v3016
        %v3018 = vrot.slane %v3004, %v3017
        %v3019 = vcombine.low %v3011, %v3018
        %v3020 = vcombine.low %v2363, %v2364
        %v3021 = vcombine.low %v2365, %v2366
        %v3023 = vunpack.c.l.s4 1983009808
        %v3024 = vunpack.c.0.s8 %v3023
        %v3025 = vlaneseq
        %v3026 = vshrl.u32 %v3025, 7
        %v3027 = vsub.s32 %v3024, %v3026
        %v3028 = vrot.slane %v3020, %v3027
        %v3030 = vunpack.c.l.s4 1983009808
        %v3031 = vunpack.c.0.s8 %v3030
        %v3032 = vlaneseq
        %v3033 = vshrl.u32 %v3032, 7
        %v3034 = vsub.s32 %v3031, %v3033
        %v3035 = vrot.slane %v3021, %v3034
        %v3036 = vcombine.low %v3028, %v3035
        %v3037 = vcombine.low %v2368, %v2369
        %v3038 = vcombine.low %v2370, %v2371
        %v3040 = vunpack.c.l.s4 1983009808
        %v3041 = vunpack.c.0.s8 %v3040
        %v3042 = vlaneseq
        %v3043 = vshrl.u32 %v3042, 7
        %v3044 = vsub.s32 %v3041, %v3043
        %v3045 = vrot.slane %v3037, %v3044
        %v3047 = vunpack.c.l.s4 1983009808
        %v3048 = vunpack.c.0.s8 %v3047
        %v3049 = vlaneseq
        %v3050 = vshrl.u32 %v3049, 7
        %v3051 = vsub.s32 %v3048, %v3050
        %v3052 = vrot.slane %v3038, %v3051
        %v3053 = vcombine.low %v3045, %v3052
        %v3054 = vcombine.low %v2372, %v2373
        %v3055 = vcombine.low %v2374, %v2375
        %v3057 = vunpack.c.l.s4 1983009808
        %v3058 = vunpack.c.0.s8 %v3057
        %v3059 = vlaneseq
        %v3060 = vshrl.u32 %v3059, 7
        %v3061 = vsub.s32 %v3058, %v3060
        %v3062 = vrot.slane %v3054, %v3061
        %v3064 = vunpack.c.l.s4 1983009808
        %v3065 = vunpack.c.0.s8 %v3064
        %v3066 = vlaneseq
        %v3067 = vshrl.u32 %v3066, 7
        %v3068 = vsub.s32 %v3065, %v3067
        %v3069 = vrot.slane %v3055, %v3068
        %v3070 = vcombine.low %v3062, %v3069
        %v3071 = vcombine.low %v2377, %v2378
        %v3072 = vcombine.low %v2379, %v2380
        %v3074 = vunpack.c.l.s4 1983009808
        %v3075 = vunpack.c.0.s8 %v3074
        %v3076 = vlaneseq
        %v3077 = vshrl.u32 %v3076, 7
        %v3078 = vsub.s32 %v3075, %v3077
        %v3079 = vrot.slane %v3071, %v3078
        %v3081 = vunpack.c.l.s4 1983009808
        %v3082 = vunpack.c.0.s8 %v3081
        %v3083 = vlaneseq
        %v3084 = vshrl.u32 %v3083, 7
        %v3085 = vsub.s32 %v3082, %v3084
        %v3086 = vrot.slane %v3072, %v3085
        %v3087 = vcombine.low %v3079, %v3086
        %v3088 = vcombine.low %v2381, %v2382
        %v3089 = vcombine.low %v2383, %v2384
        %v3091 = vunpack.c.l.s4 1983009808
        %v3092 = vunpack.c.0.s8 %v3091
        %v3093 = vlaneseq
        %v3094 = vshrl.u32 %v3093, 7
        %v3095 = vsub.s32 %v3092, %v3094
        %v3096 = vrot.slane %v3088, %v3095
        %v3098 = vunpack.c.l.s4 1983009808
        %v3099 = vunpack.c.0.s8 %v3098
        %v3100 = vlaneseq
        %v3101 = vshrl.u32 %v3100, 7
        %v3102 = vsub.s32 %v3099, %v3101
        %v3103 = vrot.slane %v3089, %v3102
        %v3104 = vcombine.low %v3096, %v3103
        %v3105 = vcombine.low %v2386, %v2387
        %v3106 = vcombine.low %v2388, %v2389
        %v3108 = vunpack.c.l.s4 1983009808
        %v3109 = vunpack.c.0.s8 %v3108
        %v3110 = vlaneseq
        %v3111 = vshrl.u32 %v3110, 7
        %v3112 = vsub.s32 %v3109, %v3111
        %v3113 = vrot.slane %v3105, %v3112
        %v3115 = vunpack.c.l.s4 1983009808
        %v3116 = vunpack.c.0.s8 %v3115
        %v3117 = vlaneseq
        %v3118 = vshrl.u32 %v3117, 7
        %v3119 = vsub.s32 %v3116, %v3118
        %v3120 = vrot.slane %v3106, %v3119
        %v3121 = vcombine.low %v3113, %v3120
        %v3122 = vcombine.low %v2390, %v2391
        %v3123 = vcombine.low %v2392, %v2393
        %v3125 = vunpack.c.l.s4 1983009808
        %v3126 = vunpack.c.0.s8 %v3125
        %v3127 = vlaneseq
        %v3128 = vshrl.u32 %v3127, 7
        %v3129 = vsub.s32 %v3126, %v3128
        %v3130 = vrot.slane %v3122, %v3129
        %v3132 = vunpack.c.l.s4 1983009808
        %v3133 = vunpack.c.0.s8 %v3132
        %v3134 = vlaneseq
        %v3135 = vshrl.u32 %v3134, 7
        %v3136 = vsub.s32 %v3133, %v3135
        %v3137 = vrot.slane %v3123, %v3136
        %v3138 = vcombine.low %v3130, %v3137
        %3171 = vst.msk [vmem:[#allocation5] sm:$0xff] %vm2175, %v2611
        %3172 = vst.msk [vmem:[#allocation5 + $0x8] sm:$0xff] %vm2175, %v2628
        %3173 = vst.msk [vmem:[#allocation5 + $0x10] sm:$0xff] %vm2175, %v2645
        %3174 = vst.msk [vmem:[#allocation5 + $0x18] sm:$0xff] %vm2175, %v2662
        %3175 = vst.msk [vmem:[#allocation5 + $0x20] sm:$0xff] %vm2175, %v2679
        %3176 = vst.msk [vmem:[#allocation5 + $0x28] sm:$0xff] %vm2175, %v2696
        %3177 = vst.msk [vmem:[#allocation5 + $0x30] sm:$0xff] %vm2175, %v2713
        %3178 = vst.msk [vmem:[#allocation5 + $0x38] sm:$0xff] %vm2175, %v2730
        %3179 = vst.msk [vmem:[#allocation5 + $0x40] sm:$0xff] %vm2175, %v2747
        %3180 = vst.msk [vmem:[#allocation5 + $0x48] sm:$0xff] %vm2175, %v2764
        %3181 = vst.msk [vmem:[#allocation5 + $0x50] sm:$0xff] %vm2175, %v2781
        %3182 = vst.msk [vmem:[#allocation5 + $0x58] sm:$0xff] %vm2175, %v2798
        %3183 = vst.msk [vmem:[#allocation5 + $0x60] sm:$0xff] %vm2175, %v2815
        %3184 = vst.msk [vmem:[#allocation5 + $0x68] sm:$0xff] %vm2175, %v2832
        %3185 = vst.msk [vmem:[#allocation5 + $0x70] sm:$0xff] %vm2175, %v2849
        %3186 = vst.msk [vmem:[#allocation5 + $0x78] sm:$0xff] %vm2175, %v2866
        %3187 = vst.msk [vmem:[#allocation5 + $0x80] sm:$0xff] %vm2175, %v2883
        %3188 = vst.msk [vmem:[#allocation5 + $0x88] sm:$0xff] %vm2175, %v2900
        %3189 = vst.msk [vmem:[#allocation5 + $0x90] sm:$0xff] %vm2175, %v2917
        %3190 = vst.msk [vmem:[#allocation5 + $0x98] sm:$0xff] %vm2175, %v2934
        %3191 = vst.msk [vmem:[#allocation5 + $0xa0] sm:$0xff] %vm2175, %v2951
        %3192 = vst.msk [vmem:[#allocation5 + $0xa8] sm:$0xff] %vm2175, %v2968
        %3193 = vst.msk [vmem:[#allocation5 + $0xb0] sm:$0xff] %vm2175, %v2985
        %3194 = vst.msk [vmem:[#allocation5 + $0xb8] sm:$0xff] %vm2175, %v3002
        %3195 = vst.msk [vmem:[#allocation5 + $0xc0] sm:$0xff] %vm2175, %v3019
        %3196 = vst.msk [vmem:[#allocation5 + $0xc8] sm:$0xff] %vm2175, %v3036
        %3197 = vst.msk [vmem:[#allocation5 + $0xd0] sm:$0xff] %vm2175, %v3053
        %3198 = vst.msk [vmem:[#allocation5 + $0xd8] sm:$0xff] %vm2175, %v3070
        %3199 = vst.msk [vmem:[#allocation5 + $0xe0] sm:$0xff] %vm2175, %v3087
        %3200 = vst.msk [vmem:[#allocation5 + $0xe8] sm:$0xff] %vm2175, %v3104
        %3201 = vst.msk [vmem:[#allocation5 + $0xf0] sm:$0xff] %vm2175, %v3121
        %3202 = vst.msk [vmem:[#allocation5 + $0xf8] sm:$0xff] %vm2175, %v3138
        %3235 = vrot.lane.b32.xlu0 %v2413, 18
        %v3236 = vpop.permute.xlu0 %3235
        %3237 = vrot.lane.b32.xlu0 %v2414, 18
        %v3238 = vpop.permute.xlu0 %3237
        %3239 = vrot.lane.b32.xlu0 %v2416, 18
        %v3240 = vpop.permute.xlu0 %3239
        %3241 = vrot.lane.b32.xlu0 %v2417, 18
        %v3242 = vpop.permute.xlu0 %3241
        %3243 = vrot.lane.b32.xlu0 %v2419, 18
        %v3244 = vpop.permute.xlu0 %3243
        %3245 = vrot.lane.b32.xlu0 %v2420, 18
        %v3246 = vpop.permute.xlu0 %3245
        %3247 = vrot.lane.b32.xlu0 %v2422, 18
        %v3248 = vpop.permute.xlu0 %3247
        %3249 = vrot.lane.b32.xlu0 %v2423, 18
        %v3250 = vpop.permute.xlu0 %3249
        %3251 = vrot.lane.b32.xlu0 %v2425, 18
        %v3252 = vpop.permute.xlu0 %3251
        %3253 = vrot.lane.b32.xlu0 %v2426, 18
        %v3254 = vpop.permute.xlu0 %3253
        %3255 = vrot.lane.b32.xlu0 %v2428, 18
        %v3256 = vpop.permute.xlu0 %3255
        %3257 = vrot.lane.b32.xlu0 %v2429, 18
        %v3258 = vpop.permute.xlu0 %3257
        %3259 = vrot.lane.b32.xlu0 %v2431, 18
        %v3260 = vpop.permute.xlu0 %3259
        %3261 = vrot.lane.b32.xlu0 %v2432, 18
        %v3262 = vpop.permute.xlu0 %3261
        %3263 = vrot.lane.b32.xlu0 %v2434, 18
        %v3264 = vpop.permute.xlu0 %3263
        %3265 = vrot.lane.b32.xlu0 %v2435, 18
        %v3266 = vpop.permute.xlu0 %3265
        %3267 = vrot.lane.b32.xlu0 %v2437, 18
        %v3268 = vpop.permute.xlu0 %3267
        %3269 = vrot.lane.b32.xlu0 %v2438, 18
        %v3270 = vpop.permute.xlu0 %3269
        %3271 = vrot.lane.b32.xlu0 %v2440, 18
        %v3272 = vpop.permute.xlu0 %3271
        %3273 = vrot.lane.b32.xlu0 %v2441, 18
        %v3274 = vpop.permute.xlu0 %3273
        %3275 = vrot.lane.b32.xlu0 %v2443, 18
        %v3276 = vpop.permute.xlu0 %3275
        %3277 = vrot.lane.b32.xlu0 %v2444, 18
        %v3278 = vpop.permute.xlu0 %3277
        %3279 = vrot.lane.b32.xlu0 %v2446, 18
        %v3280 = vpop.permute.xlu0 %3279
        %3281 = vrot.lane.b32.xlu0 %v2447, 18
        %v3282 = vpop.permute.xlu0 %3281
        %3283 = vrot.lane.b32.xlu0 %v2449, 18
        %v3284 = vpop.permute.xlu0 %3283
        %3285 = vrot.lane.b32.xlu0 %v2450, 18
        %v3286 = vpop.permute.xlu0 %3285
        %3287 = vrot.lane.b32.xlu0 %v2452, 18
        %v3288 = vpop.permute.xlu0 %3287
        %3289 = vrot.lane.b32.xlu0 %v2453, 18
        %v3290 = vpop.permute.xlu0 %3289
        %3291 = vrot.lane.b32.xlu0 %v2455, 18
        %v3292 = vpop.permute.xlu0 %3291
        %3293 = vrot.lane.b32.xlu0 %v2456, 18
        %v3294 = vpop.permute.xlu0 %3293
        %3295 = vrot.lane.b32.xlu0 %v2458, 18
        %v3296 = vpop.permute.xlu0 %3295
        %3297 = vrot.lane.b32.xlu0 %v2459, 18
        %v3298 = vpop.permute.xlu0 %3297
        %vm3331 = vcmask 162960
        %3332 = vst.msk [vmem:[#allocation5] sm:$0xff] %vm3331, %v3236
        %3333 = vst.msk [vmem:[#allocation5 + $0x8] sm:$0xff] %vm3331, %v3238
        %3334 = vst.msk [vmem:[#allocation5 + $0x10] sm:$0xff] %vm3331, %v3240
        %3335 = vst.msk [vmem:[#allocation5 + $0x18] sm:$0xff] %vm3331, %v3242
        %3336 = vst.msk [vmem:[#allocation5 + $0x20] sm:$0xff] %vm3331, %v3244
        %3337 = vst.msk [vmem:[#allocation5 + $0x28] sm:$0xff] %vm3331, %v3246
        %3338 = vst.msk [vmem:[#allocation5 + $0x30] sm:$0xff] %vm3331, %v3248
        %3339 = vst.msk [vmem:[#allocation5 + $0x38] sm:$0xff] %vm3331, %v3250
        %3340 = vst.msk [vmem:[#allocation5 + $0x40] sm:$0xff] %vm3331, %v3252
        %3341 = vst.msk [vmem:[#allocation5 + $0x48] sm:$0xff] %vm3331, %v3254
        %3342 = vst.msk [vmem:[#allocation5 + $0x50] sm:$0xff] %vm3331, %v3256
        %3343 = vst.msk [vmem:[#allocation5 + $0x58] sm:$0xff] %vm3331, %v3258
        %3344 = vst.msk [vmem:[#allocation5 + $0x60] sm:$0xff] %vm3331, %v3260
        %3345 = vst.msk [vmem:[#allocation5 + $0x68] sm:$0xff] %vm3331, %v3262
        %3346 = vst.msk [vmem:[#allocation5 + $0x70] sm:$0xff] %vm3331, %v3264
        %3347 = vst.msk [vmem:[#allocation5 + $0x78] sm:$0xff] %vm3331, %v3266
        %3348 = vst.msk [vmem:[#allocation5 + $0x80] sm:$0xff] %vm3331, %v3268
        %3349 = vst.msk [vmem:[#allocation5 + $0x88] sm:$0xff] %vm3331, %v3270
        %3350 = vst.msk [vmem:[#allocation5 + $0x90] sm:$0xff] %vm3331, %v3272
        %3351 = vst.msk [vmem:[#allocation5 + $0x98] sm:$0xff] %vm3331, %v3274
        %3352 = vst.msk [vmem:[#allocation5 + $0xa0] sm:$0xff] %vm3331, %v3276
        %3353 = vst.msk [vmem:[#allocation5 + $0xa8] sm:$0xff] %vm3331, %v3278
        %3354 = vst.msk [vmem:[#allocation5 + $0xb0] sm:$0xff] %vm3331, %v3280
        %3355 = vst.msk [vmem:[#allocation5 + $0xb8] sm:$0xff] %vm3331, %v3282
        %3356 = vst.msk [vmem:[#allocation5 + $0xc0] sm:$0xff] %vm3331, %v3284
        %3357 = vst.msk [vmem:[#allocation5 + $0xc8] sm:$0xff] %vm3331, %v3286
        %3358 = vst.msk [vmem:[#allocation5 + $0xd0] sm:$0xff] %vm3331, %v3288
        %3359 = vst.msk [vmem:[#allocation5 + $0xd8] sm:$0xff] %vm3331, %v3290
        %3360 = vst.msk [vmem:[#allocation5 + $0xe0] sm:$0xff] %vm3331, %v3292
        %3361 = vst.msk [vmem:[#allocation5 + $0xe8] sm:$0xff] %vm3331, %v3294
        %3362 = vst.msk [vmem:[#allocation5 + $0xf0] sm:$0xff] %vm3331, %v3296
        %3363 = vst.msk [vmem:[#allocation5 + $0xf8] sm:$0xff] %vm3331, %v3298
        %vm3380 = vcmask 1040384
        %vm3381 = vcmask 1042434
        %vm3382 = vmor %vm3380, %vm3381
        %vm3383 = vcmask 1044484
        %vm3384 = vmor %vm3382, %vm3383
        %vm3385 = vcmask 1046534
        %vm3386 = vmor %vm3384, %vm3385
        %v3387 = vrot.slane %v2251, 7
        %v3388 = vrot.slane %v3387, 2
        %v3389 = vrot.slane %v2252, 7
        %v3390 = vsel %vm3386, %v3388, %v3389
        %v3391 = vrot.slane %v3389, 2
        %v3392 = vrot.slane %v2253, 7
        %v3393 = vsel %vm3386, %v3391, %v3392
        %v3394 = vrot.slane %v3392, 2
        %v3395 = vrot.slane %v2254, 7
        %v3396 = vsel %vm3386, %v3394, %v3395
        %v3397 = vrot.slane %v3395, 2
        %v3398 = vrot.slane %v2255, 7
        %v3399 = vsel %vm3386, %v3397, %v3398
        %v3400 = vrot.slane %v3398, 2
        %v3401 = vrot.slane %v2256, 7
        %v3402 = vsel %vm3386, %v3400, %v3401
        %v3403 = vrot.slane %v3401, 2
        %v3404 = vrot.slane %v2257, 7
        %v3405 = vsel %vm3386, %v3403, %v3404
        %v3406 = vrot.slane %v3404, 2
        %v3407 = vrot.slane %v2258, 7
        %v3408 = vsel %vm3386, %v3406, %v3407
        %v3409 = vrot.slane %v3407, 2
        %v3410 = vrot.slane %v2259, 7
        %v3411 = vsel %vm3386, %v3409, %v3410
        %v3412 = vrot.slane %v2260, 7
        %v3413 = vrot.slane %v3412, 2
        %v3414 = vrot.slane %v2261, 7
        %v3415 = vsel %vm3386, %v3413, %v3414
        %v3416 = vrot.slane %v3414, 2
        %v3417 = vrot.slane %v2262, 7
        %v3418 = vsel %vm3386, %v3416, %v3417
        %v3419 = vrot.slane %v3417, 2
        %v3420 = vrot.slane %v2263, 7
        %v3421 = vsel %vm3386, %v3419, %v3420
        %v3422 = vrot.slane %v3420, 2
        %v3423 = vrot.slane %v2264, 7
        %v3424 = vsel %vm3386, %v3422, %v3423
        %v3425 = vrot.slane %v3423, 2
        %v3426 = vrot.slane %v2265, 7
        %v3427 = vsel %vm3386, %v3425, %v3426
        %v3428 = vrot.slane %v3426, 2
        %v3429 = vrot.slane %v2266, 7
        %v3430 = vsel %vm3386, %v3428, %v3429
        %v3431 = vrot.slane %v3429, 2
        %v3432 = vrot.slane %v2267, 7
        %v3433 = vsel %vm3386, %v3431, %v3432
        %v3434 = vrot.slane %v3432, 2
        %v3435 = vrot.slane %v2268, 7
        %v3436 = vsel %vm3386, %v3434, %v3435
        %v3437 = vrot.slane %v2269, 7
        %v3438 = vrot.slane %v3437, 2
        %v3439 = vrot.slane %v2270, 7
        %v3440 = vsel %vm3386, %v3438, %v3439
        %v3441 = vrot.slane %v3439, 2
        %v3442 = vrot.slane %v2271, 7
        %v3443 = vsel %vm3386, %v3441, %v3442
        %v3444 = vrot.slane %v3442, 2
        %v3445 = vrot.slane %v2272, 7
        %v3446 = vsel %vm3386, %v3444, %v3445
        %v3447 = vrot.slane %v3445, 2
        %v3448 = vrot.slane %v2273, 7
        %v3449 = vsel %vm3386, %v3447, %v3448
        %v3450 = vrot.slane %v3448, 2
        %v3451 = vrot.slane %v2274, 7
        %v3452 = vsel %vm3386, %v3450, %v3451
        %v3453 = vrot.slane %v3451, 2
        %v3454 = vrot.slane %v2275, 7
        %v3455 = vsel %vm3386, %v3453, %v3454
        %v3456 = vrot.slane %v3454, 2
        %v3457 = vrot.slane %v2276, 7
        %v3458 = vsel %vm3386, %v3456, %v3457
        %v3459 = vrot.slane %v3457, 2
        %v3460 = vrot.slane %v2277, 7
        %v3461 = vsel %vm3386, %v3459, %v3460
        %v3462 = vrot.slane %v2278, 7
        %v3463 = vrot.slane %v3462, 2
        %v3464 = vrot.slane %v2279, 7
        %v3465 = vsel %vm3386, %v3463, %v3464
        %v3466 = vrot.slane %v3464, 2
        %v3467 = vrot.slane %v2280, 7
        %v3468 = vsel %vm3386, %v3466, %v3467
        %v3469 = vrot.slane %v3467, 2
        %v3470 = vrot.slane %v2281, 7
        %v3471 = vsel %vm3386, %v3469, %v3470
        %v3472 = vrot.slane %v3470, 2
        %v3473 = vrot.slane %v2282, 7
        %v3474 = vsel %vm3386, %v3472, %v3473
        %v3475 = vrot.slane %v3473, 2
        %v3476 = vrot.slane %v2283, 7
        %v3477 = vsel %vm3386, %v3475, %v3476
        %v3478 = vrot.slane %v3476, 2
        %v3479 = vrot.slane %v2284, 7
        %v3480 = vsel %vm3386, %v3478, %v3479
        %v3481 = vrot.slane %v3479, 2
        %v3482 = vrot.slane %v2285, 7
        %v3483 = vsel %vm3386, %v3481, %v3482
        %v3484 = vrot.slane %v3482, 2
        %v3485 = vrot.slane %v2286, 7
        %v3486 = vsel %vm3386, %v3484, %v3485
        %v3487 = vrot.slane %v2287, 7
        %v3488 = vrot.slane %v3487, 2
        %v3489 = vrot.slane %v2288, 7
        %v3490 = vsel %vm3386, %v3488, %v3489
        %v3491 = vrot.slane %v3489, 2
        %v3492 = vrot.slane %v2289, 7
        %v3493 = vsel %vm3386, %v3491, %v3492
        %v3494 = vrot.slane %v3492, 2
        %v3495 = vrot.slane %v2290, 7
        %v3496 = vsel %vm3386, %v3494, %v3495
        %v3497 = vrot.slane %v3495, 2
        %v3498 = vrot.slane %v2291, 7
        %v3499 = vsel %vm3386, %v3497, %v3498
        %v3500 = vrot.slane %v3498, 2
        %v3501 = vrot.slane %v2292, 7
        %v3502 = vsel %vm3386, %v3500, %v3501
        %v3503 = vrot.slane %v3501, 2
        %v3504 = vrot.slane %v2293, 7
        %v3505 = vsel %vm3386, %v3503, %v3504
        %v3506 = vrot.slane %v3504, 2
        %v3507 = vrot.slane %v2294, 7
        %v3508 = vsel %vm3386, %v3506, %v3507
        %v3509 = vrot.slane %v3507, 2
        %v3510 = vrot.slane %v2295, 7
        %v3511 = vsel %vm3386, %v3509, %v3510
        %v3512 = vrot.slane %v2296, 7
        %v3513 = vrot.slane %v3512, 2
        %v3514 = vrot.slane %v2297, 7
        %v3515 = vsel %vm3386, %v3513, %v3514
        %v3516 = vrot.slane %v3514, 2
        %v3517 = vrot.slane %v2298, 7
        %v3518 = vsel %vm3386, %v3516, %v3517
        %v3519 = vrot.slane %v3517, 2
        %v3520 = vrot.slane %v2299, 7
        %v3521 = vsel %vm3386, %v3519, %v3520
        %v3522 = vrot.slane %v3520, 2
        %v3523 = vrot.slane %v2300, 7
        %v3524 = vsel %vm3386, %v3522, %v3523
        %v3525 = vrot.slane %v3523, 2
        %v3526 = vrot.slane %v2301, 7
        %v3527 = vsel %vm3386, %v3525, %v3526
        %v3528 = vrot.slane %v3526, 2
        %v3529 = vrot.slane %v2302, 7
        %v3530 = vsel %vm3386, %v3528, %v3529
        %v3531 = vrot.slane %v3529, 2
        %v3532 = vrot.slane %v2303, 7
        %v3533 = vsel %vm3386, %v3531, %v3532
        %v3534 = vrot.slane %v3532, 2
        %v3535 = vrot.slane %v2304, 7
        %v3536 = vsel %vm3386, %v3534, %v3535
        %v3537 = vrot.slane %v2305, 7
        %v3538 = vrot.slane %v3537, 2
        %v3539 = vrot.slane %v2306, 7
        %v3540 = vsel %vm3386, %v3538, %v3539
        %v3541 = vrot.slane %v3539, 2
        %v3542 = vrot.slane %v2307, 7
        %v3543 = vsel %vm3386, %v3541, %v3542
        %v3544 = vrot.slane %v3542, 2
        %v3545 = vrot.slane %v2308, 7
        %v3546 = vsel %vm3386, %v3544, %v3545
        %v3547 = vrot.slane %v3545, 2
        %v3548 = vrot.slane %v2309, 7
        %v3549 = vsel %vm3386, %v3547, %v3548
        %v3550 = vrot.slane %v3548, 2
        %v3551 = vrot.slane %v2310, 7
        %v3552 = vsel %vm3386, %v3550, %v3551
        %v3553 = vrot.slane %v3551, 2
        %v3554 = vrot.slane %v2311, 7
        %v3555 = vsel %vm3386, %v3553, %v3554
        %v3556 = vrot.slane %v3554, 2
        %v3557 = vrot.slane %v2312, 7
        %v3558 = vsel %vm3386, %v3556, %v3557
        %v3559 = vrot.slane %v3557, 2
        %v3560 = vrot.slane %v2313, 7
        %v3561 = vsel %vm3386, %v3559, %v3560
        %v3562 = vrot.slane %v2314, 7
        %v3563 = vrot.slane %v3562, 2
        %v3564 = vrot.slane %v2315, 7
        %v3565 = vsel %vm3386, %v3563, %v3564
        %v3566 = vrot.slane %v3564, 2
        %v3567 = vrot.slane %v2316, 7
        %v3568 = vsel %vm3386, %v3566, %v3567
        %v3569 = vrot.slane %v3567, 2
        %v3570 = vrot.slane %v2317, 7
        %v3571 = vsel %vm3386, %v3569, %v3570
        %v3572 = vrot.slane %v3570, 2
        %v3573 = vrot.slane %v2318, 7
        %v3574 = vsel %vm3386, %v3572, %v3573
        %v3575 = vrot.slane %v3573, 2
        %v3576 = vrot.slane %v2319, 7
        %v3577 = vsel %vm3386, %v3575, %v3576
        %v3578 = vrot.slane %v3576, 2
        %v3579 = vrot.slane %v2320, 7
        %v3580 = vsel %vm3386, %v3578, %v3579
        %v3581 = vrot.slane %v3579, 2
        %v3582 = vrot.slane %v2321, 7
        %v3583 = vsel %vm3386, %v3581, %v3582
        %v3584 = vrot.slane %v3582, 2
        %v3585 = vrot.slane %v2322, 7
        %v3586 = vsel %vm3386, %v3584, %v3585
        %v3587 = vrot.slane %v2323, 7
        %v3588 = vrot.slane %v3587, 2
        %v3589 = vrot.slane %v2324, 7
        %v3590 = vsel %vm3386, %v3588, %v3589
        %v3591 = vrot.slane %v3589, 2
        %v3592 = vrot.slane %v2325, 7
        %v3593 = vsel %vm3386, %v3591, %v3592
        %v3594 = vrot.slane %v3592, 2
        %v3595 = vrot.slane %v2326, 7
        %v3596 = vsel %vm3386, %v3594, %v3595
        %v3597 = vrot.slane %v3595, 2
        %v3598 = vrot.slane %v2327, 7
        %v3599 = vsel %vm3386, %v3597, %v3598
        %v3600 = vrot.slane %v3598, 2
        %v3601 = vrot.slane %v2328, 7
        %v3602 = vsel %vm3386, %v3600, %v3601
        %v3603 = vrot.slane %v3601, 2
        %v3604 = vrot.slane %v2329, 7
        %v3605 = vsel %vm3386, %v3603, %v3604
        %v3606 = vrot.slane %v3604, 2
        %v3607 = vrot.slane %v2330, 7
        %v3608 = vsel %vm3386, %v3606, %v3607
        %v3609 = vrot.slane %v3607, 2
        %v3610 = vrot.slane %v2331, 7
        %v3611 = vsel %vm3386, %v3609, %v3610
        %v3612 = vrot.slane %v2332, 7
        %v3613 = vrot.slane %v3612, 2
        %v3614 = vrot.slane %v2333, 7
        %v3615 = vsel %vm3386, %v3613, %v3614
        %v3616 = vrot.slane %v3614, 2
        %v3617 = vrot.slane %v2334, 7
        %v3618 = vsel %vm3386, %v3616, %v3617
        %v3619 = vrot.slane %v3617, 2
        %v3620 = vrot.slane %v2335, 7
        %v3621 = vsel %vm3386, %v3619, %v3620
        %v3622 = vrot.slane %v3620, 2
        %v3623 = vrot.slane %v2336, 7
        %v3624 = vsel %vm3386, %v3622, %v3623
        %v3625 = vrot.slane %v3623, 2
        %v3626 = vrot.slane %v2337, 7
        %v3627 = vsel %vm3386, %v3625, %v3626
        %v3628 = vrot.slane %v3626, 2
        %v3629 = vrot.slane %v2338, 7
        %v3630 = vsel %vm3386, %v3628, %v3629
        %v3631 = vrot.slane %v3629, 2
        %v3632 = vrot.slane %v2339, 7
        %v3633 = vsel %vm3386, %v3631, %v3632
        %v3634 = vrot.slane %v3632, 2
        %v3635 = vrot.slane %v2340, 7
        %v3636 = vsel %vm3386, %v3634, %v3635
        %v3637 = vrot.slane %v2341, 7
        %v3638 = vrot.slane %v3637, 2
        %v3639 = vrot.slane %v2342, 7
        %v3640 = vsel %vm3386, %v3638, %v3639
        %v3641 = vrot.slane %v3639, 2
        %v3642 = vrot.slane %v2343, 7
        %v3643 = vsel %vm3386, %v3641, %v3642
        %v3644 = vrot.slane %v3642, 2
        %v3645 = vrot.slane %v2344, 7
        %v3646 = vsel %vm3386, %v3644, %v3645
        %v3647 = vrot.slane %v3645, 2
        %v3648 = vrot.slane %v2345, 7
        %v3649 = vsel %vm3386, %v3647, %v3648
        %v3650 = vrot.slane %v3648, 2
        %v3651 = vrot.slane %v2346, 7
        %v3652 = vsel %vm3386, %v3650, %v3651
        %v3653 = vrot.slane %v3651, 2
        %v3654 = vrot.slane %v2347, 7
        %v3655 = vsel %vm3386, %v3653, %v3654
        %v3656 = vrot.slane %v3654, 2
        %v3657 = vrot.slane %v2348, 7
        %v3658 = vsel %vm3386, %v3656, %v3657
        %v3659 = vrot.slane %v3657, 2
        %v3660 = vrot.slane %v2349, 7
        %v3661 = vsel %vm3386, %v3659, %v3660
        %v3662 = vrot.slane %v2350, 7
        %v3663 = vrot.slane %v3662, 2
        %v3664 = vrot.slane %v2351, 7
        %v3665 = vsel %vm3386, %v3663, %v3664
        %v3666 = vrot.slane %v3664, 2
        %v3667 = vrot.slane %v2352, 7
        %v3668 = vsel %vm3386, %v3666, %v3667
        %v3669 = vrot.slane %v3667, 2
        %v3670 = vrot.slane %v2353, 7
        %v3671 = vsel %vm3386, %v3669, %v3670
        %v3672 = vrot.slane %v3670, 2
        %v3673 = vrot.slane %v2354, 7
        %v3674 = vsel %vm3386, %v3672, %v3673
        %v3675 = vrot.slane %v3673, 2
        %v3676 = vrot.slane %v2355, 7
        %v3677 = vsel %vm3386, %v3675, %v3676
        %v3678 = vrot.slane %v3676, 2
        %v3679 = vrot.slane %v2356, 7
        %v3680 = vsel %vm3386, %v3678, %v3679
        %v3681 = vrot.slane %v3679, 2
        %v3682 = vrot.slane %v2357, 7
        %v3683 = vsel %vm3386, %v3681, %v3682
        %v3684 = vrot.slane %v3682, 2
        %v3685 = vrot.slane %v2358, 7
        %v3686 = vsel %vm3386, %v3684, %v3685
        %v3687 = vrot.slane %v2359, 7
        %v3688 = vrot.slane %v3687, 2
        %v3689 = vrot.slane %v2360, 7
        %v3690 = vsel %vm3386, %v3688, %v3689
        %v3691 = vrot.slane %v3689, 2
        %v3692 = vrot.slane %v2361, 7
        %v3693 = vsel %vm3386, %v3691, %v3692
        %v3694 = vrot.slane %v3692, 2
        %v3695 = vrot.slane %v2362, 7
        %v3696 = vsel %vm3386, %v3694, %v3695
        %v3697 = vrot.slane %v3695, 2
        %v3698 = vrot.slane %v2363, 7
        %v3699 = vsel %vm3386, %v3697, %v3698
        %v3700 = vrot.slane %v3698, 2
        %v3701 = vrot.slane %v2364, 7
        %v3702 = vsel %vm3386, %v3700, %v3701
        %v3703 = vrot.slane %v3701, 2
        %v3704 = vrot.slane %v2365, 7
        %v3705 = vsel %vm3386, %v3703, %v3704
        %v3706 = vrot.slane %v3704, 2
        %v3707 = vrot.slane %v2366, 7
        %v3708 = vsel %vm3386, %v3706, %v3707
        %v3709 = vrot.slane %v3707, 2
        %v3710 = vrot.slane %v2367, 7
        %v3711 = vsel %vm3386, %v3709, %v3710
        %v3712 = vrot.slane %v2368, 7
        %v3713 = vrot.slane %v3712, 2
        %v3714 = vrot.slane %v2369, 7
        %v3715 = vsel %vm3386, %v3713, %v3714
        %v3716 = vrot.slane %v3714, 2
        %v3717 = vrot.slane %v2370, 7
        %v3718 = vsel %vm3386, %v3716, %v3717
        %v3719 = vrot.slane %v3717, 2
        %v3720 = vrot.slane %v2371, 7
        %v3721 = vsel %vm3386, %v3719, %v3720
        %v3722 = vrot.slane %v3720, 2
        %v3723 = vrot.slane %v2372, 7
        %v3724 = vsel %vm3386, %v3722, %v3723
        %v3725 = vrot.slane %v3723, 2
        %v3726 = vrot.slane %v2373, 7
        %v3727 = vsel %vm3386, %v3725, %v3726
        %v3728 = vrot.slane %v3726, 2
        %v3729 = vrot.slane %v2374, 7
        %v3730 = vsel %vm3386, %v3728, %v3729
        %v3731 = vrot.slane %v3729, 2
        %v3732 = vrot.slane %v2375, 7
        %v3733 = vsel %vm3386, %v3731, %v3732
        %v3734 = vrot.slane %v3732, 2
        %v3735 = vrot.slane %v2376, 7
        %v3736 = vsel %vm3386, %v3734, %v3735
        %v3737 = vrot.slane %v2377, 7
        %v3738 = vrot.slane %v3737, 2
        %v3739 = vrot.slane %v2378, 7
        %v3740 = vsel %vm3386, %v3738, %v3739
        %v3741 = vrot.slane %v3739, 2
        %v3742 = vrot.slane %v2379, 7
        %v3743 = vsel %vm3386, %v3741, %v3742
        %v3744 = vrot.slane %v3742, 2
        %v3745 = vrot.slane %v2380, 7
        %v3746 = vsel %vm3386, %v3744, %v3745
        %v3747 = vrot.slane %v3745, 2
        %v3748 = vrot.slane %v2381, 7
        %v3749 = vsel %vm3386, %v3747, %v3748
        %v3750 = vrot.slane %v3748, 2
        %v3751 = vrot.slane %v2382, 7
        %v3752 = vsel %vm3386, %v3750, %v3751
        %v3753 = vrot.slane %v3751, 2
        %v3754 = vrot.slane %v2383, 7
        %v3755 = vsel %vm3386, %v3753, %v3754
        %v3756 = vrot.slane %v3754, 2
        %v3757 = vrot.slane %v2384, 7
        %v3758 = vsel %vm3386, %v3756, %v3757
        %v3759 = vrot.slane %v3757, 2
        %v3760 = vrot.slane %v2385, 7
        %v3761 = vsel %vm3386, %v3759, %v3760
        %v3762 = vrot.slane %v2386, 7
        %v3763 = vrot.slane %v3762, 2
        %v3764 = vrot.slane %v2387, 7
        %v3765 = vsel %vm3386, %v3763, %v3764
        %v3766 = vrot.slane %v3764, 2
        %v3767 = vrot.slane %v2388, 7
        %v3768 = vsel %vm3386, %v3766, %v3767
        %v3769 = vrot.slane %v3767, 2
        %v3770 = vrot.slane %v2389, 7
        %v3771 = vsel %vm3386, %v3769, %v3770
        %v3772 = vrot.slane %v3770, 2
        %v3773 = vrot.slane %v2390, 7
        %v3774 = vsel %vm3386, %v3772, %v3773
        %v3775 = vrot.slane %v3773, 2
        %v3776 = vrot.slane %v2391, 7
        %v3777 = vsel %vm3386, %v3775, %v3776
        %v3778 = vrot.slane %v3776, 2
        %v3779 = vrot.slane %v2392, 7
        %v3780 = vsel %vm3386, %v3778, %v3779
        %v3781 = vrot.slane %v3779, 2
        %v3782 = vrot.slane %v2393, 7
        %v3783 = vsel %vm3386, %v3781, %v3782
        %v3784 = vrot.slane %v3782, 2
        %v3785 = vrot.slane %v2394, 7
        %v3786 = vsel %vm3386, %v3784, %v3785
        %v3787 = vcombine.low %v3390, %v3393
        %v3788 = vcombine.low %v3396, %v3399
        %v3790 = vunpack.c.l.s4 1983009808
        %v3791 = vunpack.c.0.s8 %v3790
        %v3792 = vlaneseq
        %v3793 = vshrl.u32 %v3792, 7
        %v3794 = vsub.s32 %v3791, %v3793
        %v3795 = vrot.slane %v3787, %v3794
        %v3797 = vunpack.c.l.s4 1983009808
        %v3798 = vunpack.c.0.s8 %v3797
        %v3799 = vlaneseq
        %v3800 = vshrl.u32 %v3799, 7
        %v3801 = vsub.s32 %v3798, %v3800
        %v3802 = vrot.slane %v3788, %v3801
        %v3803 = vcombine.low %v3795, %v3802
        %v3804 = vcombine.low %v3402, %v3405
        %v3805 = vcombine.low %v3408, %v3411
        %v3807 = vunpack.c.l.s4 1983009808
        %v3808 = vunpack.c.0.s8 %v3807
        %v3809 = vlaneseq
        %v3810 = vshrl.u32 %v3809, 7
        %v3811 = vsub.s32 %v3808, %v3810
        %v3812 = vrot.slane %v3804, %v3811
        %v3814 = vunpack.c.l.s4 1983009808
        %v3815 = vunpack.c.0.s8 %v3814
        %v3816 = vlaneseq
        %v3817 = vshrl.u32 %v3816, 7
        %v3818 = vsub.s32 %v3815, %v3817
        %v3819 = vrot.slane %v3805, %v3818
        %v3820 = vcombine.low %v3812, %v3819
        %v3821 = vcombine.low %v3415, %v3418
        %v3822 = vcombine.low %v3421, %v3424
        %v3824 = vunpack.c.l.s4 1983009808
        %v3825 = vunpack.c.0.s8 %v3824
        %v3826 = vlaneseq
        %v3827 = vshrl.u32 %v3826, 7
        %v3828 = vsub.s32 %v3825, %v3827
        %v3829 = vrot.slane %v3821, %v3828
        %v3831 = vunpack.c.l.s4 1983009808
        %v3832 = vunpack.c.0.s8 %v3831
        %v3833 = vlaneseq
        %v3834 = vshrl.u32 %v3833, 7
        %v3835 = vsub.s32 %v3832, %v3834
        %v3836 = vrot.slane %v3822, %v3835
        %v3837 = vcombine.low %v3829, %v3836
        %v3838 = vcombine.low %v3427, %v3430
        %v3839 = vcombine.low %v3433, %v3436
        %v3841 = vunpack.c.l.s4 1983009808
        %v3842 = vunpack.c.0.s8 %v3841
        %v3843 = vlaneseq
        %v3844 = vshrl.u32 %v3843, 7
        %v3845 = vsub.s32 %v3842, %v3844
        %v3846 = vrot.slane %v3838, %v3845
        %v3848 = vunpack.c.l.s4 1983009808
        %v3849 = vunpack.c.0.s8 %v3848
        %v3850 = vlaneseq
        %v3851 = vshrl.u32 %v3850, 7
        %v3852 = vsub.s32 %v3849, %v3851
        %v3853 = vrot.slane %v3839, %v3852
        %v3854 = vcombine.low %v3846, %v3853
        %v3855 = vcombine.low %v3440, %v3443
        %v3856 = vcombine.low %v3446, %v3449
        %v3858 = vunpack.c.l.s4 1983009808
        %v3859 = vunpack.c.0.s8 %v3858
        %v3860 = vlaneseq
        %v3861 = vshrl.u32 %v3860, 7
        %v3862 = vsub.s32 %v3859, %v3861
        %v3863 = vrot.slane %v3855, %v3862
        %v3865 = vunpack.c.l.s4 1983009808
        %v3866 = vunpack.c.0.s8 %v3865
        %v3867 = vlaneseq
        %v3868 = vshrl.u32 %v3867, 7
        %v3869 = vsub.s32 %v3866, %v3868
        %v3870 = vrot.slane %v3856, %v3869
        %v3871 = vcombine.low %v3863, %v3870
        %v3872 = vcombine.low %v3452, %v3455
        %v3873 = vcombine.low %v3458, %v3461
        %v3875 = vunpack.c.l.s4 1983009808
        %v3876 = vunpack.c.0.s8 %v3875
        %v3877 = vlaneseq
        %v3878 = vshrl.u32 %v3877, 7
        %v3879 = vsub.s32 %v3876, %v3878
        %v3880 = vrot.slane %v3872, %v3879
        %v3882 = vunpack.c.l.s4 1983009808
        %v3883 = vunpack.c.0.s8 %v3882
        %v3884 = vlaneseq
        %v3885 = vshrl.u32 %v3884, 7
        %v3886 = vsub.s32 %v3883, %v3885
        %v3887 = vrot.slane %v3873, %v3886
        %v3888 = vcombine.low %v3880, %v3887
        %v3889 = vcombine.low %v3465, %v3468
        %v3890 = vcombine.low %v3471, %v3474
        %v3892 = vunpack.c.l.s4 1983009808
        %v3893 = vunpack.c.0.s8 %v3892
        %v3894 = vlaneseq
        %v3895 = vshrl.u32 %v3894, 7
        %v3896 = vsub.s32 %v3893, %v3895
        %v3897 = vrot.slane %v3889, %v3896
        %v3899 = vunpack.c.l.s4 1983009808
        %v3900 = vunpack.c.0.s8 %v3899
        %v3901 = vlaneseq
        %v3902 = vshrl.u32 %v3901, 7
        %v3903 = vsub.s32 %v3900, %v3902
        %v3904 = vrot.slane %v3890, %v3903
        %v3905 = vcombine.low %v3897, %v3904
        %v3906 = vcombine.low %v3477, %v3480
        %v3907 = vcombine.low %v3483, %v3486
        %v3909 = vunpack.c.l.s4 1983009808
        %v3910 = vunpack.c.0.s8 %v3909
        %v3911 = vlaneseq
        %v3912 = vshrl.u32 %v3911, 7
        %v3913 = vsub.s32 %v3910, %v3912
        %v3914 = vrot.slane %v3906, %v3913
        %v3916 = vunpack.c.l.s4 1983009808
        %v3917 = vunpack.c.0.s8 %v3916
        %v3918 = vlaneseq
        %v3919 = vshrl.u32 %v3918, 7
        %v3920 = vsub.s32 %v3917, %v3919
        %v3921 = vrot.slane %v3907, %v3920
        %v3922 = vcombine.low %v3914, %v3921
        %v3923 = vcombine.low %v3490, %v3493
        %v3924 = vcombine.low %v3496, %v3499
        %v3926 = vunpack.c.l.s4 1983009808
        %v3927 = vunpack.c.0.s8 %v3926
        %v3928 = vlaneseq
        %v3929 = vshrl.u32 %v3928, 7
        %v3930 = vsub.s32 %v3927, %v3929
        %v3931 = vrot.slane %v3923, %v3930
        %v3933 = vunpack.c.l.s4 1983009808
        %v3934 = vunpack.c.0.s8 %v3933
        %v3935 = vlaneseq
        %v3936 = vshrl.u32 %v3935, 7
        %v3937 = vsub.s32 %v3934, %v3936
        %v3938 = vrot.slane %v3924, %v3937
        %v3939 = vcombine.low %v3931, %v3938
        %v3940 = vcombine.low %v3502, %v3505
        %v3941 = vcombine.low %v3508, %v3511
        %v3943 = vunpack.c.l.s4 1983009808
        %v3944 = vunpack.c.0.s8 %v3943
        %v3945 = vlaneseq
        %v3946 = vshrl.u32 %v3945, 7
        %v3947 = vsub.s32 %v3944, %v3946
        %v3948 = vrot.slane %v3940, %v3947
        %v3950 = vunpack.c.l.s4 1983009808
        %v3951 = vunpack.c.0.s8 %v3950
        %v3952 = vlaneseq
        %v3953 = vshrl.u32 %v3952, 7
        %v3954 = vsub.s32 %v3951, %v3953
        %v3955 = vrot.slane %v3941, %v3954
        %v3956 = vcombine.low %v3948, %v3955
        %v3957 = vcombine.low %v3515, %v3518
        %v3958 = vcombine.low %v3521, %v3524
        %v3960 = vunpack.c.l.s4 1983009808
        %v3961 = vunpack.c.0.s8 %v3960
        %v3962 = vlaneseq
        %v3963 = vshrl.u32 %v3962, 7
        %v3964 = vsub.s32 %v3961, %v3963
        %v3965 = vrot.slane %v3957, %v3964
        %v3967 = vunpack.c.l.s4 1983009808
        %v3968 = vunpack.c.0.s8 %v3967
        %v3969 = vlaneseq
        %v3970 = vshrl.u32 %v3969, 7
        %v3971 = vsub.s32 %v3968, %v3970
        %v3972 = vrot.slane %v3958, %v3971
        %v3973 = vcombine.low %v3965, %v3972
        %v3974 = vcombine.low %v3527, %v3530
        %v3975 = vcombine.low %v3533, %v3536
        %v3977 = vunpack.c.l.s4 1983009808
        %v3978 = vunpack.c.0.s8 %v3977
        %v3979 = vlaneseq
        %v3980 = vshrl.u32 %v3979, 7
        %v3981 = vsub.s32 %v3978, %v3980
        %v3982 = vrot.slane %v3974, %v3981
        %v3984 = vunpack.c.l.s4 1983009808
        %v3985 = vunpack.c.0.s8 %v3984
        %v3986 = vlaneseq
        %v3987 = vshrl.u32 %v3986, 7
        %v3988 = vsub.s32 %v3985, %v3987
        %v3989 = vrot.slane %v3975, %v3988
        %v3990 = vcombine.low %v3982, %v3989
        %v3991 = vcombine.low %v3540, %v3543
        %v3992 = vcombine.low %v3546, %v3549
        %v3994 = vunpack.c.l.s4 1983009808
        %v3995 = vunpack.c.0.s8 %v3994
        %v3996 = vlaneseq
        %v3997 = vshrl.u32 %v3996, 7
        %v3998 = vsub.s32 %v3995, %v3997
        %v3999 = vrot.slane %v3991, %v3998
        %v4001 = vunpack.c.l.s4 1983009808
        %v4002 = vunpack.c.0.s8 %v4001
        %v4003 = vlaneseq
        %v4004 = vshrl.u32 %v4003, 7
        %v4005 = vsub.s32 %v4002, %v4004
        %v4006 = vrot.slane %v3992, %v4005
        %v4007 = vcombine.low %v3999, %v4006
        %v4008 = vcombine.low %v3552, %v3555
        %v4009 = vcombine.low %v3558, %v3561
        %v4011 = vunpack.c.l.s4 1983009808
        %v4012 = vunpack.c.0.s8 %v4011
        %v4013 = vlaneseq
        %v4014 = vshrl.u32 %v4013, 7
        %v4015 = vsub.s32 %v4012, %v4014
        %v4016 = vrot.slane %v4008, %v4015
        %v4018 = vunpack.c.l.s4 1983009808
        %v4019 = vunpack.c.0.s8 %v4018
        %v4020 = vlaneseq
        %v4021 = vshrl.u32 %v4020, 7
        %v4022 = vsub.s32 %v4019, %v4021
        %v4023 = vrot.slane %v4009, %v4022
        %v4024 = vcombine.low %v4016, %v4023
        %v4025 = vcombine.low %v3565, %v3568
        %v4026 = vcombine.low %v3571, %v3574
        %v4028 = vunpack.c.l.s4 1983009808
        %v4029 = vunpack.c.0.s8 %v4028
        %v4030 = vlaneseq
        %v4031 = vshrl.u32 %v4030, 7
        %v4032 = vsub.s32 %v4029, %v4031
        %v4033 = vrot.slane %v4025, %v4032
        %v4035 = vunpack.c.l.s4 1983009808
        %v4036 = vunpack.c.0.s8 %v4035
        %v4037 = vlaneseq
        %v4038 = vshrl.u32 %v4037, 7
        %v4039 = vsub.s32 %v4036, %v4038
        %v4040 = vrot.slane %v4026, %v4039
        %v4041 = vcombine.low %v4033, %v4040
        %v4042 = vcombine.low %v3577, %v3580
        %v4043 = vcombine.low %v3583, %v3586
        %v4045 = vunpack.c.l.s4 1983009808
        %v4046 = vunpack.c.0.s8 %v4045
        %v4047 = vlaneseq
        %v4048 = vshrl.u32 %v4047, 7
        %v4049 = vsub.s32 %v4046, %v4048
        %v4050 = vrot.slane %v4042, %v4049
        %v4052 = vunpack.c.l.s4 1983009808
        %v4053 = vunpack.c.0.s8 %v4052
        %v4054 = vlaneseq
        %v4055 = vshrl.u32 %v4054, 7
        %v4056 = vsub.s32 %v4053, %v4055
        %v4057 = vrot.slane %v4043, %v4056
        %v4058 = vcombine.low %v4050, %v4057
        %v4059 = vcombine.low %v3590, %v3593
        %v4060 = vcombine.low %v3596, %v3599
        %v4062 = vunpack.c.l.s4 1983009808
        %v4063 = vunpack.c.0.s8 %v4062
        %v4064 = vlaneseq
        %v4065 = vshrl.u32 %v4064, 7
        %v4066 = vsub.s32 %v4063, %v4065
        %v4067 = vrot.slane %v4059, %v4066
        %v4069 = vunpack.c.l.s4 1983009808
        %v4070 = vunpack.c.0.s8 %v4069
        %v4071 = vlaneseq
        %v4072 = vshrl.u32 %v4071, 7
        %v4073 = vsub.s32 %v4070, %v4072
        %v4074 = vrot.slane %v4060, %v4073
        %v4075 = vcombine.low %v4067, %v4074
        %v4076 = vcombine.low %v3602, %v3605
        %v4077 = vcombine.low %v3608, %v3611
        %v4079 = vunpack.c.l.s4 1983009808
        %v4080 = vunpack.c.0.s8 %v4079
        %v4081 = vlaneseq
        %v4082 = vshrl.u32 %v4081, 7
        %v4083 = vsub.s32 %v4080, %v4082
        %v4084 = vrot.slane %v4076, %v4083
        %v4086 = vunpack.c.l.s4 1983009808
        %v4087 = vunpack.c.0.s8 %v4086
        %v4088 = vlaneseq
        %v4089 = vshrl.u32 %v4088, 7
        %v4090 = vsub.s32 %v4087, %v4089
        %v4091 = vrot.slane %v4077, %v4090
        %v4092 = vcombine.low %v4084, %v4091
        %v4093 = vcombine.low %v3615, %v3618
        %v4094 = vcombine.low %v3621, %v3624
        %v4096 = vunpack.c.l.s4 1983009808
        %v4097 = vunpack.c.0.s8 %v4096
        %v4098 = vlaneseq
        %v4099 = vshrl.u32 %v4098, 7
        %v4100 = vsub.s32 %v4097, %v4099
        %v4101 = vrot.slane %v4093, %v4100
        %v4103 = vunpack.c.l.s4 1983009808
        %v4104 = vunpack.c.0.s8 %v4103
        %v4105 = vlaneseq
        %v4106 = vshrl.u32 %v4105, 7
        %v4107 = vsub.s32 %v4104, %v4106
        %v4108 = vrot.slane %v4094, %v4107
        %v4109 = vcombine.low %v4101, %v4108
        %v4110 = vcombine.low %v3627, %v3630
        %v4111 = vcombine.low %v3633, %v3636
        %v4113 = vunpack.c.l.s4 1983009808
        %v4114 = vunpack.c.0.s8 %v4113
        %v4115 = vlaneseq
        %v4116 = vshrl.u32 %v4115, 7
        %v4117 = vsub.s32 %v4114, %v4116
        %v4118 = vrot.slane %v4110, %v4117
        %v4120 = vunpack.c.l.s4 1983009808
        %v4121 = vunpack.c.0.s8 %v4120
        %v4122 = vlaneseq
        %v4123 = vshrl.u32 %v4122, 7
        %v4124 = vsub.s32 %v4121, %v4123
        %v4125 = vrot.slane %v4111, %v4124
        %v4126 = vcombine.low %v4118, %v4125
        %v4127 = vcombine.low %v3640, %v3643
        %v4128 = vcombine.low %v3646, %v3649
        %v4130 = vunpack.c.l.s4 1983009808
        %v4131 = vunpack.c.0.s8 %v4130
        %v4132 = vlaneseq
        %v4133 = vshrl.u32 %v4132, 7
        %v4134 = vsub.s32 %v4131, %v4133
        %v4135 = vrot.slane %v4127, %v4134
        %v4137 = vunpack.c.l.s4 1983009808
        %v4138 = vunpack.c.0.s8 %v4137
        %v4139 = vlaneseq
        %v4140 = vshrl.u32 %v4139, 7
        %v4141 = vsub.s32 %v4138, %v4140
        %v4142 = vrot.slane %v4128, %v4141
        %v4143 = vcombine.low %v4135, %v4142
        %v4144 = vcombine.low %v3652, %v3655
        %v4145 = vcombine.low %v3658, %v3661
        %v4147 = vunpack.c.l.s4 1983009808
        %v4148 = vunpack.c.0.s8 %v4147
        %v4149 = vlaneseq
        %v4150 = vshrl.u32 %v4149, 7
        %v4151 = vsub.s32 %v4148, %v4150
        %v4152 = vrot.slane %v4144, %v4151
        %v4154 = vunpack.c.l.s4 1983009808
        %v4155 = vunpack.c.0.s8 %v4154
        %v4156 = vlaneseq
        %v4157 = vshrl.u32 %v4156, 7
        %v4158 = vsub.s32 %v4155, %v4157
        %v4159 = vrot.slane %v4145, %v4158
        %v4160 = vcombine.low %v4152, %v4159
        %v4161 = vcombine.low %v3665, %v3668
        %v4162 = vcombine.low %v3671, %v3674
        %v4164 = vunpack.c.l.s4 1983009808
        %v4165 = vunpack.c.0.s8 %v4164
        %v4166 = vlaneseq
        %v4167 = vshrl.u32 %v4166, 7
        %v4168 = vsub.s32 %v4165, %v4167
        %v4169 = vrot.slane %v4161, %v4168
        %v4171 = vunpack.c.l.s4 1983009808
        %v4172 = vunpack.c.0.s8 %v4171
        %v4173 = vlaneseq
        %v4174 = vshrl.u32 %v4173, 7
        %v4175 = vsub.s32 %v4172, %v4174
        %v4176 = vrot.slane %v4162, %v4175
        %v4177 = vcombine.low %v4169, %v4176
        %v4178 = vcombine.low %v3677, %v3680
        %v4179 = vcombine.low %v3683, %v3686
        %v4181 = vunpack.c.l.s4 1983009808
        %v4182 = vunpack.c.0.s8 %v4181
        %v4183 = vlaneseq
        %v4184 = vshrl.u32 %v4183, 7
        %v4185 = vsub.s32 %v4182, %v4184
        %v4186 = vrot.slane %v4178, %v4185
        %v4188 = vunpack.c.l.s4 1983009808
        %v4189 = vunpack.c.0.s8 %v4188
        %v4190 = vlaneseq
        %v4191 = vshrl.u32 %v4190, 7
        %v4192 = vsub.s32 %v4189, %v4191
        %v4193 = vrot.slane %v4179, %v4192
        %v4194 = vcombine.low %v4186, %v4193
        %v4195 = vcombine.low %v3690, %v3693
        %v4196 = vcombine.low %v3696, %v3699
        %v4198 = vunpack.c.l.s4 1983009808
        %v4199 = vunpack.c.0.s8 %v4198
        %v4200 = vlaneseq
        %v4201 = vshrl.u32 %v4200, 7
        %v4202 = vsub.s32 %v4199, %v4201
        %v4203 = vrot.slane %v4195, %v4202
        %v4205 = vunpack.c.l.s4 1983009808
        %v4206 = vunpack.c.0.s8 %v4205
        %v4207 = vlaneseq
        %v4208 = vshrl.u32 %v4207, 7
        %v4209 = vsub.s32 %v4206, %v4208
        %v4210 = vrot.slane %v4196, %v4209
        %v4211 = vcombine.low %v4203, %v4210
        %v4212 = vcombine.low %v3702, %v3705
        %v4213 = vcombine.low %v3708, %v3711
        %v4215 = vunpack.c.l.s4 1983009808
        %v4216 = vunpack.c.0.s8 %v4215
        %v4217 = vlaneseq
        %v4218 = vshrl.u32 %v4217, 7
        %v4219 = vsub.s32 %v4216, %v4218
        %v4220 = vrot.slane %v4212, %v4219
        %v4222 = vunpack.c.l.s4 1983009808
        %v4223 = vunpack.c.0.s8 %v4222
        %v4224 = vlaneseq
        %v4225 = vshrl.u32 %v4224, 7
        %v4226 = vsub.s32 %v4223, %v4225
        %v4227 = vrot.slane %v4213, %v4226
        %v4228 = vcombine.low %v4220, %v4227
        %v4229 = vcombine.low %v3715, %v3718
        %v4230 = vcombine.low %v3721, %v3724
        %v4232 = vunpack.c.l.s4 1983009808
        %v4233 = vunpack.c.0.s8 %v4232
        %v4234 = vlaneseq
        %v4235 = vshrl.u32 %v4234, 7
        %v4236 = vsub.s32 %v4233, %v4235
        %v4237 = vrot.slane %v4229, %v4236
        %v4239 = vunpack.c.l.s4 1983009808
        %v4240 = vunpack.c.0.s8 %v4239
        %v4241 = vlaneseq
        %v4242 = vshrl.u32 %v4241, 7
        %v4243 = vsub.s32 %v4240, %v4242
        %v4244 = vrot.slane %v4230, %v4243
        %v4245 = vcombine.low %v4237, %v4244
        %v4246 = vcombine.low %v3727, %v3730
        %v4247 = vcombine.low %v3733, %v3736
        %v4249 = vunpack.c.l.s4 1983009808
        %v4250 = vunpack.c.0.s8 %v4249
        %v4251 = vlaneseq
        %v4252 = vshrl.u32 %v4251, 7
        %v4253 = vsub.s32 %v4250, %v4252
        %v4254 = vrot.slane %v4246, %v4253
        %v4256 = vunpack.c.l.s4 1983009808
        %v4257 = vunpack.c.0.s8 %v4256
        %v4258 = vlaneseq
        %v4259 = vshrl.u32 %v4258, 7
        %v4260 = vsub.s32 %v4257, %v4259
        %v4261 = vrot.slane %v4247, %v4260
        %v4262 = vcombine.low %v4254, %v4261
        %v4263 = vcombine.low %v3740, %v3743
        %v4264 = vcombine.low %v3746, %v3749
        %v4266 = vunpack.c.l.s4 1983009808
        %v4267 = vunpack.c.0.s8 %v4266
        %v4268 = vlaneseq
        %v4269 = vshrl.u32 %v4268, 7
        %v4270 = vsub.s32 %v4267, %v4269
        %v4271 = vrot.slane %v4263, %v4270
        %v4273 = vunpack.c.l.s4 1983009808
        %v4274 = vunpack.c.0.s8 %v4273
        %v4275 = vlaneseq
        %v4276 = vshrl.u32 %v4275, 7
        %v4277 = vsub.s32 %v4274, %v4276
        %v4278 = vrot.slane %v4264, %v4277
        %v4279 = vcombine.low %v4271, %v4278
        %v4280 = vcombine.low %v3752, %v3755
        %v4281 = vcombine.low %v3758, %v3761
        %v4283 = vunpack.c.l.s4 1983009808
        %v4284 = vunpack.c.0.s8 %v4283
        %v4285 = vlaneseq
        %v4286 = vshrl.u32 %v4285, 7
        %v4287 = vsub.s32 %v4284, %v4286
        %v4288 = vrot.slane %v4280, %v4287
        %v4290 = vunpack.c.l.s4 1983009808
        %v4291 = vunpack.c.0.s8 %v4290
        %v4292 = vlaneseq
        %v4293 = vshrl.u32 %v4292, 7
        %v4294 = vsub.s32 %v4291, %v4293
        %v4295 = vrot.slane %v4281, %v4294
        %v4296 = vcombine.low %v4288, %v4295
        %v4297 = vcombine.low %v3765, %v3768
        %v4298 = vcombine.low %v3771, %v3774
        %v4300 = vunpack.c.l.s4 1983009808
        %v4301 = vunpack.c.0.s8 %v4300
        %v4302 = vlaneseq
        %v4303 = vshrl.u32 %v4302, 7
        %v4304 = vsub.s32 %v4301, %v4303
        %v4305 = vrot.slane %v4297, %v4304
        %v4307 = vunpack.c.l.s4 1983009808
        %v4308 = vunpack.c.0.s8 %v4307
        %v4309 = vlaneseq
        %v4310 = vshrl.u32 %v4309, 7
        %v4311 = vsub.s32 %v4308, %v4310
        %v4312 = vrot.slane %v4298, %v4311
        %v4313 = vcombine.low %v4305, %v4312
        %v4314 = vcombine.low %v3777, %v3780
        %v4315 = vcombine.low %v3783, %v3786
        %v4317 = vunpack.c.l.s4 1983009808
        %v4318 = vunpack.c.0.s8 %v4317
        %v4319 = vlaneseq
        %v4320 = vshrl.u32 %v4319, 7
        %v4321 = vsub.s32 %v4318, %v4320
        %v4322 = vrot.slane %v4314, %v4321
        %v4324 = vunpack.c.l.s4 1983009808
        %v4325 = vunpack.c.0.s8 %v4324
        %v4326 = vlaneseq
        %v4327 = vshrl.u32 %v4326, 7
        %v4328 = vsub.s32 %v4325, %v4327
        %v4329 = vrot.slane %v4315, %v4328
        %v4330 = vcombine.low %v4322, %v4329
        %4331 = vrot.lane.b32.xlu0 %v3803, 2
        %v4332 = vpop.permute.xlu0 %4331
        %4333 = vrot.lane.b32.xlu0 %v3820, 2
        %v4334 = vpop.permute.xlu0 %4333
        %4335 = vrot.lane.b32.xlu0 %v3837, 2
        %v4336 = vpop.permute.xlu0 %4335
        %4337 = vrot.lane.b32.xlu0 %v3854, 2
        %v4338 = vpop.permute.xlu0 %4337
        %4339 = vrot.lane.b32.xlu0 %v3871, 2
        %v4340 = vpop.permute.xlu0 %4339
        %4341 = vrot.lane.b32.xlu0 %v3888, 2
        %v4342 = vpop.permute.xlu0 %4341
        %4343 = vrot.lane.b32.xlu0 %v3905, 2
        %v4344 = vpop.permute.xlu0 %4343
        %4345 = vrot.lane.b32.xlu0 %v3922, 2
        %v4346 = vpop.permute.xlu0 %4345
        %4347 = vrot.lane.b32.xlu0 %v3939, 2
        %v4348 = vpop.permute.xlu0 %4347
        %4349 = vrot.lane.b32.xlu0 %v3956, 2
        %v4350 = vpop.permute.xlu0 %4349
        %4351 = vrot.lane.b32.xlu0 %v3973, 2
        %v4352 = vpop.permute.xlu0 %4351
        %4353 = vrot.lane.b32.xlu0 %v3990, 2
        %v4354 = vpop.permute.xlu0 %4353
        %4355 = vrot.lane.b32.xlu0 %v4007, 2
        %v4356 = vpop.permute.xlu0 %4355
        %4357 = vrot.lane.b32.xlu0 %v4024, 2
        %v4358 = vpop.permute.xlu0 %4357
        %4359 = vrot.lane.b32.xlu0 %v4041, 2
        %v4360 = vpop.permute.xlu0 %4359
        %4361 = vrot.lane.b32.xlu0 %v4058, 2
        %v4362 = vpop.permute.xlu0 %4361
        %4363 = vrot.lane.b32.xlu0 %v4075, 2
        %v4364 = vpop.permute.xlu0 %4363
        %4365 = vrot.lane.b32.xlu0 %v4092, 2
        %v4366 = vpop.permute.xlu0 %4365
        %4367 = vrot.lane.b32.xlu0 %v4109, 2
        %v4368 = vpop.permute.xlu0 %4367
        %4369 = vrot.lane.b32.xlu0 %v4126, 2
        %v4370 = vpop.permute.xlu0 %4369
        %4371 = vrot.lane.b32.xlu0 %v4143, 2
        %v4372 = vpop.permute.xlu0 %4371
        %4373 = vrot.lane.b32.xlu0 %v4160, 2
        %v4374 = vpop.permute.xlu0 %4373
        %4375 = vrot.lane.b32.xlu0 %v4177, 2
        %v4376 = vpop.permute.xlu0 %4375
        %4377 = vrot.lane.b32.xlu0 %v4194, 2
        %v4378 = vpop.permute.xlu0 %4377
        %4379 = vrot.lane.b32.xlu0 %v4211, 2
        %v4380 = vpop.permute.xlu0 %4379
        %4381 = vrot.lane.b32.xlu0 %v4228, 2
        %v4382 = vpop.permute.xlu0 %4381
        %4383 = vrot.lane.b32.xlu0 %v4245, 2
        %v4384 = vpop.permute.xlu0 %4383
        %4385 = vrot.lane.b32.xlu0 %v4262, 2
        %v4386 = vpop.permute.xlu0 %4385
        %4387 = vrot.lane.b32.xlu0 %v4279, 2
        %v4388 = vpop.permute.xlu0 %4387
        %4389 = vrot.lane.b32.xlu0 %v4296, 2
        %v4390 = vpop.permute.xlu0 %4389
        %4391 = vrot.lane.b32.xlu0 %v4313, 2
        %v4392 = vpop.permute.xlu0 %4391
        %4393 = vrot.lane.b32.xlu0 %v4330, 2
        %v4394 = vpop.permute.xlu0 %4393
        %vm4427 = vcmask 31760
        %4428 = vst.msk [vmem:[#allocation5] sm:$0xff] %vm4427, %v4332
        %4429 = vst.msk [vmem:[#allocation5 + $0x8] sm:$0xff] %vm4427, %v4334
        %4430 = vst.msk [vmem:[#allocation5 + $0x10] sm:$0xff] %vm4427, %v4336
        %4431 = vst.msk [vmem:[#allocation5 + $0x18] sm:$0xff] %vm4427, %v4338
        %4432 = vst.msk [vmem:[#allocation5 + $0x20] sm:$0xff] %vm4427, %v4340
        %4433 = vst.msk [vmem:[#allocation5 + $0x28] sm:$0xff] %vm4427, %v4342
        %4434 = vst.msk [vmem:[#allocation5 + $0x30] sm:$0xff] %vm4427, %v4344
        %4435 = vst.msk [vmem:[#allocation5 + $0x38] sm:$0xff] %vm4427, %v4346
        %4436 = vst.msk [vmem:[#allocation5 + $0x40] sm:$0xff] %vm4427, %v4348
        %4437 = vst.msk [vmem:[#allocation5 + $0x48] sm:$0xff] %vm4427, %v4350
        %4438 = vst.msk [vmem:[#allocation5 + $0x50] sm:$0xff] %vm4427, %v4352
        %4439 = vst.msk [vmem:[#allocation5 + $0x58] sm:$0xff] %vm4427, %v4354
        %4440 = vst.msk [vmem:[#allocation5 + $0x60] sm:$0xff] %vm4427, %v4356
        %4441 = vst.msk [vmem:[#allocation5 + $0x68] sm:$0xff] %vm4427, %v4358
        %4442 = vst.msk [vmem:[#allocation5 + $0x70] sm:$0xff] %vm4427, %v4360
        %4443 = vst.msk [vmem:[#allocation5 + $0x78] sm:$0xff] %vm4427, %v4362
        %4444 = vst.msk [vmem:[#allocation5 + $0x80] sm:$0xff] %vm4427, %v4364
        %4445 = vst.msk [vmem:[#allocation5 + $0x88] sm:$0xff] %vm4427, %v4366
        %4446 = vst.msk [vmem:[#allocation5 + $0x90] sm:$0xff] %vm4427, %v4368
        %4447 = vst.msk [vmem:[#allocation5 + $0x98] sm:$0xff] %vm4427, %v4370
        %4448 = vst.msk [vmem:[#allocation5 + $0xa0] sm:$0xff] %vm4427, %v4372
        %4449 = vst.msk [vmem:[#allocation5 + $0xa8] sm:$0xff] %vm4427, %v4374
        %4450 = vst.msk [vmem:[#allocation5 + $0xb0] sm:$0xff] %vm4427, %v4376
        %4451 = vst.msk [vmem:[#allocation5 + $0xb8] sm:$0xff] %vm4427, %v4378
        %4452 = vst.msk [vmem:[#allocation5 + $0xc0] sm:$0xff] %vm4427, %v4380
        %4453 = vst.msk [vmem:[#allocation5 + $0xc8] sm:$0xff] %vm4427, %v4382
        %4454 = vst.msk [vmem:[#allocation5 + $0xd0] sm:$0xff] %vm4427, %v4384
        %4455 = vst.msk [vmem:[#allocation5 + $0xd8] sm:$0xff] %vm4427, %v4386
        %4456 = vst.msk [vmem:[#allocation5 + $0xe0] sm:$0xff] %vm4427, %v4388
        %4457 = vst.msk [vmem:[#allocation5 + $0xe8] sm:$0xff] %vm4427, %v4390
        %4458 = vst.msk [vmem:[#allocation5 + $0xf0] sm:$0xff] %vm4427, %v4392
        %4459 = vst.msk [vmem:[#allocation5 + $0xf8] sm:$0xff] %vm4427, %v4394
        %vm4476 = vcmask 1046528
        %v4477 = vrot.slane %v2413, 1
        %v4478 = vrot.slane %v2414, 1
        %v4479 = vsel %vm4476, %v4477, %v4478
        %v4480 = vrot.slane %v2415, 1
        %v4481 = vsel %vm4476, %v4478, %v4480
        %v4482 = vrot.slane %v2416, 1
        %v4483 = vrot.slane %v2417, 1
        %v4484 = vsel %vm4476, %v4482, %v4483
        %v4485 = vrot.slane %v2418, 1
        %v4486 = vsel %vm4476, %v4483, %v4485
        %v4487 = vrot.slane %v2419, 1
        %v4488 = vrot.slane %v2420, 1
        %v4489 = vsel %vm4476, %v4487, %v4488
        %v4490 = vrot.slane %v2421, 1
        %v4491 = vsel %vm4476, %v4488, %v4490
        %v4492 = vrot.slane %v2422, 1
        %v4493 = vrot.slane %v2423, 1
        %v4494 = vsel %vm4476, %v4492, %v4493
        %v4495 = vrot.slane %v2424, 1
        %v4496 = vsel %vm4476, %v4493, %v4495
        %v4497 = vrot.slane %v2425, 1
        %v4498 = vrot.slane %v2426, 1
        %v4499 = vsel %vm4476, %v4497, %v4498
        %v4500 = vrot.slane %v2427, 1
        %v4501 = vsel %vm4476, %v4498, %v4500
        %v4502 = vrot.slane %v2428, 1
        %v4503 = vrot.slane %v2429, 1
        %v4504 = vsel %vm4476, %v4502, %v4503
        %v4505 = vrot.slane %v2430, 1
        %v4506 = vsel %vm4476, %v4503, %v4505
        %v4507 = vrot.slane %v2431, 1
        %v4508 = vrot.slane %v2432, 1
        %v4509 = vsel %vm4476, %v4507, %v4508
        %v4510 = vrot.slane %v2433, 1
        %v4511 = vsel %vm4476, %v4508, %v4510
        %v4512 = vrot.slane %v2434, 1
        %v4513 = vrot.slane %v2435, 1
        %v4514 = vsel %vm4476, %v4512, %v4513
        %v4515 = vrot.slane %v2436, 1
        %v4516 = vsel %vm4476, %v4513, %v4515
        %v4517 = vrot.slane %v2437, 1
        %v4518 = vrot.slane %v2438, 1
        %v4519 = vsel %vm4476, %v4517, %v4518
        %v4520 = vrot.slane %v2439, 1
        %v4521 = vsel %vm4476, %v4518, %v4520
        %v4522 = vrot.slane %v2440, 1
        %v4523 = vrot.slane %v2441, 1
        %v4524 = vsel %vm4476, %v4522, %v4523
        %v4525 = vrot.slane %v2442, 1
        %v4526 = vsel %vm4476, %v4523, %v4525
        %v4527 = vrot.slane %v2443, 1
        %v4528 = vrot.slane %v2444, 1
        %v4529 = vsel %vm4476, %v4527, %v4528
        %v4530 = vrot.slane %v2445, 1
        %v4531 = vsel %vm4476, %v4528, %v4530
        %v4532 = vrot.slane %v2446, 1
        %v4533 = vrot.slane %v2447, 1
        %v4534 = vsel %vm4476, %v4532, %v4533
        %v4535 = vrot.slane %v2448, 1
        %v4536 = vsel %vm4476, %v4533, %v4535
        %v4537 = vrot.slane %v2449, 1
        %v4538 = vrot.slane %v2450, 1
        %v4539 = vsel %vm4476, %v4537, %v4538
        %v4540 = vrot.slane %v2451, 1
        %v4541 = vsel %vm4476, %v4538, %v4540
        %v4542 = vrot.slane %v2452, 1
        %v4543 = vrot.slane %v2453, 1
        %v4544 = vsel %vm4476, %v4542, %v4543
        %v4545 = vrot.slane %v2454, 1
        %v4546 = vsel %vm4476, %v4543, %v4545
        %v4547 = vrot.slane %v2455, 1
        %v4548 = vrot.slane %v2456, 1
        %v4549 = vsel %vm4476, %v4547, %v4548
        %v4550 = vrot.slane %v2457, 1
        %v4551 = vsel %vm4476, %v4548, %v4550
        %v4552 = vrot.slane %v2458, 1
        %v4553 = vrot.slane %v2459, 1
        %v4554 = vsel %vm4476, %v4552, %v4553
        %v4555 = vrot.slane %v2460, 1
        %v4556 = vsel %vm4476, %v4553, %v4555
        %4557 = vrot.lane.b32.xlu0 %v4479, 20
        %v4558 = vpop.permute.xlu0 %4557
        %4559 = vrot.lane.b32.xlu0 %v4481, 20
        %v4560 = vpop.permute.xlu0 %4559
        %4561 = vrot.lane.b32.xlu0 %v4484, 20
        %v4562 = vpop.permute.xlu0 %4561
        %4563 = vrot.lane.b32.xlu0 %v4486, 20
        %v4564 = vpop.permute.xlu0 %4563
        %4565 = vrot.lane.b32.xlu0 %v4489, 20
        %v4566 = vpop.permute.xlu0 %4565
        %4567 = vrot.lane.b32.xlu0 %v4491, 20
        %v4568 = vpop.permute.xlu0 %4567
        %4569 = vrot.lane.b32.xlu0 %v4494, 20
        %v4570 = vpop.permute.xlu0 %4569
        %4571 = vrot.lane.b32.xlu0 %v4496, 20
        %v4572 = vpop.permute.xlu0 %4571
        %4573 = vrot.lane.b32.xlu0 %v4499, 20
        %v4574 = vpop.permute.xlu0 %4573
        %4575 = vrot.lane.b32.xlu0 %v4501, 20
        %v4576 = vpop.permute.xlu0 %4575
        %4577 = vrot.lane.b32.xlu0 %v4504, 20
        %v4578 = vpop.permute.xlu0 %4577
        %4579 = vrot.lane.b32.xlu0 %v4506, 20
        %v4580 = vpop.permute.xlu0 %4579
        %4581 = vrot.lane.b32.xlu0 %v4509, 20
        %v4582 = vpop.permute.xlu0 %4581
        %4583 = vrot.lane.b32.xlu0 %v4511, 20
        %v4584 = vpop.permute.xlu0 %4583
        %4585 = vrot.lane.b32.xlu0 %v4514, 20
        %v4586 = vpop.permute.xlu0 %4585
        %4587 = vrot.lane.b32.xlu0 %v4516, 20
        %v4588 = vpop.permute.xlu0 %4587
        %4589 = vrot.lane.b32.xlu0 %v4519, 20
        %v4590 = vpop.permute.xlu0 %4589
        %4591 = vrot.lane.b32.xlu0 %v4521, 20
        %v4592 = vpop.permute.xlu0 %4591
        %4593 = vrot.lane.b32.xlu0 %v4524, 20
        %v4594 = vpop.permute.xlu0 %4593
        %4595 = vrot.lane.b32.xlu0 %v4526, 20
        %v4596 = vpop.permute.xlu0 %4595
        %4597 = vrot.lane.b32.xlu0 %v4529, 20
        %v4598 = vpop.permute.xlu0 %4597
        %4599 = vrot.lane.b32.xlu0 %v4531, 20
        %v4600 = vpop.permute.xlu0 %4599
        %4601 = vrot.lane.b32.xlu0 %v4534, 20
        %v4602 = vpop.permute.xlu0 %4601
        %4603 = vrot.lane.b32.xlu0 %v4536, 20
        %v4604 = vpop.permute.xlu0 %4603
        %4605 = vrot.lane.b32.xlu0 %v4539, 20
        %v4606 = vpop.permute.xlu0 %4605
        %4607 = vrot.lane.b32.xlu0 %v4541, 20
        %v4608 = vpop.permute.xlu0 %4607
        %4609 = vrot.lane.b32.xlu0 %v4544, 20
        %v4610 = vpop.permute.xlu0 %4609
        %4611 = vrot.lane.b32.xlu0 %v4546, 20
        %v4612 = vpop.permute.xlu0 %4611
        %4613 = vrot.lane.b32.xlu0 %v4549, 20
        %v4614 = vpop.permute.xlu0 %4613
        %4615 = vrot.lane.b32.xlu0 %v4551, 20
        %v4616 = vpop.permute.xlu0 %4615
        %4617 = vrot.lane.b32.xlu0 %v4554, 20
        %v4618 = vpop.permute.xlu0 %4617
        %4619 = vrot.lane.b32.xlu0 %v4556, 20
        %v4620 = vpop.permute.xlu0 %4619
        %vm4653 = vcmask 179360
        %4654 = vst.msk [vmem:[#allocation5] sm:$0xff] %vm4653, %v4558
        %4655 = vst.msk [vmem:[#allocation5 + $0x8] sm:$0xff] %vm4653, %v4560
        %4656 = vst.msk [vmem:[#allocation5 + $0x10] sm:$0xff] %vm4653, %v4562
        %4657 = vst.msk [vmem:[#allocation5 + $0x18] sm:$0xff] %vm4653, %v4564
        %4658 = vst.msk [vmem:[#allocation5 + $0x20] sm:$0xff] %vm4653, %v4566
        %4659 = vst.msk [vmem:[#allocation5 + $0x28] sm:$0xff] %vm4653, %v4568
        %4660 = vst.msk [vmem:[#allocation5 + $0x30] sm:$0xff] %vm4653, %v4570
        %4661 = vst.msk [vmem:[#allocation5 + $0x38] sm:$0xff] %vm4653, %v4572
        %4662 = vst.msk [vmem:[#allocation5 + $0x40] sm:$0xff] %vm4653, %v4574
        %4663 = vst.msk [vmem:[#allocation5 + $0x48] sm:$0xff] %vm4653, %v4576
        %4664 = vst.msk [vmem:[#allocation5 + $0x50] sm:$0xff] %vm4653, %v4578
        %4665 = vst.msk [vmem:[#allocation5 + $0x58] sm:$0xff] %vm4653, %v4580
        %4666 = vst.msk [vmem:[#allocation5 + $0x60] sm:$0xff] %vm4653, %v4582
        %4667 = vst.msk [vmem:[#allocation5 + $0x68] sm:$0xff] %vm4653, %v4584
        %4668 = vst.msk [vmem:[#allocation5 + $0x70] sm:$0xff] %vm4653, %v4586
        %4669 = vst.msk [vmem:[#allocation5 + $0x78] sm:$0xff] %vm4653, %v4588
        %4670 = vst.msk [vmem:[#allocation5 + $0x80] sm:$0xff] %vm4653, %v4590
        %4671 = vst.msk [vmem:[#allocation5 + $0x88] sm:$0xff] %vm4653, %v4592
        %4672 = vst.msk [vmem:[#allocation5 + $0x90] sm:$0xff] %vm4653, %v4594
        %4673 = vst.msk [vmem:[#allocation5 + $0x98] sm:$0xff] %vm4653, %v4596
        %4674 = vst.msk [vmem:[#allocation5 + $0xa0] sm:$0xff] %vm4653, %v4598
        %4675 = vst.msk [vmem:[#allocation5 + $0xa8] sm:$0xff] %vm4653, %v4600
        %4676 = vst.msk [vmem:[#allocation5 + $0xb0] sm:$0xff] %vm4653, %v4602
        %4677 = vst.msk [vmem:[#allocation5 + $0xb8] sm:$0xff] %vm4653, %v4604
        %4678 = vst.msk [vmem:[#allocation5 + $0xc0] sm:$0xff] %vm4653, %v4606
        %4679 = vst.msk [vmem:[#allocation5 + $0xc8] sm:$0xff] %vm4653, %v4608
        %4680 = vst.msk [vmem:[#allocation5 + $0xd0] sm:$0xff] %vm4653, %v4610
        %4681 = vst.msk [vmem:[#allocation5 + $0xd8] sm:$0xff] %vm4653, %v4612
        %4682 = vst.msk [vmem:[#allocation5 + $0xe0] sm:$0xff] %vm4653, %v4614
        %4683 = vst.msk [vmem:[#allocation5 + $0xe8] sm:$0xff] %vm4653, %v4616
        %4684 = vst.msk [vmem:[#allocation5 + $0xf0] sm:$0xff] %vm4653, %v4618
        %4685 = vst.msk [vmem:[#allocation5 + $0xf8] sm:$0xff] %vm4653, %v4620
        %v4686 = vcombine.low %v2252, %v2253
        %v4687 = vcombine.low %v2254, %v2255
        %v4689 = vunpack.c.l.s4 1983009808
        %v4690 = vunpack.c.0.s8 %v4689
        %v4691 = vlaneseq
        %v4692 = vshrl.u32 %v4691, 7
        %v4693 = vsub.s32 %v4690, %v4692
        %v4694 = vrot.slane %v4686, %v4693
        %v4696 = vunpack.c.l.s4 1983009808
        %v4697 = vunpack.c.0.s8 %v4696
        %v4698 = vlaneseq
        %v4699 = vshrl.u32 %v4698, 7
        %v4700 = vsub.s32 %v4697, %v4699
        %v4701 = vrot.slane %v4687, %v4700
        %v4702 = vcombine.low %v4694, %v4701
        %v4703 = vcombine.low %v2256, %v2257
        %v4704 = vcombine.low %v2258, %v2259
        %v4706 = vunpack.c.l.s4 1983009808
        %v4707 = vunpack.c.0.s8 %v4706
        %v4708 = vlaneseq
        %v4709 = vshrl.u32 %v4708, 7
        %v4710 = vsub.s32 %v4707, %v4709
        %v4711 = vrot.slane %v4703, %v4710
        %v4713 = vunpack.c.l.s4 1983009808
        %v4714 = vunpack.c.0.s8 %v4713
        %v4715 = vlaneseq
        %v4716 = vshrl.u32 %v4715, 7
        %v4717 = vsub.s32 %v4714, %v4716
        %v4718 = vrot.slane %v4704, %v4717
        %v4719 = vcombine.low %v4711, %v4718
        %v4720 = vcombine.low %v2261, %v2262
        %v4721 = vcombine.low %v2263, %v2264
        %v4723 = vunpack.c.l.s4 1983009808
        %v4724 = vunpack.c.0.s8 %v4723
        %v4725 = vlaneseq
        %v4726 = vshrl.u32 %v4725, 7
        %v4727 = vsub.s32 %v4724, %v4726
        %v4728 = vrot.slane %v4720, %v4727
        %v4730 = vunpack.c.l.s4 1983009808
        %v4731 = vunpack.c.0.s8 %v4730
        %v4732 = vlaneseq
        %v4733 = vshrl.u32 %v4732, 7
        %v4734 = vsub.s32 %v4731, %v4733
        %v4735 = vrot.slane %v4721, %v4734
        %v4736 = vcombine.low %v4728, %v4735
        %v4737 = vcombine.low %v2265, %v2266
        %v4738 = vcombine.low %v2267, %v2268
        %v4740 = vunpack.c.l.s4 1983009808
        %v4741 = vunpack.c.0.s8 %v4740
        %v4742 = vlaneseq
        %v4743 = vshrl.u32 %v4742, 7
        %v4744 = vsub.s32 %v4741, %v4743
        %v4745 = vrot.slane %v4737, %v4744
        %v4747 = vunpack.c.l.s4 1983009808
        %v4748 = vunpack.c.0.s8 %v4747
        %v4749 = vlaneseq
        %v4750 = vshrl.u32 %v4749, 7
        %v4751 = vsub.s32 %v4748, %v4750
        %v4752 = vrot.slane %v4738, %v4751
        %v4753 = vcombine.low %v4745, %v4752
        %v4754 = vcombine.low %v2270, %v2271
        %v4755 = vcombine.low %v2272, %v2273
        %v4757 = vunpack.c.l.s4 1983009808
        %v4758 = vunpack.c.0.s8 %v4757
        %v4759 = vlaneseq
        %v4760 = vshrl.u32 %v4759, 7
        %v4761 = vsub.s32 %v4758, %v4760
        %v4762 = vrot.slane %v4754, %v4761
        %v4764 = vunpack.c.l.s4 1983009808
        %v4765 = vunpack.c.0.s8 %v4764
        %v4766 = vlaneseq
        %v4767 = vshrl.u32 %v4766, 7
        %v4768 = vsub.s32 %v4765, %v4767
        %v4769 = vrot.slane %v4755, %v4768
        %v4770 = vcombine.low %v4762, %v4769
        %v4771 = vcombine.low %v2274, %v2275
        %v4772 = vcombine.low %v2276, %v2277
        %v4774 = vunpack.c.l.s4 1983009808
        %v4775 = vunpack.c.0.s8 %v4774
        %v4776 = vlaneseq
        %v4777 = vshrl.u32 %v4776, 7
        %v4778 = vsub.s32 %v4775, %v4777
        %v4779 = vrot.slane %v4771, %v4778
        %v4781 = vunpack.c.l.s4 1983009808
        %v4782 = vunpack.c.0.s8 %v4781
        %v4783 = vlaneseq
        %v4784 = vshrl.u32 %v4783, 7
        %v4785 = vsub.s32 %v4782, %v4784
        %v4786 = vrot.slane %v4772, %v4785
        %v4787 = vcombine.low %v4779, %v4786
        %v4788 = vcombine.low %v2279, %v2280
        %v4789 = vcombine.low %v2281, %v2282
        %v4791 = vunpack.c.l.s4 1983009808
        %v4792 = vunpack.c.0.s8 %v4791
        %v4793 = vlaneseq
        %v4794 = vshrl.u32 %v4793, 7
        %v4795 = vsub.s32 %v4792, %v4794
        %v4796 = vrot.slane %v4788, %v4795
        %v4798 = vunpack.c.l.s4 1983009808
        %v4799 = vunpack.c.0.s8 %v4798
        %v4800 = vlaneseq
        %v4801 = vshrl.u32 %v4800, 7
        %v4802 = vsub.s32 %v4799, %v4801
        %v4803 = vrot.slane %v4789, %v4802
        %v4804 = vcombine.low %v4796, %v4803
        %v4805 = vcombine.low %v2283, %v2284
        %v4806 = vcombine.low %v2285, %v2286
        %v4808 = vunpack.c.l.s4 1983009808
        %v4809 = vunpack.c.0.s8 %v4808
        %v4810 = vlaneseq
        %v4811 = vshrl.u32 %v4810, 7
        %v4812 = vsub.s32 %v4809, %v4811
        %v4813 = vrot.slane %v4805, %v4812
        %v4815 = vunpack.c.l.s4 1983009808
        %v4816 = vunpack.c.0.s8 %v4815
        %v4817 = vlaneseq
        %v4818 = vshrl.u32 %v4817, 7
        %v4819 = vsub.s32 %v4816, %v4818
        %v4820 = vrot.slane %v4806, %v4819
        %v4821 = vcombine.low %v4813, %v4820
        %v4822 = vcombine.low %v2288, %v2289
        %v4823 = vcombine.low %v2290, %v2291
        %v4825 = vunpack.c.l.s4 1983009808
        %v4826 = vunpack.c.0.s8 %v4825
        %v4827 = vlaneseq
        %v4828 = vshrl.u32 %v4827, 7
        %v4829 = vsub.s32 %v4826, %v4828
        %v4830 = vrot.slane %v4822, %v4829
        %v4832 = vunpack.c.l.s4 1983009808
        %v4833 = vunpack.c.0.s8 %v4832
        %v4834 = vlaneseq
        %v4835 = vshrl.u32 %v4834, 7
        %v4836 = vsub.s32 %v4833, %v4835
        %v4837 = vrot.slane %v4823, %v4836
        %v4838 = vcombine.low %v4830, %v4837
        %v4839 = vcombine.low %v2292, %v2293
        %v4840 = vcombine.low %v2294, %v2295
        %v4842 = vunpack.c.l.s4 1983009808
        %v4843 = vunpack.c.0.s8 %v4842
        %v4844 = vlaneseq
        %v4845 = vshrl.u32 %v4844, 7
        %v4846 = vsub.s32 %v4843, %v4845
        %v4847 = vrot.slane %v4839, %v4846
        %v4849 = vunpack.c.l.s4 1983009808
        %v4850 = vunpack.c.0.s8 %v4849
        %v4851 = vlaneseq
        %v4852 = vshrl.u32 %v4851, 7
        %v4853 = vsub.s32 %v4850, %v4852
        %v4854 = vrot.slane %v4840, %v4853
        %v4855 = vcombine.low %v4847, %v4854
        %v4856 = vcombine.low %v2297, %v2298
        %v4857 = vcombine.low %v2299, %v2300
        %v4859 = vunpack.c.l.s4 1983009808
        %v4860 = vunpack.c.0.s8 %v4859
        %v4861 = vlaneseq
        %v4862 = vshrl.u32 %v4861, 7
        %v4863 = vsub.s32 %v4860, %v4862
        %v4864 = vrot.slane %v4856, %v4863
        %v4866 = vunpack.c.l.s4 1983009808
        %v4867 = vunpack.c.0.s8 %v4866
        %v4868 = vlaneseq
        %v4869 = vshrl.u32 %v4868, 7
        %v4870 = vsub.s32 %v4867, %v4869
        %v4871 = vrot.slane %v4857, %v4870
        %v4872 = vcombine.low %v4864, %v4871
        %v4873 = vcombine.low %v2301, %v2302
        %v4874 = vcombine.low %v2303, %v2304
        %v4876 = vunpack.c.l.s4 1983009808
        %v4877 = vunpack.c.0.s8 %v4876
        %v4878 = vlaneseq
        %v4879 = vshrl.u32 %v4878, 7
        %v4880 = vsub.s32 %v4877, %v4879
        %v4881 = vrot.slane %v4873, %v4880
        %v4883 = vunpack.c.l.s4 1983009808
        %v4884 = vunpack.c.0.s8 %v4883
        %v4885 = vlaneseq
        %v4886 = vshrl.u32 %v4885, 7
        %v4887 = vsub.s32 %v4884, %v4886
        %v4888 = vrot.slane %v4874, %v4887
        %v4889 = vcombine.low %v4881, %v4888
        %v4890 = vcombine.low %v2306, %v2307
        %v4891 = vcombine.low %v2308, %v2309
        %v4893 = vunpack.c.l.s4 1983009808
        %v4894 = vunpack.c.0.s8 %v4893
        %v4895 = vlaneseq
        %v4896 = vshrl.u32 %v4895, 7
        %v4897 = vsub.s32 %v4894, %v4896
        %v4898 = vrot.slane %v4890, %v4897
        %v4900 = vunpack.c.l.s4 1983009808
        %v4901 = vunpack.c.0.s8 %v4900
        %v4902 = vlaneseq
        %v4903 = vshrl.u32 %v4902, 7
        %v4904 = vsub.s32 %v4901, %v4903
        %v4905 = vrot.slane %v4891, %v4904
        %v4906 = vcombine.low %v4898, %v4905
        %v4907 = vcombine.low %v2310, %v2311
        %v4908 = vcombine.low %v2312, %v2313
        %v4910 = vunpack.c.l.s4 1983009808
        %v4911 = vunpack.c.0.s8 %v4910
        %v4912 = vlaneseq
        %v4913 = vshrl.u32 %v4912, 7
        %v4914 = vsub.s32 %v4911, %v4913
        %v4915 = vrot.slane %v4907, %v4914
        %v4917 = vunpack.c.l.s4 1983009808
        %v4918 = vunpack.c.0.s8 %v4917
        %v4919 = vlaneseq
        %v4920 = vshrl.u32 %v4919, 7
        %v4921 = vsub.s32 %v4918, %v4920
        %v4922 = vrot.slane %v4908, %v4921
        %v4923 = vcombine.low %v4915, %v4922
        %v4924 = vcombine.low %v2315, %v2316
        %v4925 = vcombine.low %v2317, %v2318
        %v4927 = vunpack.c.l.s4 1983009808
        %v4928 = vunpack.c.0.s8 %v4927
        %v4929 = vlaneseq
        %v4930 = vshrl.u32 %v4929, 7
        %v4931 = vsub.s32 %v4928, %v4930
        %v4932 = vrot.slane %v4924, %v4931
        %v4934 = vunpack.c.l.s4 1983009808
        %v4935 = vunpack.c.0.s8 %v4934
        %v4936 = vlaneseq
        %v4937 = vshrl.u32 %v4936, 7
        %v4938 = vsub.s32 %v4935, %v4937
        %v4939 = vrot.slane %v4925, %v4938
        %v4940 = vcombine.low %v4932, %v4939
        %v4941 = vcombine.low %v2319, %v2320
        %v4942 = vcombine.low %v2321, %v2322
        %v4944 = vunpack.c.l.s4 1983009808
        %v4945 = vunpack.c.0.s8 %v4944
        %v4946 = vlaneseq
        %v4947 = vshrl.u32 %v4946, 7
        %v4948 = vsub.s32 %v4945, %v4947
        %v4949 = vrot.slane %v4941, %v4948
        %v4951 = vunpack.c.l.s4 1983009808
        %v4952 = vunpack.c.0.s8 %v4951
        %v4953 = vlaneseq
        %v4954 = vshrl.u32 %v4953, 7
        %v4955 = vsub.s32 %v4952, %v4954
        %v4956 = vrot.slane %v4942, %v4955
        %v4957 = vcombine.low %v4949, %v4956
        %v4958 = vcombine.low %v2324, %v2325
        %v4959 = vcombine.low %v2326, %v2327
        %v4961 = vunpack.c.l.s4 1983009808
        %v4962 = vunpack.c.0.s8 %v4961
        %v4963 = vlaneseq
        %v4964 = vshrl.u32 %v4963, 7
        %v4965 = vsub.s32 %v4962, %v4964
        %v4966 = vrot.slane %v4958, %v4965
        %v4968 = vunpack.c.l.s4 1983009808
        %v4969 = vunpack.c.0.s8 %v4968
        %v4970 = vlaneseq
        %v4971 = vshrl.u32 %v4970, 7
        %v4972 = vsub.s32 %v4969, %v4971
        %v4973 = vrot.slane %v4959, %v4972
        %v4974 = vcombine.low %v4966, %v4973
        %v4975 = vcombine.low %v2328, %v2329
        %v4976 = vcombine.low %v2330, %v2331
        %v4978 = vunpack.c.l.s4 1983009808
        %v4979 = vunpack.c.0.s8 %v4978
        %v4980 = vlaneseq
        %v4981 = vshrl.u32 %v4980, 7
        %v4982 = vsub.s32 %v4979, %v4981
        %v4983 = vrot.slane %v4975, %v4982
        %v4985 = vunpack.c.l.s4 1983009808
        %v4986 = vunpack.c.0.s8 %v4985
        %v4987 = vlaneseq
        %v4988 = vshrl.u32 %v4987, 7
        %v4989 = vsub.s32 %v4986, %v4988
        %v4990 = vrot.slane %v4976, %v4989
        %v4991 = vcombine.low %v4983, %v4990
        %v4992 = vcombine.low %v2333, %v2334
        %v4993 = vcombine.low %v2335, %v2336
        %v4995 = vunpack.c.l.s4 1983009808
        %v4996 = vunpack.c.0.s8 %v4995
        %v4997 = vlaneseq
        %v4998 = vshrl.u32 %v4997, 7
        %v4999 = vsub.s32 %v4996, %v4998
        %v5000 = vrot.slane %v4992, %v4999
        %v5002 = vunpack.c.l.s4 1983009808
        %v5003 = vunpack.c.0.s8 %v5002
        %v5004 = vlaneseq
        %v5005 = vshrl.u32 %v5004, 7
        %v5006 = vsub.s32 %v5003, %v5005
        %v5007 = vrot.slane %v4993, %v5006
        %v5008 = vcombine.low %v5000, %v5007
        %v5009 = vcombine.low %v2337, %v2338
        %v5010 = vcombine.low %v2339, %v2340
        %v5012 = vunpack.c.l.s4 1983009808
        %v5013 = vunpack.c.0.s8 %v5012
        %v5014 = vlaneseq
        %v5015 = vshrl.u32 %v5014, 7
        %v5016 = vsub.s32 %v5013, %v5015
        %v5017 = vrot.slane %v5009, %v5016
        %v5019 = vunpack.c.l.s4 1983009808
        %v5020 = vunpack.c.0.s8 %v5019
        %v5021 = vlaneseq
        %v5022 = vshrl.u32 %v5021, 7
        %v5023 = vsub.s32 %v5020, %v5022
        %v5024 = vrot.slane %v5010, %v5023
        %v5025 = vcombine.low %v5017, %v5024
        %v5026 = vcombine.low %v2342, %v2343
        %v5027 = vcombine.low %v2344, %v2345
        %v5029 = vunpack.c.l.s4 1983009808
        %v5030 = vunpack.c.0.s8 %v5029
        %v5031 = vlaneseq
        %v5032 = vshrl.u32 %v5031, 7
        %v5033 = vsub.s32 %v5030, %v5032
        %v5034 = vrot.slane %v5026, %v5033
        %v5036 = vunpack.c.l.s4 1983009808
        %v5037 = vunpack.c.0.s8 %v5036
        %v5038 = vlaneseq
        %v5039 = vshrl.u32 %v5038, 7
        %v5040 = vsub.s32 %v5037, %v5039
        %v5041 = vrot.slane %v5027, %v5040
        %v5042 = vcombine.low %v5034, %v5041
        %v5043 = vcombine.low %v2346, %v2347
        %v5044 = vcombine.low %v2348, %v2349
        %v5046 = vunpack.c.l.s4 1983009808
        %v5047 = vunpack.c.0.s8 %v5046
        %v5048 = vlaneseq
        %v5049 = vshrl.u32 %v5048, 7
        %v5050 = vsub.s32 %v5047, %v5049
        %v5051 = vrot.slane %v5043, %v5050
        %v5053 = vunpack.c.l.s4 1983009808
        %v5054 = vunpack.c.0.s8 %v5053
        %v5055 = vlaneseq
        %v5056 = vshrl.u32 %v5055, 7
        %v5057 = vsub.s32 %v5054, %v5056
        %v5058 = vrot.slane %v5044, %v5057
        %v5059 = vcombine.low %v5051, %v5058
        %v5060 = vcombine.low %v2351, %v2352
        %v5061 = vcombine.low %v2353, %v2354
        %v5063 = vunpack.c.l.s4 1983009808
        %v5064 = vunpack.c.0.s8 %v5063
        %v5065 = vlaneseq
        %v5066 = vshrl.u32 %v5065, 7
        %v5067 = vsub.s32 %v5064, %v5066
        %v5068 = vrot.slane %v5060, %v5067
        %v5070 = vunpack.c.l.s4 1983009808
        %v5071 = vunpack.c.0.s8 %v5070
        %v5072 = vlaneseq
        %v5073 = vshrl.u32 %v5072, 7
        %v5074 = vsub.s32 %v5071, %v5073
        %v5075 = vrot.slane %v5061, %v5074
        %v5076 = vcombine.low %v5068, %v5075
        %v5077 = vcombine.low %v2355, %v2356
        %v5078 = vcombine.low %v2357, %v2358
        %v5080 = vunpack.c.l.s4 1983009808
        %v5081 = vunpack.c.0.s8 %v5080
        %v5082 = vlaneseq
        %v5083 = vshrl.u32 %v5082, 7
        %v5084 = vsub.s32 %v5081, %v5083
        %v5085 = vrot.slane %v5077, %v5084
        %v5087 = vunpack.c.l.s4 1983009808
        %v5088 = vunpack.c.0.s8 %v5087
        %v5089 = vlaneseq
        %v5090 = vshrl.u32 %v5089, 7
        %v5091 = vsub.s32 %v5088, %v5090
        %v5092 = vrot.slane %v5078, %v5091
        %v5093 = vcombine.low %v5085, %v5092
        %v5094 = vcombine.low %v2360, %v2361
        %v5095 = vcombine.low %v2362, %v2363
        %v5097 = vunpack.c.l.s4 1983009808
        %v5098 = vunpack.c.0.s8 %v5097
        %v5099 = vlaneseq
        %v5100 = vshrl.u32 %v5099, 7
        %v5101 = vsub.s32 %v5098, %v5100
        %v5102 = vrot.slane %v5094, %v5101
        %v5104 = vunpack.c.l.s4 1983009808
        %v5105 = vunpack.c.0.s8 %v5104
        %v5106 = vlaneseq
        %v5107 = vshrl.u32 %v5106, 7
        %v5108 = vsub.s32 %v5105, %v5107
        %v5109 = vrot.slane %v5095, %v5108
        %v5110 = vcombine.low %v5102, %v5109
        %v5111 = vcombine.low %v2364, %v2365
        %v5112 = vcombine.low %v2366, %v2367
        %v5114 = vunpack.c.l.s4 1983009808
        %v5115 = vunpack.c.0.s8 %v5114
        %v5116 = vlaneseq
        %v5117 = vshrl.u32 %v5116, 7
        %v5118 = vsub.s32 %v5115, %v5117
        %v5119 = vrot.slane %v5111, %v5118
        %v5121 = vunpack.c.l.s4 1983009808
        %v5122 = vunpack.c.0.s8 %v5121
        %v5123 = vlaneseq
        %v5124 = vshrl.u32 %v5123, 7
        %v5125 = vsub.s32 %v5122, %v5124
        %v5126 = vrot.slane %v5112, %v5125
        %v5127 = vcombine.low %v5119, %v5126
        %v5128 = vcombine.low %v2369, %v2370
        %v5129 = vcombine.low %v2371, %v2372
        %v5131 = vunpack.c.l.s4 1983009808
        %v5132 = vunpack.c.0.s8 %v5131
        %v5133 = vlaneseq
        %v5134 = vshrl.u32 %v5133, 7
        %v5135 = vsub.s32 %v5132, %v5134
        %v5136 = vrot.slane %v5128, %v5135
        %v5138 = vunpack.c.l.s4 1983009808
        %v5139 = vunpack.c.0.s8 %v5138
        %v5140 = vlaneseq
        %v5141 = vshrl.u32 %v5140, 7
        %v5142 = vsub.s32 %v5139, %v5141
        %v5143 = vrot.slane %v5129, %v5142
        %v5144 = vcombine.low %v5136, %v5143
        %v5145 = vcombine.low %v2373, %v2374
        %v5146 = vcombine.low %v2375, %v2376
        %v5148 = vunpack.c.l.s4 1983009808
        %v5149 = vunpack.c.0.s8 %v5148
        %v5150 = vlaneseq
        %v5151 = vshrl.u32 %v5150, 7
        %v5152 = vsub.s32 %v5149, %v5151
        %v5153 = vrot.slane %v5145, %v5152
        %v5155 = vunpack.c.l.s4 1983009808
        %v5156 = vunpack.c.0.s8 %v5155
        %v5157 = vlaneseq
        %v5158 = vshrl.u32 %v5157, 7
        %v5159 = vsub.s32 %v5156, %v5158
        %v5160 = vrot.slane %v5146, %v5159
        %v5161 = vcombine.low %v5153, %v5160
        %v5162 = vcombine.low %v2378, %v2379
        %v5163 = vcombine.low %v2380, %v2381
        %v5165 = vunpack.c.l.s4 1983009808
        %v5166 = vunpack.c.0.s8 %v5165
        %v5167 = vlaneseq
        %v5168 = vshrl.u32 %v5167, 7
        %v5169 = vsub.s32 %v5166, %v5168
        %v5170 = vrot.slane %v5162, %v5169
        %v5172 = vunpack.c.l.s4 1983009808
        %v5173 = vunpack.c.0.s8 %v5172
        %v5174 = vlaneseq
        %v5175 = vshrl.u32 %v5174, 7
        %v5176 = vsub.s32 %v5173, %v5175
        %v5177 = vrot.slane %v5163, %v5176
        %v5178 = vcombine.low %v5170, %v5177
        %v5179 = vcombine.low %v2382, %v2383
        %v5180 = vcombine.low %v2384, %v2385
        %v5182 = vunpack.c.l.s4 1983009808
        %v5183 = vunpack.c.0.s8 %v5182
        %v5184 = vlaneseq
        %v5185 = vshrl.u32 %v5184, 7
        %v5186 = vsub.s32 %v5183, %v5185
        %v5187 = vrot.slane %v5179, %v5186
        %v5189 = vunpack.c.l.s4 1983009808
        %v5190 = vunpack.c.0.s8 %v5189
        %v5191 = vlaneseq
        %v5192 = vshrl.u32 %v5191, 7
        %v5193 = vsub.s32 %v5190, %v5192
        %v5194 = vrot.slane %v5180, %v5193
        %v5195 = vcombine.low %v5187, %v5194
        %v5196 = vcombine.low %v2387, %v2388
        %v5197 = vcombine.low %v2389, %v2390
        %v5199 = vunpack.c.l.s4 1983009808
        %v5200 = vunpack.c.0.s8 %v5199
        %v5201 = vlaneseq
        %v5202 = vshrl.u32 %v5201, 7
        %v5203 = vsub.s32 %v5200, %v5202
        %v5204 = vrot.slane %v5196, %v5203
        %v5206 = vunpack.c.l.s4 1983009808
        %v5207 = vunpack.c.0.s8 %v5206
        %v5208 = vlaneseq
        %v5209 = vshrl.u32 %v5208, 7
        %v5210 = vsub.s32 %v5207, %v5209
        %v5211 = vrot.slane %v5197, %v5210
        %v5212 = vcombine.low %v5204, %v5211
        %v5213 = vcombine.low %v2391, %v2392
        %v5214 = vcombine.low %v2393, %v2394
        %v5216 = vunpack.c.l.s4 1983009808
        %v5217 = vunpack.c.0.s8 %v5216
        %v5218 = vlaneseq
        %v5219 = vshrl.u32 %v5218, 7
        %v5220 = vsub.s32 %v5217, %v5219
        %v5221 = vrot.slane %v5213, %v5220
        %v5223 = vunpack.c.l.s4 1983009808
        %v5224 = vunpack.c.0.s8 %v5223
        %v5225 = vlaneseq
        %v5226 = vshrl.u32 %v5225, 7
        %v5227 = vsub.s32 %v5224, %v5226
        %v5228 = vrot.slane %v5214, %v5227
        %v5229 = vcombine.low %v5221, %v5228
        %5230 = vrot.lane.b32.xlu0 %v4702, 4
        %v5231 = vpop.permute.xlu0 %5230
        %5232 = vrot.lane.b32.xlu0 %v4719, 4
        %v5233 = vpop.permute.xlu0 %5232
        %5234 = vrot.lane.b32.xlu0 %v4736, 4
        %v5235 = vpop.permute.xlu0 %5234
        %5236 = vrot.lane.b32.xlu0 %v4753, 4
        %v5237 = vpop.permute.xlu0 %5236
        %5238 = vrot.lane.b32.xlu0 %v4770, 4
        %v5239 = vpop.permute.xlu0 %5238
        %5240 = vrot.lane.b32.xlu0 %v4787, 4
        %v5241 = vpop.permute.xlu0 %5240
        %5242 = vrot.lane.b32.xlu0 %v4804, 4
        %v5243 = vpop.permute.xlu0 %5242
        %5244 = vrot.lane.b32.xlu0 %v4821, 4
        %v5245 = vpop.permute.xlu0 %5244
        %5246 = vrot.lane.b32.xlu0 %v4838, 4
        %v5247 = vpop.permute.xlu0 %5246
        %5248 = vrot.lane.b32.xlu0 %v4855, 4
        %v5249 = vpop.permute.xlu0 %5248
        %5250 = vrot.lane.b32.xlu0 %v4872, 4
        %v5251 = vpop.permute.xlu0 %5250
        %5252 = vrot.lane.b32.xlu0 %v4889, 4
        %v5253 = vpop.permute.xlu0 %5252
        %5254 = vrot.lane.b32.xlu0 %v4906, 4
        %v5255 = vpop.permute.xlu0 %5254
        %5256 = vrot.lane.b32.xlu0 %v4923, 4
        %v5257 = vpop.permute.xlu0 %5256
        %5258 = vrot.lane.b32.xlu0 %v4940, 4
        %v5259 = vpop.permute.xlu0 %5258
        %5260 = vrot.lane.b32.xlu0 %v4957, 4
        %v5261 = vpop.permute.xlu0 %5260
        %5262 = vrot.lane.b32.xlu0 %v4974, 4
        %v5263 = vpop.permute.xlu0 %5262
        %5264 = vrot.lane.b32.xlu0 %v4991, 4
        %v5265 = vpop.permute.xlu0 %5264
        %5266 = vrot.lane.b32.xlu0 %v5008, 4
        %v5267 = vpop.permute.xlu0 %5266
        %5268 = vrot.lane.b32.xlu0 %v5025, 4
        %v5269 = vpop.permute.xlu0 %5268
        %5270 = vrot.lane.b32.xlu0 %v5042, 4
        %v5271 = vpop.permute.xlu0 %5270
        %5272 = vrot.lane.b32.xlu0 %v5059, 4
        %v5273 = vpop.permute.xlu0 %5272
        %5274 = vrot.lane.b32.xlu0 %v5076, 4
        %v5275 = vpop.permute.xlu0 %5274
        %5276 = vrot.lane.b32.xlu0 %v5093, 4
        %v5277 = vpop.permute.xlu0 %5276
        %5278 = vrot.lane.b32.xlu0 %v5110, 4
        %v5279 = vpop.permute.xlu0 %5278
        %5280 = vrot.lane.b32.xlu0 %v5127, 4
        %v5281 = vpop.permute.xlu0 %5280
        %5282 = vrot.lane.b32.xlu0 %v5144, 4
        %v5283 = vpop.permute.xlu0 %5282
        %5284 = vrot.lane.b32.xlu0 %v5161, 4
        %v5285 = vpop.permute.xlu0 %5284
        %5286 = vrot.lane.b32.xlu0 %v5178, 4
        %v5287 = vpop.permute.xlu0 %5286
        %5288 = vrot.lane.b32.xlu0 %v5195, 4
        %v5289 = vpop.permute.xlu0 %5288
        %5290 = vrot.lane.b32.xlu0 %v5212, 4
        %v5291 = vpop.permute.xlu0 %5290
        %5292 = vrot.lane.b32.xlu0 %v5229, 4
        %v5293 = vpop.permute.xlu0 %5292
        %vm5326 = vcmask 48160
        %5327 = vst.msk [vmem:[#allocation5] sm:$0xff] %vm5326, %v5231
        %5328 = vst.msk [vmem:[#allocation5 + $0x8] sm:$0xff] %vm5326, %v5233
        %5329 = vst.msk [vmem:[#allocation5 + $0x10] sm:$0xff] %vm5326, %v5235
        %5330 = vst.msk [vmem:[#allocation5 + $0x18] sm:$0xff] %vm5326, %v5237
        %5331 = vst.msk [vmem:[#allocation5 + $0x20] sm:$0xff] %vm5326, %v5239
        %5332 = vst.msk [vmem:[#allocation5 + $0x28] sm:$0xff] %vm5326, %v5241
        %5333 = vst.msk [vmem:[#allocation5 + $0x30] sm:$0xff] %vm5326, %v5243
        %5334 = vst.msk [vmem:[#allocation5 + $0x38] sm:$0xff] %vm5326, %v5245
        %5335 = vst.msk [vmem:[#allocation5 + $0x40] sm:$0xff] %vm5326, %v5247
        %5336 = vst.msk [vmem:[#allocation5 + $0x48] sm:$0xff] %vm5326, %v5249
        %5337 = vst.msk [vmem:[#allocation5 + $0x50] sm:$0xff] %vm5326, %v5251
        %5338 = vst.msk [vmem:[#allocation5 + $0x58] sm:$0xff] %vm5326, %v5253
        %5339 = vst.msk [vmem:[#allocation5 + $0x60] sm:$0xff] %vm5326, %v5255
        %5340 = vst.msk [vmem:[#allocation5 + $0x68] sm:$0xff] %vm5326, %v5257
        %5341 = vst.msk [vmem:[#allocation5 + $0x70] sm:$0xff] %vm5326, %v5259
        %5342 = vst.msk [vmem:[#allocation5 + $0x78] sm:$0xff] %vm5326, %v5261
        %5343 = vst.msk [vmem:[#allocation5 + $0x80] sm:$0xff] %vm5326, %v5263
        %5344 = vst.msk [vmem:[#allocation5 + $0x88] sm:$0xff] %vm5326, %v5265
        %5345 = vst.msk [vmem:[#allocation5 + $0x90] sm:$0xff] %vm5326, %v5267
        %5346 = vst.msk [vmem:[#allocation5 + $0x98] sm:$0xff] %vm5326, %v5269
        %5347 = vst.msk [vmem:[#allocation5 + $0xa0] sm:$0xff] %vm5326, %v5271
        %5348 = vst.msk [vmem:[#allocation5 + $0xa8] sm:$0xff] %vm5326, %v5273
        %5349 = vst.msk [vmem:[#allocation5 + $0xb0] sm:$0xff] %vm5326, %v5275
        %5350 = vst.msk [vmem:[#allocation5 + $0xb8] sm:$0xff] %vm5326, %v5277
        %5351 = vst.msk [vmem:[#allocation5 + $0xc0] sm:$0xff] %vm5326, %v5279
        %5352 = vst.msk [vmem:[#allocation5 + $0xc8] sm:$0xff] %vm5326, %v5281
        %5353 = vst.msk [vmem:[#allocation5 + $0xd0] sm:$0xff] %vm5326, %v5283
        %5354 = vst.msk [vmem:[#allocation5 + $0xd8] sm:$0xff] %vm5326, %v5285
        %5355 = vst.msk [vmem:[#allocation5 + $0xe0] sm:$0xff] %vm5326, %v5287
        %5356 = vst.msk [vmem:[#allocation5 + $0xe8] sm:$0xff] %vm5326, %v5289
        %5357 = vst.msk [vmem:[#allocation5 + $0xf0] sm:$0xff] %vm5326, %v5291
        %5358 = vst.msk [vmem:[#allocation5 + $0xf8] sm:$0xff] %vm5326, %v5293
        %vm5359 = vcmask 1045504
        %v5360 = vrot.slane %v2413, 2
        %v5361 = vrot.slane %v2414, 2
        %v5362 = vsel %vm5359, %v5360, %v5361
        %v5363 = vrot.slane %v2415, 2
        %v5364 = vsel %vm5359, %v5361, %v5363
        %v5365 = vrot.slane %v2416, 2
        %v5366 = vrot.slane %v2417, 2
        %v5367 = vsel %vm5359, %v5365, %v5366
        %v5368 = vrot.slane %v2418, 2
        %v5369 = vsel %vm5359, %v5366, %v5368
        %v5370 = vrot.slane %v2419, 2
        %v5371 = vrot.slane %v2420, 2
        %v5372 = vsel %vm5359, %v5370, %v5371
        %v5373 = vrot.slane %v2421, 2
        %v5374 = vsel %vm5359, %v5371, %v5373
        %v5375 = vrot.slane %v2422, 2
        %v5376 = vrot.slane %v2423, 2
        %v5377 = vsel %vm5359, %v5375, %v5376
        %v5378 = vrot.slane %v2424, 2
        %v5379 = vsel %vm5359, %v5376, %v5378
        %v5380 = vrot.slane %v2425, 2
        %v5381 = vrot.slane %v2426, 2
        %v5382 = vsel %vm5359, %v5380, %v5381
        %v5383 = vrot.slane %v2427, 2
        %v5384 = vsel %vm5359, %v5381, %v5383
        %v5385 = vrot.slane %v2428, 2
        %v5386 = vrot.slane %v2429, 2
        %v5387 = vsel %vm5359, %v5385, %v5386
        %v5388 = vrot.slane %v2430, 2
        %v5389 = vsel %vm5359, %v5386, %v5388
        %v5390 = vrot.slane %v2431, 2
        %v5391 = vrot.slane %v2432, 2
        %v5392 = vsel %vm5359, %v5390, %v5391
        %v5393 = vrot.slane %v2433, 2
        %v5394 = vsel %vm5359, %v5391, %v5393
        %v5395 = vrot.slane %v2434, 2
        %v5396 = vrot.slane %v2435, 2
        %v5397 = vsel %vm5359, %v5395, %v5396
        %v5398 = vrot.slane %v2436, 2
        %v5399 = vsel %vm5359, %v5396, %v5398
        %v5400 = vrot.slane %v2437, 2
        %v5401 = vrot.slane %v2438, 2
        %v5402 = vsel %vm5359, %v5400, %v5401
        %v5403 = vrot.slane %v2439, 2
        %v5404 = vsel %vm5359, %v5401, %v5403
        %v5405 = vrot.slane %v2440, 2
        %v5406 = vrot.slane %v2441, 2
        %v5407 = vsel %vm5359, %v5405, %v5406
        %v5408 = vrot.slane %v2442, 2
        %v5409 = vsel %vm5359, %v5406, %v5408
        %v5410 = vrot.slane %v2443, 2
        %v5411 = vrot.slane %v2444, 2
        %v5412 = vsel %vm5359, %v5410, %v5411
        %v5413 = vrot.slane %v2445, 2
        %v5414 = vsel %vm5359, %v5411, %v5413
        %v5415 = vrot.slane %v2446, 2
        %v5416 = vrot.slane %v2447, 2
        %v5417 = vsel %vm5359, %v5415, %v5416
        %v5418 = vrot.slane %v2448, 2
        %v5419 = vsel %vm5359, %v5416, %v5418
        %v5420 = vrot.slane %v2449, 2
        %v5421 = vrot.slane %v2450, 2
        %v5422 = vsel %vm5359, %v5420, %v5421
        %v5423 = vrot.slane %v2451, 2
        %v5424 = vsel %vm5359, %v5421, %v5423
        %v5425 = vrot.slane %v2452, 2
        %v5426 = vrot.slane %v2453, 2
        %v5427 = vsel %vm5359, %v5425, %v5426
        %v5428 = vrot.slane %v2454, 2
        %v5429 = vsel %vm5359, %v5426, %v5428
        %v5430 = vrot.slane %v2455, 2
        %v5431 = vrot.slane %v2456, 2
        %v5432 = vsel %vm5359, %v5430, %v5431
        %v5433 = vrot.slane %v2457, 2
        %v5434 = vsel %vm5359, %v5431, %v5433
        %v5435 = vrot.slane %v2458, 2
        %v5436 = vrot.slane %v2459, 2
        %v5437 = vsel %vm5359, %v5435, %v5436
        %v5438 = vrot.slane %v2460, 2
        %v5439 = vsel %vm5359, %v5436, %v5438
        %5440 = vrot.lane.b32.xlu0 %v5362, 22
        %v5441 = vpop.permute.xlu0 %5440
        %5442 = vrot.lane.b32.xlu0 %v5364, 22
        %v5443 = vpop.permute.xlu0 %5442
        %5444 = vrot.lane.b32.xlu0 %v5367, 22
        %v5445 = vpop.permute.xlu0 %5444
        %5446 = vrot.lane.b32.xlu0 %v5369, 22
        %v5447 = vpop.permute.xlu0 %5446
        %5448 = vrot.lane.b32.xlu0 %v5372, 22
        %v5449 = vpop.permute.xlu0 %5448
        %5450 = vrot.lane.b32.xlu0 %v5374, 22
        %v5451 = vpop.permute.xlu0 %5450
        %5452 = vrot.lane.b32.xlu0 %v5377, 22
        %v5453 = vpop.permute.xlu0 %5452
        %5454 = vrot.lane.b32.xlu0 %v5379, 22
        %v5455 = vpop.permute.xlu0 %5454
        %5456 = vrot.lane.b32.xlu0 %v5382, 22
        %v5457 = vpop.permute.xlu0 %5456
        %5458 = vrot.lane.b32.xlu0 %v5384, 22
        %v5459 = vpop.permute.xlu0 %5458
        %5460 = vrot.lane.b32.xlu0 %v5387, 22
        %v5461 = vpop.permute.xlu0 %5460
        %5462 = vrot.lane.b32.xlu0 %v5389, 22
        %v5463 = vpop.permute.xlu0 %5462
        %5464 = vrot.lane.b32.xlu0 %v5392, 22
        %v5465 = vpop.permute.xlu0 %5464
        %5466 = vrot.lane.b32.xlu0 %v5394, 22
        %v5467 = vpop.permute.xlu0 %5466
        %5468 = vrot.lane.b32.xlu0 %v5397, 22
        %v5469 = vpop.permute.xlu0 %5468
        %5470 = vrot.lane.b32.xlu0 %v5399, 22
        %v5471 = vpop.permute.xlu0 %5470
        %5472 = vrot.lane.b32.xlu0 %v5402, 22
        %v5473 = vpop.permute.xlu0 %5472
        %5474 = vrot.lane.b32.xlu0 %v5404, 22
        %v5475 = vpop.permute.xlu0 %5474
        %5476 = vrot.lane.b32.xlu0 %v5407, 22
        %v5477 = vpop.permute.xlu0 %5476
        %5478 = vrot.lane.b32.xlu0 %v5409, 22
        %v5479 = vpop.permute.xlu0 %5478
        %5480 = vrot.lane.b32.xlu0 %v5412, 22
        %v5481 = vpop.permute.xlu0 %5480
        %5482 = vrot.lane.b32.xlu0 %v5414, 22
        %v5483 = vpop.permute.xlu0 %5482
        %5484 = vrot.lane.b32.xlu0 %v5417, 22
        %v5485 = vpop.permute.xlu0 %5484
        %5486 = vrot.lane.b32.xlu0 %v5419, 22
        %v5487 = vpop.permute.xlu0 %5486
        %5488 = vrot.lane.b32.xlu0 %v5422, 22
        %v5489 = vpop.permute.xlu0 %5488
        %5490 = vrot.lane.b32.xlu0 %v5424, 22
        %v5491 = vpop.permute.xlu0 %5490
        %5492 = vrot.lane.b32.xlu0 %v5427, 22
        %v5493 = vpop.permute.xlu0 %5492
        %5494 = vrot.lane.b32.xlu0 %v5429, 22
        %v5495 = vpop.permute.xlu0 %5494
        %5496 = vrot.lane.b32.xlu0 %v5432, 22
        %v5497 = vpop.permute.xlu0 %5496
        %5498 = vrot.lane.b32.xlu0 %v5434, 22
        %v5499 = vpop.permute.xlu0 %5498
        %5500 = vrot.lane.b32.xlu0 %v5437, 22
        %v5501 = vpop.permute.xlu0 %5500
        %5502 = vrot.lane.b32.xlu0 %v5439, 22
        %v5503 = vpop.permute.xlu0 %5502
        %vm5536 = vcmask 195760
        %5537 = vst.msk [vmem:[#allocation5] sm:$0xff] %vm5536, %v5441
        %5538 = vst.msk [vmem:[#allocation5 + $0x8] sm:$0xff] %vm5536, %v5443
        %5539 = vst.msk [vmem:[#allocation5 + $0x10] sm:$0xff] %vm5536, %v5445
        %5540 = vst.msk [vmem:[#allocation5 + $0x18] sm:$0xff] %vm5536, %v5447
        %5541 = vst.msk [vmem:[#allocation5 + $0x20] sm:$0xff] %vm5536, %v5449
        %5542 = vst.msk [vmem:[#allocation5 + $0x28] sm:$0xff] %vm5536, %v5451
        %5543 = vst.msk [vmem:[#allocation5 + $0x30] sm:$0xff] %vm5536, %v5453
        %5544 = vst.msk [vmem:[#allocation5 + $0x38] sm:$0xff] %vm5536, %v5455
        %5545 = vst.msk [vmem:[#allocation5 + $0x40] sm:$0xff] %vm5536, %v5457
        %5546 = vst.msk [vmem:[#allocation5 + $0x48] sm:$0xff] %vm5536, %v5459
        %5547 = vst.msk [vmem:[#allocation5 + $0x50] sm:$0xff] %vm5536, %v5461
        %5548 = vst.msk [vmem:[#allocation5 + $0x58] sm:$0xff] %vm5536, %v5463
        %5549 = vst.msk [vmem:[#allocation5 + $0x60] sm:$0xff] %vm5536, %v5465
        %5550 = vst.msk [vmem:[#allocation5 + $0x68] sm:$0xff] %vm5536, %v5467
        %5551 = vst.msk [vmem:[#allocation5 + $0x70] sm:$0xff] %vm5536, %v5469
        %5552 = vst.msk [vmem:[#allocation5 + $0x78] sm:$0xff] %vm5536, %v5471
        %5553 = vst.msk [vmem:[#allocation5 + $0x80] sm:$0xff] %vm5536, %v5473
        %5554 = vst.msk [vmem:[#allocation5 + $0x88] sm:$0xff] %vm5536, %v5475
        %5555 = vst.msk [vmem:[#allocation5 + $0x90] sm:$0xff] %vm5536, %v5477
        %5556 = vst.msk [vmem:[#allocation5 + $0x98] sm:$0xff] %vm5536, %v5479
        %5557 = vst.msk [vmem:[#allocation5 + $0xa0] sm:$0xff] %vm5536, %v5481
        %5558 = vst.msk [vmem:[#allocation5 + $0xa8] sm:$0xff] %vm5536, %v5483
        %5559 = vst.msk [vmem:[#allocation5 + $0xb0] sm:$0xff] %vm5536, %v5485
        %5560 = vst.msk [vmem:[#allocation5 + $0xb8] sm:$0xff] %vm5536, %v5487
        %5561 = vst.msk [vmem:[#allocation5 + $0xc0] sm:$0xff] %vm5536, %v5489
        %5562 = vst.msk [vmem:[#allocation5 + $0xc8] sm:$0xff] %vm5536, %v5491
        %5563 = vst.msk [vmem:[#allocation5 + $0xd0] sm:$0xff] %vm5536, %v5493
        %5564 = vst.msk [vmem:[#allocation5 + $0xd8] sm:$0xff] %vm5536, %v5495
        %5565 = vst.msk [vmem:[#allocation5 + $0xe0] sm:$0xff] %vm5536, %v5497
        %5566 = vst.msk [vmem:[#allocation5 + $0xe8] sm:$0xff] %vm5536, %v5499
        %5567 = vst.msk [vmem:[#allocation5 + $0xf0] sm:$0xff] %vm5536, %v5501
        %5568 = vst.msk [vmem:[#allocation5 + $0xf8] sm:$0xff] %vm5536, %v5503
        %v5577 = vcombine.low %v2395, %v2396
        %v5578 = vcombine.low %v2397, %v2398
        %v5580 = vunpack.c.l.s4 1983009808
        %v5581 = vunpack.c.0.s8 %v5580
        %v5582 = vlaneseq
        %v5583 = vshrl.u32 %v5582, 7
        %v5584 = vsub.s32 %v5581, %v5583
        %v5585 = vrot.slane %v5577, %v5584
        %v5587 = vunpack.c.l.s4 1983009808
        %v5588 = vunpack.c.0.s8 %v5587
        %v5589 = vlaneseq
        %v5590 = vshrl.u32 %v5589, 7
        %v5591 = vsub.s32 %v5588, %v5590
        %v5592 = vrot.slane %v5578, %v5591
        %v5593 = vcombine.low %v5585, %v5592
        %v5594 = vcombine.low %v2399, %v2400
        %v5595 = vcombine.low %v2401, %v2402
        %v5597 = vunpack.c.l.s4 1983009808
        %v5598 = vunpack.c.0.s8 %v5597
        %v5599 = vlaneseq
        %v5600 = vshrl.u32 %v5599, 7
        %v5601 = vsub.s32 %v5598, %v5600
        %v5602 = vrot.slane %v5594, %v5601
        %v5604 = vunpack.c.l.s4 1983009808
        %v5605 = vunpack.c.0.s8 %v5604
        %v5606 = vlaneseq
        %v5607 = vshrl.u32 %v5606, 7
        %v5608 = vsub.s32 %v5605, %v5607
        %v5609 = vrot.slane %v5595, %v5608
        %v5610 = vcombine.low %v5602, %v5609
        %5611 = vrot.lane.b32.xlu0 %v2645, 6
        %v5612 = vpop.permute.xlu0 %5611
        %5613 = vrot.lane.b32.xlu0 %v2662, 6
        %v5614 = vpop.permute.xlu0 %5613
        %5615 = vrot.lane.b32.xlu0 %v2679, 6
        %v5616 = vpop.permute.xlu0 %5615
        %5617 = vrot.lane.b32.xlu0 %v2696, 6
        %v5618 = vpop.permute.xlu0 %5617
        %5619 = vrot.lane.b32.xlu0 %v2713, 6
        %v5620 = vpop.permute.xlu0 %5619
        %5621 = vrot.lane.b32.xlu0 %v2730, 6
        %v5622 = vpop.permute.xlu0 %5621
        %5623 = vrot.lane.b32.xlu0 %v2747, 6
        %v5624 = vpop.permute.xlu0 %5623
        %5625 = vrot.lane.b32.xlu0 %v2764, 6
        %v5626 = vpop.permute.xlu0 %5625
        %5627 = vrot.lane.b32.xlu0 %v2781, 6
        %v5628 = vpop.permute.xlu0 %5627
        %5629 = vrot.lane.b32.xlu0 %v2798, 6
        %v5630 = vpop.permute.xlu0 %5629
        %5631 = vrot.lane.b32.xlu0 %v2815, 6
        %v5632 = vpop.permute.xlu0 %5631
        %5633 = vrot.lane.b32.xlu0 %v2832, 6
        %v5634 = vpop.permute.xlu0 %5633
        %5635 = vrot.lane.b32.xlu0 %v2849, 6
        %v5636 = vpop.permute.xlu0 %5635
        %5637 = vrot.lane.b32.xlu0 %v2866, 6
        %v5638 = vpop.permute.xlu0 %5637
        %5639 = vrot.lane.b32.xlu0 %v2883, 6
        %v5640 = vpop.permute.xlu0 %5639
        %5641 = vrot.lane.b32.xlu0 %v2900, 6
        %v5642 = vpop.permute.xlu0 %5641
        %5643 = vrot.lane.b32.xlu0 %v2917, 6
        %v5644 = vpop.permute.xlu0 %5643
        %5645 = vrot.lane.b32.xlu0 %v2934, 6
        %v5646 = vpop.permute.xlu0 %5645
        %5647 = vrot.lane.b32.xlu0 %v2951, 6
        %v5648 = vpop.permute.xlu0 %5647
        %5649 = vrot.lane.b32.xlu0 %v2968, 6
        %v5650 = vpop.permute.xlu0 %5649
        %5651 = vrot.lane.b32.xlu0 %v2985, 6
        %v5652 = vpop.permute.xlu0 %5651
        %5653 = vrot.lane.b32.xlu0 %v3002, 6
        %v5654 = vpop.permute.xlu0 %5653
        %5655 = vrot.lane.b32.xlu0 %v3019, 6
        %v5656 = vpop.permute.xlu0 %5655
        %5657 = vrot.lane.b32.xlu0 %v3036, 6
        %v5658 = vpop.permute.xlu0 %5657
        %5659 = vrot.lane.b32.xlu0 %v3053, 6
        %v5660 = vpop.permute.xlu0 %5659
        %5661 = vrot.lane.b32.xlu0 %v3070, 6
        %v5662 = vpop.permute.xlu0 %5661
        %5663 = vrot.lane.b32.xlu0 %v3087, 6
        %v5664 = vpop.permute.xlu0 %5663
        %5665 = vrot.lane.b32.xlu0 %v3104, 6
        %v5666 = vpop.permute.xlu0 %5665
        %5667 = vrot.lane.b32.xlu0 %v3121, 6
        %v5668 = vpop.permute.xlu0 %5667
        %5669 = vrot.lane.b32.xlu0 %v3138, 6
        %v5670 = vpop.permute.xlu0 %5669
        %5671 = vrot.lane.b32.xlu0 %v5593, 6
        %v5672 = vpop.permute.xlu0 %5671
        %5673 = vrot.lane.b32.xlu0 %v5610, 6
        %v5674 = vpop.permute.xlu0 %5673
        %vm5707 = vcmask 64560
        %5708 = vst.msk [vmem:[#allocation5] sm:$0xff] %vm5707, %v5612
        %5709 = vst.msk [vmem:[#allocation5 + $0x8] sm:$0xff] %vm5707, %v5614
        %5710 = vst.msk [vmem:[#allocation5 + $0x10] sm:$0xff] %vm5707, %v5616
        %5711 = vst.msk [vmem:[#allocation5 + $0x18] sm:$0xff] %vm5707, %v5618
        %5712 = vst.msk [vmem:[#allocation5 + $0x20] sm:$0xff] %vm5707, %v5620
        %5713 = vst.msk [vmem:[#allocation5 + $0x28] sm:$0xff] %vm5707, %v5622
        %5714 = vst.msk [vmem:[#allocation5 + $0x30] sm:$0xff] %vm5707, %v5624
        %5715 = vst.msk [vmem:[#allocation5 + $0x38] sm:$0xff] %vm5707, %v5626
        %5716 = vst.msk [vmem:[#allocation5 + $0x40] sm:$0xff] %vm5707, %v5628
        %5717 = vst.msk [vmem:[#allocation5 + $0x48] sm:$0xff] %vm5707, %v5630
        %5718 = vst.msk [vmem:[#allocation5 + $0x50] sm:$0xff] %vm5707, %v5632
        %5719 = vst.msk [vmem:[#allocation5 + $0x58] sm:$0xff] %vm5707, %v5634
        %5720 = vst.msk [vmem:[#allocation5 + $0x60] sm:$0xff] %vm5707, %v5636
        %5721 = vst.msk [vmem:[#allocation5 + $0x68] sm:$0xff] %vm5707, %v5638
        %5722 = vst.msk [vmem:[#allocation5 + $0x70] sm:$0xff] %vm5707, %v5640
        %5723 = vst.msk [vmem:[#allocation5 + $0x78] sm:$0xff] %vm5707, %v5642
        %5724 = vst.msk [vmem:[#allocation5 + $0x80] sm:$0xff] %vm5707, %v5644
        %5725 = vst.msk [vmem:[#allocation5 + $0x88] sm:$0xff] %vm5707, %v5646
        %5726 = vst.msk [vmem:[#allocation5 + $0x90] sm:$0xff] %vm5707, %v5648
        %5727 = vst.msk [vmem:[#allocation5 + $0x98] sm:$0xff] %vm5707, %v5650
        %5728 = vst.msk [vmem:[#allocation5 + $0xa0] sm:$0xff] %vm5707, %v5652
        %5729 = vst.msk [vmem:[#allocation5 + $0xa8] sm:$0xff] %vm5707, %v5654
        %5730 = vst.msk [vmem:[#allocation5 + $0xb0] sm:$0xff] %vm5707, %v5656
        %5731 = vst.msk [vmem:[#allocation5 + $0xb8] sm:$0xff] %vm5707, %v5658
        %5732 = vst.msk [vmem:[#allocation5 + $0xc0] sm:$0xff] %vm5707, %v5660
        %5733 = vst.msk [vmem:[#allocation5 + $0xc8] sm:$0xff] %vm5707, %v5662
        %5734 = vst.msk [vmem:[#allocation5 + $0xd0] sm:$0xff] %vm5707, %v5664
        %5735 = vst.msk [vmem:[#allocation5 + $0xd8] sm:$0xff] %vm5707, %v5666
        %5736 = vst.msk [vmem:[#allocation5 + $0xe0] sm:$0xff] %vm5707, %v5668
        %5737 = vst.msk [vmem:[#allocation5 + $0xe8] sm:$0xff] %vm5707, %v5670
        %5738 = vst.msk [vmem:[#allocation5 + $0xf0] sm:$0xff] %vm5707, %v5672
        %5739 = vst.msk [vmem:[#allocation5 + $0xf8] sm:$0xff] %vm5707, %v5674
        %5742 = vrot.lane.b32.xlu0 %v2416, 24
        %v5743 = vpop.permute.xlu0 %5742
        %5744 = vrot.lane.b32.xlu0 %v2417, 24
        %v5745 = vpop.permute.xlu0 %5744
        %5746 = vrot.lane.b32.xlu0 %v2419, 24
        %v5747 = vpop.permute.xlu0 %5746
        %5748 = vrot.lane.b32.xlu0 %v2420, 24
        %v5749 = vpop.permute.xlu0 %5748
        %5750 = vrot.lane.b32.xlu0 %v2422, 24
        %v5751 = vpop.permute.xlu0 %5750
        %5752 = vrot.lane.b32.xlu0 %v2423, 24
        %v5753 = vpop.permute.xlu0 %5752
        %5754 = vrot.lane.b32.xlu0 %v2425, 24
        %v5755 = vpop.permute.xlu0 %5754
        %5756 = vrot.lane.b32.xlu0 %v2426, 24
        %v5757 = vpop.permute.xlu0 %5756
        %5758 = vrot.lane.b32.xlu0 %v2428, 24
        %v5759 = vpop.permute.xlu0 %5758
        %5760 = vrot.lane.b32.xlu0 %v2429, 24
        %v5761 = vpop.permute.xlu0 %5760
        %5762 = vrot.lane.b32.xlu0 %v2431, 24
        %v5763 = vpop.permute.xlu0 %5762
        %5764 = vrot.lane.b32.xlu0 %v2432, 24
        %v5765 = vpop.permute.xlu0 %5764
        %5766 = vrot.lane.b32.xlu0 %v2434, 24
        %v5767 = vpop.permute.xlu0 %5766
        %5768 = vrot.lane.b32.xlu0 %v2435, 24
        %v5769 = vpop.permute.xlu0 %5768
        %5770 = vrot.lane.b32.xlu0 %v2437, 24
        %v5771 = vpop.permute.xlu0 %5770
        %5772 = vrot.lane.b32.xlu0 %v2438, 24
        %v5773 = vpop.permute.xlu0 %5772
        %5774 = vrot.lane.b32.xlu0 %v2440, 24
        %v5775 = vpop.permute.xlu0 %5774
        %5776 = vrot.lane.b32.xlu0 %v2441, 24
        %v5777 = vpop.permute.xlu0 %5776
        %5778 = vrot.lane.b32.xlu0 %v2443, 24
        %v5779 = vpop.permute.xlu0 %5778
        %5780 = vrot.lane.b32.xlu0 %v2444, 24
        %v5781 = vpop.permute.xlu0 %5780
        %5782 = vrot.lane.b32.xlu0 %v2446, 24
        %v5783 = vpop.permute.xlu0 %5782
        %5784 = vrot.lane.b32.xlu0 %v2447, 24
        %v5785 = vpop.permute.xlu0 %5784
        %5786 = vrot.lane.b32.xlu0 %v2449, 24
        %v5787 = vpop.permute.xlu0 %5786
        %5788 = vrot.lane.b32.xlu0 %v2450, 24
        %v5789 = vpop.permute.xlu0 %5788
        %5790 = vrot.lane.b32.xlu0 %v2452, 24
        %v5791 = vpop.permute.xlu0 %5790
        %5792 = vrot.lane.b32.xlu0 %v2453, 24
        %v5793 = vpop.permute.xlu0 %5792
        %5794 = vrot.lane.b32.xlu0 %v2455, 24
        %v5795 = vpop.permute.xlu0 %5794
        %5796 = vrot.lane.b32.xlu0 %v2456, 24
        %v5797 = vpop.permute.xlu0 %5796
        %5798 = vrot.lane.b32.xlu0 %v2458, 24
        %v5799 = vpop.permute.xlu0 %5798
        %5800 = vrot.lane.b32.xlu0 %v2459, 24
        %v5801 = vpop.permute.xlu0 %5800
        %5802 = vrot.lane.b32.xlu0 %v2461, 24
        %v5803 = vpop.permute.xlu0 %5802
        %5804 = vrot.lane.b32.xlu0 %v2462, 24
        %v5805 = vpop.permute.xlu0 %5804
        %vm5838 = vcmask 212160
        %5839 = vst.msk [vmem:[#allocation5] sm:$0xff] %vm5838, %v5743
        %5840 = vst.msk [vmem:[#allocation5 + $0x8] sm:$0xff] %vm5838, %v5745
        %5841 = vst.msk [vmem:[#allocation5 + $0x10] sm:$0xff] %vm5838, %v5747
        %5842 = vst.msk [vmem:[#allocation5 + $0x18] sm:$0xff] %vm5838, %v5749
        %5843 = vst.msk [vmem:[#allocation5 + $0x20] sm:$0xff] %vm5838, %v5751
        %5844 = vst.msk [vmem:[#allocation5 + $0x28] sm:$0xff] %vm5838, %v5753
        %5845 = vst.msk [vmem:[#allocation5 + $0x30] sm:$0xff] %vm5838, %v5755
        %5846 = vst.msk [vmem:[#allocation5 + $0x38] sm:$0xff] %vm5838, %v5757
        %5847 = vst.msk [vmem:[#allocation5 + $0x40] sm:$0xff] %vm5838, %v5759
        %5848 = vst.msk [vmem:[#allocation5 + $0x48] sm:$0xff] %vm5838, %v5761
        %5849 = vst.msk [vmem:[#allocation5 + $0x50] sm:$0xff] %vm5838, %v5763
        %5850 = vst.msk [vmem:[#allocation5 + $0x58] sm:$0xff] %vm5838, %v5765
        %5851 = vst.msk [vmem:[#allocation5 + $0x60] sm:$0xff] %vm5838, %v5767
        %5852 = vst.msk [vmem:[#allocation5 + $0x68] sm:$0xff] %vm5838, %v5769
        %5853 = vst.msk [vmem:[#allocation5 + $0x70] sm:$0xff] %vm5838, %v5771
        %5854 = vst.msk [vmem:[#allocation5 + $0x78] sm:$0xff] %vm5838, %v5773
        %5855 = vst.msk [vmem:[#allocation5 + $0x80] sm:$0xff] %vm5838, %v5775
        %5856 = vst.msk [vmem:[#allocation5 + $0x88] sm:$0xff] %vm5838, %v5777
        %5857 = vst.msk [vmem:[#allocation5 + $0x90] sm:$0xff] %vm5838, %v5779
        %5858 = vst.msk [vmem:[#allocation5 + $0x98] sm:$0xff] %vm5838, %v5781
        %5859 = vst.msk [vmem:[#allocation5 + $0xa0] sm:$0xff] %vm5838, %v5783
        %5860 = vst.msk [vmem:[#allocation5 + $0xa8] sm:$0xff] %vm5838, %v5785
        %5861 = vst.msk [vmem:[#allocation5 + $0xb0] sm:$0xff] %vm5838, %v5787
        %5862 = vst.msk [vmem:[#allocation5 + $0xb8] sm:$0xff] %vm5838, %v5789
        %5863 = vst.msk [vmem:[#allocation5 + $0xc0] sm:$0xff] %vm5838, %v5791
        %5864 = vst.msk [vmem:[#allocation5 + $0xc8] sm:$0xff] %vm5838, %v5793
        %5865 = vst.msk [vmem:[#allocation5 + $0xd0] sm:$0xff] %vm5838, %v5795
        %5866 = vst.msk [vmem:[#allocation5 + $0xd8] sm:$0xff] %vm5838, %v5797
        %5867 = vst.msk [vmem:[#allocation5 + $0xe0] sm:$0xff] %vm5838, %v5799
        %5868 = vst.msk [vmem:[#allocation5 + $0xe8] sm:$0xff] %vm5838, %v5801
        %5869 = vst.msk [vmem:[#allocation5 + $0xf0] sm:$0xff] %vm5838, %v5803
        %5870 = vst.msk [vmem:[#allocation5 + $0xf8] sm:$0xff] %vm5838, %v5805
        %v5872 = vrot.slane %v2395, 7
        %v5873 = vrot.slane %v5872, 2
        %v5874 = vrot.slane %v2396, 7
        %v5875 = vsel %vm3386, %v5873, %v5874
        %v5876 = vrot.slane %v5874, 2
        %v5877 = vrot.slane %v2397, 7
        %v5878 = vsel %vm3386, %v5876, %v5877
        %v5879 = vrot.slane %v5877, 2
        %v5880 = vrot.slane %v2398, 7
        %v5881 = vsel %vm3386, %v5879, %v5880
        %v5882 = vrot.slane %v5880, 2
        %v5883 = vrot.slane %v2399, 7
        %v5884 = vsel %vm3386, %v5882, %v5883
        %v5885 = vrot.slane %v5883, 2
        %v5886 = vrot.slane %v2400, 7
        %v5887 = vsel %vm3386, %v5885, %v5886
        %v5888 = vrot.slane %v5886, 2
        %v5889 = vrot.slane %v2401, 7
        %v5890 = vsel %vm3386, %v5888, %v5889
        %v5891 = vrot.slane %v5889, 2
        %v5892 = vrot.slane %v2402, 7
        %v5893 = vsel %vm3386, %v5891, %v5892
        %v5894 = vrot.slane %v5892, 2
        %v5895 = vrot.slane %v2403, 7
        %v5896 = vsel %vm3386, %v5894, %v5895
        %v5897 = vcombine.low %v5875, %v5878
        %v5898 = vcombine.low %v5881, %v5884
        %v5900 = vunpack.c.l.s4 1983009808
        %v5901 = vunpack.c.0.s8 %v5900
        %v5902 = vlaneseq
        %v5903 = vshrl.u32 %v5902, 7
        %v5904 = vsub.s32 %v5901, %v5903
        %v5905 = vrot.slane %v5897, %v5904
        %v5907 = vunpack.c.l.s4 1983009808
        %v5908 = vunpack.c.0.s8 %v5907
        %v5909 = vlaneseq
        %v5910 = vshrl.u32 %v5909, 7
        %v5911 = vsub.s32 %v5908, %v5910
        %v5912 = vrot.slane %v5898, %v5911
        %v5913 = vcombine.low %v5905, %v5912
        %v5914 = vcombine.low %v5887, %v5890
        %v5915 = vcombine.low %v5893, %v5896
        %v5917 = vunpack.c.l.s4 1983009808
        %v5918 = vunpack.c.0.s8 %v5917
        %v5919 = vlaneseq
        %v5920 = vshrl.u32 %v5919, 7
        %v5921 = vsub.s32 %v5918, %v5920
        %v5922 = vrot.slane %v5914, %v5921
        %v5924 = vunpack.c.l.s4 1983009808
        %v5925 = vunpack.c.0.s8 %v5924
        %v5926 = vlaneseq
        %v5927 = vshrl.u32 %v5926, 7
        %v5928 = vsub.s32 %v5925, %v5927
        %v5929 = vrot.slane %v5915, %v5928
        %v5930 = vcombine.low %v5922, %v5929
        %5931 = vrot.lane.b32.xlu0 %v3837, 8
        %v5932 = vpop.permute.xlu0 %5931
        %5933 = vrot.lane.b32.xlu0 %v3854, 8
        %v5934 = vpop.permute.xlu0 %5933
        %5935 = vrot.lane.b32.xlu0 %v3871, 8
        %v5936 = vpop.permute.xlu0 %5935
        %5937 = vrot.lane.b32.xlu0 %v3888, 8
        %v5938 = vpop.permute.xlu0 %5937
        %5939 = vrot.lane.b32.xlu0 %v3905, 8
        %v5940 = vpop.permute.xlu0 %5939
        %5941 = vrot.lane.b32.xlu0 %v3922, 8
        %v5942 = vpop.permute.xlu0 %5941
        %5943 = vrot.lane.b32.xlu0 %v3939, 8
        %v5944 = vpop.permute.xlu0 %5943
        %5945 = vrot.lane.b32.xlu0 %v3956, 8
        %v5946 = vpop.permute.xlu0 %5945
        %5947 = vrot.lane.b32.xlu0 %v3973, 8
        %v5948 = vpop.permute.xlu0 %5947
        %5949 = vrot.lane.b32.xlu0 %v3990, 8
        %v5950 = vpop.permute.xlu0 %5949
        %5951 = vrot.lane.b32.xlu0 %v4007, 8
        %v5952 = vpop.permute.xlu0 %5951
        %5953 = vrot.lane.b32.xlu0 %v4024, 8
        %v5954 = vpop.permute.xlu0 %5953
        %5955 = vrot.lane.b32.xlu0 %v4041, 8
        %v5956 = vpop.permute.xlu0 %5955
        %5957 = vrot.lane.b32.xlu0 %v4058, 8
        %v5958 = vpop.permute.xlu0 %5957
        %5959 = vrot.lane.b32.xlu0 %v4075, 8
        %v5960 = vpop.permute.xlu0 %5959
        %5961 = vrot.lane.b32.xlu0 %v4092, 8
        %v5962 = vpop.permute.xlu0 %5961
        %5963 = vrot.lane.b32.xlu0 %v4109, 8
        %v5964 = vpop.permute.xlu0 %5963
        %5965 = vrot.lane.b32.xlu0 %v4126, 8
        %v5966 = vpop.permute.xlu0 %5965
        %5967 = vrot.lane.b32.xlu0 %v4143, 8
        %v5968 = vpop.permute.xlu0 %5967
        %5969 = vrot.lane.b32.xlu0 %v4160, 8
        %v5970 = vpop.permute.xlu0 %5969
        %5971 = vrot.lane.b32.xlu0 %v4177, 8
        %v5972 = vpop.permute.xlu0 %5971
        %5973 = vrot.lane.b32.xlu0 %v4194, 8
        %v5974 = vpop.permute.xlu0 %5973
        %5975 = vrot.lane.b32.xlu0 %v4211, 8
        %v5976 = vpop.permute.xlu0 %5975
        %5977 = vrot.lane.b32.xlu0 %v4228, 8
        %v5978 = vpop.permute.xlu0 %5977
        %5979 = vrot.lane.b32.xlu0 %v4245, 8
        %v5980 = vpop.permute.xlu0 %5979
        %5981 = vrot.lane.b32.xlu0 %v4262, 8
        %v5982 = vpop.permute.xlu0 %5981
        %5983 = vrot.lane.b32.xlu0 %v4279, 8
        %v5984 = vpop.permute.xlu0 %5983
        %5985 = vrot.lane.b32.xlu0 %v4296, 8
        %v5986 = vpop.permute.xlu0 %5985
        %5987 = vrot.lane.b32.xlu0 %v4313, 8
        %v5988 = vpop.permute.xlu0 %5987
        %5989 = vrot.lane.b32.xlu0 %v4330, 8
        %v5990 = vpop.permute.xlu0 %5989
        %5991 = vrot.lane.b32.xlu0 %v5913, 8
        %v5992 = vpop.permute.xlu0 %5991
        %5993 = vrot.lane.b32.xlu0 %v5930, 8
        %v5994 = vpop.permute.xlu0 %5993
        %vm6027 = vcmask 80960
        %6028 = vst.msk [vmem:[#allocation5] sm:$0xff] %vm6027, %v5932
        %6029 = vst.msk [vmem:[#allocation5 + $0x8] sm:$0xff] %vm6027, %v5934
        %6030 = vst.msk [vmem:[#allocation5 + $0x10] sm:$0xff] %vm6027, %v5936
        %6031 = vst.msk [vmem:[#allocation5 + $0x18] sm:$0xff] %vm6027, %v5938
        %6032 = vst.msk [vmem:[#allocation5 + $0x20] sm:$0xff] %vm6027, %v5940
        %6033 = vst.msk [vmem:[#allocation5 + $0x28] sm:$0xff] %vm6027, %v5942
        %6034 = vst.msk [vmem:[#allocation5 + $0x30] sm:$0xff] %vm6027, %v5944
        %6035 = vst.msk [vmem:[#allocation5 + $0x38] sm:$0xff] %vm6027, %v5946
        %6036 = vst.msk [vmem:[#allocation5 + $0x40] sm:$0xff] %vm6027, %v5948
        %6037 = vst.msk [vmem:[#allocation5 + $0x48] sm:$0xff] %vm6027, %v5950
        %6038 = vst.msk [vmem:[#allocation5 + $0x50] sm:$0xff] %vm6027, %v5952
        %6039 = vst.msk [vmem:[#allocation5 + $0x58] sm:$0xff] %vm6027, %v5954
        %6040 = vst.msk [vmem:[#allocation5 + $0x60] sm:$0xff] %vm6027, %v5956
        %6041 = vst.msk [vmem:[#allocation5 + $0x68] sm:$0xff] %vm6027, %v5958
        %6042 = vst.msk [vmem:[#allocation5 + $0x70] sm:$0xff] %vm6027, %v5960
        %6043 = vst.msk [vmem:[#allocation5 + $0x78] sm:$0xff] %vm6027, %v5962
        %6044 = vst.msk [vmem:[#allocation5 + $0x80] sm:$0xff] %vm6027, %v5964
        %6045 = vst.msk [vmem:[#allocation5 + $0x88] sm:$0xff] %vm6027, %v5966
        %6046 = vst.msk [vmem:[#allocation5 + $0x90] sm:$0xff] %vm6027, %v5968
        %6047 = vst.msk [vmem:[#allocation5 + $0x98] sm:$0xff] %vm6027, %v5970
        %6048 = vst.msk [vmem:[#allocation5 + $0xa0] sm:$0xff] %vm6027, %v5972
        %6049 = vst.msk [vmem:[#allocation5 + $0xa8] sm:$0xff] %vm6027, %v5974
        %6050 = vst.msk [vmem:[#allocation5 + $0xb0] sm:$0xff] %vm6027, %v5976
        %6051 = vst.msk [vmem:[#allocation5 + $0xb8] sm:$0xff] %vm6027, %v5978
        %6052 = vst.msk [vmem:[#allocation5 + $0xc0] sm:$0xff] %vm6027, %v5980
        %6053 = vst.msk [vmem:[#allocation5 + $0xc8] sm:$0xff] %vm6027, %v5982
        %6054 = vst.msk [vmem:[#allocation5 + $0xd0] sm:$0xff] %vm6027, %v5984
        %6055 = vst.msk [vmem:[#allocation5 + $0xd8] sm:$0xff] %vm6027, %v5986
        %6056 = vst.msk [vmem:[#allocation5 + $0xe0] sm:$0xff] %vm6027, %v5988
        %6057 = vst.msk [vmem:[#allocation5 + $0xe8] sm:$0xff] %vm6027, %v5990
        %6058 = vst.msk [vmem:[#allocation5 + $0xf0] sm:$0xff] %vm6027, %v5992
        %6059 = vst.msk [vmem:[#allocation5 + $0xf8] sm:$0xff] %vm6027, %v5994
        %v6061 = vrot.slane %v2461, 1
        %v6062 = vrot.slane %v2462, 1
        %v6063 = vsel %vm4476, %v6061, %v6062
        %v6064 = vrot.slane %v2463, 1
        %v6065 = vsel %vm4476, %v6062, %v6064
        %6066 = vrot.lane.b32.xlu0 %v4484, 26
        %v6067 = vpop.permute.xlu0 %6066
        %6068 = vrot.lane.b32.xlu0 %v4486, 26
        %v6069 = vpop.permute.xlu0 %6068
        %6070 = vrot.lane.b32.xlu0 %v4489, 26
        %v6071 = vpop.permute.xlu0 %6070
        %6072 = vrot.lane.b32.xlu0 %v4491, 26
        %v6073 = vpop.permute.xlu0 %6072
        %6074 = vrot.lane.b32.xlu0 %v4494, 26
        %v6075 = vpop.permute.xlu0 %6074
        %6076 = vrot.lane.b32.xlu0 %v4496, 26
        %v6077 = vpop.permute.xlu0 %6076
        %6078 = vrot.lane.b32.xlu0 %v4499, 26
        %v6079 = vpop.permute.xlu0 %6078
        %6080 = vrot.lane.b32.xlu0 %v4501, 26
        %v6081 = vpop.permute.xlu0 %6080
        %6082 = vrot.lane.b32.xlu0 %v4504, 26
        %v6083 = vpop.permute.xlu0 %6082
        %6084 = vrot.lane.b32.xlu0 %v4506, 26
        %v6085 = vpop.permute.xlu0 %6084
        %6086 = vrot.lane.b32.xlu0 %v4509, 26
        %v6087 = vpop.permute.xlu0 %6086
        %6088 = vrot.lane.b32.xlu0 %v4511, 26
        %v6089 = vpop.permute.xlu0 %6088
        %6090 = vrot.lane.b32.xlu0 %v4514, 26
        %v6091 = vpop.permute.xlu0 %6090
        %6092 = vrot.lane.b32.xlu0 %v4516, 26
        %v6093 = vpop.permute.xlu0 %6092
        %6094 = vrot.lane.b32.xlu0 %v4519, 26
        %v6095 = vpop.permute.xlu0 %6094
        %6096 = vrot.lane.b32.xlu0 %v4521, 26
        %v6097 = vpop.permute.xlu0 %6096
        %6098 = vrot.lane.b32.xlu0 %v4524, 26
        %v6099 = vpop.permute.xlu0 %6098
        %6100 = vrot.lane.b32.xlu0 %v4526, 26
        %v6101 = vpop.permute.xlu0 %6100
        %6102 = vrot.lane.b32.xlu0 %v4529, 26
        %v6103 = vpop.permute.xlu0 %6102
        %6104 = vrot.lane.b32.xlu0 %v4531, 26
        %v6105 = vpop.permute.xlu0 %6104
        %6106 = vrot.lane.b32.xlu0 %v4534, 26
        %v6107 = vpop.permute.xlu0 %6106
        %6108 = vrot.lane.b32.xlu0 %v4536, 26
        %v6109 = vpop.permute.xlu0 %6108
        %6110 = vrot.lane.b32.xlu0 %v4539, 26
        %v6111 = vpop.permute.xlu0 %6110
        %6112 = vrot.lane.b32.xlu0 %v4541, 26
        %v6113 = vpop.permute.xlu0 %6112
        %6114 = vrot.lane.b32.xlu0 %v4544, 26
        %v6115 = vpop.permute.xlu0 %6114
        %6116 = vrot.lane.b32.xlu0 %v4546, 26
        %v6117 = vpop.permute.xlu0 %6116
        %6118 = vrot.lane.b32.xlu0 %v4549, 26
        %v6119 = vpop.permute.xlu0 %6118
        %6120 = vrot.lane.b32.xlu0 %v4551, 26
        %v6121 = vpop.permute.xlu0 %6120
        %6122 = vrot.lane.b32.xlu0 %v4554, 26
        %v6123 = vpop.permute.xlu0 %6122
        %6124 = vrot.lane.b32.xlu0 %v4556, 26
        %v6125 = vpop.permute.xlu0 %6124
        %6126 = vrot.lane.b32.xlu0 %v6063, 26
        %v6127 = vpop.permute.xlu0 %6126
        %6128 = vrot.lane.b32.xlu0 %v6065, 26
        %v6129 = vpop.permute.xlu0 %6128
        %vm6162 = vcmask 228560
        %6163 = vst.msk [vmem:[#allocation5] sm:$0xff] %vm6162, %v6067
        %6164 = vst.msk [vmem:[#allocation5 + $0x8] sm:$0xff] %vm6162, %v6069
        %6165 = vst.msk [vmem:[#allocation5 + $0x10] sm:$0xff] %vm6162, %v6071
        %6166 = vst.msk [vmem:[#allocation5 + $0x18] sm:$0xff] %vm6162, %v6073
        %6167 = vst.msk [vmem:[#allocation5 + $0x20] sm:$0xff] %vm6162, %v6075
        %6168 = vst.msk [vmem:[#allocation5 + $0x28] sm:$0xff] %vm6162, %v6077
        %6169 = vst.msk [vmem:[#allocation5 + $0x30] sm:$0xff] %vm6162, %v6079
        %6170 = vst.msk [vmem:[#allocation5 + $0x38] sm:$0xff] %vm6162, %v6081
        %6171 = vst.msk [vmem:[#allocation5 + $0x40] sm:$0xff] %vm6162, %v6083
        %6172 = vst.msk [vmem:[#allocation5 + $0x48] sm:$0xff] %vm6162, %v6085
        %6173 = vst.msk [vmem:[#allocation5 + $0x50] sm:$0xff] %vm6162, %v6087
        %6174 = vst.msk [vmem:[#allocation5 + $0x58] sm:$0xff] %vm6162, %v6089
        %6175 = vst.msk [vmem:[#allocation5 + $0x60] sm:$0xff] %vm6162, %v6091
        %6176 = vst.msk [vmem:[#allocation5 + $0x68] sm:$0xff] %vm6162, %v6093
        %6177 = vst.msk [vmem:[#allocation5 + $0x70] sm:$0xff] %vm6162, %v6095
        %6178 = vst.msk [vmem:[#allocation5 + $0x78] sm:$0xff] %vm6162, %v6097
        %6179 = vst.msk [vmem:[#allocation5 + $0x80] sm:$0xff] %vm6162, %v6099
        %6180 = vst.msk [vmem:[#allocation5 + $0x88] sm:$0xff] %vm6162, %v6101
        %6181 = vst.msk [vmem:[#allocation5 + $0x90] sm:$0xff] %vm6162, %v6103
        %6182 = vst.msk [vmem:[#allocation5 + $0x98] sm:$0xff] %vm6162, %v6105
        %6183 = vst.msk [vmem:[#allocation5 + $0xa0] sm:$0xff] %vm6162, %v6107
        %6184 = vst.msk [vmem:[#allocation5 + $0xa8] sm:$0xff] %vm6162, %v6109
        %6185 = vst.msk [vmem:[#allocation5 + $0xb0] sm:$0xff] %vm6162, %v6111
        %6186 = vst.msk [vmem:[#allocation5 + $0xb8] sm:$0xff] %vm6162, %v6113
        %6187 = vst.msk [vmem:[#allocation5 + $0xc0] sm:$0xff] %vm6162, %v6115
        %6188 = vst.msk [vmem:[#allocation5 + $0xc8] sm:$0xff] %vm6162, %v6117
        %6189 = vst.msk [vmem:[#allocation5 + $0xd0] sm:$0xff] %vm6162, %v6119
        %6190 = vst.msk [vmem:[#allocation5 + $0xd8] sm:$0xff] %vm6162, %v6121
        %6191 = vst.msk [vmem:[#allocation5 + $0xe0] sm:$0xff] %vm6162, %v6123
        %6192 = vst.msk [vmem:[#allocation5 + $0xe8] sm:$0xff] %vm6162, %v6125
        %6193 = vst.msk [vmem:[#allocation5 + $0xf0] sm:$0xff] %vm6162, %v6127
        %6194 = vst.msk [vmem:[#allocation5 + $0xf8] sm:$0xff] %vm6162, %v6129
        %v6195 = vcombine.low %v2396, %v2397
        %v6196 = vcombine.low %v2398, %v2399
        %v6198 = vunpack.c.l.s4 1983009808
        %v6199 = vunpack.c.0.s8 %v6198
        %v6200 = vlaneseq
        %v6201 = vshrl.u32 %v6200, 7
        %v6202 = vsub.s32 %v6199, %v6201
        %v6203 = vrot.slane %v6195, %v6202
        %v6205 = vunpack.c.l.s4 1983009808
        %v6206 = vunpack.c.0.s8 %v6205
        %v6207 = vlaneseq
        %v6208 = vshrl.u32 %v6207, 7
        %v6209 = vsub.s32 %v6206, %v6208
        %v6210 = vrot.slane %v6196, %v6209
        %v6211 = vcombine.low %v6203, %v6210
        %v6212 = vcombine.low %v2400, %v2401
        %v6213 = vcombine.low %v2402, %v2403
        %v6215 = vunpack.c.l.s4 1983009808
        %v6216 = vunpack.c.0.s8 %v6215
        %v6217 = vlaneseq
        %v6218 = vshrl.u32 %v6217, 7
        %v6219 = vsub.s32 %v6216, %v6218
        %v6220 = vrot.slane %v6212, %v6219
        %v6222 = vunpack.c.l.s4 1983009808
        %v6223 = vunpack.c.0.s8 %v6222
        %v6224 = vlaneseq
        %v6225 = vshrl.u32 %v6224, 7
        %v6226 = vsub.s32 %v6223, %v6225
        %v6227 = vrot.slane %v6213, %v6226
        %v6228 = vcombine.low %v6220, %v6227
        %6229 = vrot.lane.b32.xlu0 %v4736, 10
        %v6230 = vpop.permute.xlu0 %6229
        %6231 = vrot.lane.b32.xlu0 %v4753, 10
        %v6232 = vpop.permute.xlu0 %6231
        %6233 = vrot.lane.b32.xlu0 %v4770, 10
        %v6234 = vpop.permute.xlu0 %6233
        %6235 = vrot.lane.b32.xlu0 %v4787, 10
        %v6236 = vpop.permute.xlu0 %6235
        %6237 = vrot.lane.b32.xlu0 %v4804, 10
        %v6238 = vpop.permute.xlu0 %6237
        %6239 = vrot.lane.b32.xlu0 %v4821, 10
        %v6240 = vpop.permute.xlu0 %6239
        %6241 = vrot.lane.b32.xlu0 %v4838, 10
        %v6242 = vpop.permute.xlu0 %6241
        %6243 = vrot.lane.b32.xlu0 %v4855, 10
        %v6244 = vpop.permute.xlu0 %6243
        %6245 = vrot.lane.b32.xlu0 %v4872, 10
        %v6246 = vpop.permute.xlu0 %6245
        %6247 = vrot.lane.b32.xlu0 %v4889, 10
        %v6248 = vpop.permute.xlu0 %6247
        %6249 = vrot.lane.b32.xlu0 %v4906, 10
        %v6250 = vpop.permute.xlu0 %6249
        %6251 = vrot.lane.b32.xlu0 %v4923, 10
        %v6252 = vpop.permute.xlu0 %6251
        %6253 = vrot.lane.b32.xlu0 %v4940, 10
        %v6254 = vpop.permute.xlu0 %6253
        %6255 = vrot.lane.b32.xlu0 %v4957, 10
        %v6256 = vpop.permute.xlu0 %6255
        %6257 = vrot.lane.b32.xlu0 %v4974, 10
        %v6258 = vpop.permute.xlu0 %6257
        %6259 = vrot.lane.b32.xlu0 %v4991, 10
        %v6260 = vpop.permute.xlu0 %6259
        %6261 = vrot.lane.b32.xlu0 %v5008, 10
        %v6262 = vpop.permute.xlu0 %6261
        %6263 = vrot.lane.b32.xlu0 %v5025, 10
        %v6264 = vpop.permute.xlu0 %6263
        %6265 = vrot.lane.b32.xlu0 %v5042, 10
        %v6266 = vpop.permute.xlu0 %6265
        %6267 = vrot.lane.b32.xlu0 %v5059, 10
        %v6268 = vpop.permute.xlu0 %6267
        %6269 = vrot.lane.b32.xlu0 %v5076, 10
        %v6270 = vpop.permute.xlu0 %6269
        %6271 = vrot.lane.b32.xlu0 %v5093, 10
        %v6272 = vpop.permute.xlu0 %6271
        %6273 = vrot.lane.b32.xlu0 %v5110, 10
        %v6274 = vpop.permute.xlu0 %6273
        %6275 = vrot.lane.b32.xlu0 %v5127, 10
        %v6276 = vpop.permute.xlu0 %6275
        %6277 = vrot.lane.b32.xlu0 %v5144, 10
        %v6278 = vpop.permute.xlu0 %6277
        %6279 = vrot.lane.b32.xlu0 %v5161, 10
        %v6280 = vpop.permute.xlu0 %6279
        %6281 = vrot.lane.b32.xlu0 %v5178, 10
        %v6282 = vpop.permute.xlu0 %6281
        %6283 = vrot.lane.b32.xlu0 %v5195, 10
        %v6284 = vpop.permute.xlu0 %6283
        %6285 = vrot.lane.b32.xlu0 %v5212, 10
        %v6286 = vpop.permute.xlu0 %6285
        %6287 = vrot.lane.b32.xlu0 %v5229, 10
        %v6288 = vpop.permute.xlu0 %6287
        %6289 = vrot.lane.b32.xlu0 %v6211, 10
        %v6290 = vpop.permute.xlu0 %6289
        %6291 = vrot.lane.b32.xlu0 %v6228, 10
        %v6292 = vpop.permute.xlu0 %6291
        %vm6325 = vcmask 97360
        %6326 = vst.msk [vmem:[#allocation5] sm:$0xff] %vm6325, %v6230
        %6327 = vst.msk [vmem:[#allocation5 + $0x8] sm:$0xff] %vm6325, %v6232
        %6328 = vst.msk [vmem:[#allocation5 + $0x10] sm:$0xff] %vm6325, %v6234
        %6329 = vst.msk [vmem:[#allocation5 + $0x18] sm:$0xff] %vm6325, %v6236
        %6330 = vst.msk [vmem:[#allocation5 + $0x20] sm:$0xff] %vm6325, %v6238
        %6331 = vst.msk [vmem:[#allocation5 + $0x28] sm:$0xff] %vm6325, %v6240
        %6332 = vst.msk [vmem:[#allocation5 + $0x30] sm:$0xff] %vm6325, %v6242
        %6333 = vst.msk [vmem:[#allocation5 + $0x38] sm:$0xff] %vm6325, %v6244
        %6334 = vst.msk [vmem:[#allocation5 + $0x40] sm:$0xff] %vm6325, %v6246
        %6335 = vst.msk [vmem:[#allocation5 + $0x48] sm:$0xff] %vm6325, %v6248
        %6336 = vst.msk [vmem:[#allocation5 + $0x50] sm:$0xff] %vm6325, %v6250
        %6337 = vst.msk [vmem:[#allocation5 + $0x58] sm:$0xff] %vm6325, %v6252
        %6338 = vst.msk [vmem:[#allocation5 + $0x60] sm:$0xff] %vm6325, %v6254
        %6339 = vst.msk [vmem:[#allocation5 + $0x68] sm:$0xff] %vm6325, %v6256
        %6340 = vst.msk [vmem:[#allocation5 + $0x70] sm:$0xff] %vm6325, %v6258
        %6341 = vst.msk [vmem:[#allocation5 + $0x78] sm:$0xff] %vm6325, %v6260
        %6342 = vst.msk [vmem:[#allocation5 + $0x80] sm:$0xff] %vm6325, %v6262
        %6343 = vst.msk [vmem:[#allocation5 + $0x88] sm:$0xff] %vm6325, %v6264
        %6344 = vst.msk [vmem:[#allocation5 + $0x90] sm:$0xff] %vm6325, %v6266
        %6345 = vst.msk [vmem:[#allocation5 + $0x98] sm:$0xff] %vm6325, %v6268
        %6346 = vst.msk [vmem:[#allocation5 + $0xa0] sm:$0xff] %vm6325, %v6270
        %6347 = vst.msk [vmem:[#allocation5 + $0xa8] sm:$0xff] %vm6325, %v6272
        %6348 = vst.msk [vmem:[#allocation5 + $0xb0] sm:$0xff] %vm6325, %v6274
        %6349 = vst.msk [vmem:[#allocation5 + $0xb8] sm:$0xff] %vm6325, %v6276
        %6350 = vst.msk [vmem:[#allocation5 + $0xc0] sm:$0xff] %vm6325, %v6278
        %6351 = vst.msk [vmem:[#allocation5 + $0xc8] sm:$0xff] %vm6325, %v6280
        %6352 = vst.msk [vmem:[#allocation5 + $0xd0] sm:$0xff] %vm6325, %v6282
        %6353 = vst.msk [vmem:[#allocation5 + $0xd8] sm:$0xff] %vm6325, %v6284
        %6354 = vst.msk [vmem:[#allocation5 + $0xe0] sm:$0xff] %vm6325, %v6286
        %6355 = vst.msk [vmem:[#allocation5 + $0xe8] sm:$0xff] %vm6325, %v6288
        %6356 = vst.msk [vmem:[#allocation5 + $0xf0] sm:$0xff] %vm6325, %v6290
        %6357 = vst.msk [vmem:[#allocation5 + $0xf8] sm:$0xff] %vm6325, %v6292
        %v6358 = vrot.slane %v2461, 2
        %v6359 = vrot.slane %v2462, 2
        %v6360 = vsel %vm5359, %v6358, %v6359
        %v6361 = vrot.slane %v2463, 2
        %v6362 = vsel %vm5359, %v6359, %v6361
        %6363 = vrot.lane.b32.xlu0 %v5367, 28
        %v6364 = vpop.permute.xlu0 %6363
        %6365 = vrot.lane.b32.xlu0 %v5369, 28
        %v6366 = vpop.permute.xlu0 %6365
        %6367 = vrot.lane.b32.xlu0 %v5372, 28
        %v6368 = vpop.permute.xlu0 %6367
        %6369 = vrot.lane.b32.xlu0 %v5374, 28
        %v6370 = vpop.permute.xlu0 %6369
        %6371 = vrot.lane.b32.xlu0 %v5377, 28
        %v6372 = vpop.permute.xlu0 %6371
        %6373 = vrot.lane.b32.xlu0 %v5379, 28
        %v6374 = vpop.permute.xlu0 %6373
        %6375 = vrot.lane.b32.xlu0 %v5382, 28
        %v6376 = vpop.permute.xlu0 %6375
        %6377 = vrot.lane.b32.xlu0 %v5384, 28
        %v6378 = vpop.permute.xlu0 %6377
        %6379 = vrot.lane.b32.xlu0 %v5387, 28
        %v6380 = vpop.permute.xlu0 %6379
        %6381 = vrot.lane.b32.xlu0 %v5389, 28
        %v6382 = vpop.permute.xlu0 %6381
        %6383 = vrot.lane.b32.xlu0 %v5392, 28
        %v6384 = vpop.permute.xlu0 %6383
        %6385 = vrot.lane.b32.xlu0 %v5394, 28
        %v6386 = vpop.permute.xlu0 %6385
        %6387 = vrot.lane.b32.xlu0 %v5397, 28
        %v6388 = vpop.permute.xlu0 %6387
        %6389 = vrot.lane.b32.xlu0 %v5399, 28
        %v6390 = vpop.permute.xlu0 %6389
        %6391 = vrot.lane.b32.xlu0 %v5402, 28
        %v6392 = vpop.permute.xlu0 %6391
        %6393 = vrot.lane.b32.xlu0 %v5404, 28
        %v6394 = vpop.permute.xlu0 %6393
        %6395 = vrot.lane.b32.xlu0 %v5407, 28
        %v6396 = vpop.permute.xlu0 %6395
        %6397 = vrot.lane.b32.xlu0 %v5409, 28
        %v6398 = vpop.permute.xlu0 %6397
        %6399 = vrot.lane.b32.xlu0 %v5412, 28
        %v6400 = vpop.permute.xlu0 %6399
        %6401 = vrot.lane.b32.xlu0 %v5414, 28
        %v6402 = vpop.permute.xlu0 %6401
        %6403 = vrot.lane.b32.xlu0 %v5417, 28
        %v6404 = vpop.permute.xlu0 %6403
        %6405 = vrot.lane.b32.xlu0 %v5419, 28
        %v6406 = vpop.permute.xlu0 %6405
        %6407 = vrot.lane.b32.xlu0 %v5422, 28
        %v6408 = vpop.permute.xlu0 %6407
        %6409 = vrot.lane.b32.xlu0 %v5424, 28
        %v6410 = vpop.permute.xlu0 %6409
        %6411 = vrot.lane.b32.xlu0 %v5427, 28
        %v6412 = vpop.permute.xlu0 %6411
        %6413 = vrot.lane.b32.xlu0 %v5429, 28
        %v6414 = vpop.permute.xlu0 %6413
        %6415 = vrot.lane.b32.xlu0 %v5432, 28
        %v6416 = vpop.permute.xlu0 %6415
        %6417 = vrot.lane.b32.xlu0 %v5434, 28
        %v6418 = vpop.permute.xlu0 %6417
        %6419 = vrot.lane.b32.xlu0 %v5437, 28
        %v6420 = vpop.permute.xlu0 %6419
        %6421 = vrot.lane.b32.xlu0 %v5439, 28
        %v6422 = vpop.permute.xlu0 %6421
        %6423 = vrot.lane.b32.xlu0 %v6360, 28
        %v6424 = vpop.permute.xlu0 %6423
        %6425 = vrot.lane.b32.xlu0 %v6362, 28
        %v6426 = vpop.permute.xlu0 %6425
        %vm6459 = vcmask 244960
        %6460 = vst.msk [vmem:[#allocation5] sm:$0xff] %vm6459, %v6364
        %6461 = vst.msk [vmem:[#allocation5 + $0x8] sm:$0xff] %vm6459, %v6366
        %6462 = vst.msk [vmem:[#allocation5 + $0x10] sm:$0xff] %vm6459, %v6368
        %6463 = vst.msk [vmem:[#allocation5 + $0x18] sm:$0xff] %vm6459, %v6370
        %6464 = vst.msk [vmem:[#allocation5 + $0x20] sm:$0xff] %vm6459, %v6372
        %6465 = vst.msk [vmem:[#allocation5 + $0x28] sm:$0xff] %vm6459, %v6374
        %6466 = vst.msk [vmem:[#allocation5 + $0x30] sm:$0xff] %vm6459, %v6376
        %6467 = vst.msk [vmem:[#allocation5 + $0x38] sm:$0xff] %vm6459, %v6378
        %6468 = vst.msk [vmem:[#allocation5 + $0x40] sm:$0xff] %vm6459, %v6380
        %6469 = vst.msk [vmem:[#allocation5 + $0x48] sm:$0xff] %vm6459, %v6382
        %6470 = vst.msk [vmem:[#allocation5 + $0x50] sm:$0xff] %vm6459, %v6384
        %6471 = vst.msk [vmem:[#allocation5 + $0x58] sm:$0xff] %vm6459, %v6386
        %6472 = vst.msk [vmem:[#allocation5 + $0x60] sm:$0xff] %vm6459, %v6388
        %6473 = vst.msk [vmem:[#allocation5 + $0x68] sm:$0xff] %vm6459, %v6390
        %6474 = vst.msk [vmem:[#allocation5 + $0x70] sm:$0xff] %vm6459, %v6392
        %6475 = vst.msk [vmem:[#allocation5 + $0x78] sm:$0xff] %vm6459, %v6394
        %6476 = vst.msk [vmem:[#allocation5 + $0x80] sm:$0xff] %vm6459, %v6396
        %6477 = vst.msk [vmem:[#allocation5 + $0x88] sm:$0xff] %vm6459, %v6398
        %6478 = vst.msk [vmem:[#allocation5 + $0x90] sm:$0xff] %vm6459, %v6400
        %6479 = vst.msk [vmem:[#allocation5 + $0x98] sm:$0xff] %vm6459, %v6402
        %6480 = vst.msk [vmem:[#allocation5 + $0xa0] sm:$0xff] %vm6459, %v6404
        %6481 = vst.msk [vmem:[#allocation5 + $0xa8] sm:$0xff] %vm6459, %v6406
        %6482 = vst.msk [vmem:[#allocation5 + $0xb0] sm:$0xff] %vm6459, %v6408
        %6483 = vst.msk [vmem:[#allocation5 + $0xb8] sm:$0xff] %vm6459, %v6410
        %6484 = vst.msk [vmem:[#allocation5 + $0xc0] sm:$0xff] %vm6459, %v6412
        %6485 = vst.msk [vmem:[#allocation5 + $0xc8] sm:$0xff] %vm6459, %v6414
        %6486 = vst.msk [vmem:[#allocation5 + $0xd0] sm:$0xff] %vm6459, %v6416
        %6487 = vst.msk [vmem:[#allocation5 + $0xd8] sm:$0xff] %vm6459, %v6418
        %6488 = vst.msk [vmem:[#allocation5 + $0xe0] sm:$0xff] %vm6459, %v6420
        %6489 = vst.msk [vmem:[#allocation5 + $0xe8] sm:$0xff] %vm6459, %v6422
        %6490 = vst.msk [vmem:[#allocation5 + $0xf0] sm:$0xff] %vm6459, %v6424
        %6491 = vst.msk [vmem:[#allocation5 + $0xf8] sm:$0xff] %vm6459, %v6426
        %v6500 = vcombine.low %v2404, %v2405
        %v6501 = vcombine.low %v2406, %v2407
        %v6503 = vunpack.c.l.s4 1983009808
        %v6504 = vunpack.c.0.s8 %v6503
        %v6505 = vlaneseq
        %v6506 = vshrl.u32 %v6505, 7
        %v6507 = vsub.s32 %v6504, %v6506
        %v6508 = vrot.slane %v6500, %v6507
        %v6510 = vunpack.c.l.s4 1983009808
        %v6511 = vunpack.c.0.s8 %v6510
        %v6512 = vlaneseq
        %v6513 = vshrl.u32 %v6512, 7
        %v6514 = vsub.s32 %v6511, %v6513
        %v6515 = vrot.slane %v6501, %v6514
        %v6516 = vcombine.low %v6508, %v6515
        %v6517 = vcombine.low %v2408, %v2409
        %v6518 = vcombine.low %v2410, %v2411
        %v6520 = vunpack.c.l.s4 1983009808
        %v6521 = vunpack.c.0.s8 %v6520
        %v6522 = vlaneseq
        %v6523 = vshrl.u32 %v6522, 7
        %v6524 = vsub.s32 %v6521, %v6523
        %v6525 = vrot.slane %v6517, %v6524
        %v6527 = vunpack.c.l.s4 1983009808
        %v6528 = vunpack.c.0.s8 %v6527
        %v6529 = vlaneseq
        %v6530 = vshrl.u32 %v6529, 7
        %v6531 = vsub.s32 %v6528, %v6530
        %v6532 = vrot.slane %v6518, %v6531
        %v6533 = vcombine.low %v6525, %v6532
        %6534 = vrot.lane.b32.xlu0 %v2679, 12
        %v6535 = vpop.permute.xlu0 %6534
        %6536 = vrot.lane.b32.xlu0 %v2696, 12
        %v6537 = vpop.permute.xlu0 %6536
        %6538 = vrot.lane.b32.xlu0 %v2713, 12
        %v6539 = vpop.permute.xlu0 %6538
        %6540 = vrot.lane.b32.xlu0 %v2730, 12
        %v6541 = vpop.permute.xlu0 %6540
        %6542 = vrot.lane.b32.xlu0 %v2747, 12
        %v6543 = vpop.permute.xlu0 %6542
        %6544 = vrot.lane.b32.xlu0 %v2764, 12
        %v6545 = vpop.permute.xlu0 %6544
        %6546 = vrot.lane.b32.xlu0 %v2781, 12
        %v6547 = vpop.permute.xlu0 %6546
        %6548 = vrot.lane.b32.xlu0 %v2798, 12
        %v6549 = vpop.permute.xlu0 %6548
        %6550 = vrot.lane.b32.xlu0 %v2815, 12
        %v6551 = vpop.permute.xlu0 %6550
        %6552 = vrot.lane.b32.xlu0 %v2832, 12
        %v6553 = vpop.permute.xlu0 %6552
        %6554 = vrot.lane.b32.xlu0 %v2849, 12
        %v6555 = vpop.permute.xlu0 %6554
        %6556 = vrot.lane.b32.xlu0 %v2866, 12
        %v6557 = vpop.permute.xlu0 %6556
        %6558 = vrot.lane.b32.xlu0 %v2883, 12
        %v6559 = vpop.permute.xlu0 %6558
        %6560 = vrot.lane.b32.xlu0 %v2900, 12
        %v6561 = vpop.permute.xlu0 %6560
        %6562 = vrot.lane.b32.xlu0 %v2917, 12
        %v6563 = vpop.permute.xlu0 %6562
        %6564 = vrot.lane.b32.xlu0 %v2934, 12
        %v6565 = vpop.permute.xlu0 %6564
        %6566 = vrot.lane.b32.xlu0 %v2951, 12
        %v6567 = vpop.permute.xlu0 %6566
        %6568 = vrot.lane.b32.xlu0 %v2968, 12
        %v6569 = vpop.permute.xlu0 %6568
        %6570 = vrot.lane.b32.xlu0 %v2985, 12
        %v6571 = vpop.permute.xlu0 %6570
        %6572 = vrot.lane.b32.xlu0 %v3002, 12
        %v6573 = vpop.permute.xlu0 %6572
        %6574 = vrot.lane.b32.xlu0 %v3019, 12
        %v6575 = vpop.permute.xlu0 %6574
        %6576 = vrot.lane.b32.xlu0 %v3036, 12
        %v6577 = vpop.permute.xlu0 %6576
        %6578 = vrot.lane.b32.xlu0 %v3053, 12
        %v6579 = vpop.permute.xlu0 %6578
        %6580 = vrot.lane.b32.xlu0 %v3070, 12
        %v6581 = vpop.permute.xlu0 %6580
        %6582 = vrot.lane.b32.xlu0 %v3087, 12
        %v6583 = vpop.permute.xlu0 %6582
        %6584 = vrot.lane.b32.xlu0 %v3104, 12
        %v6585 = vpop.permute.xlu0 %6584
        %6586 = vrot.lane.b32.xlu0 %v3121, 12
        %v6587 = vpop.permute.xlu0 %6586
        %6588 = vrot.lane.b32.xlu0 %v3138, 12
        %v6589 = vpop.permute.xlu0 %6588
        %6590 = vrot.lane.b32.xlu0 %v5593, 12
        %v6591 = vpop.permute.xlu0 %6590
        %6592 = vrot.lane.b32.xlu0 %v5610, 12
        %v6593 = vpop.permute.xlu0 %6592
        %6594 = vrot.lane.b32.xlu0 %v6516, 12
        %v6595 = vpop.permute.xlu0 %6594
        %6596 = vrot.lane.b32.xlu0 %v6533, 12
        %v6597 = vpop.permute.xlu0 %6596
        %vm6630 = vcmask 113760
        %6631 = vst.msk [vmem:[#allocation5] sm:$0xff] %vm6630, %v6535
        %6632 = vst.msk [vmem:[#allocation5 + $0x8] sm:$0xff] %vm6630, %v6537
        %6633 = vst.msk [vmem:[#allocation5 + $0x10] sm:$0xff] %vm6630, %v6539
        %6634 = vst.msk [vmem:[#allocation5 + $0x18] sm:$0xff] %vm6630, %v6541
        %6635 = vst.msk [vmem:[#allocation5 + $0x20] sm:$0xff] %vm6630, %v6543
        %6636 = vst.msk [vmem:[#allocation5 + $0x28] sm:$0xff] %vm6630, %v6545
        %6637 = vst.msk [vmem:[#allocation5 + $0x30] sm:$0xff] %vm6630, %v6547
        %6638 = vst.msk [vmem:[#allocation5 + $0x38] sm:$0xff] %vm6630, %v6549
        %6639 = vst.msk [vmem:[#allocation5 + $0x40] sm:$0xff] %vm6630, %v6551
        %6640 = vst.msk [vmem:[#allocation5 + $0x48] sm:$0xff] %vm6630, %v6553
        %6641 = vst.msk [vmem:[#allocation5 + $0x50] sm:$0xff] %vm6630, %v6555
        %6642 = vst.msk [vmem:[#allocation5 + $0x58] sm:$0xff] %vm6630, %v6557
        %6643 = vst.msk [vmem:[#allocation5 + $0x60] sm:$0xff] %vm6630, %v6559
        %6644 = vst.msk [vmem:[#allocation5 + $0x68] sm:$0xff] %vm6630, %v6561
        %6645 = vst.msk [vmem:[#allocation5 + $0x70] sm:$0xff] %vm6630, %v6563
        %6646 = vst.msk [vmem:[#allocation5 + $0x78] sm:$0xff] %vm6630, %v6565
        %6647 = vst.msk [vmem:[#allocation5 + $0x80] sm:$0xff] %vm6630, %v6567
        %6648 = vst.msk [vmem:[#allocation5 + $0x88] sm:$0xff] %vm6630, %v6569
        %6649 = vst.msk [vmem:[#allocation5 + $0x90] sm:$0xff] %vm6630, %v6571
        %6650 = vst.msk [vmem:[#allocation5 + $0x98] sm:$0xff] %vm6630, %v6573
        %6651 = vst.msk [vmem:[#allocation5 + $0xa0] sm:$0xff] %vm6630, %v6575
        %6652 = vst.msk [vmem:[#allocation5 + $0xa8] sm:$0xff] %vm6630, %v6577
        %6653 = vst.msk [vmem:[#allocation5 + $0xb0] sm:$0xff] %vm6630, %v6579
        %6654 = vst.msk [vmem:[#allocation5 + $0xb8] sm:$0xff] %vm6630, %v6581
        %6655 = vst.msk [vmem:[#allocation5 + $0xc0] sm:$0xff] %vm6630, %v6583
        %6656 = vst.msk [vmem:[#allocation5 + $0xc8] sm:$0xff] %vm6630, %v6585
        %6657 = vst.msk [vmem:[#allocation5 + $0xd0] sm:$0xff] %vm6630, %v6587
        %6658 = vst.msk [vmem:[#allocation5 + $0xd8] sm:$0xff] %vm6630, %v6589
        %6659 = vst.msk [vmem:[#allocation5 + $0xe0] sm:$0xff] %vm6630, %v6591
        %6660 = vst.msk [vmem:[#allocation5 + $0xe8] sm:$0xff] %vm6630, %v6593
        %6661 = vst.msk [vmem:[#allocation5 + $0xf0] sm:$0xff] %vm6630, %v6595
        %6662 = vst.msk [vmem:[#allocation5 + $0xf8] sm:$0xff] %vm6630, %v6597
        %6665 = vrot.lane.b32.xlu0 %v2419, 30
        %v6666 = vpop.permute.xlu0 %6665
        %6667 = vrot.lane.b32.xlu0 %v2420, 30
        %v6668 = vpop.permute.xlu0 %6667
        %6669 = vrot.lane.b32.xlu0 %v2422, 30
        %v6670 = vpop.permute.xlu0 %6669
        %6671 = vrot.lane.b32.xlu0 %v2423, 30
        %v6672 = vpop.permute.xlu0 %6671
        %6673 = vrot.lane.b32.xlu0 %v2425, 30
        %v6674 = vpop.permute.xlu0 %6673
        %6675 = vrot.lane.b32.xlu0 %v2426, 30
        %v6676 = vpop.permute.xlu0 %6675
        %6677 = vrot.lane.b32.xlu0 %v2428, 30
        %v6678 = vpop.permute.xlu0 %6677
        %6679 = vrot.lane.b32.xlu0 %v2429, 30
        %v6680 = vpop.permute.xlu0 %6679
        %6681 = vrot.lane.b32.xlu0 %v2431, 30
        %v6682 = vpop.permute.xlu0 %6681
        %6683 = vrot.lane.b32.xlu0 %v2432, 30
        %v6684 = vpop.permute.xlu0 %6683
        %6685 = vrot.lane.b32.xlu0 %v2434, 30
        %v6686 = vpop.permute.xlu0 %6685
        %6687 = vrot.lane.b32.xlu0 %v2435, 30
        %v6688 = vpop.permute.xlu0 %6687
        %6689 = vrot.lane.b32.xlu0 %v2437, 30
        %v6690 = vpop.permute.xlu0 %6689
        %6691 = vrot.lane.b32.xlu0 %v2438, 30
        %v6692 = vpop.permute.xlu0 %6691
        %6693 = vrot.lane.b32.xlu0 %v2440, 30
        %v6694 = vpop.permute.xlu0 %6693
        %6695 = vrot.lane.b32.xlu0 %v2441, 30
        %v6696 = vpop.permute.xlu0 %6695
        %6697 = vrot.lane.b32.xlu0 %v2443, 30
        %v6698 = vpop.permute.xlu0 %6697
        %6699 = vrot.lane.b32.xlu0 %v2444, 30
        %v6700 = vpop.permute.xlu0 %6699
        %6701 = vrot.lane.b32.xlu0 %v2446, 30
        %v6702 = vpop.permute.xlu0 %6701
        %6703 = vrot.lane.b32.xlu0 %v2447, 30
        %v6704 = vpop.permute.xlu0 %6703
        %6705 = vrot.lane.b32.xlu0 %v2449, 30
        %v6706 = vpop.permute.xlu0 %6705
        %6707 = vrot.lane.b32.xlu0 %v2450, 30
        %v6708 = vpop.permute.xlu0 %6707
        %6709 = vrot.lane.b32.xlu0 %v2452, 30
        %v6710 = vpop.permute.xlu0 %6709
        %6711 = vrot.lane.b32.xlu0 %v2453, 30
        %v6712 = vpop.permute.xlu0 %6711
        %6713 = vrot.lane.b32.xlu0 %v2455, 30
        %v6714 = vpop.permute.xlu0 %6713
        %6715 = vrot.lane.b32.xlu0 %v2456, 30
        %v6716 = vpop.permute.xlu0 %6715
        %6717 = vrot.lane.b32.xlu0 %v2458, 30
        %v6718 = vpop.permute.xlu0 %6717
        %6719 = vrot.lane.b32.xlu0 %v2459, 30
        %v6720 = vpop.permute.xlu0 %6719
        %6721 = vrot.lane.b32.xlu0 %v2461, 30
        %v6722 = vpop.permute.xlu0 %6721
        %6723 = vrot.lane.b32.xlu0 %v2462, 30
        %v6724 = vpop.permute.xlu0 %6723
        %6725 = vrot.lane.b32.xlu0 %v2464, 30
        %v6726 = vpop.permute.xlu0 %6725
        %6727 = vrot.lane.b32.xlu0 %v2465, 30
        %v6728 = vpop.permute.xlu0 %6727
        %vm6761 = vcmask 261360
        %6762 = vst.msk [vmem:[#allocation5] sm:$0xff] %vm6761, %v6666
        %6763 = vst.msk [vmem:[#allocation5 + $0x8] sm:$0xff] %vm6761, %v6668
        %6764 = vst.msk [vmem:[#allocation5 + $0x10] sm:$0xff] %vm6761, %v6670
        %6765 = vst.msk [vmem:[#allocation5 + $0x18] sm:$0xff] %vm6761, %v6672
        %6766 = vst.msk [vmem:[#allocation5 + $0x20] sm:$0xff] %vm6761, %v6674
        %6767 = vst.msk [vmem:[#allocation5 + $0x28] sm:$0xff] %vm6761, %v6676
        %6768 = vst.msk [vmem:[#allocation5 + $0x30] sm:$0xff] %vm6761, %v6678
        %6769 = vst.msk [vmem:[#allocation5 + $0x38] sm:$0xff] %vm6761, %v6680
        %6770 = vst.msk [vmem:[#allocation5 + $0x40] sm:$0xff] %vm6761, %v6682
        %6771 = vst.msk [vmem:[#allocation5 + $0x48] sm:$0xff] %vm6761, %v6684
        %6772 = vst.msk [vmem:[#allocation5 + $0x50] sm:$0xff] %vm6761, %v6686
        %6773 = vst.msk [vmem:[#allocation5 + $0x58] sm:$0xff] %vm6761, %v6688
        %6774 = vst.msk [vmem:[#allocation5 + $0x60] sm:$0xff] %vm6761, %v6690
        %6775 = vst.msk [vmem:[#allocation5 + $0x68] sm:$0xff] %vm6761, %v6692
        %6776 = vst.msk [vmem:[#allocation5 + $0x70] sm:$0xff] %vm6761, %v6694
        %6777 = vst.msk [vmem:[#allocation5 + $0x78] sm:$0xff] %vm6761, %v6696
        %6778 = vst.msk [vmem:[#allocation5 + $0x80] sm:$0xff] %vm6761, %v6698
        %6779 = vst.msk [vmem:[#allocation5 + $0x88] sm:$0xff] %vm6761, %v6700
        %6780 = vst.msk [vmem:[#allocation5 + $0x90] sm:$0xff] %vm6761, %v6702
        %6781 = vst.msk [vmem:[#allocation5 + $0x98] sm:$0xff] %vm6761, %v6704
        %6782 = vst.msk [vmem:[#allocation5 + $0xa0] sm:$0xff] %vm6761, %v6706
        %6783 = vst.msk [vmem:[#allocation5 + $0xa8] sm:$0xff] %vm6761, %v6708
        %6784 = vst.msk [vmem:[#allocation5 + $0xb0] sm:$0xff] %vm6761, %v6710
        %6785 = vst.msk [vmem:[#allocation5 + $0xb8] sm:$0xff] %vm6761, %v6712
        %6786 = vst.msk [vmem:[#allocation5 + $0xc0] sm:$0xff] %vm6761, %v6714
        %6787 = vst.msk [vmem:[#allocation5 + $0xc8] sm:$0xff] %vm6761, %v6716
        %6788 = vst.msk [vmem:[#allocation5 + $0xd0] sm:$0xff] %vm6761, %v6718
        %6789 = vst.msk [vmem:[#allocation5 + $0xd8] sm:$0xff] %vm6761, %v6720
        %6790 = vst.msk [vmem:[#allocation5 + $0xe0] sm:$0xff] %vm6761, %v6722
        %6791 = vst.msk [vmem:[#allocation5 + $0xe8] sm:$0xff] %vm6761, %v6724
        %6792 = vst.msk [vmem:[#allocation5 + $0xf0] sm:$0xff] %vm6761, %v6726
        %6793 = vst.msk [vmem:[#allocation5 + $0xf8] sm:$0xff] %vm6761, %v6728
        %v6795 = vrot.slane %v2404, 7
        %v6796 = vrot.slane %v6795, 2
        %v6797 = vrot.slane %v2405, 7
        %v6798 = vsel %vm3386, %v6796, %v6797
        %v6799 = vrot.slane %v6797, 2
        %v6800 = vrot.slane %v2406, 7
        %v6801 = vsel %vm3386, %v6799, %v6800
        %v6802 = vrot.slane %v6800, 2
        %v6803 = vrot.slane %v2407, 7
        %v6804 = vsel %vm3386, %v6802, %v6803
        %v6805 = vrot.slane %v6803, 2
        %v6806 = vrot.slane %v2408, 7
        %v6807 = vsel %vm3386, %v6805, %v6806
        %v6808 = vrot.slane %v6806, 2
        %v6809 = vrot.slane %v2409, 7
        %v6810 = vsel %vm3386, %v6808, %v6809
        %v6811 = vrot.slane %v6809, 2
        %v6812 = vrot.slane %v2410, 7
        %v6813 = vsel %vm3386, %v6811, %v6812
        %v6814 = vrot.slane %v6812, 2
        %v6815 = vrot.slane %v2411, 7
        %v6816 = vsel %vm3386, %v6814, %v6815
        %v6817 = vrot.slane %v6815, 2
        %v6818 = vrot.slane %v2412, 7
        %v6819 = vsel %vm3386, %v6817, %v6818
        %v6820 = vcombine.low %v6798, %v6801
        %v6821 = vcombine.low %v6804, %v6807
        %v6823 = vunpack.c.l.s4 1983009808
        %v6824 = vunpack.c.0.s8 %v6823
        %v6825 = vlaneseq
        %v6826 = vshrl.u32 %v6825, 7
        %v6827 = vsub.s32 %v6824, %v6826
        %v6828 = vrot.slane %v6820, %v6827
        %v6830 = vunpack.c.l.s4 1983009808
        %v6831 = vunpack.c.0.s8 %v6830
        %v6832 = vlaneseq
        %v6833 = vshrl.u32 %v6832, 7
        %v6834 = vsub.s32 %v6831, %v6833
        %v6835 = vrot.slane %v6821, %v6834
        %v6836 = vcombine.low %v6828, %v6835
        %v6837 = vcombine.low %v6810, %v6813
        %v6838 = vcombine.low %v6816, %v6819
        %v6840 = vunpack.c.l.s4 1983009808
        %v6841 = vunpack.c.0.s8 %v6840
        %v6842 = vlaneseq
        %v6843 = vshrl.u32 %v6842, 7
        %v6844 = vsub.s32 %v6841, %v6843
        %v6845 = vrot.slane %v6837, %v6844
        %v6847 = vunpack.c.l.s4 1983009808
        %v6848 = vunpack.c.0.s8 %v6847
        %v6849 = vlaneseq
        %v6850 = vshrl.u32 %v6849, 7
        %v6851 = vsub.s32 %v6848, %v6850
        %v6852 = vrot.slane %v6838, %v6851
        %v6853 = vcombine.low %v6845, %v6852
        %6854 = vrot.lane.b32.xlu0 %v3871, 14
        %v6855 = vpop.permute.xlu0 %6854
        %6856 = vrot.lane.b32.xlu0 %v3888, 14
        %v6857 = vpop.permute.xlu0 %6856
        %6858 = vrot.lane.b32.xlu0 %v3905, 14
        %v6859 = vpop.permute.xlu0 %6858
        %6860 = vrot.lane.b32.xlu0 %v3922, 14
        %v6861 = vpop.permute.xlu0 %6860
        %6862 = vrot.lane.b32.xlu0 %v3939, 14
        %v6863 = vpop.permute.xlu0 %6862
        %6864 = vrot.lane.b32.xlu0 %v3956, 14
        %v6865 = vpop.permute.xlu0 %6864
        %6866 = vrot.lane.b32.xlu0 %v3973, 14
        %v6867 = vpop.permute.xlu0 %6866
        %6868 = vrot.lane.b32.xlu0 %v3990, 14
        %v6869 = vpop.permute.xlu0 %6868
        %6870 = vrot.lane.b32.xlu0 %v4007, 14
        %v6871 = vpop.permute.xlu0 %6870
        %6872 = vrot.lane.b32.xlu0 %v4024, 14
        %v6873 = vpop.permute.xlu0 %6872
        %6874 = vrot.lane.b32.xlu0 %v4041, 14
        %v6875 = vpop.permute.xlu0 %6874
        %6876 = vrot.lane.b32.xlu0 %v4058, 14
        %v6877 = vpop.permute.xlu0 %6876
        %6878 = vrot.lane.b32.xlu0 %v4075, 14
        %v6879 = vpop.permute.xlu0 %6878
        %6880 = vrot.lane.b32.xlu0 %v4092, 14
        %v6881 = vpop.permute.xlu0 %6880
        %6882 = vrot.lane.b32.xlu0 %v4109, 14
        %v6883 = vpop.permute.xlu0 %6882
        %6884 = vrot.lane.b32.xlu0 %v4126, 14
        %v6885 = vpop.permute.xlu0 %6884
        %6886 = vrot.lane.b32.xlu0 %v4143, 14
        %v6887 = vpop.permute.xlu0 %6886
        %6888 = vrot.lane.b32.xlu0 %v4160, 14
        %v6889 = vpop.permute.xlu0 %6888
        %6890 = vrot.lane.b32.xlu0 %v4177, 14
        %v6891 = vpop.permute.xlu0 %6890
        %6892 = vrot.lane.b32.xlu0 %v4194, 14
        %v6893 = vpop.permute.xlu0 %6892
        %6894 = vrot.lane.b32.xlu0 %v4211, 14
        %v6895 = vpop.permute.xlu0 %6894
        %6896 = vrot.lane.b32.xlu0 %v4228, 14
        %v6897 = vpop.permute.xlu0 %6896
        %6898 = vrot.lane.b32.xlu0 %v4245, 14
        %v6899 = vpop.permute.xlu0 %6898
        %6900 = vrot.lane.b32.xlu0 %v4262, 14
        %v6901 = vpop.permute.xlu0 %6900
        %6902 = vrot.lane.b32.xlu0 %v4279, 14
        %v6903 = vpop.permute.xlu0 %6902
        %6904 = vrot.lane.b32.xlu0 %v4296, 14
        %v6905 = vpop.permute.xlu0 %6904
        %6906 = vrot.lane.b32.xlu0 %v4313, 14
        %v6907 = vpop.permute.xlu0 %6906
        %6908 = vrot.lane.b32.xlu0 %v4330, 14
        %v6909 = vpop.permute.xlu0 %6908
        %6910 = vrot.lane.b32.xlu0 %v5913, 14
        %v6911 = vpop.permute.xlu0 %6910
        %6912 = vrot.lane.b32.xlu0 %v5930, 14
        %v6913 = vpop.permute.xlu0 %6912
        %6914 = vrot.lane.b32.xlu0 %v6836, 14
        %v6915 = vpop.permute.xlu0 %6914
        %6916 = vrot.lane.b32.xlu0 %v6853, 14
        %v6917 = vpop.permute.xlu0 %6916
        %vm6950 = vcmask 130160
        %6951 = vst.msk [vmem:[#allocation5] sm:$0xff] %vm6950, %v6855
        %6952 = vst.msk [vmem:[#allocation5 + $0x8] sm:$0xff] %vm6950, %v6857
        %6953 = vst.msk [vmem:[#allocation5 + $0x10] sm:$0xff] %vm6950, %v6859
        %6954 = vst.msk [vmem:[#allocation5 + $0x18] sm:$0xff] %vm6950, %v6861
        %6955 = vst.msk [vmem:[#allocation5 + $0x20] sm:$0xff] %vm6950, %v6863
        %6956 = vst.msk [vmem:[#allocation5 + $0x28] sm:$0xff] %vm6950, %v6865
        %6957 = vst.msk [vmem:[#allocation5 + $0x30] sm:$0xff] %vm6950, %v6867
        %6958 = vst.msk [vmem:[#allocation5 + $0x38] sm:$0xff] %vm6950, %v6869
        %6959 = vst.msk [vmem:[#allocation5 + $0x40] sm:$0xff] %vm6950, %v6871
        %6960 = vst.msk [vmem:[#allocation5 + $0x48] sm:$0xff] %vm6950, %v6873
        %6961 = vst.msk [vmem:[#allocation5 + $0x50] sm:$0xff] %vm6950, %v6875
        %6962 = vst.msk [vmem:[#allocation5 + $0x58] sm:$0xff] %vm6950, %v6877
        %6963 = vst.msk [vmem:[#allocation5 + $0x60] sm:$0xff] %vm6950, %v6879
        %6964 = vst.msk [vmem:[#allocation5 + $0x68] sm:$0xff] %vm6950, %v6881
        %6965 = vst.msk [vmem:[#allocation5 + $0x70] sm:$0xff] %vm6950, %v6883
        %6966 = vst.msk [vmem:[#allocation5 + $0x78] sm:$0xff] %vm6950, %v6885
        %6967 = vst.msk [vmem:[#allocation5 + $0x80] sm:$0xff] %vm6950, %v6887
        %6968 = vst.msk [vmem:[#allocation5 + $0x88] sm:$0xff] %vm6950, %v6889
        %6969 = vst.msk [vmem:[#allocation5 + $0x90] sm:$0xff] %vm6950, %v6891
        %6970 = vst.msk [vmem:[#allocation5 + $0x98] sm:$0xff] %vm6950, %v6893
        %6971 = vst.msk [vmem:[#allocation5 + $0xa0] sm:$0xff] %vm6950, %v6895
        %6972 = vst.msk [vmem:[#allocation5 + $0xa8] sm:$0xff] %vm6950, %v6897
        %6973 = vst.msk [vmem:[#allocation5 + $0xb0] sm:$0xff] %vm6950, %v6899
        %6974 = vst.msk [vmem:[#allocation5 + $0xb8] sm:$0xff] %vm6950, %v6901
        %6975 = vst.msk [vmem:[#allocation5 + $0xc0] sm:$0xff] %vm6950, %v6903
        %6976 = vst.msk [vmem:[#allocation5 + $0xc8] sm:$0xff] %vm6950, %v6905
        %6977 = vst.msk [vmem:[#allocation5 + $0xd0] sm:$0xff] %vm6950, %v6907
        %6978 = vst.msk [vmem:[#allocation5 + $0xd8] sm:$0xff] %vm6950, %v6909
        %6979 = vst.msk [vmem:[#allocation5 + $0xe0] sm:$0xff] %vm6950, %v6911
        %6980 = vst.msk [vmem:[#allocation5 + $0xe8] sm:$0xff] %vm6950, %v6913
        %6981 = vst.msk [vmem:[#allocation5 + $0xf0] sm:$0xff] %vm6950, %v6915
        %6982 = vst.msk [vmem:[#allocation5 + $0xf8] sm:$0xff] %vm6950, %v6917
        %v6984 = vrot.slane %v2464, 1
        %v6985 = vrot.slane %v2465, 1
        %v6986 = vsel %vm4476, %v6984, %v6985
        %v6987 = vrot.slane %v2466, 1
        %v6988 = vsel %vm4476, %v6985, %v6987
        %6989 = vrot.lane.b32.xlu0 %v4489, 32
        %v6990 = vpop.permute.xlu0 %6989
        %6991 = vrot.lane.b32.xlu0 %v4491, 32
        %v6992 = vpop.permute.xlu0 %6991
        %6993 = vrot.lane.b32.xlu0 %v4494, 32
        %v6994 = vpop.permute.xlu0 %6993
        %6995 = vrot.lane.b32.xlu0 %v4496, 32
        %v6996 = vpop.permute.xlu0 %6995
        %6997 = vrot.lane.b32.xlu0 %v4499, 32
        %v6998 = vpop.permute.xlu0 %6997
        %6999 = vrot.lane.b32.xlu0 %v4501, 32
        %v7000 = vpop.permute.xlu0 %6999
        %7001 = vrot.lane.b32.xlu0 %v4504, 32
        %v7002 = vpop.permute.xlu0 %7001
        %7003 = vrot.lane.b32.xlu0 %v4506, 32
        %v7004 = vpop.permute.xlu0 %7003
        %7005 = vrot.lane.b32.xlu0 %v4509, 32
        %v7006 = vpop.permute.xlu0 %7005
        %7007 = vrot.lane.b32.xlu0 %v4511, 32
        %v7008 = vpop.permute.xlu0 %7007
        %7009 = vrot.lane.b32.xlu0 %v4514, 32
        %v7010 = vpop.permute.xlu0 %7009
        %7011 = vrot.lane.b32.xlu0 %v4516, 32
        %v7012 = vpop.permute.xlu0 %7011
        %7013 = vrot.lane.b32.xlu0 %v4519, 32
        %v7014 = vpop.permute.xlu0 %7013
        %7015 = vrot.lane.b32.xlu0 %v4521, 32
        %v7016 = vpop.permute.xlu0 %7015
        %7017 = vrot.lane.b32.xlu0 %v4524, 32
        %v7018 = vpop.permute.xlu0 %7017
        %7019 = vrot.lane.b32.xlu0 %v4526, 32
        %v7020 = vpop.permute.xlu0 %7019
        %7021 = vrot.lane.b32.xlu0 %v4529, 32
        %v7022 = vpop.permute.xlu0 %7021
        %7023 = vrot.lane.b32.xlu0 %v4531, 32
        %v7024 = vpop.permute.xlu0 %7023
        %7025 = vrot.lane.b32.xlu0 %v4534, 32
        %v7026 = vpop.permute.xlu0 %7025
        %7027 = vrot.lane.b32.xlu0 %v4536, 32
        %v7028 = vpop.permute.xlu0 %7027
        %7029 = vrot.lane.b32.xlu0 %v4539, 32
        %v7030 = vpop.permute.xlu0 %7029
        %7031 = vrot.lane.b32.xlu0 %v4541, 32
        %v7032 = vpop.permute.xlu0 %7031
        %7033 = vrot.lane.b32.xlu0 %v4544, 32
        %v7034 = vpop.permute.xlu0 %7033
        %7035 = vrot.lane.b32.xlu0 %v4546, 32
        %v7036 = vpop.permute.xlu0 %7035
        %7037 = vrot.lane.b32.xlu0 %v4549, 32
        %v7038 = vpop.permute.xlu0 %7037
        %7039 = vrot.lane.b32.xlu0 %v4551, 32
        %v7040 = vpop.permute.xlu0 %7039
        %7041 = vrot.lane.b32.xlu0 %v4554, 32
        %v7042 = vpop.permute.xlu0 %7041
        %7043 = vrot.lane.b32.xlu0 %v4556, 32
        %v7044 = vpop.permute.xlu0 %7043
        %7045 = vrot.lane.b32.xlu0 %v6063, 32
        %v7046 = vpop.permute.xlu0 %7045
        %7047 = vrot.lane.b32.xlu0 %v6065, 32
        %v7048 = vpop.permute.xlu0 %7047
        %7049 = vrot.lane.b32.xlu0 %v6986, 32
        %v7050 = vpop.permute.xlu0 %7049
        %7051 = vrot.lane.b32.xlu0 %v6988, 32
        %v7052 = vpop.permute.xlu0 %7051
        %vm7085 = vcmask 277760
        %7086 = vst.msk [vmem:[#allocation5] sm:$0xff] %vm7085, %v6990
        %7087 = vst.msk [vmem:[#allocation5 + $0x8] sm:$0xff] %vm7085, %v6992
        %7088 = vst.msk [vmem:[#allocation5 + $0x10] sm:$0xff] %vm7085, %v6994
        %7089 = vst.msk [vmem:[#allocation5 + $0x18] sm:$0xff] %vm7085, %v6996
        %7090 = vst.msk [vmem:[#allocation5 + $0x20] sm:$0xff] %vm7085, %v6998
        %7091 = vst.msk [vmem:[#allocation5 + $0x28] sm:$0xff] %vm7085, %v7000
        %7092 = vst.msk [vmem:[#allocation5 + $0x30] sm:$0xff] %vm7085, %v7002
        %7093 = vst.msk [vmem:[#allocation5 + $0x38] sm:$0xff] %vm7085, %v7004
        %7094 = vst.msk [vmem:[#allocation5 + $0x40] sm:$0xff] %vm7085, %v7006
        %7095 = vst.msk [vmem:[#allocation5 + $0x48] sm:$0xff] %vm7085, %v7008
        %7096 = vst.msk [vmem:[#allocation5 + $0x50] sm:$0xff] %vm7085, %v7010
        %7097 = vst.msk [vmem:[#allocation5 + $0x58] sm:$0xff] %vm7085, %v7012
        %7098 = vst.msk [vmem:[#allocation5 + $0x60] sm:$0xff] %vm7085, %v7014
        %7099 = vst.msk [vmem:[#allocation5 + $0x68] sm:$0xff] %vm7085, %v7016
        %7100 = vst.msk [vmem:[#allocation5 + $0x70] sm:$0xff] %vm7085, %v7018
        %7101 = vst.msk [vmem:[#allocation5 + $0x78] sm:$0xff] %vm7085, %v7020
        %7102 = vst.msk [vmem:[#allocation5 + $0x80] sm:$0xff] %vm7085, %v7022
        %7103 = vst.msk [vmem:[#allocation5 + $0x88] sm:$0xff] %vm7085, %v7024
        %7104 = vst.msk [vmem:[#allocation5 + $0x90] sm:$0xff] %vm7085, %v7026
        %7105 = vst.msk [vmem:[#allocation5 + $0x98] sm:$0xff] %vm7085, %v7028
        %7106 = vst.msk [vmem:[#allocation5 + $0xa0] sm:$0xff] %vm7085, %v7030
        %7107 = vst.msk [vmem:[#allocation5 + $0xa8] sm:$0xff] %vm7085, %v7032
        %7108 = vst.msk [vmem:[#allocation5 + $0xb0] sm:$0xff] %vm7085, %v7034
        %7109 = vst.msk [vmem:[#allocation5 + $0xb8] sm:$0xff] %vm7085, %v7036
        %7110 = vst.msk [vmem:[#allocation5 + $0xc0] sm:$0xff] %vm7085, %v7038
        %7111 = vst.msk [vmem:[#allocation5 + $0xc8] sm:$0xff] %vm7085, %v7040
        %7112 = vst.msk [vmem:[#allocation5 + $0xd0] sm:$0xff] %vm7085, %v7042
        %7113 = vst.msk [vmem:[#allocation5 + $0xd8] sm:$0xff] %vm7085, %v7044
        %7114 = vst.msk [vmem:[#allocation5 + $0xe0] sm:$0xff] %vm7085, %v7046
        %7115 = vst.msk [vmem:[#allocation5 + $0xe8] sm:$0xff] %vm7085, %v7048
        %7116 = vst.msk [vmem:[#allocation5 + $0xf0] sm:$0xff] %vm7085, %v7050
        %7117 = vst.msk [vmem:[#allocation5 + $0xf8] sm:$0xff] %vm7085, %v7052
        %v7118 = vcombine.low %v2405, %v2406
        %v7119 = vcombine.low %v2407, %v2408
        %v7121 = vunpack.c.l.s4 1983009808
        %v7122 = vunpack.c.0.s8 %v7121
        %v7123 = vlaneseq
        %v7124 = vshrl.u32 %v7123, 7
        %v7125 = vsub.s32 %v7122, %v7124
        %v7126 = vrot.slane %v7118, %v7125
        %v7128 = vunpack.c.l.s4 1983009808
        %v7129 = vunpack.c.0.s8 %v7128
        %v7130 = vlaneseq
        %v7131 = vshrl.u32 %v7130, 7
        %v7132 = vsub.s32 %v7129, %v7131
        %v7133 = vrot.slane %v7119, %v7132
        %v7134 = vcombine.low %v7126, %v7133
        %v7135 = vcombine.low %v2409, %v2410
        %v7136 = vcombine.low %v2411, %v2412
        %v7138 = vunpack.c.l.s4 1983009808
        %v7139 = vunpack.c.0.s8 %v7138
        %v7140 = vlaneseq
        %v7141 = vshrl.u32 %v7140, 7
        %v7142 = vsub.s32 %v7139, %v7141
        %v7143 = vrot.slane %v7135, %v7142
        %v7145 = vunpack.c.l.s4 1983009808
        %v7146 = vunpack.c.0.s8 %v7145
        %v7147 = vlaneseq
        %v7148 = vshrl.u32 %v7147, 7
        %v7149 = vsub.s32 %v7146, %v7148
        %v7150 = vrot.slane %v7136, %v7149
        %v7151 = vcombine.low %v7143, %v7150
        %7152 = vrot.lane.b32.xlu0 %v4770, 16
        %v7153 = vpop.permute.xlu0 %7152
        %7154 = vrot.lane.b32.xlu0 %v4787, 16
        %v7155 = vpop.permute.xlu0 %7154
        %7156 = vrot.lane.b32.xlu0 %v4804, 16
        %v7157 = vpop.permute.xlu0 %7156
        %7158 = vrot.lane.b32.xlu0 %v4821, 16
        %v7159 = vpop.permute.xlu0 %7158
        %7160 = vrot.lane.b32.xlu0 %v4838, 16
        %v7161 = vpop.permute.xlu0 %7160
        %7162 = vrot.lane.b32.xlu0 %v4855, 16
        %v7163 = vpop.permute.xlu0 %7162
        %7164 = vrot.lane.b32.xlu0 %v4872, 16
        %v7165 = vpop.permute.xlu0 %7164
        %7166 = vrot.lane.b32.xlu0 %v4889, 16
        %v7167 = vpop.permute.xlu0 %7166
        %7168 = vrot.lane.b32.xlu0 %v4906, 16
        %v7169 = vpop.permute.xlu0 %7168
        %7170 = vrot.lane.b32.xlu0 %v4923, 16
        %v7171 = vpop.permute.xlu0 %7170
        %7172 = vrot.lane.b32.xlu0 %v4940, 16
        %v7173 = vpop.permute.xlu0 %7172
        %7174 = vrot.lane.b32.xlu0 %v4957, 16
        %v7175 = vpop.permute.xlu0 %7174
        %7176 = vrot.lane.b32.xlu0 %v4974, 16
        %v7177 = vpop.permute.xlu0 %7176
        %7178 = vrot.lane.b32.xlu0 %v4991, 16
        %v7179 = vpop.permute.xlu0 %7178
        %7180 = vrot.lane.b32.xlu0 %v5008, 16
        %v7181 = vpop.permute.xlu0 %7180
        %7182 = vrot.lane.b32.xlu0 %v5025, 16
        %v7183 = vpop.permute.xlu0 %7182
        %7184 = vrot.lane.b32.xlu0 %v5042, 16
        %v7185 = vpop.permute.xlu0 %7184
        %7186 = vrot.lane.b32.xlu0 %v5059, 16
        %v7187 = vpop.permute.xlu0 %7186
        %7188 = vrot.lane.b32.xlu0 %v5076, 16
        %v7189 = vpop.permute.xlu0 %7188
        %7190 = vrot.lane.b32.xlu0 %v5093, 16
        %v7191 = vpop.permute.xlu0 %7190
        %7192 = vrot.lane.b32.xlu0 %v5110, 16
        %v7193 = vpop.permute.xlu0 %7192
        %7194 = vrot.lane.b32.xlu0 %v5127, 16
        %v7195 = vpop.permute.xlu0 %7194
        %7196 = vrot.lane.b32.xlu0 %v5144, 16
        %v7197 = vpop.permute.xlu0 %7196
        %7198 = vrot.lane.b32.xlu0 %v5161, 16
        %v7199 = vpop.permute.xlu0 %7198
        %7200 = vrot.lane.b32.xlu0 %v5178, 16
        %v7201 = vpop.permute.xlu0 %7200
        %7202 = vrot.lane.b32.xlu0 %v5195, 16
        %v7203 = vpop.permute.xlu0 %7202
        %7204 = vrot.lane.b32.xlu0 %v5212, 16
        %v7205 = vpop.permute.xlu0 %7204
        %7206 = vrot.lane.b32.xlu0 %v5229, 16
        %v7207 = vpop.permute.xlu0 %7206
        %7208 = vrot.lane.b32.xlu0 %v6211, 16
        %v7209 = vpop.permute.xlu0 %7208
        %7210 = vrot.lane.b32.xlu0 %v6228, 16
        %v7211 = vpop.permute.xlu0 %7210
        %7212 = vrot.lane.b32.xlu0 %v7134, 16
        %v7213 = vpop.permute.xlu0 %7212
        %7214 = vrot.lane.b32.xlu0 %v7151, 16
        %v7215 = vpop.permute.xlu0 %7214
        %vm7248 = vcmask 146560
        %7249 = vst.msk [vmem:[#allocation5] sm:$0xff] %vm7248, %v7153
        %7250 = vst.msk [vmem:[#allocation5 + $0x8] sm:$0xff] %vm7248, %v7155
        %7251 = vst.msk [vmem:[#allocation5 + $0x10] sm:$0xff] %vm7248, %v7157
        %7252 = vst.msk [vmem:[#allocation5 + $0x18] sm:$0xff] %vm7248, %v7159
        %7253 = vst.msk [vmem:[#allocation5 + $0x20] sm:$0xff] %vm7248, %v7161
        %7254 = vst.msk [vmem:[#allocation5 + $0x28] sm:$0xff] %vm7248, %v7163
        %7255 = vst.msk [vmem:[#allocation5 + $0x30] sm:$0xff] %vm7248, %v7165
        %7256 = vst.msk [vmem:[#allocation5 + $0x38] sm:$0xff] %vm7248, %v7167
        %7257 = vst.msk [vmem:[#allocation5 + $0x40] sm:$0xff] %vm7248, %v7169
        %7258 = vst.msk [vmem:[#allocation5 + $0x48] sm:$0xff] %vm7248, %v7171
        %7259 = vst.msk [vmem:[#allocation5 + $0x50] sm:$0xff] %vm7248, %v7173
        %7260 = vst.msk [vmem:[#allocation5 + $0x58] sm:$0xff] %vm7248, %v7175
        %7261 = vst.msk [vmem:[#allocation5 + $0x60] sm:$0xff] %vm7248, %v7177
        %7262 = vst.msk [vmem:[#allocation5 + $0x68] sm:$0xff] %vm7248, %v7179
        %7263 = vst.msk [vmem:[#allocation5 + $0x70] sm:$0xff] %vm7248, %v7181
        %7264 = vst.msk [vmem:[#allocation5 + $0x78] sm:$0xff] %vm7248, %v7183
        %7265 = vst.msk [vmem:[#allocation5 + $0x80] sm:$0xff] %vm7248, %v7185
        %7266 = vst.msk [vmem:[#allocation5 + $0x88] sm:$0xff] %vm7248, %v7187
        %7267 = vst.msk [vmem:[#allocation5 + $0x90] sm:$0xff] %vm7248, %v7189
        %7268 = vst.msk [vmem:[#allocation5 + $0x98] sm:$0xff] %vm7248, %v7191
        %7269 = vst.msk [vmem:[#allocation5 + $0xa0] sm:$0xff] %vm7248, %v7193
        %7270 = vst.msk [vmem:[#allocation5 + $0xa8] sm:$0xff] %vm7248, %v7195
        %7271 = vst.msk [vmem:[#allocation5 + $0xb0] sm:$0xff] %vm7248, %v7197
        %7272 = vst.msk [vmem:[#allocation5 + $0xb8] sm:$0xff] %vm7248, %v7199
        %7273 = vst.msk [vmem:[#allocation5 + $0xc0] sm:$0xff] %vm7248, %v7201
        %7274 = vst.msk [vmem:[#allocation5 + $0xc8] sm:$0xff] %vm7248, %v7203
        %7275 = vst.msk [vmem:[#allocation5 + $0xd0] sm:$0xff] %vm7248, %v7205
        %7276 = vst.msk [vmem:[#allocation5 + $0xd8] sm:$0xff] %vm7248, %v7207
        %7277 = vst.msk [vmem:[#allocation5 + $0xe0] sm:$0xff] %vm7248, %v7209
        %7278 = vst.msk [vmem:[#allocation5 + $0xe8] sm:$0xff] %vm7248, %v7211
        %7279 = vst.msk [vmem:[#allocation5 + $0xf0] sm:$0xff] %vm7248, %v7213
        %7280 = vst.msk [vmem:[#allocation5 + $0xf8] sm:$0xff] %vm7248, %v7215
        %v7281 = vrot.slane %v2464, 2
        %v7282 = vrot.slane %v2465, 2
        %v7283 = vsel %vm5359, %v7281, %v7282
        %v7284 = vrot.slane %v2466, 2
        %v7285 = vsel %vm5359, %v7282, %v7284
        %7286 = vrot.lane.b32.xlu0 %v5372, 34
        %v7287 = vpop.permute.xlu0 %7286
        %7288 = vrot.lane.b32.xlu0 %v5374, 34
        %v7289 = vpop.permute.xlu0 %7288
        %7290 = vrot.lane.b32.xlu0 %v5377, 34
        %v7291 = vpop.permute.xlu0 %7290
        %7292 = vrot.lane.b32.xlu0 %v5379, 34
        %v7293 = vpop.permute.xlu0 %7292
        %7294 = vrot.lane.b32.xlu0 %v5382, 34
        %v7295 = vpop.permute.xlu0 %7294
        %7296 = vrot.lane.b32.xlu0 %v5384, 34
        %v7297 = vpop.permute.xlu0 %7296
        %7298 = vrot.lane.b32.xlu0 %v5387, 34
        %v7299 = vpop.permute.xlu0 %7298
        %7300 = vrot.lane.b32.xlu0 %v5389, 34
        %v7301 = vpop.permute.xlu0 %7300
        %7302 = vrot.lane.b32.xlu0 %v5392, 34
        %v7303 = vpop.permute.xlu0 %7302
        %7304 = vrot.lane.b32.xlu0 %v5394, 34
        %v7305 = vpop.permute.xlu0 %7304
        %7306 = vrot.lane.b32.xlu0 %v5397, 34
        %v7307 = vpop.permute.xlu0 %7306
        %7308 = vrot.lane.b32.xlu0 %v5399, 34
        %v7309 = vpop.permute.xlu0 %7308
        %7310 = vrot.lane.b32.xlu0 %v5402, 34
        %v7311 = vpop.permute.xlu0 %7310
        %7312 = vrot.lane.b32.xlu0 %v5404, 34
        %v7313 = vpop.permute.xlu0 %7312
        %7314 = vrot.lane.b32.xlu0 %v5407, 34
        %v7315 = vpop.permute.xlu0 %7314
        %7316 = vrot.lane.b32.xlu0 %v5409, 34
        %v7317 = vpop.permute.xlu0 %7316
        %7318 = vrot.lane.b32.xlu0 %v5412, 34
        %v7319 = vpop.permute.xlu0 %7318
        %7320 = vrot.lane.b32.xlu0 %v5414, 34
        %v7321 = vpop.permute.xlu0 %7320
        %7322 = vrot.lane.b32.xlu0 %v5417, 34
        %v7323 = vpop.permute.xlu0 %7322
        %7324 = vrot.lane.b32.xlu0 %v5419, 34
        %v7325 = vpop.permute.xlu0 %7324
        %7326 = vrot.lane.b32.xlu0 %v5422, 34
        %v7327 = vpop.permute.xlu0 %7326
        %7328 = vrot.lane.b32.xlu0 %v5424, 34
        %v7329 = vpop.permute.xlu0 %7328
        %7330 = vrot.lane.b32.xlu0 %v5427, 34
        %v7331 = vpop.permute.xlu0 %7330
        %7332 = vrot.lane.b32.xlu0 %v5429, 34
        %v7333 = vpop.permute.xlu0 %7332
        %7334 = vrot.lane.b32.xlu0 %v5432, 34
        %v7335 = vpop.permute.xlu0 %7334
        %7336 = vrot.lane.b32.xlu0 %v5434, 34
        %v7337 = vpop.permute.xlu0 %7336
        %7338 = vrot.lane.b32.xlu0 %v5437, 34
        %v7339 = vpop.permute.xlu0 %7338
        %7340 = vrot.lane.b32.xlu0 %v5439, 34
        %v7341 = vpop.permute.xlu0 %7340
        %7342 = vrot.lane.b32.xlu0 %v6360, 34
        %v7343 = vpop.permute.xlu0 %7342
        %7344 = vrot.lane.b32.xlu0 %v6362, 34
        %v7345 = vpop.permute.xlu0 %7344
        %7346 = vrot.lane.b32.xlu0 %v7283, 34
        %v7347 = vpop.permute.xlu0 %7346
        %7348 = vrot.lane.b32.xlu0 %v7285, 34
        %v7349 = vpop.permute.xlu0 %7348
        %vm7382 = vcmask 294160
        %7383 = vst.msk [vmem:[#allocation5] sm:$0xff] %vm7382, %v7287
        %7384 = vst.msk [vmem:[#allocation5 + $0x8] sm:$0xff] %vm7382, %v7289
        %7385 = vst.msk [vmem:[#allocation5 + $0x10] sm:$0xff] %vm7382, %v7291
        %7386 = vst.msk [vmem:[#allocation5 + $0x18] sm:$0xff] %vm7382, %v7293
        %7387 = vst.msk [vmem:[#allocation5 + $0x20] sm:$0xff] %vm7382, %v7295
        %7388 = vst.msk [vmem:[#allocation5 + $0x28] sm:$0xff] %vm7382, %v7297
        %7389 = vst.msk [vmem:[#allocation5 + $0x30] sm:$0xff] %vm7382, %v7299
        %7390 = vst.msk [vmem:[#allocation5 + $0x38] sm:$0xff] %vm7382, %v7301
        %7391 = vst.msk [vmem:[#allocation5 + $0x40] sm:$0xff] %vm7382, %v7303
        %7392 = vst.msk [vmem:[#allocation5 + $0x48] sm:$0xff] %vm7382, %v7305
        %7393 = vst.msk [vmem:[#allocation5 + $0x50] sm:$0xff] %vm7382, %v7307
        %7394 = vst.msk [vmem:[#allocation5 + $0x58] sm:$0xff] %vm7382, %v7309
        %7395 = vst.msk [vmem:[#allocation5 + $0x60] sm:$0xff] %vm7382, %v7311
        %7396 = vst.msk [vmem:[#allocation5 + $0x68] sm:$0xff] %vm7382, %v7313
        %7397 = vst.msk [vmem:[#allocation5 + $0x70] sm:$0xff] %vm7382, %v7315
        %7398 = vst.msk [vmem:[#allocation5 + $0x78] sm:$0xff] %vm7382, %v7317
        %7399 = vst.msk [vmem:[#allocation5 + $0x80] sm:$0xff] %vm7382, %v7319
        %7400 = vst.msk [vmem:[#allocation5 + $0x88] sm:$0xff] %vm7382, %v7321
        %7401 = vst.msk [vmem:[#allocation5 + $0x90] sm:$0xff] %vm7382, %v7323
        %7402 = vst.msk [vmem:[#allocation5 + $0x98] sm:$0xff] %vm7382, %v7325
        %7403 = vst.msk [vmem:[#allocation5 + $0xa0] sm:$0xff] %vm7382, %v7327
        %7404 = vst.msk [vmem:[#allocation5 + $0xa8] sm:$0xff] %vm7382, %v7329
        %7405 = vst.msk [vmem:[#allocation5 + $0xb0] sm:$0xff] %vm7382, %v7331
        %7406 = vst.msk [vmem:[#allocation5 + $0xb8] sm:$0xff] %vm7382, %v7333
        %7407 = vst.msk [vmem:[#allocation5 + $0xc0] sm:$0xff] %vm7382, %v7335
        %7408 = vst.msk [vmem:[#allocation5 + $0xc8] sm:$0xff] %vm7382, %v7337
        %7409 = vst.msk [vmem:[#allocation5 + $0xd0] sm:$0xff] %vm7382, %v7339
        %7410 = vst.msk [vmem:[#allocation5 + $0xd8] sm:$0xff] %vm7382, %v7341
        %7411 = vst.msk [vmem:[#allocation5 + $0xe0] sm:$0xff] %vm7382, %v7343
        %7412 = vst.msk [vmem:[#allocation5 + $0xe8] sm:$0xff] %vm7382, %v7345
        %7413 = vst.msk [vmem:[#allocation5 + $0xf0] sm:$0xff] %vm7382, %v7347
        %7414 = vst.msk [vmem:[#allocation5 + $0xf8] sm:$0xff] %vm7382, %v7349
        %v7415 = vld [vmem:[#allocation5] sm:$0xff]
        %v7416 = vld [vmem:[#allocation5 + $0x8] sm:$0xff]
        %v7417 = vld [vmem:[#allocation5 + $0x10] sm:$0xff]
        %v7418 = vld [vmem:[#allocation5 + $0x18] sm:$0xff]
        %v7419 = vld [vmem:[#allocation5 + $0x20] sm:$0xff]
        %v7420 = vld [vmem:[#allocation5 + $0x28] sm:$0xff]
        %v7421 = vld [vmem:[#allocation5 + $0x30] sm:$0xff]
        %v7422 = vld [vmem:[#allocation5 + $0x38] sm:$0xff]
        %v7423 = vld [vmem:[#allocation5 + $0x40] sm:$0xff]
        %v7424 = vld [vmem:[#allocation5 + $0x48] sm:$0xff]
        %v7425 = vld [vmem:[#allocation5 + $0x50] sm:$0xff]
        %v7426 = vld [vmem:[#allocation5 + $0x58] sm:$0xff]
        %v7427 = vld [vmem:[#allocation5 + $0x60] sm:$0xff]
        %v7428 = vld [vmem:[#allocation5 + $0x68] sm:$0xff]
        %v7429 = vld [vmem:[#allocation5 + $0x70] sm:$0xff]
        %v7430 = vld [vmem:[#allocation5 + $0x78] sm:$0xff]
        %v7431 = vld [vmem:[#allocation5 + $0x80] sm:$0xff]
        %v7432 = vld [vmem:[#allocation5 + $0x88] sm:$0xff]
        %v7433 = vld [vmem:[#allocation5 + $0x90] sm:$0xff]
        %v7434 = vld [vmem:[#allocation5 + $0x98] sm:$0xff]
        %v7435 = vld [vmem:[#allocation5 + $0xa0] sm:$0xff]
        %v7436 = vld [vmem:[#allocation5 + $0xa8] sm:$0xff]
        %v7437 = vld [vmem:[#allocation5 + $0xb0] sm:$0xff]
        %v7438 = vld [vmem:[#allocation5 + $0xb8] sm:$0xff]
        %v7439 = vld [vmem:[#allocation5 + $0xc0] sm:$0xff]
        %v7440 = vld [vmem:[#allocation5 + $0xc8] sm:$0xff]
        %v7441 = vld [vmem:[#allocation5 + $0xd0] sm:$0xff]
        %v7442 = vld [vmem:[#allocation5 + $0xd8] sm:$0xff]
        %v7443 = vld [vmem:[#allocation5 + $0xe0] sm:$0xff]
        %v7444 = vld [vmem:[#allocation5 + $0xe8] sm:$0xff]
        %v7445 = vld [vmem:[#allocation5 + $0xf0] sm:$0xff]
        %v7446 = vld [vmem:[#allocation5 + $0xf8] sm:$0xff]
        %v7447 = vld [vmem:[%s4] sm:$0xff]
        %v7448 = vld [vmem:[%s4 + $0x8] sm:$0xff]
        %v7449 = vld [vmem:[%s4 + $0x10] sm:$0xff]
        %v7450 = vld [vmem:[%s4 + $0x18] sm:$0xff]
        %v7451 = vld [vmem:[%s4 + $0x20] sm:$0xf]
        %v7452 = vld [vmem:[%s5] sm:$0x1]
        %v7454 = vlaneseq
        %v7455 = vshrl.u32 %v7454, 7
        %v7456 = vsub.s32 0, %v7455
        %v7457 = vrot.slane %v7452, %v7456
        %vm7459 = vcmask 293888
        %v7461 = vsel %vm7459, %v7415, 0
        %v7464 = vsel %vm7459, %v7416, 0
        %v7467 = vsel %vm7459, %v7417, 0
        %v7470 = vsel %vm7459, %v7418, 0
        %v7473 = vsel %vm7459, %v7419, 0
        %v7476 = vsel %vm7459, %v7420, 0
        %v7479 = vsel %vm7459, %v7421, 0
        %v7482 = vsel %vm7459, %v7422, 0
        %v7485 = vsel %vm7459, %v7423, 0
        %v7488 = vsel %vm7459, %v7424, 0
        %v7491 = vsel %vm7459, %v7425, 0
        %v7494 = vsel %vm7459, %v7426, 0
        %v7497 = vsel %vm7459, %v7427, 0
        %v7500 = vsel %vm7459, %v7428, 0
        %v7503 = vsel %vm7459, %v7429, 0
        %v7506 = vsel %vm7459, %v7430, 0
        %v7509 = vsel %vm7459, %v7431, 0
        %v7512 = vsel %vm7459, %v7432, 0
        %v7515 = vsel %vm7459, %v7433, 0
        %v7518 = vsel %vm7459, %v7434, 0
        %v7521 = vsel %vm7459, %v7435, 0
        %v7524 = vsel %vm7459, %v7436, 0
        %v7527 = vsel %vm7459, %v7437, 0
        %v7530 = vsel %vm7459, %v7438, 0
        %v7533 = vsel %vm7459, %v7439, 0
        %v7536 = vsel %vm7459, %v7440, 0
        %v7539 = vsel %vm7459, %v7441, 0
        %v7542 = vsel %vm7459, %v7442, 0
        %v7545 = vsel %vm7459, %v7443, 0
        %v7548 = vsel %vm7459, %v7444, 0
        %v7551 = vsel %vm7459, %v7445, 0
        %v7554 = vsel %vm7459, %v7446, 0
        %v7557 = vsel %vm419, %v7451, 0
        %7559 = vmatprep.subr.mxu0 0.0
        %7560 = vmatpush1.msra.mxu0 %v7447
        %7561 = vmatprep.subr.mxu0 0.0
        %7562 = vmatpush1.msra.mxu0 %v7448
        %7563 = vmatprep.subr.mxu0 0.0
        %7564 = vmatpush1.msra.mxu0 %v7449
        %7565 = vmatprep.subr.mxu0 0.0
        %7566 = vmatpush1.msra.mxu0 %v7450
        %7567 = vmatprep.subr.mxu0 0.0
        %7568 = vmatpush1.msra.mxu0 %v7557
        %7569 = vmatprep.subr.mxu0 0.0
        %7570 = vmatpush1.msra.mxu0 0.0
        %7571 = vmatprep.subr.mxu0 0.0
        %7572 = vmatpush1.msra.mxu0 0.0
        %7573 = vmatprep.subr.mxu0 0.0
        %7574 = vmatpush1.msra.mxu0 0.0
        %7575 = vmatprep.subr.mxu0 0.0
        %7576 = vmatpush1.msra.mxu0 0.0
        %7577 = vmatprep.subr.mxu0 0.0
        %7578 = vmatpush1.msra.mxu0 0.0
        %7579 = vmatprep.subr.mxu0 0.0
        %7580 = vmatpush1.msra.mxu0 0.0
        %7581 = vmatprep.subr.mxu0 0.0
        %7582 = vmatpush1.msra.mxu0 0.0
        %7583 = vmatprep.subr.mxu0 0.0
        %7584 = vmatpush1.msra.mxu0 0.0
        %7585 = vmatprep.subr.mxu0 0.0
        %7586 = vmatpush1.msra.mxu0 0.0
        %7587 = vmatprep.subr.mxu0 0.0
        %7588 = vmatpush1.msra.mxu0 0.0
        %7589 = vmatprep.subr.mxu0 0.0
        %7590 = vmatpush1.msra.mxu0 0.0
        %7591 = vmatprep.subr.mxu0 0.0
        %7592 = vmatpush1.msra.mxu0 0.0
        %7593 = vmatprep.subr.mxu0 0.0
        %7594 = vmatpush1.msra.mxu0 0.0
        %7595 = vmatprep.subr.mxu0 0.0
        %7596 = vmatpush1.msra.mxu0 0.0
        %7597 = vmatprep.subr.mxu0 0.0
        %7598 = vmatpush1.msra.mxu0 0.0
        %7599 = vmatprep.subr.mxu0 0.0
        %7600 = vmatpush1.msra.mxu0 0.0
        %7601 = vmatprep.subr.mxu0 0.0
        %7602 = vmatpush1.msra.mxu0 0.0
        %7603 = vmatprep.subr.mxu0 0.0
        %7604 = vmatpush1.msra.mxu0 0.0
        %7605 = vmatprep.subr.mxu0 0.0
        %7606 = vmatpush1.msra.mxu0 0.0
        %7607 = vmatprep.subr.mxu0 0.0
        %7608 = vmatpush1.msra.mxu0 0.0
        %7609 = vmatprep.subr.mxu0 0.0
        %7610 = vmatpush1.msra.mxu0 0.0
        %7611 = vmatprep.subr.mxu0 0.0
        %7612 = vmatpush1.msra.mxu0 0.0
        %7613 = vmatprep.subr.mxu0 0.0
        %7614 = vmatpush1.msra.mxu0 0.0
        %7615 = vmatprep.subr.mxu0 0.0
        %7616 = vmatpush1.msra.mxu0 0.0
        %7617 = vmatprep.subr.mxu0 0.0
        %7618 = vmatpush1.msra.mxu0 0.0
        %7619 = vmatprep.subr.mxu0 0.0
        %7620 = vmatpush1.msra.mxu0 0.0
        %7621 = vmatprep.subr.mxu0 0.0
        %7622 = vmatpush1.msra.mxu0 0.0
        %7623 = vmatprep.mubr.f32.mxu0 0.0
        %7624 = vmatmul.mubr.f32.gmra.mrb[0].mxu0 %v7461
        %v7625 = vpop.f32.mrb[0].mxu0
        %v7626 = vadd.f32 %v7457, %v7625
        %v7627 = vpop.f32.mrb[0].mxu0
        %7628 = vmatprep.mubr.f32.mxu0 0.0
        %7629 = vmatmul.mubr.f32.gmra.mrb[0].mxu0 %v7464
        %v7630 = vpop.f32.mrb[0].mxu0
        %v7631 = vadd.f32 %v7457, %v7630
        %v7632 = vpop.f32.mrb[0].mxu0
        %7633 = vmatprep.mubr.f32.mxu0 0.0
        %7634 = vmatmul.mubr.f32.gmra.mrb[0].mxu0 %v7467
        %v7635 = vpop.f32.mrb[0].mxu0
        %v7636 = vadd.f32 %v7457, %v7635
        %v7637 = vpop.f32.mrb[0].mxu0
        %7638 = vmatprep.mubr.f32.mxu0 0.0
        %7639 = vmatmul.mubr.f32.gmra.mrb[0].mxu0 %v7470
        %v7640 = vpop.f32.mrb[0].mxu0
        %v7641 = vadd.f32 %v7457, %v7640
        %v7642 = vpop.f32.mrb[0].mxu0
        %7643 = vmatprep.mubr.f32.mxu0 0.0
        %7644 = vmatmul.mubr.f32.gmra.mrb[0].mxu0 %v7473
        %v7645 = vpop.f32.mrb[0].mxu0
        %v7646 = vadd.f32 %v7457, %v7645
        %v7647 = vpop.f32.mrb[0].mxu0
        %7648 = vmatprep.mubr.f32.mxu0 0.0
        %7649 = vmatmul.mubr.f32.gmra.mrb[0].mxu0 %v7476
        %v7650 = vpop.f32.mrb[0].mxu0
        %v7651 = vadd.f32 %v7457, %v7650
        %v7652 = vpop.f32.mrb[0].mxu0
        %7653 = vmatprep.mubr.f32.mxu0 0.0
        %7654 = vmatmul.mubr.f32.gmra.mrb[0].mxu0 %v7479
        %v7655 = vpop.f32.mrb[0].mxu0
        %v7656 = vadd.f32 %v7457, %v7655
        %v7657 = vpop.f32.mrb[0].mxu0
        %7658 = vmatprep.mubr.f32.mxu0 0.0
        %7659 = vmatmul.mubr.f32.gmra.mrb[0].mxu0 %v7482
        %v7660 = vpop.f32.mrb[0].mxu0
        %v7661 = vadd.f32 %v7457, %v7660
        %v7662 = vpop.f32.mrb[0].mxu0
        %7663 = vmatprep.mubr.f32.mxu0 0.0
        %7664 = vmatmul.mubr.f32.gmra.mrb[0].mxu0 %v7485
        %v7665 = vpop.f32.mrb[0].mxu0
        %v7666 = vadd.f32 %v7457, %v7665
        %v7667 = vpop.f32.mrb[0].mxu0
        %7668 = vmatprep.mubr.f32.mxu0 0.0
        %7669 = vmatmul.mubr.f32.gmra.mrb[0].mxu0 %v7488
        %v7670 = vpop.f32.mrb[0].mxu0
        %v7671 = vadd.f32 %v7457, %v7670
        %v7672 = vpop.f32.mrb[0].mxu0
        %7673 = vmatprep.mubr.f32.mxu0 0.0
        %7674 = vmatmul.mubr.f32.gmra.mrb[0].mxu0 %v7491
        %v7675 = vpop.f32.mrb[0].mxu0
        %v7676 = vadd.f32 %v7457, %v7675
        %v7677 = vpop.f32.mrb[0].mxu0
        %7678 = vmatprep.mubr.f32.mxu0 0.0
        %7679 = vmatmul.mubr.f32.gmra.mrb[0].mxu0 %v7494
        %v7680 = vpop.f32.mrb[0].mxu0
        %v7681 = vadd.f32 %v7457, %v7680
        %v7682 = vpop.f32.mrb[0].mxu0
        %7683 = vmatprep.mubr.f32.mxu0 0.0
        %7684 = vmatmul.mubr.f32.gmra.mrb[0].mxu0 %v7497
        %v7685 = vpop.f32.mrb[0].mxu0
        %v7686 = vadd.f32 %v7457, %v7685
        %v7687 = vpop.f32.mrb[0].mxu0
        %7688 = vmatprep.mubr.f32.mxu0 0.0
        %7689 = vmatmul.mubr.f32.gmra.mrb[0].mxu0 %v7500
        %v7690 = vpop.f32.mrb[0].mxu0
        %v7691 = vadd.f32 %v7457, %v7690
        %v7692 = vpop.f32.mrb[0].mxu0
        %7693 = vmatprep.mubr.f32.mxu0 0.0
        %7694 = vmatmul.mubr.f32.gmra.mrb[0].mxu0 %v7503
        %v7695 = vpop.f32.mrb[0].mxu0
        %v7696 = vadd.f32 %v7457, %v7695
        %v7697 = vpop.f32.mrb[0].mxu0
        %7698 = vmatprep.mubr.f32.mxu0 0.0
        %7699 = vmatmul.mubr.f32.gmra.mrb[0].mxu0 %v7506
        %v7700 = vpop.f32.mrb[0].mxu0
        %v7701 = vadd.f32 %v7457, %v7700
        %v7702 = vpop.f32.mrb[0].mxu0
        %7703 = vmatprep.mubr.f32.mxu0 0.0
        %7704 = vmatmul.mubr.f32.gmra.mrb[0].mxu0 %v7509
        %v7705 = vpop.f32.mrb[0].mxu0
        %v7706 = vadd.f32 %v7457, %v7705
        %v7707 = vpop.f32.mrb[0].mxu0
        %7708 = vmatprep.mubr.f32.mxu0 0.0
        %7709 = vmatmul.mubr.f32.gmra.mrb[0].mxu0 %v7512
        %v7710 = vpop.f32.mrb[0].mxu0
        %v7711 = vadd.f32 %v7457, %v7710
        %v7712 = vpop.f32.mrb[0].mxu0
        %7713 = vmatprep.mubr.f32.mxu0 0.0
        %7714 = vmatmul.mubr.f32.gmra.mrb[0].mxu0 %v7515
        %v7715 = vpop.f32.mrb[0].mxu0
        %v7716 = vadd.f32 %v7457, %v7715
        %v7717 = vpop.f32.mrb[0].mxu0
        %7718 = vmatprep.mubr.f32.mxu0 0.0
        %7719 = vmatmul.mubr.f32.gmra.mrb[0].mxu0 %v7518
        %v7720 = vpop.f32.mrb[0].mxu0
        %v7721 = vadd.f32 %v7457, %v7720
        %v7722 = vpop.f32.mrb[0].mxu0
        %7723 = vmatprep.mubr.f32.mxu0 0.0
        %7724 = vmatmul.mubr.f32.gmra.mrb[0].mxu0 %v7521
        %v7725 = vpop.f32.mrb[0].mxu0
        %v7726 = vadd.f32 %v7457, %v7725
        %v7727 = vpop.f32.mrb[0].mxu0
        %7728 = vmatprep.mubr.f32.mxu0 0.0
        %7729 = vmatmul.mubr.f32.gmra.mrb[0].mxu0 %v7524
        %v7730 = vpop.f32.mrb[0].mxu0
        %v7731 = vadd.f32 %v7457, %v7730
        %v7732 = vpop.f32.mrb[0].mxu0
        %7733 = vmatprep.mubr.f32.mxu0 0.0
        %7734 = vmatmul.mubr.f32.gmra.mrb[0].mxu0 %v7527
        %v7735 = vpop.f32.mrb[0].mxu0
        %v7736 = vadd.f32 %v7457, %v7735
        %v7737 = vpop.f32.mrb[0].mxu0
        %7738 = vmatprep.mubr.f32.mxu0 0.0
        %7739 = vmatmul.mubr.f32.gmra.mrb[0].mxu0 %v7530
        %v7740 = vpop.f32.mrb[0].mxu0
        %v7741 = vadd.f32 %v7457, %v7740
        %v7742 = vpop.f32.mrb[0].mxu0
        %7743 = vmatprep.mubr.f32.mxu0 0.0
        %7744 = vmatmul.mubr.f32.gmra.mrb[0].mxu0 %v7533
        %v7745 = vpop.f32.mrb[0].mxu0
        %v7746 = vadd.f32 %v7457, %v7745
        %v7747 = vpop.f32.mrb[0].mxu0
        %7748 = vmatprep.mubr.f32.mxu0 0.0
        %7749 = vmatmul.mubr.f32.gmra.mrb[0].mxu0 %v7536
        %v7750 = vpop.f32.mrb[0].mxu0
        %v7751 = vadd.f32 %v7457, %v7750
        %v7752 = vpop.f32.mrb[0].mxu0
        %7753 = vmatprep.mubr.f32.mxu0 0.0
        %7754 = vmatmul.mubr.f32.gmra.mrb[0].mxu0 %v7539
        %v7755 = vpop.f32.mrb[0].mxu0
        %v7756 = vadd.f32 %v7457, %v7755
        %v7757 = vpop.f32.mrb[0].mxu0
        %7758 = vmatprep.mubr.f32.mxu0 0.0
        %7759 = vmatmul.mubr.f32.gmra.mrb[0].mxu0 %v7542
        %v7760 = vpop.f32.mrb[0].mxu0
        %v7761 = vadd.f32 %v7457, %v7760
        %v7762 = vpop.f32.mrb[0].mxu0
        %7763 = vmatprep.mubr.f32.mxu0 0.0
        %7764 = vmatmul.mubr.f32.gmra.mrb[0].mxu0 %v7545
        %v7765 = vpop.f32.mrb[0].mxu0
        %v7766 = vadd.f32 %v7457, %v7765
        %v7767 = vpop.f32.mrb[0].mxu0
        %7768 = vmatprep.mubr.f32.mxu0 0.0
        %7769 = vmatmul.mubr.f32.gmra.mrb[0].mxu0 %v7548
        %v7770 = vpop.f32.mrb[0].mxu0
        %v7771 = vadd.f32 %v7457, %v7770
        %v7772 = vpop.f32.mrb[0].mxu0
        %7773 = vmatprep.mubr.f32.mxu0 0.0
        %7774 = vmatmul.mubr.f32.gmra.mrb[0].mxu0 %v7551
        %v7775 = vpop.f32.mrb[0].mxu0
        %v7776 = vadd.f32 %v7457, %v7775
        %v7777 = vpop.f32.mrb[0].mxu0
        %7778 = vmatprep.mubr.f32.mxu0 0.0
        %7779 = vmatmul.mubr.f32.gmra.mrb[0].mxu0 %v7554
        %v7780 = vpop.f32.mrb[0].mxu0
        %v7781 = vadd.f32 %v7457, %v7780
        %v7782 = vpop.f32.mrb[0].mxu0
        %7783 = vdwg.mxu0
        %v7784 = vmax.f32 %v7626, 0.0
        %v7785 = vmax.f32 %v7631, 0.0
        %v7786 = vmax.f32 %v7636, 0.0
        %v7787 = vmax.f32 %v7641, 0.0
        %v7788 = vmax.f32 %v7646, 0.0
        %v7789 = vmax.f32 %v7651, 0.0
        %v7790 = vmax.f32 %v7656, 0.0
        %v7791 = vmax.f32 %v7661, 0.0
        %v7792 = vmax.f32 %v7666, 0.0
        %v7793 = vmax.f32 %v7671, 0.0
        %v7794 = vmax.f32 %v7676, 0.0
        %v7795 = vmax.f32 %v7681, 0.0
        %v7796 = vmax.f32 %v7686, 0.0
        %v7797 = vmax.f32 %v7691, 0.0
        %v7798 = vmax.f32 %v7696, 0.0
        %v7799 = vmax.f32 %v7701, 0.0
        %v7800 = vmax.f32 %v7706, 0.0
        %v7801 = vmax.f32 %v7711, 0.0
        %v7802 = vmax.f32 %v7716, 0.0
        %v7803 = vmax.f32 %v7721, 0.0
        %v7804 = vmax.f32 %v7726, 0.0
        %v7805 = vmax.f32 %v7731, 0.0
        %v7806 = vmax.f32 %v7736, 0.0
        %v7807 = vmax.f32 %v7741, 0.0
        %v7808 = vmax.f32 %v7746, 0.0
        %v7809 = vmax.f32 %v7751, 0.0
        %v7810 = vmax.f32 %v7756, 0.0
        %v7811 = vmax.f32 %v7761, 0.0
        %v7812 = vmax.f32 %v7766, 0.0
        %v7813 = vmax.f32 %v7771, 0.0
        %v7814 = vmax.f32 %v7776, 0.0
        %v7815 = vmax.f32 %v7781, 0.0
        %v7816 = vld [vmem:[%s8] sm:$0xf]
        %v7818 = vrot.slane %v7816, 2
        %v7819 = vsel %vm2175, %v4484, 0
        %v7821 = vsel %vm2175, %v4486, 0
        %v7823 = vsel %vm2175, %v4489, 0
        %v7825 = vsel %vm2175, %v4491, 0
        %v7827 = vsel %vm2175, %v4494, 0
        %v7829 = vsel %vm2175, %v4496, 0
        %v7831 = vsel %vm2175, %v4499, 0
        %v7833 = vsel %vm2175, %v4501, 0
        %v7835 = vsel %vm2175, %v4504, 0
        %v7837 = vsel %vm2175, %v4506, 0
        %v7839 = vsel %vm2175, %v4509, 0
        %v7841 = vsel %vm2175, %v4511, 0
        %v7843 = vsel %vm2175, %v4514, 0
        %v7845 = vsel %vm2175, %v4516, 0
        %v7847 = vsel %vm2175, %v4519, 0
        %v7849 = vsel %vm2175, %v4521, 0
        %v7851 = vsel %vm2175, %v4524, 0
        %v7853 = vsel %vm2175, %v4526, 0
        %v7855 = vsel %vm2175, %v4529, 0
        %v7857 = vsel %vm2175, %v4531, 0
        %v7859 = vsel %vm2175, %v4534, 0
        %v7861 = vsel %vm2175, %v4536, 0
        %v7863 = vsel %vm2175, %v4539, 0
        %v7865 = vsel %vm2175, %v4541, 0
        %v7867 = vsel %vm2175, %v4544, 0
        %v7869 = vsel %vm2175, %v4546, 0
        %v7871 = vsel %vm2175, %v4549, 0
        %v7873 = vsel %vm2175, %v4551, 0
        %v7875 = vsel %vm2175, %v4554, 0
        %v7877 = vsel %vm2175, %v4556, 0
        %v7879 = vsel %vm2175, %v6063, 0
        %v7881 = vsel %vm2175, %v6065, 0
        %vm7883 = vcmask 1041408
        %v7884 = vsel %vm7883, %v7818, 0
        %7886 = vmatprep.subr.mxu0 0.0
        %7887 = vmatpush1.msra.mxu0 %v7884
        %7888 = vmatprep.subr.mxu0 0.0
        %7889 = vmatpush1.msra.mxu0 0.0
        %7890 = vmatprep.subr.mxu0 0.0
        %7891 = vmatpush1.msra.mxu0 0.0
        %7892 = vmatprep.subr.mxu0 0.0
        %7893 = vmatpush1.msra.mxu0 0.0
        %7894 = vmatprep.subr.mxu0 0.0
        %7895 = vmatpush1.msra.mxu0 0.0
        %7896 = vmatprep.subr.mxu0 0.0
        %7897 = vmatpush1.msra.mxu0 0.0
        %7898 = vmatprep.subr.mxu0 0.0
        %7899 = vmatpush1.msra.mxu0 0.0
        %7900 = vmatprep.subr.mxu0 0.0
        %7901 = vmatpush1.msra.mxu0 0.0
        %7902 = vmatprep.subr.mxu0 0.0
        %7903 = vmatpush1.msra.mxu0 0.0
        %7904 = vmatprep.subr.mxu0 0.0
        %7905 = vmatpush1.msra.mxu0 0.0
        %7906 = vmatprep.subr.mxu0 0.0
        %7907 = vmatpush1.msra.mxu0 0.0
        %7908 = vmatprep.subr.mxu0 0.0
        %7909 = vmatpush1.msra.mxu0 0.0
        %7910 = vmatprep.subr.mxu0 0.0
        %7911 = vmatpush1.msra.mxu0 0.0
        %7912 = vmatprep.subr.mxu0 0.0
        %7913 = vmatpush1.msra.mxu0 0.0
        %7914 = vmatprep.subr.mxu0 0.0
        %7915 = vmatpush1.msra.mxu0 0.0
        %7916 = vmatprep.subr.mxu0 0.0
        %7917 = vmatpush1.msra.mxu0 0.0
        %7918 = vmatprep.subr.mxu0 0.0
        %7919 = vmatpush1.msra.mxu0 0.0
        %7920 = vmatprep.subr.mxu0 0.0
        %7921 = vmatpush1.msra.mxu0 0.0
        %7922 = vmatprep.subr.mxu0 0.0
        %7923 = vmatpush1.msra.mxu0 0.0
        %7924 = vmatprep.subr.mxu0 0.0
        %7925 = vmatpush1.msra.mxu0 0.0
        %7926 = vmatprep.subr.mxu0 0.0
        %7927 = vmatpush1.msra.mxu0 0.0
        %7928 = vmatprep.subr.mxu0 0.0
        %7929 = vmatpush1.msra.mxu0 0.0
        %7930 = vmatprep.subr.mxu0 0.0
        %7931 = vmatpush1.msra.mxu0 0.0
        %7932 = vmatprep.subr.mxu0 0.0
        %7933 = vmatpush1.msra.mxu0 0.0
        %7934 = vmatprep.subr.mxu0 0.0
        %7935 = vmatpush1.msra.mxu0 0.0
        %7936 = vmatprep.subr.mxu0 0.0
        %7937 = vmatpush1.msra.mxu0 0.0
        %7938 = vmatprep.subr.mxu0 0.0
        %7939 = vmatpush1.msra.mxu0 0.0
        %7940 = vmatprep.subr.mxu0 0.0
        %7941 = vmatpush1.msra.mxu0 0.0
        %7942 = vmatprep.subr.mxu0 0.0
        %7943 = vmatpush1.msra.mxu0 0.0
        %7944 = vmatprep.subr.mxu0 0.0
        %7945 = vmatpush1.msra.mxu0 0.0
        %7946 = vmatprep.subr.mxu0 0.0
        %7947 = vmatpush1.msra.mxu0 0.0
        %7948 = vmatprep.subr.mxu0 0.0
        %7949 = vmatpush1.msra.mxu0 0.0
        %7950 = vmatprep.mubr.f32.mxu0 0.0
        %7951 = vmatmul.mubr.f32.gmra.mrb[0].mxu0 %v7819
        %v7952 = vpop.f32.mrb[0].mxu0
        %v7953 = vadd.f32 0.0, %v7952
        %v7954 = vpop.f32.mrb[0].mxu0
        %7955 = vmatprep.mubr.f32.mxu0 0.0
        %7956 = vmatmul.mubr.f32.gmra.mrb[0].mxu0 %v7821
        %v7957 = vpop.f32.mrb[0].mxu0
        %v7958 = vadd.f32 0.0, %v7957
        %v7959 = vpop.f32.mrb[0].mxu0
        %7960 = vmatprep.mubr.f32.mxu0 0.0
        %7961 = vmatmul.mubr.f32.gmra.mrb[0].mxu0 %v7823
        %v7962 = vpop.f32.mrb[0].mxu0
        %v7963 = vadd.f32 0.0, %v7962
        %v7964 = vpop.f32.mrb[0].mxu0
        %7965 = vmatprep.mubr.f32.mxu0 0.0
        %7966 = vmatmul.mubr.f32.gmra.mrb[0].mxu0 %v7825
        %v7967 = vpop.f32.mrb[0].mxu0
        %v7968 = vadd.f32 0.0, %v7967
        %v7969 = vpop.f32.mrb[0].mxu0
        %7970 = vmatprep.mubr.f32.mxu0 0.0
        %7971 = vmatmul.mubr.f32.gmra.mrb[0].mxu0 %v7827
        %v7972 = vpop.f32.mrb[0].mxu0
        %v7973 = vadd.f32 0.0, %v7972
        %v7974 = vpop.f32.mrb[0].mxu0
        %7975 = vmatprep.mubr.f32.mxu0 0.0
        %7976 = vmatmul.mubr.f32.gmra.mrb[0].mxu0 %v7829
        %v7977 = vpop.f32.mrb[0].mxu0
        %v7978 = vadd.f32 0.0, %v7977
        %v7979 = vpop.f32.mrb[0].mxu0
        %7980 = vmatprep.mubr.f32.mxu0 0.0
        %7981 = vmatmul.mubr.f32.gmra.mrb[0].mxu0 %v7831
        %v7982 = vpop.f32.mrb[0].mxu0
        %v7983 = vadd.f32 0.0, %v7982
        %v7984 = vpop.f32.mrb[0].mxu0
        %7985 = vmatprep.mubr.f32.mxu0 0.0
        %7986 = vmatmul.mubr.f32.gmra.mrb[0].mxu0 %v7833
        %v7987 = vpop.f32.mrb[0].mxu0
        %v7988 = vadd.f32 0.0, %v7987
        %v7989 = vpop.f32.mrb[0].mxu0
        %7990 = vmatprep.mubr.f32.mxu0 0.0
        %7991 = vmatmul.mubr.f32.gmra.mrb[0].mxu0 %v7835
        %v7992 = vpop.f32.mrb[0].mxu0
        %v7993 = vadd.f32 0.0, %v7992
        %v7994 = vpop.f32.mrb[0].mxu0
        %7995 = vmatprep.mubr.f32.mxu0 0.0
        %7996 = vmatmul.mubr.f32.gmra.mrb[0].mxu0 %v7837
        %v7997 = vpop.f32.mrb[0].mxu0
        %v7998 = vadd.f32 0.0, %v7997
        %v7999 = vpop.f32.mrb[0].mxu0
        %8000 = vmatprep.mubr.f32.mxu0 0.0
        %8001 = vmatmul.mubr.f32.gmra.mrb[0].mxu0 %v7839
        %v8002 = vpop.f32.mrb[0].mxu0
        %v8003 = vadd.f32 0.0, %v8002
        %v8004 = vpop.f32.mrb[0].mxu0
        %8005 = vmatprep.mubr.f32.mxu0 0.0
        %8006 = vmatmul.mubr.f32.gmra.mrb[0].mxu0 %v7841
        %v8007 = vpop.f32.mrb[0].mxu0
        %v8008 = vadd.f32 0.0, %v8007
        %v8009 = vpop.f32.mrb[0].mxu0
        %8010 = vmatprep.mubr.f32.mxu0 0.0
        %8011 = vmatmul.mubr.f32.gmra.mrb[0].mxu0 %v7843
        %v8012 = vpop.f32.mrb[0].mxu0
        %v8013 = vadd.f32 0.0, %v8012
        %v8014 = vpop.f32.mrb[0].mxu0
        %8015 = vmatprep.mubr.f32.mxu0 0.0
        %8016 = vmatmul.mubr.f32.gmra.mrb[0].mxu0 %v7845
        %v8017 = vpop.f32.mrb[0].mxu0
        %v8018 = vadd.f32 0.0, %v8017
        %v8019 = vpop.f32.mrb[0].mxu0
        %8020 = vmatprep.mubr.f32.mxu0 0.0
        %8021 = vmatmul.mubr.f32.gmra.mrb[0].mxu0 %v7847
        %v8022 = vpop.f32.mrb[0].mxu0
        %v8023 = vadd.f32 0.0, %v8022
        %v8024 = vpop.f32.mrb[0].mxu0
        %8025 = vmatprep.mubr.f32.mxu0 0.0
        %8026 = vmatmul.mubr.f32.gmra.mrb[0].mxu0 %v7849
        %v8027 = vpop.f32.mrb[0].mxu0
        %v8028 = vadd.f32 0.0, %v8027
        %v8029 = vpop.f32.mrb[0].mxu0
        %8030 = vmatprep.mubr.f32.mxu0 0.0
        %8031 = vmatmul.mubr.f32.gmra.mrb[0].mxu0 %v7851
        %v8032 = vpop.f32.mrb[0].mxu0
        %v8033 = vadd.f32 0.0, %v8032
        %v8034 = vpop.f32.mrb[0].mxu0
        %8035 = vmatprep.mubr.f32.mxu0 0.0
        %8036 = vmatmul.mubr.f32.gmra.mrb[0].mxu0 %v7853
        %v8037 = vpop.f32.mrb[0].mxu0
        %v8038 = vadd.f32 0.0, %v8037
        %v8039 = vpop.f32.mrb[0].mxu0
        %8040 = vmatprep.mubr.f32.mxu0 0.0
        %8041 = vmatmul.mubr.f32.gmra.mrb[0].mxu0 %v7855
        %v8042 = vpop.f32.mrb[0].mxu0
        %v8043 = vadd.f32 0.0, %v8042
        %v8044 = vpop.f32.mrb[0].mxu0
        %8045 = vmatprep.mubr.f32.mxu0 0.0
        %8046 = vmatmul.mubr.f32.gmra.mrb[0].mxu0 %v7857
        %v8047 = vpop.f32.mrb[0].mxu0
        %v8048 = vadd.f32 0.0, %v8047
        %v8049 = vpop.f32.mrb[0].mxu0
        %8050 = vmatprep.mubr.f32.mxu0 0.0
        %8051 = vmatmul.mubr.f32.gmra.mrb[0].mxu0 %v7859
        %v8052 = vpop.f32.mrb[0].mxu0
        %v8053 = vadd.f32 0.0, %v8052
        %v8054 = vpop.f32.mrb[0].mxu0
        %8055 = vmatprep.mubr.f32.mxu0 0.0
        %8056 = vmatmul.mubr.f32.gmra.mrb[0].mxu0 %v7861
        %v8057 = vpop.f32.mrb[0].mxu0
        %v8058 = vadd.f32 0.0, %v8057
        %v8059 = vpop.f32.mrb[0].mxu0
        %8060 = vmatprep.mubr.f32.mxu0 0.0
        %8061 = vmatmul.mubr.f32.gmra.mrb[0].mxu0 %v7863
        %v8062 = vpop.f32.mrb[0].mxu0
        %v8063 = vadd.f32 0.0, %v8062
        %v8064 = vpop.f32.mrb[0].mxu0
        %8065 = vmatprep.mubr.f32.mxu0 0.0
        %8066 = vmatmul.mubr.f32.gmra.mrb[0].mxu0 %v7865
        %v8067 = vpop.f32.mrb[0].mxu0
        %v8068 = vadd.f32 0.0, %v8067
        %v8069 = vpop.f32.mrb[0].mxu0
        %8070 = vmatprep.mubr.f32.mxu0 0.0
        %8071 = vmatmul.mubr.f32.gmra.mrb[0].mxu0 %v7867
        %v8072 = vpop.f32.mrb[0].mxu0
        %v8073 = vadd.f32 0.0, %v8072
        %v8074 = vpop.f32.mrb[0].mxu0
        %8075 = vmatprep.mubr.f32.mxu0 0.0
        %8076 = vmatmul.mubr.f32.gmra.mrb[0].mxu0 %v7869
        %v8077 = vpop.f32.mrb[0].mxu0
        %v8078 = vadd.f32 0.0, %v8077
        %v8079 = vpop.f32.mrb[0].mxu0
        %8080 = vmatprep.mubr.f32.mxu0 0.0
        %8081 = vmatmul.mubr.f32.gmra.mrb[0].mxu0 %v7871
        %v8082 = vpop.f32.mrb[0].mxu0
        %v8083 = vadd.f32 0.0, %v8082
        %v8084 = vpop.f32.mrb[0].mxu0
        %8085 = vmatprep.mubr.f32.mxu0 0.0
        %8086 = vmatmul.mubr.f32.gmra.mrb[0].mxu0 %v7873
        %v8087 = vpop.f32.mrb[0].mxu0
        %v8088 = vadd.f32 0.0, %v8087
        %v8089 = vpop.f32.mrb[0].mxu0
        %8090 = vmatprep.mubr.f32.mxu0 0.0
        %8091 = vmatmul.mubr.f32.gmra.mrb[0].mxu0 %v7875
        %v8092 = vpop.f32.mrb[0].mxu0
        %v8093 = vadd.f32 0.0, %v8092
        %v8094 = vpop.f32.mrb[0].mxu0
        %8095 = vmatprep.mubr.f32.mxu0 0.0
        %8096 = vmatmul.mubr.f32.gmra.mrb[0].mxu0 %v7877
        %v8097 = vpop.f32.mrb[0].mxu0
        %v8098 = vadd.f32 0.0, %v8097
        %v8099 = vpop.f32.mrb[0].mxu0
        %8100 = vmatprep.mubr.f32.mxu0 0.0
        %8101 = vmatmul.mubr.f32.gmra.mrb[0].mxu0 %v7879
        %v8102 = vpop.f32.mrb[0].mxu0
        %v8103 = vadd.f32 0.0, %v8102
        %v8104 = vpop.f32.mrb[0].mxu0
        %8105 = vmatprep.mubr.f32.mxu0 0.0
        %8106 = vmatmul.mubr.f32.gmra.mrb[0].mxu0 %v7881
        %v8107 = vpop.f32.mrb[0].mxu0
        %v8108 = vadd.f32 0.0, %v8107
        %v8109 = vpop.f32.mrb[0].mxu0
        %8110 = vdwg.mxu0
        %v8111 = vsel %vm2175, %v3837, 0
        %v8113 = vsel %vm2175, %v3854, 0
        %v8115 = vsel %vm2175, %v3871, 0
        %v8117 = vsel %vm2175, %v3888, 0
        %v8119 = vsel %vm2175, %v3905, 0
        %v8121 = vsel %vm2175, %v3922, 0
        %v8123 = vsel %vm2175, %v3939, 0
        %v8125 = vsel %vm2175, %v3956, 0
        %v8127 = vsel %vm2175, %v3973, 0
        %v8129 = vsel %vm2175, %v3990, 0
        %v8131 = vsel %vm2175, %v4007, 0
        %v8133 = vsel %vm2175, %v4024, 0
        %v8135 = vsel %vm2175, %v4041, 0
        %v8137 = vsel %vm2175, %v4058, 0
        %v8139 = vsel %vm2175, %v4075, 0
        %v8141 = vsel %vm2175, %v4092, 0
        %v8143 = vsel %vm2175, %v4109, 0
        %v8145 = vsel %vm2175, %v4126, 0
        %v8147 = vsel %vm2175, %v4143, 0
        %v8149 = vsel %vm2175, %v4160, 0
        %v8151 = vsel %vm2175, %v4177, 0
        %v8153 = vsel %vm2175, %v4194, 0
        %v8155 = vsel %vm2175, %v4211, 0
        %v8157 = vsel %vm2175, %v4228, 0
        %v8159 = vsel %vm2175, %v4245, 0
        %v8161 = vsel %vm2175, %v4262, 0
        %v8163 = vsel %vm2175, %v4279, 0
        %v8165 = vsel %vm2175, %v4296, 0
        %v8167 = vsel %vm2175, %v4313, 0
        %v8169 = vsel %vm2175, %v4330, 0
        %v8171 = vsel %vm2175, %v5913, 0
        %v8173 = vsel %vm2175, %v5930, 0
        %v8175 = vsel %vm7883, %v7816, 0
        %8177 = vmatprep.subr.mxu0 0.0
        %8178 = vmatpush1.msra.mxu0 %v8175
        %8179 = vmatprep.subr.mxu0 0.0
        %8180 = vmatpush1.msra.mxu0 0.0
        %8181 = vmatprep.subr.mxu0 0.0
        %8182 = vmatpush1.msra.mxu0 0.0
        %8183 = vmatprep.subr.mxu0 0.0
        %8184 = vmatpush1.msra.mxu0 0.0
        %8185 = vmatprep.subr.mxu0 0.0
        %8186 = vmatpush1.msra.mxu0 0.0
        %8187 = vmatprep.subr.mxu0 0.0
        %8188 = vmatpush1.msra.mxu0 0.0
        %8189 = vmatprep.subr.mxu0 0.0
        %8190 = vmatpush1.msra.mxu0 0.0
        %8191 = vmatprep.subr.mxu0 0.0
        %8192 = vmatpush1.msra.mxu0 0.0
        %8193 = vmatprep.subr.mxu0 0.0
        %8194 = vmatpush1.msra.mxu0 0.0
        %8195 = vmatprep.subr.mxu0 0.0
        %8196 = vmatpush1.msra.mxu0 0.0
        %8197 = vmatprep.subr.mxu0 0.0
        %8198 = vmatpush1.msra.mxu0 0.0
        %8199 = vmatprep.subr.mxu0 0.0
        %8200 = vmatpush1.msra.mxu0 0.0
        %8201 = vmatprep.subr.mxu0 0.0
        %8202 = vmatpush1.msra.mxu0 0.0
        %8203 = vmatprep.subr.mxu0 0.0
        %8204 = vmatpush1.msra.mxu0 0.0
        %8205 = vmatprep.subr.mxu0 0.0
        %8206 = vmatpush1.msra.mxu0 0.0
        %8207 = vmatprep.subr.mxu0 0.0
        %8208 = vmatpush1.msra.mxu0 0.0
        %8209 = vmatprep.subr.mxu0 0.0
        %8210 = vmatpush1.msra.mxu0 0.0
        %8211 = vmatprep.subr.mxu0 0.0
        %8212 = vmatpush1.msra.mxu0 0.0
        %8213 = vmatprep.subr.mxu0 0.0
        %8214 = vmatpush1.msra.mxu0 0.0
        %8215 = vmatprep.subr.mxu0 0.0
        %8216 = vmatpush1.msra.mxu0 0.0
        %8217 = vmatprep.subr.mxu0 0.0
        %8218 = vmatpush1.msra.mxu0 0.0
        %8219 = vmatprep.subr.mxu0 0.0
        %8220 = vmatpush1.msra.mxu0 0.0
        %8221 = vmatprep.subr.mxu0 0.0
        %8222 = vmatpush1.msra.mxu0 0.0
        %8223 = vmatprep.subr.mxu0 0.0
        %8224 = vmatpush1.msra.mxu0 0.0
        %8225 = vmatprep.subr.mxu0 0.0
        %8226 = vmatpush1.msra.mxu0 0.0
        %8227 = vmatprep.subr.mxu0 0.0
        %8228 = vmatpush1.msra.mxu0 0.0
        %8229 = vmatprep.subr.mxu0 0.0
        %8230 = vmatpush1.msra.mxu0 0.0
        %8231 = vmatprep.subr.mxu0 0.0
        %8232 = vmatpush1.msra.mxu0 0.0
        %8233 = vmatprep.subr.mxu0 0.0
        %8234 = vmatpush1.msra.mxu0 0.0
        %8235 = vmatprep.subr.mxu0 0.0
        %8236 = vmatpush1.msra.mxu0 0.0
        %8237 = vmatprep.subr.mxu0 0.0
        %8238 = vmatpush1.msra.mxu0 0.0
        %8239 = vmatprep.subr.mxu0 0.0
        %8240 = vmatpush1.msra.mxu0 0.0
        %8241 = vmatprep.mubr.f32.mxu0 0.0
        %8242 = vmatmul.mubr.f32.gmra.mrb[0].mxu0 %v8111
        %v8243 = vpop.f32.mrb[0].mxu0
        %v8244 = vadd.f32 %v7953, %v8243
        %v8245 = vpop.f32.mrb[0].mxu0
        %8246 = vmatprep.mubr.f32.mxu0 0.0
        %8247 = vmatmul.mubr.f32.gmra.mrb[0].mxu0 %v8113
        %v8248 = vpop.f32.mrb[0].mxu0
        %v8249 = vadd.f32 %v7958, %v8248
        %v8250 = vpop.f32.mrb[0].mxu0
        %8251 = vmatprep.mubr.f32.mxu0 0.0
        %8252 = vmatmul.mubr.f32.gmra.mrb[0].mxu0 %v8115
        %v8253 = vpop.f32.mrb[0].mxu0
        %v8254 = vadd.f32 %v7963, %v8253
        %v8255 = vpop.f32.mrb[0].mxu0
        %8256 = vmatprep.mubr.f32.mxu0 0.0
        %8257 = vmatmul.mubr.f32.gmra.mrb[0].mxu0 %v8117
        %v8258 = vpop.f32.mrb[0].mxu0
        %v8259 = vadd.f32 %v7968, %v8258
        %v8260 = vpop.f32.mrb[0].mxu0
        %8261 = vmatprep.mubr.f32.mxu0 0.0
        %8262 = vmatmul.mubr.f32.gmra.mrb[0].mxu0 %v8119
        %v8263 = vpop.f32.mrb[0].mxu0
        %v8264 = vadd.f32 %v7973, %v8263
        %v8265 = vpop.f32.mrb[0].mxu0
        %8266 = vmatprep.mubr.f32.mxu0 0.0
        %8267 = vmatmul.mubr.f32.gmra.mrb[0].mxu0 %v8121
        %v8268 = vpop.f32.mrb[0].mxu0
        %v8269 = vadd.f32 %v7978, %v8268
        %v8270 = vpop.f32.mrb[0].mxu0
        %8271 = vmatprep.mubr.f32.mxu0 0.0
        %8272 = vmatmul.mubr.f32.gmra.mrb[0].mxu0 %v8123
        %v8273 = vpop.f32.mrb[0].mxu0
        %v8274 = vadd.f32 %v7983, %v8273
        %v8275 = vpop.f32.mrb[0].mxu0
        %8276 = vmatprep.mubr.f32.mxu0 0.0
        %8277 = vmatmul.mubr.f32.gmra.mrb[0].mxu0 %v8125
        %v8278 = vpop.f32.mrb[0].mxu0
        %v8279 = vadd.f32 %v7988, %v8278
        %v8280 = vpop.f32.mrb[0].mxu0
        %8281 = vmatprep.mubr.f32.mxu0 0.0
        %8282 = vmatmul.mubr.f32.gmra.mrb[0].mxu0 %v8127
        %v8283 = vpop.f32.mrb[0].mxu0
        %v8284 = vadd.f32 %v7993, %v8283
        %v8285 = vpop.f32.mrb[0].mxu0
        %8286 = vmatprep.mubr.f32.mxu0 0.0
        %8287 = vmatmul.mubr.f32.gmra.mrb[0].mxu0 %v8129
        %v8288 = vpop.f32.mrb[0].mxu0
        %v8289 = vadd.f32 %v7998, %v8288
        %v8290 = vpop.f32.mrb[0].mxu0
        %8291 = vmatprep.mubr.f32.mxu0 0.0
        %8292 = vmatmul.mubr.f32.gmra.mrb[0].mxu0 %v8131
        %v8293 = vpop.f32.mrb[0].mxu0
        %v8294 = vadd.f32 %v8003, %v8293
        %v8295 = vpop.f32.mrb[0].mxu0
        %8296 = vmatprep.mubr.f32.mxu0 0.0
        %8297 = vmatmul.mubr.f32.gmra.mrb[0].mxu0 %v8133
        %v8298 = vpop.f32.mrb[0].mxu0
        %v8299 = vadd.f32 %v8008, %v8298
        %v8300 = vpop.f32.mrb[0].mxu0
        %8301 = vmatprep.mubr.f32.mxu0 0.0
        %8302 = vmatmul.mubr.f32.gmra.mrb[0].mxu0 %v8135
        %v8303 = vpop.f32.mrb[0].mxu0
        %v8304 = vadd.f32 %v8013, %v8303
        %v8305 = vpop.f32.mrb[0].mxu0
        %8306 = vmatprep.mubr.f32.mxu0 0.0
        %8307 = vmatmul.mubr.f32.gmra.mrb[0].mxu0 %v8137
        %v8308 = vpop.f32.mrb[0].mxu0
        %v8309 = vadd.f32 %v8018, %v8308
        %v8310 = vpop.f32.mrb[0].mxu0
        %8311 = vmatprep.mubr.f32.mxu0 0.0
        %8312 = vmatmul.mubr.f32.gmra.mrb[0].mxu0 %v8139
        %v8313 = vpop.f32.mrb[0].mxu0
        %v8314 = vadd.f32 %v8023, %v8313
        %v8315 = vpop.f32.mrb[0].mxu0
        %8316 = vmatprep.mubr.f32.mxu0 0.0
        %8317 = vmatmul.mubr.f32.gmra.mrb[0].mxu0 %v8141
        %v8318 = vpop.f32.mrb[0].mxu0
        %v8319 = vadd.f32 %v8028, %v8318
        %v8320 = vpop.f32.mrb[0].mxu0
        %8321 = vmatprep.mubr.f32.mxu0 0.0
        %8322 = vmatmul.mubr.f32.gmra.mrb[0].mxu0 %v8143
        %v8323 = vpop.f32.mrb[0].mxu0
        %v8324 = vadd.f32 %v8033, %v8323
        %v8325 = vpop.f32.mrb[0].mxu0
        %8326 = vmatprep.mubr.f32.mxu0 0.0
        %8327 = vmatmul.mubr.f32.gmra.mrb[0].mxu0 %v8145
        %v8328 = vpop.f32.mrb[0].mxu0
        %v8329 = vadd.f32 %v8038, %v8328
        %v8330 = vpop.f32.mrb[0].mxu0
        %8331 = vmatprep.mubr.f32.mxu0 0.0
        %8332 = vmatmul.mubr.f32.gmra.mrb[0].mxu0 %v8147
        %v8333 = vpop.f32.mrb[0].mxu0
        %v8334 = vadd.f32 %v8043, %v8333
        %v8335 = vpop.f32.mrb[0].mxu0
        %8336 = vmatprep.mubr.f32.mxu0 0.0
        %8337 = vmatmul.mubr.f32.gmra.mrb[0].mxu0 %v8149
        %v8338 = vpop.f32.mrb[0].mxu0
        %v8339 = vadd.f32 %v8048, %v8338
        %v8340 = vpop.f32.mrb[0].mxu0
        %8341 = vmatprep.mubr.f32.mxu0 0.0
        %8342 = vmatmul.mubr.f32.gmra.mrb[0].mxu0 %v8151
        %v8343 = vpop.f32.mrb[0].mxu0
        %v8344 = vadd.f32 %v8053, %v8343
        %v8345 = vpop.f32.mrb[0].mxu0
        %8346 = vmatprep.mubr.f32.mxu0 0.0
        %8347 = vmatmul.mubr.f32.gmra.mrb[0].mxu0 %v8153
        %v8348 = vpop.f32.mrb[0].mxu0
        %v8349 = vadd.f32 %v8058, %v8348
        %v8350 = vpop.f32.mrb[0].mxu0
        %8351 = vmatprep.mubr.f32.mxu0 0.0
        %8352 = vmatmul.mubr.f32.gmra.mrb[0].mxu0 %v8155
        %v8353 = vpop.f32.mrb[0].mxu0
        %v8354 = vadd.f32 %v8063, %v8353
        %v8355 = vpop.f32.mrb[0].mxu0
        %8356 = vmatprep.mubr.f32.mxu0 0.0
        %8357 = vmatmul.mubr.f32.gmra.mrb[0].mxu0 %v8157
        %v8358 = vpop.f32.mrb[0].mxu0
        %v8359 = vadd.f32 %v8068, %v8358
        %v8360 = vpop.f32.mrb[0].mxu0
        %8361 = vmatprep.mubr.f32.mxu0 0.0
        %8362 = vmatmul.mubr.f32.gmra.mrb[0].mxu0 %v8159
        %v8363 = vpop.f32.mrb[0].mxu0
        %v8364 = vadd.f32 %v8073, %v8363
        %v8365 = vpop.f32.mrb[0].mxu0
        %8366 = vmatprep.mubr.f32.mxu0 0.0
        %8367 = vmatmul.mubr.f32.gmra.mrb[0].mxu0 %v8161
        %v8368 = vpop.f32.mrb[0].mxu0
        %v8369 = vadd.f32 %v8078, %v8368
        %v8370 = vpop.f32.mrb[0].mxu0
        %8371 = vmatprep.mubr.f32.mxu0 0.0
        %8372 = vmatmul.mubr.f32.gmra.mrb[0].mxu0 %v8163
        %v8373 = vpop.f32.mrb[0].mxu0
        %v8374 = vadd.f32 %v8083, %v8373
        %v8375 = vpop.f32.mrb[0].mxu0
        %8376 = vmatprep.mubr.f32.mxu0 0.0
        %8377 = vmatmul.mubr.f32.gmra.mrb[0].mxu0 %v8165
        %v8378 = vpop.f32.mrb[0].mxu0
        %v8379 = vadd.f32 %v8088, %v8378
        %v8380 = vpop.f32.mrb[0].mxu0
        %8381 = vmatprep.mubr.f32.mxu0 0.0
        %8382 = vmatmul.mubr.f32.gmra.mrb[0].mxu0 %v8167
        %v8383 = vpop.f32.mrb[0].mxu0
        %v8384 = vadd.f32 %v8093, %v8383
        %v8385 = vpop.f32.mrb[0].mxu0
        %8386 = vmatprep.mubr.f32.mxu0 0.0
        %8387 = vmatmul.mubr.f32.gmra.mrb[0].mxu0 %v8169
        %v8388 = vpop.f32.mrb[0].mxu0
        %v8389 = vadd.f32 %v8098, %v8388
        %v8390 = vpop.f32.mrb[0].mxu0
        %8391 = vmatprep.mubr.f32.mxu0 0.0
        %8392 = vmatmul.mubr.f32.gmra.mrb[0].mxu0 %v8171
        %v8393 = vpop.f32.mrb[0].mxu0
        %v8394 = vadd.f32 %v8103, %v8393
        %v8395 = vpop.f32.mrb[0].mxu0
        %8396 = vmatprep.mubr.f32.mxu0 0.0
        %8397 = vmatmul.mubr.f32.gmra.mrb[0].mxu0 %v8173
        %v8398 = vpop.f32.mrb[0].mxu0
        %v8399 = vadd.f32 %v8108, %v8398
        %v8400 = vpop.f32.mrb[0].mxu0
        %8401 = vdwg.mxu0
        %v8402 = vld [vmem:[%s9] sm:$0x1]
        %v8404 = vlaneseq
        %v8405 = vshrl.u32 %v8404, 7
        %v8406 = vsub.s32 0, %v8405
        %v8407 = vrot.slane %v8402, %v8406
        %v8409 = vadd.f32 %v8244, %v8407
        %v8410 = vadd.f32 %v8249, %v8407
        %v8411 = vadd.f32 %v8254, %v8407
        %v8412 = vadd.f32 %v8259, %v8407
        %v8413 = vadd.f32 %v8264, %v8407
        %v8414 = vadd.f32 %v8269, %v8407
        %v8415 = vadd.f32 %v8274, %v8407
        %v8416 = vadd.f32 %v8279, %v8407
        %v8417 = vadd.f32 %v8284, %v8407
        %v8418 = vadd.f32 %v8289, %v8407
        %v8419 = vadd.f32 %v8294, %v8407
        %v8420 = vadd.f32 %v8299, %v8407
        %v8421 = vadd.f32 %v8304, %v8407
        %v8422 = vadd.f32 %v8309, %v8407
        %v8423 = vadd.f32 %v8314, %v8407
        %v8424 = vadd.f32 %v8319, %v8407
        %v8425 = vadd.f32 %v8324, %v8407
        %v8426 = vadd.f32 %v8329, %v8407
        %v8427 = vadd.f32 %v8334, %v8407
        %v8428 = vadd.f32 %v8339, %v8407
        %v8429 = vadd.f32 %v8344, %v8407
        %v8430 = vadd.f32 %v8349, %v8407
        %v8431 = vadd.f32 %v8354, %v8407
        %v8432 = vadd.f32 %v8359, %v8407
        %v8433 = vadd.f32 %v8364, %v8407
        %v8434 = vadd.f32 %v8369, %v8407
        %v8435 = vadd.f32 %v8374, %v8407
        %v8436 = vadd.f32 %v8379, %v8407
        %v8437 = vadd.f32 %v8384, %v8407
        %v8438 = vadd.f32 %v8389, %v8407
        %v8439 = vadd.f32 %v8394, %v8407
        %v8440 = vadd.f32 %v8399, %v8407
        %s8441 = scalar_lea.vmem [#allocation4], 24
        %8442 = vst.msk [vmem:[%s8441 + $0x1] sm:$0xff] %vm394, %v7784
        %8443 = vst.msk [vmem:[%s8441 + $0x9] sm:$0xff] %vm394, %v7785
        %8444 = vst.msk [vmem:[%s8441 + $0x19] sm:$0xff] %vm394, %v7786
        %8445 = vst.msk [vmem:[%s8441 + $0x21] sm:$0xff] %vm394, %v7787
        %8446 = vst.msk [vmem:[%s8441 + $0x31] sm:$0xff] %vm394, %v7788
        %8447 = vst.msk [vmem:[%s8441 + $0x39] sm:$0xff] %vm394, %v7789
        %8448 = vst.msk [vmem:[%s8441 + $0x49] sm:$0xff] %vm394, %v7790
        %8449 = vst.msk [vmem:[%s8441 + $0x51] sm:$0xff] %vm394, %v7791
        %8450 = vst.msk [vmem:[%s8441 + $0x61] sm:$0xff] %vm394, %v7792
        %8451 = vst.msk [vmem:[%s8441 + $0x69] sm:$0xff] %vm394, %v7793
        %8452 = vst.msk [vmem:[%s8441 + $0x79] sm:$0xff] %vm394, %v7794
        %8453 = vst.msk [vmem:[%s8441 + $0x81] sm:$0xff] %vm394, %v7795
        %8454 = vst.msk [vmem:[%s8441 + $0x91] sm:$0xff] %vm394, %v7796
        %8455 = vst.msk [vmem:[%s8441 + $0x99] sm:$0xff] %vm394, %v7797
        %8456 = vst.msk [vmem:[%s8441 + $0xa9] sm:$0xff] %vm394, %v7798
        %8457 = vst.msk [vmem:[%s8441 + $0xb1] sm:$0xff] %vm394, %v7799
        %8458 = vst.msk [vmem:[%s8441 + $0xc1] sm:$0xff] %vm394, %v7800
        %8459 = vst.msk [vmem:[%s8441 + $0xc9] sm:$0xff] %vm394, %v7801
        %8460 = vst.msk [vmem:[%s8441 + $0xd9] sm:$0xff] %vm394, %v7802
        %8461 = vst.msk [vmem:[%s8441 + $0xe1] sm:$0xff] %vm394, %v7803
        %8462 = vst.msk [vmem:[%s8441 + $0xf1] sm:$0xff] %vm394, %v7804
        %8463 = vst.msk [vmem:[%s8441 + $0xf9] sm:$0xff] %vm394, %v7805
        %8464 = vst.msk [vmem:[%s8441 + $0x109] sm:$0xff] %vm394, %v7806
        %8465 = vst.msk [vmem:[%s8441 + $0x111] sm:$0xff] %vm394, %v7807
        %8466 = vst.msk [vmem:[%s8441 + $0x121] sm:$0xff] %vm394, %v7808
        %8467 = vst.msk [vmem:[%s8441 + $0x129] sm:$0xff] %vm394, %v7809
        %8468 = vst.msk [vmem:[%s8441 + $0x139] sm:$0xff] %vm394, %v7810
        %8469 = vst.msk [vmem:[%s8441 + $0x141] sm:$0xff] %vm394, %v7811
        %8470 = vst.msk [vmem:[%s8441 + $0x151] sm:$0xff] %vm394, %v7812
        %8471 = vst.msk [vmem:[%s8441 + $0x159] sm:$0xff] %vm394, %v7813
        %8472 = vst.msk [vmem:[%s8441 + $0x169] sm:$0xff] %vm394, %v7814
        %8473 = vst.msk [vmem:[%s8441 + $0x171] sm:$0xff] %vm394, %v7815
        %8474 = vst.msk [vmem:[#allocation4] sm:$0xff] %vm394, 0.0
        %8475 = vst.msk [vmem:[#allocation4 + $0x8] sm:$0xff] %vm394, 0.0
        %vm8476 = vcmask 25600
        %8477 = vst.msk [vmem:[#allocation4 + $0x10] sm:$0x3] %vm8476, 0.0
        %s8478 = scalar_lea.vmem [#allocation4], 408
        %8479 = vst.msk [vmem:[%s8478] sm:$0xff] %vm394, 0.0
        %8480 = vst.msk [vmem:[%s8478 + $0x8] sm:$0xff] %vm394, 0.0
        %8481 = vst.msk [vmem:[%s8478 + $0x10] sm:$0x3] %vm8476, 0.0
        %vm8482 = vcmask 24576
        %8483 = vst.msk [vmem:[#allocation4] sm:$0x1] %vm8482, 0.0
        %8484 = vst.msk [vmem:[#allocation4 + $0x18] sm:$0x1] %vm8482, 0.0
        %8485 = vst.msk [vmem:[#allocation4 + $0x30] sm:$0x1] %vm8482, 0.0
        %8486 = vst.msk [vmem:[#allocation4 + $0x48] sm:$0x1] %vm8482, 0.0
        %8487 = vst.msk [vmem:[#allocation4 + $0x60] sm:$0x1] %vm8482, 0.0
        %8488 = vst.msk [vmem:[#allocation4 + $0x78] sm:$0x1] %vm8482, 0.0
        %8489 = vst.msk [vmem:[#allocation4 + $0x90] sm:$0x1] %vm8482, 0.0
        %8490 = vst.msk [vmem:[#allocation4 + $0xa8] sm:$0x1] %vm8482, 0.0
        %8491 = vst.msk [vmem:[#allocation4 + $0xc0] sm:$0x1] %vm8482, 0.0
        %8492 = vst.msk [vmem:[#allocation4 + $0xd8] sm:$0x1] %vm8482, 0.0
        %8493 = vst.msk [vmem:[#allocation4 + $0xf0] sm:$0x1] %vm8482, 0.0
        %8494 = vst.msk [vmem:[#allocation4 + $0x108] sm:$0x1] %vm8482, 0.0
        %8495 = vst.msk [vmem:[#allocation4 + $0x120] sm:$0x1] %vm8482, 0.0
        %8496 = vst.msk [vmem:[#allocation4 + $0x138] sm:$0x1] %vm8482, 0.0
        %8497 = vst.msk [vmem:[#allocation4 + $0x150] sm:$0x1] %vm8482, 0.0
        %8498 = vst.msk [vmem:[#allocation4 + $0x168] sm:$0x1] %vm8482, 0.0
        %8499 = vst.msk [vmem:[#allocation4 + $0x180] sm:$0x1] %vm8482, 0.0
        %8500 = vst.msk [vmem:[#allocation4 + $0x198] sm:$0x1] %vm8482, 0.0
        %8501 = vst.msk [vmem:[#allocation4 + $0x11] sm:$0x1] %vm8482, 0.0
        %8502 = vst.msk [vmem:[#allocation4 + $0x29] sm:$0x1] %vm8482, 0.0
        %8503 = vst.msk [vmem:[#allocation4 + $0x41] sm:$0x1] %vm8482, 0.0
        %8504 = vst.msk [vmem:[#allocation4 + $0x59] sm:$0x1] %vm8482, 0.0
        %8505 = vst.msk [vmem:[#allocation4 + $0x71] sm:$0x1] %vm8482, 0.0
        %8506 = vst.msk [vmem:[#allocation4 + $0x89] sm:$0x1] %vm8482, 0.0
        %8507 = vst.msk [vmem:[#allocation4 + $0xa1] sm:$0x1] %vm8482, 0.0
        %8508 = vst.msk [vmem:[#allocation4 + $0xb9] sm:$0x1] %vm8482, 0.0
        %8509 = vst.msk [vmem:[#allocation4 + $0xd1] sm:$0x1] %vm8482, 0.0
        %8510 = vst.msk [vmem:[#allocation4 + $0xe9] sm:$0x1] %vm8482, 0.0
        %8511 = vst.msk [vmem:[#allocation4 + $0x101] sm:$0x1] %vm8482, 0.0
        %8512 = vst.msk [vmem:[#allocation4 + $0x119] sm:$0x1] %vm8482, 0.0
        %8513 = vst.msk [vmem:[#allocation4 + $0x131] sm:$0x1] %vm8482, 0.0
        %8514 = vst.msk [vmem:[#allocation4 + $0x149] sm:$0x1] %vm8482, 0.0
        %8515 = vst.msk [vmem:[#allocation4 + $0x161] sm:$0x1] %vm8482, 0.0
        %8516 = vst.msk [vmem:[#allocation4 + $0x179] sm:$0x1] %vm8482, 0.0
        %8517 = vst.msk [vmem:[#allocation4 + $0x191] sm:$0x1] %vm8482, 0.0
        %8518 = vst.msk [vmem:[#allocation4 + $0x1a9] sm:$0x1] %vm8482, 0.0
        %v8519 = vld [vmem:[#allocation4] sm:$0xff]
        %v8520 = vld [vmem:[#allocation4 + $0x8] sm:$0xff]
        %v8521 = vld [vmem:[#allocation4 + $0x10] sm:$0x3]
        %v8522 = vld [vmem:[#allocation4 + $0x18] sm:$0xff]
        %v8523 = vld [vmem:[#allocation4 + $0x20] sm:$0xff]
        %v8524 = vld [vmem:[#allocation4 + $0x28] sm:$0x3]
        %v8525 = vld [vmem:[#allocation4 + $0x30] sm:$0xff]
        %v8526 = vld [vmem:[#allocation4 + $0x38] sm:$0xff]
        %v8527 = vld [vmem:[#allocation4 + $0x40] sm:$0x3]
        %v8528 = vld [vmem:[#allocation4 + $0x48] sm:$0xff]
        %v8529 = vld [vmem:[#allocation4 + $0x50] sm:$0xff]
        %v8530 = vld [vmem:[#allocation4 + $0x58] sm:$0x3]
        %v8531 = vld [vmem:[#allocation4 + $0x60] sm:$0xff]
        %v8532 = vld [vmem:[#allocation4 + $0x68] sm:$0xff]
        %v8533 = vld [vmem:[#allocation4 + $0x70] sm:$0x3]
        %v8534 = vld [vmem:[#allocation4 + $0x78] sm:$0xff]
        %v8535 = vld [vmem:[#allocation4 + $0x80] sm:$0xff]
        %v8536 = vld [vmem:[#allocation4 + $0x88] sm:$0x3]
        %v8537 = vld [vmem:[#allocation4 + $0x90] sm:$0xff]
        %v8538 = vld [vmem:[#allocation4 + $0x98] sm:$0xff]
        %v8539 = vld [vmem:[#allocation4 + $0xa0] sm:$0x3]
        %v8540 = vld [vmem:[#allocation4 + $0xa8] sm:$0xff]
        %v8541 = vld [vmem:[#allocation4 + $0xb0] sm:$0xff]
        %v8542 = vld [vmem:[#allocation4 + $0xb8] sm:$0x3]
        %v8543 = vld [vmem:[#allocation4 + $0xc0] sm:$0xff]
        %v8544 = vld [vmem:[#allocation4 + $0xc8] sm:$0xff]
        %v8545 = vld [vmem:[#allocation4 + $0xd0] sm:$0x3]
        %v8546 = vld [vmem:[#allocation4 + $0xd8] sm:$0xff]
        %v8547 = vld [vmem:[#allocation4 + $0xe0] sm:$0xff]
        %v8548 = vld [vmem:[#allocation4 + $0xe8] sm:$0x3]
        %v8549 = vld [vmem:[#allocation4 + $0xf0] sm:$0xff]
        %v8550 = vld [vmem:[#allocation4 + $0xf8] sm:$0xff]
        %v8551 = vld [vmem:[#allocation4 + $0x100] sm:$0x3]
        %v8552 = vld [vmem:[#allocation4 + $0x108] sm:$0xff]
        %v8553 = vld [vmem:[#allocation4 + $0x110] sm:$0xff]
        %v8554 = vld [vmem:[#allocation4 + $0x118] sm:$0x3]
        %v8555 = vld [vmem:[#allocation4 + $0x120] sm:$0xff]
        %v8556 = vld [vmem:[#allocation4 + $0x128] sm:$0xff]
        %v8557 = vld [vmem:[#allocation4 + $0x130] sm:$0x3]
        %v8558 = vld [vmem:[#allocation4 + $0x138] sm:$0xff]
        %v8559 = vld [vmem:[#allocation4 + $0x140] sm:$0xff]
        %v8560 = vld [vmem:[#allocation4 + $0x148] sm:$0x3]
        %v8561 = vld [vmem:[#allocation4 + $0x150] sm:$0xff]
        %v8562 = vld [vmem:[#allocation4 + $0x158] sm:$0xff]
        %v8563 = vld [vmem:[#allocation4 + $0x160] sm:$0x3]
        %v8564 = vld [vmem:[#allocation4 + $0x168] sm:$0xff]
        %v8565 = vld [vmem:[#allocation4 + $0x170] sm:$0xff]
        %v8566 = vld [vmem:[#allocation4 + $0x178] sm:$0x3]
        %v8567 = vld [vmem:[#allocation4 + $0x180] sm:$0xff]
        %v8568 = vld [vmem:[#allocation4 + $0x188] sm:$0xff]
        %v8569 = vld [vmem:[#allocation4 + $0x190] sm:$0x3]
        %v8570 = vld [vmem:[#allocation4 + $0x198] sm:$0xff]
        %v8571 = vld [vmem:[#allocation4 + $0x1a0] sm:$0xff]
        %v8572 = vld [vmem:[#allocation4 + $0x1a8] sm:$0x3]
        %8573 = vst.msk [vmem:[#allocation6] sm:$0xff] %vm394, %v8519
        %8574 = vst.msk [vmem:[#allocation6 + $0x8] sm:$0xff] %vm394, %v8520
        %8575 = vst.msk [vmem:[#allocation6 + $0x10] sm:$0xff] %vm394, %v8522
        %8576 = vst.msk [vmem:[#allocation6 + $0x18] sm:$0xff] %vm394, %v8523
        %8577 = vst.msk [vmem:[#allocation6 + $0x20] sm:$0xff] %vm394, %v8525
        %8578 = vst.msk [vmem:[#allocation6 + $0x28] sm:$0xff] %vm394, %v8526
        %8579 = vst.msk [vmem:[#allocation6 + $0x30] sm:$0xff] %vm394, %v8528
        %8580 = vst.msk [vmem:[#allocation6 + $0x38] sm:$0xff] %vm394, %v8529
        %8581 = vst.msk [vmem:[#allocation6 + $0x40] sm:$0xff] %vm394, %v8531
        %8582 = vst.msk [vmem:[#allocation6 + $0x48] sm:$0xff] %vm394, %v8532
        %8583 = vst.msk [vmem:[#allocation6 + $0x50] sm:$0xff] %vm394, %v8534
        %8584 = vst.msk [vmem:[#allocation6 + $0x58] sm:$0xff] %vm394, %v8535
        %8585 = vst.msk [vmem:[#allocation6 + $0x60] sm:$0xff] %vm394, %v8537
        %8586 = vst.msk [vmem:[#allocation6 + $0x68] sm:$0xff] %vm394, %v8538
        %8587 = vst.msk [vmem:[#allocation6 + $0x70] sm:$0xff] %vm394, %v8540
        %8588 = vst.msk [vmem:[#allocation6 + $0x78] sm:$0xff] %vm394, %v8541
        %8589 = vst.msk [vmem:[#allocation6 + $0x80] sm:$0xff] %vm394, %v8543
        %8590 = vst.msk [vmem:[#allocation6 + $0x88] sm:$0xff] %vm394, %v8544
        %8591 = vst.msk [vmem:[#allocation6 + $0x90] sm:$0xff] %vm394, %v8546
        %8592 = vst.msk [vmem:[#allocation6 + $0x98] sm:$0xff] %vm394, %v8547
        %8593 = vst.msk [vmem:[#allocation6 + $0xa0] sm:$0xff] %vm394, %v8549
        %8594 = vst.msk [vmem:[#allocation6 + $0xa8] sm:$0xff] %vm394, %v8550
        %8595 = vst.msk [vmem:[#allocation6 + $0xb0] sm:$0xff] %vm394, %v8552
        %8596 = vst.msk [vmem:[#allocation6 + $0xb8] sm:$0xff] %vm394, %v8553
        %8597 = vst.msk [vmem:[#allocation6 + $0xc0] sm:$0xff] %vm394, %v8555
        %8598 = vst.msk [vmem:[#allocation6 + $0xc8] sm:$0xff] %vm394, %v8556
        %8599 = vst.msk [vmem:[#allocation6 + $0xd0] sm:$0xff] %vm394, %v8558
        %8600 = vst.msk [vmem:[#allocation6 + $0xd8] sm:$0xff] %vm394, %v8559
        %8601 = vst.msk [vmem:[#allocation6 + $0xe0] sm:$0xff] %vm394, %v8561
        %8602 = vst.msk [vmem:[#allocation6 + $0xe8] sm:$0xff] %vm394, %v8562
        %8603 = vst.msk [vmem:[#allocation6 + $0xf0] sm:$0xff] %vm394, %v8564
        %8604 = vst.msk [vmem:[#allocation6 + $0xf8] sm:$0xff] %vm394, %v8565
        %v8653 = vrot.slane %v8519, 1
        %v8654 = vrot.slane %v8520, 1
        %v8655 = vsel %vm4476, %v8653, %v8654
        %v8656 = vrot.slane %v8521, 1
        %v8657 = vsel %vm4476, %v8654, %v8656
        %v8658 = vrot.slane %v8522, 1
        %v8659 = vrot.slane %v8523, 1
        %v8660 = vsel %vm4476, %v8658, %v8659
        %v8661 = vrot.slane %v8524, 1
        %v8662 = vsel %vm4476, %v8659, %v8661
        %v8663 = vrot.slane %v8525, 1
        %v8664 = vrot.slane %v8526, 1
        %v8665 = vsel %vm4476, %v8663, %v8664
        %v8666 = vrot.slane %v8527, 1
        %v8667 = vsel %vm4476, %v8664, %v8666
        %v8668 = vrot.slane %v8528, 1
        %v8669 = vrot.slane %v8529, 1
        %v8670 = vsel %vm4476, %v8668, %v8669
        %v8671 = vrot.slane %v8530, 1
        %v8672 = vsel %vm4476, %v8669, %v8671
        %v8673 = vrot.slane %v8531, 1
        %v8674 = vrot.slane %v8532, 1
        %v8675 = vsel %vm4476, %v8673, %v8674
        %v8676 = vrot.slane %v8533, 1
        %v8677 = vsel %vm4476, %v8674, %v8676
        %v8678 = vrot.slane %v8534, 1
        %v8679 = vrot.slane %v8535, 1
        %v8680 = vsel %vm4476, %v8678, %v8679
        %v8681 = vrot.slane %v8536, 1
        %v8682 = vsel %vm4476, %v8679, %v8681
        %v8683 = vrot.slane %v8537, 1
        %v8684 = vrot.slane %v8538, 1
        %v8685 = vsel %vm4476, %v8683, %v8684
        %v8686 = vrot.slane %v8539, 1
        %v8687 = vsel %vm4476, %v8684, %v8686
        %v8688 = vrot.slane %v8540, 1
        %v8689 = vrot.slane %v8541, 1
        %v8690 = vsel %vm4476, %v8688, %v8689
        %v8691 = vrot.slane %v8542, 1
        %v8692 = vsel %vm4476, %v8689, %v8691
        %v8693 = vrot.slane %v8543, 1
        %v8694 = vrot.slane %v8544, 1
        %v8695 = vsel %vm4476, %v8693, %v8694
        %v8696 = vrot.slane %v8545, 1
        %v8697 = vsel %vm4476, %v8694, %v8696
        %v8698 = vrot.slane %v8546, 1
        %v8699 = vrot.slane %v8547, 1
        %v8700 = vsel %vm4476, %v8698, %v8699
        %v8701 = vrot.slane %v8548, 1
        %v8702 = vsel %vm4476, %v8699, %v8701
        %v8703 = vrot.slane %v8549, 1
        %v8704 = vrot.slane %v8550, 1
        %v8705 = vsel %vm4476, %v8703, %v8704
        %v8706 = vrot.slane %v8551, 1
        %v8707 = vsel %vm4476, %v8704, %v8706
        %v8708 = vrot.slane %v8552, 1
        %v8709 = vrot.slane %v8553, 1
        %v8710 = vsel %vm4476, %v8708, %v8709
        %v8711 = vrot.slane %v8554, 1
        %v8712 = vsel %vm4476, %v8709, %v8711
        %v8713 = vrot.slane %v8555, 1
        %v8714 = vrot.slane %v8556, 1
        %v8715 = vsel %vm4476, %v8713, %v8714
        %v8716 = vrot.slane %v8557, 1
        %v8717 = vsel %vm4476, %v8714, %v8716
        %v8718 = vrot.slane %v8558, 1
        %v8719 = vrot.slane %v8559, 1
        %v8720 = vsel %vm4476, %v8718, %v8719
        %v8721 = vrot.slane %v8560, 1
        %v8722 = vsel %vm4476, %v8719, %v8721
        %v8723 = vrot.slane %v8561, 1
        %v8724 = vrot.slane %v8562, 1
        %v8725 = vsel %vm4476, %v8723, %v8724
        %v8726 = vrot.slane %v8563, 1
        %v8727 = vsel %vm4476, %v8724, %v8726
        %v8728 = vrot.slane %v8564, 1
        %v8729 = vrot.slane %v8565, 1
        %v8730 = vsel %vm4476, %v8728, %v8729
        %v8731 = vrot.slane %v8566, 1
        %v8732 = vsel %vm4476, %v8729, %v8731
        %8733 = vrot.lane.b32.xlu0 %v8655, 4
        %v8734 = vpop.permute.xlu0 %8733
        %8735 = vrot.lane.b32.xlu0 %v8657, 4
        %v8736 = vpop.permute.xlu0 %8735
        %8737 = vrot.lane.b32.xlu0 %v8660, 4
        %v8738 = vpop.permute.xlu0 %8737
        %8739 = vrot.lane.b32.xlu0 %v8662, 4
        %v8740 = vpop.permute.xlu0 %8739
        %8741 = vrot.lane.b32.xlu0 %v8665, 4
        %v8742 = vpop.permute.xlu0 %8741
        %8743 = vrot.lane.b32.xlu0 %v8667, 4
        %v8744 = vpop.permute.xlu0 %8743
        %8745 = vrot.lane.b32.xlu0 %v8670, 4
        %v8746 = vpop.permute.xlu0 %8745
        %8747 = vrot.lane.b32.xlu0 %v8672, 4
        %v8748 = vpop.permute.xlu0 %8747
        %8749 = vrot.lane.b32.xlu0 %v8675, 4
        %v8750 = vpop.permute.xlu0 %8749
        %8751 = vrot.lane.b32.xlu0 %v8677, 4
        %v8752 = vpop.permute.xlu0 %8751
        %8753 = vrot.lane.b32.xlu0 %v8680, 4
        %v8754 = vpop.permute.xlu0 %8753
        %8755 = vrot.lane.b32.xlu0 %v8682, 4
        %v8756 = vpop.permute.xlu0 %8755
        %8757 = vrot.lane.b32.xlu0 %v8685, 4
        %v8758 = vpop.permute.xlu0 %8757
        %8759 = vrot.lane.b32.xlu0 %v8687, 4
        %v8760 = vpop.permute.xlu0 %8759
        %8761 = vrot.lane.b32.xlu0 %v8690, 4
        %v8762 = vpop.permute.xlu0 %8761
        %8763 = vrot.lane.b32.xlu0 %v8692, 4
        %v8764 = vpop.permute.xlu0 %8763
        %8765 = vrot.lane.b32.xlu0 %v8695, 4
        %v8766 = vpop.permute.xlu0 %8765
        %8767 = vrot.lane.b32.xlu0 %v8697, 4
        %v8768 = vpop.permute.xlu0 %8767
        %8769 = vrot.lane.b32.xlu0 %v8700, 4
        %v8770 = vpop.permute.xlu0 %8769
        %8771 = vrot.lane.b32.xlu0 %v8702, 4
        %v8772 = vpop.permute.xlu0 %8771
        %8773 = vrot.lane.b32.xlu0 %v8705, 4
        %v8774 = vpop.permute.xlu0 %8773
        %8775 = vrot.lane.b32.xlu0 %v8707, 4
        %v8776 = vpop.permute.xlu0 %8775
        %8777 = vrot.lane.b32.xlu0 %v8710, 4
        %v8778 = vpop.permute.xlu0 %8777
        %8779 = vrot.lane.b32.xlu0 %v8712, 4
        %v8780 = vpop.permute.xlu0 %8779
        %8781 = vrot.lane.b32.xlu0 %v8715, 4
        %v8782 = vpop.permute.xlu0 %8781
        %8783 = vrot.lane.b32.xlu0 %v8717, 4
        %v8784 = vpop.permute.xlu0 %8783
        %8785 = vrot.lane.b32.xlu0 %v8720, 4
        %v8786 = vpop.permute.xlu0 %8785
        %8787 = vrot.lane.b32.xlu0 %v8722, 4
        %v8788 = vpop.permute.xlu0 %8787
        %8789 = vrot.lane.b32.xlu0 %v8725, 4
        %v8790 = vpop.permute.xlu0 %8789
        %8791 = vrot.lane.b32.xlu0 %v8727, 4
        %v8792 = vpop.permute.xlu0 %8791
        %8793 = vrot.lane.b32.xlu0 %v8730, 4
        %v8794 = vpop.permute.xlu0 %8793
        %8795 = vrot.lane.b32.xlu0 %v8732, 4
        %v8796 = vpop.permute.xlu0 %8795
        %vm8829 = vcmask 64544
        %8830 = vst.msk [vmem:[#allocation6] sm:$0xff] %vm8829, %v8734
        %8831 = vst.msk [vmem:[#allocation6 + $0x8] sm:$0xff] %vm8829, %v8736
        %8832 = vst.msk [vmem:[#allocation6 + $0x10] sm:$0xff] %vm8829, %v8738
        %8833 = vst.msk [vmem:[#allocation6 + $0x18] sm:$0xff] %vm8829, %v8740
        %8834 = vst.msk [vmem:[#allocation6 + $0x20] sm:$0xff] %vm8829, %v8742
        %8835 = vst.msk [vmem:[#allocation6 + $0x28] sm:$0xff] %vm8829, %v8744
        %8836 = vst.msk [vmem:[#allocation6 + $0x30] sm:$0xff] %vm8829, %v8746
        %8837 = vst.msk [vmem:[#allocation6 + $0x38] sm:$0xff] %vm8829, %v8748
        %8838 = vst.msk [vmem:[#allocation6 + $0x40] sm:$0xff] %vm8829, %v8750
        %8839 = vst.msk [vmem:[#allocation6 + $0x48] sm:$0xff] %vm8829, %v8752
        %8840 = vst.msk [vmem:[#allocation6 + $0x50] sm:$0xff] %vm8829, %v8754
        %8841 = vst.msk [vmem:[#allocation6 + $0x58] sm:$0xff] %vm8829, %v8756
        %8842 = vst.msk [vmem:[#allocation6 + $0x60] sm:$0xff] %vm8829, %v8758
        %8843 = vst.msk [vmem:[#allocation6 + $0x68] sm:$0xff] %vm8829, %v8760
        %8844 = vst.msk [vmem:[#allocation6 + $0x70] sm:$0xff] %vm8829, %v8762
        %8845 = vst.msk [vmem:[#allocation6 + $0x78] sm:$0xff] %vm8829, %v8764
        %8846 = vst.msk [vmem:[#allocation6 + $0x80] sm:$0xff] %vm8829, %v8766
        %8847 = vst.msk [vmem:[#allocation6 + $0x88] sm:$0xff] %vm8829, %v8768
        %8848 = vst.msk [vmem:[#allocation6 + $0x90] sm:$0xff] %vm8829, %v8770
        %8849 = vst.msk [vmem:[#allocation6 + $0x98] sm:$0xff] %vm8829, %v8772
        %8850 = vst.msk [vmem:[#allocation6 + $0xa0] sm:$0xff] %vm8829, %v8774
        %8851 = vst.msk [vmem:[#allocation6 + $0xa8] sm:$0xff] %vm8829, %v8776
        %8852 = vst.msk [vmem:[#allocation6 + $0xb0] sm:$0xff] %vm8829, %v8778
        %8853 = vst.msk [vmem:[#allocation6 + $0xb8] sm:$0xff] %vm8829, %v8780
        %8854 = vst.msk [vmem:[#allocation6 + $0xc0] sm:$0xff] %vm8829, %v8782
        %8855 = vst.msk [vmem:[#allocation6 + $0xc8] sm:$0xff] %vm8829, %v8784
        %8856 = vst.msk [vmem:[#allocation6 + $0xd0] sm:$0xff] %vm8829, %v8786
        %8857 = vst.msk [vmem:[#allocation6 + $0xd8] sm:$0xff] %vm8829, %v8788
        %8858 = vst.msk [vmem:[#allocation6 + $0xe0] sm:$0xff] %vm8829, %v8790
        %8859 = vst.msk [vmem:[#allocation6 + $0xe8] sm:$0xff] %vm8829, %v8792
        %8860 = vst.msk [vmem:[#allocation6 + $0xf0] sm:$0xff] %vm8829, %v8794
        %8861 = vst.msk [vmem:[#allocation6 + $0xf8] sm:$0xff] %vm8829, %v8796
        %v8862 = vrot.slane %v8519, 2
        %v8863 = vrot.slane %v8520, 2
        %v8864 = vsel %vm5359, %v8862, %v8863
        %v8865 = vrot.slane %v8521, 2
        %v8866 = vsel %vm5359, %v8863, %v8865
        %v8867 = vrot.slane %v8522, 2
        %v8868 = vrot.slane %v8523, 2
        %v8869 = vsel %vm5359, %v8867, %v8868
        %v8870 = vrot.slane %v8524, 2
        %v8871 = vsel %vm5359, %v8868, %v8870
        %v8872 = vrot.slane %v8525, 2
        %v8873 = vrot.slane %v8526, 2
        %v8874 = vsel %vm5359, %v8872, %v8873
        %v8875 = vrot.slane %v8527, 2
        %v8876 = vsel %vm5359, %v8873, %v8875
        %v8877 = vrot.slane %v8528, 2
        %v8878 = vrot.slane %v8529, 2
        %v8879 = vsel %vm5359, %v8877, %v8878
        %v8880 = vrot.slane %v8530, 2
        %v8881 = vsel %vm5359, %v8878, %v8880
        %v8882 = vrot.slane %v8531, 2
        %v8883 = vrot.slane %v8532, 2
        %v8884 = vsel %vm5359, %v8882, %v8883
        %v8885 = vrot.slane %v8533, 2
        %v8886 = vsel %vm5359, %v8883, %v8885
        %v8887 = vrot.slane %v8534, 2
        %v8888 = vrot.slane %v8535, 2
        %v8889 = vsel %vm5359, %v8887, %v8888
        %v8890 = vrot.slane %v8536, 2
        %v8891 = vsel %vm5359, %v8888, %v8890
        %v8892 = vrot.slane %v8537, 2
        %v8893 = vrot.slane %v8538, 2
        %v8894 = vsel %vm5359, %v8892, %v8893
        %v8895 = vrot.slane %v8539, 2
        %v8896 = vsel %vm5359, %v8893, %v8895
        %v8897 = vrot.slane %v8540, 2
        %v8898 = vrot.slane %v8541, 2
        %v8899 = vsel %vm5359, %v8897, %v8898
        %v8900 = vrot.slane %v8542, 2
        %v8901 = vsel %vm5359, %v8898, %v8900
        %v8902 = vrot.slane %v8543, 2
        %v8903 = vrot.slane %v8544, 2
        %v8904 = vsel %vm5359, %v8902, %v8903
        %v8905 = vrot.slane %v8545, 2
        %v8906 = vsel %vm5359, %v8903, %v8905
        %v8907 = vrot.slane %v8546, 2
        %v8908 = vrot.slane %v8547, 2
        %v8909 = vsel %vm5359, %v8907, %v8908
        %v8910 = vrot.slane %v8548, 2
        %v8911 = vsel %vm5359, %v8908, %v8910
        %v8912 = vrot.slane %v8549, 2
        %v8913 = vrot.slane %v8550, 2
        %v8914 = vsel %vm5359, %v8912, %v8913
        %v8915 = vrot.slane %v8551, 2
        %v8916 = vsel %vm5359, %v8913, %v8915
        %v8917 = vrot.slane %v8552, 2
        %v8918 = vrot.slane %v8553, 2
        %v8919 = vsel %vm5359, %v8917, %v8918
        %v8920 = vrot.slane %v8554, 2
        %v8921 = vsel %vm5359, %v8918, %v8920
        %v8922 = vrot.slane %v8555, 2
        %v8923 = vrot.slane %v8556, 2
        %v8924 = vsel %vm5359, %v8922, %v8923
        %v8925 = vrot.slane %v8557, 2
        %v8926 = vsel %vm5359, %v8923, %v8925
        %v8927 = vrot.slane %v8558, 2
        %v8928 = vrot.slane %v8559, 2
        %v8929 = vsel %vm5359, %v8927, %v8928
        %v8930 = vrot.slane %v8560, 2
        %v8931 = vsel %vm5359, %v8928, %v8930
        %v8932 = vrot.slane %v8561, 2
        %v8933 = vrot.slane %v8562, 2
        %v8934 = vsel %vm5359, %v8932, %v8933
        %v8935 = vrot.slane %v8563, 2
        %v8936 = vsel %vm5359, %v8933, %v8935
        %v8937 = vrot.slane %v8564, 2
        %v8938 = vrot.slane %v8565, 2
        %v8939 = vsel %vm5359, %v8937, %v8938
        %v8940 = vrot.slane %v8566, 2
        %v8941 = vsel %vm5359, %v8938, %v8940
        %8942 = vrot.lane.b32.xlu0 %v8864, 8
        %v8943 = vpop.permute.xlu0 %8942
        %8944 = vrot.lane.b32.xlu0 %v8866, 8
        %v8945 = vpop.permute.xlu0 %8944
        %8946 = vrot.lane.b32.xlu0 %v8869, 8
        %v8947 = vpop.permute.xlu0 %8946
        %8948 = vrot.lane.b32.xlu0 %v8871, 8
        %v8949 = vpop.permute.xlu0 %8948
        %8950 = vrot.lane.b32.xlu0 %v8874, 8
        %v8951 = vpop.permute.xlu0 %8950
        %8952 = vrot.lane.b32.xlu0 %v8876, 8
        %v8953 = vpop.permute.xlu0 %8952
        %8954 = vrot.lane.b32.xlu0 %v8879, 8
        %v8955 = vpop.permute.xlu0 %8954
        %8956 = vrot.lane.b32.xlu0 %v8881, 8
        %v8957 = vpop.permute.xlu0 %8956
        %8958 = vrot.lane.b32.xlu0 %v8884, 8
        %v8959 = vpop.permute.xlu0 %8958
        %8960 = vrot.lane.b32.xlu0 %v8886, 8
        %v8961 = vpop.permute.xlu0 %8960
        %8962 = vrot.lane.b32.xlu0 %v8889, 8
        %v8963 = vpop.permute.xlu0 %8962
        %8964 = vrot.lane.b32.xlu0 %v8891, 8
        %v8965 = vpop.permute.xlu0 %8964
        %8966 = vrot.lane.b32.xlu0 %v8894, 8
        %v8967 = vpop.permute.xlu0 %8966
        %8968 = vrot.lane.b32.xlu0 %v8896, 8
        %v8969 = vpop.permute.xlu0 %8968
        %8970 = vrot.lane.b32.xlu0 %v8899, 8
        %v8971 = vpop.permute.xlu0 %8970
        %8972 = vrot.lane.b32.xlu0 %v8901, 8
        %v8973 = vpop.permute.xlu0 %8972
        %8974 = vrot.lane.b32.xlu0 %v8904, 8
        %v8975 = vpop.permute.xlu0 %8974
        %8976 = vrot.lane.b32.xlu0 %v8906, 8
        %v8977 = vpop.permute.xlu0 %8976
        %8978 = vrot.lane.b32.xlu0 %v8909, 8
        %v8979 = vpop.permute.xlu0 %8978
        %8980 = vrot.lane.b32.xlu0 %v8911, 8
        %v8981 = vpop.permute.xlu0 %8980
        %8982 = vrot.lane.b32.xlu0 %v8914, 8
        %v8983 = vpop.permute.xlu0 %8982
        %8984 = vrot.lane.b32.xlu0 %v8916, 8
        %v8985 = vpop.permute.xlu0 %8984
        %8986 = vrot.lane.b32.xlu0 %v8919, 8
        %v8987 = vpop.permute.xlu0 %8986
        %8988 = vrot.lane.b32.xlu0 %v8921, 8
        %v8989 = vpop.permute.xlu0 %8988
        %8990 = vrot.lane.b32.xlu0 %v8924, 8
        %v8991 = vpop.permute.xlu0 %8990
        %8992 = vrot.lane.b32.xlu0 %v8926, 8
        %v8993 = vpop.permute.xlu0 %8992
        %8994 = vrot.lane.b32.xlu0 %v8929, 8
        %v8995 = vpop.permute.xlu0 %8994
        %8996 = vrot.lane.b32.xlu0 %v8931, 8
        %v8997 = vpop.permute.xlu0 %8996
        %8998 = vrot.lane.b32.xlu0 %v8934, 8
        %v8999 = vpop.permute.xlu0 %8998
        %9000 = vrot.lane.b32.xlu0 %v8936, 8
        %v9001 = vpop.permute.xlu0 %9000
        %9002 = vrot.lane.b32.xlu0 %v8939, 8
        %v9003 = vpop.permute.xlu0 %9002
        %9004 = vrot.lane.b32.xlu0 %v8941, 8
        %v9005 = vpop.permute.xlu0 %9004
        %vm9038 = vcmask 97344
        %9039 = vst.msk [vmem:[#allocation6] sm:$0xff] %vm9038, %v8943
        %9040 = vst.msk [vmem:[#allocation6 + $0x8] sm:$0xff] %vm9038, %v8945
        %9041 = vst.msk [vmem:[#allocation6 + $0x10] sm:$0xff] %vm9038, %v8947
        %9042 = vst.msk [vmem:[#allocation6 + $0x18] sm:$0xff] %vm9038, %v8949
        %9043 = vst.msk [vmem:[#allocation6 + $0x20] sm:$0xff] %vm9038, %v8951
        %9044 = vst.msk [vmem:[#allocation6 + $0x28] sm:$0xff] %vm9038, %v8953
        %9045 = vst.msk [vmem:[#allocation6 + $0x30] sm:$0xff] %vm9038, %v8955
        %9046 = vst.msk [vmem:[#allocation6 + $0x38] sm:$0xff] %vm9038, %v8957
        %9047 = vst.msk [vmem:[#allocation6 + $0x40] sm:$0xff] %vm9038, %v8959
        %9048 = vst.msk [vmem:[#allocation6 + $0x48] sm:$0xff] %vm9038, %v8961
        %9049 = vst.msk [vmem:[#allocation6 + $0x50] sm:$0xff] %vm9038, %v8963
        %9050 = vst.msk [vmem:[#allocation6 + $0x58] sm:$0xff] %vm9038, %v8965
        %9051 = vst.msk [vmem:[#allocation6 + $0x60] sm:$0xff] %vm9038, %v8967
        %9052 = vst.msk [vmem:[#allocation6 + $0x68] sm:$0xff] %vm9038, %v8969
        %9053 = vst.msk [vmem:[#allocation6 + $0x70] sm:$0xff] %vm9038, %v8971
        %9054 = vst.msk [vmem:[#allocation6 + $0x78] sm:$0xff] %vm9038, %v8973
        %9055 = vst.msk [vmem:[#allocation6 + $0x80] sm:$0xff] %vm9038, %v8975
        %9056 = vst.msk [vmem:[#allocation6 + $0x88] sm:$0xff] %vm9038, %v8977
        %9057 = vst.msk [vmem:[#allocation6 + $0x90] sm:$0xff] %vm9038, %v8979
        %9058 = vst.msk [vmem:[#allocation6 + $0x98] sm:$0xff] %vm9038, %v8981
        %9059 = vst.msk [vmem:[#allocation6 + $0xa0] sm:$0xff] %vm9038, %v8983
        %9060 = vst.msk [vmem:[#allocation6 + $0xa8] sm:$0xff] %vm9038, %v8985
        %9061 = vst.msk [vmem:[#allocation6 + $0xb0] sm:$0xff] %vm9038, %v8987
        %9062 = vst.msk [vmem:[#allocation6 + $0xb8] sm:$0xff] %vm9038, %v8989
        %9063 = vst.msk [vmem:[#allocation6 + $0xc0] sm:$0xff] %vm9038, %v8991
        %9064 = vst.msk [vmem:[#allocation6 + $0xc8] sm:$0xff] %vm9038, %v8993
        %9065 = vst.msk [vmem:[#allocation6 + $0xd0] sm:$0xff] %vm9038, %v8995
        %9066 = vst.msk [vmem:[#allocation6 + $0xd8] sm:$0xff] %vm9038, %v8997
        %9067 = vst.msk [vmem:[#allocation6 + $0xe0] sm:$0xff] %vm9038, %v8999
        %9068 = vst.msk [vmem:[#allocation6 + $0xe8] sm:$0xff] %vm9038, %v9001
        %9069 = vst.msk [vmem:[#allocation6 + $0xf0] sm:$0xff] %vm9038, %v9003
        %9070 = vst.msk [vmem:[#allocation6 + $0xf8] sm:$0xff] %vm9038, %v9005
        %9073 = vrot.lane.b32.xlu0 %v8522, 12
        %v9074 = vpop.permute.xlu0 %9073
        %9075 = vrot.lane.b32.xlu0 %v8523, 12
        %v9076 = vpop.permute.xlu0 %9075
        %9077 = vrot.lane.b32.xlu0 %v8525, 12
        %v9078 = vpop.permute.xlu0 %9077
        %9079 = vrot.lane.b32.xlu0 %v8526, 12
        %v9080 = vpop.permute.xlu0 %9079
        %9081 = vrot.lane.b32.xlu0 %v8528, 12
        %v9082 = vpop.permute.xlu0 %9081
        %9083 = vrot.lane.b32.xlu0 %v8529, 12
        %v9084 = vpop.permute.xlu0 %9083
        %9085 = vrot.lane.b32.xlu0 %v8531, 12
        %v9086 = vpop.permute.xlu0 %9085
        %9087 = vrot.lane.b32.xlu0 %v8532, 12
        %v9088 = vpop.permute.xlu0 %9087
        %9089 = vrot.lane.b32.xlu0 %v8534, 12
        %v9090 = vpop.permute.xlu0 %9089
        %9091 = vrot.lane.b32.xlu0 %v8535, 12
        %v9092 = vpop.permute.xlu0 %9091
        %9093 = vrot.lane.b32.xlu0 %v8537, 12
        %v9094 = vpop.permute.xlu0 %9093
        %9095 = vrot.lane.b32.xlu0 %v8538, 12
        %v9096 = vpop.permute.xlu0 %9095
        %9097 = vrot.lane.b32.xlu0 %v8540, 12
        %v9098 = vpop.permute.xlu0 %9097
        %9099 = vrot.lane.b32.xlu0 %v8541, 12
        %v9100 = vpop.permute.xlu0 %9099
        %9101 = vrot.lane.b32.xlu0 %v8543, 12
        %v9102 = vpop.permute.xlu0 %9101
        %9103 = vrot.lane.b32.xlu0 %v8544, 12
        %v9104 = vpop.permute.xlu0 %9103
        %9105 = vrot.lane.b32.xlu0 %v8546, 12
        %v9106 = vpop.permute.xlu0 %9105
        %9107 = vrot.lane.b32.xlu0 %v8547, 12
        %v9108 = vpop.permute.xlu0 %9107
        %9109 = vrot.lane.b32.xlu0 %v8549, 12
        %v9110 = vpop.permute.xlu0 %9109
        %9111 = vrot.lane.b32.xlu0 %v8550, 12
        %v9112 = vpop.permute.xlu0 %9111
        %9113 = vrot.lane.b32.xlu0 %v8552, 12
        %v9114 = vpop.permute.xlu0 %9113
        %9115 = vrot.lane.b32.xlu0 %v8553, 12
        %v9116 = vpop.permute.xlu0 %9115
        %9117 = vrot.lane.b32.xlu0 %v8555, 12
        %v9118 = vpop.permute.xlu0 %9117
        %9119 = vrot.lane.b32.xlu0 %v8556, 12
        %v9120 = vpop.permute.xlu0 %9119
        %9121 = vrot.lane.b32.xlu0 %v8558, 12
        %v9122 = vpop.permute.xlu0 %9121
        %9123 = vrot.lane.b32.xlu0 %v8559, 12
        %v9124 = vpop.permute.xlu0 %9123
        %9125 = vrot.lane.b32.xlu0 %v8561, 12
        %v9126 = vpop.permute.xlu0 %9125
        %9127 = vrot.lane.b32.xlu0 %v8562, 12
        %v9128 = vpop.permute.xlu0 %9127
        %9129 = vrot.lane.b32.xlu0 %v8564, 12
        %v9130 = vpop.permute.xlu0 %9129
        %9131 = vrot.lane.b32.xlu0 %v8565, 12
        %v9132 = vpop.permute.xlu0 %9131
        %9133 = vrot.lane.b32.xlu0 %v8567, 12
        %v9134 = vpop.permute.xlu0 %9133
        %9135 = vrot.lane.b32.xlu0 %v8568, 12
        %v9136 = vpop.permute.xlu0 %9135
        %vm9169 = vcmask 130144
        %9170 = vst.msk [vmem:[#allocation6] sm:$0xff] %vm9169, %v9074
        %9171 = vst.msk [vmem:[#allocation6 + $0x8] sm:$0xff] %vm9169, %v9076
        %9172 = vst.msk [vmem:[#allocation6 + $0x10] sm:$0xff] %vm9169, %v9078
        %9173 = vst.msk [vmem:[#allocation6 + $0x18] sm:$0xff] %vm9169, %v9080
        %9174 = vst.msk [vmem:[#allocation6 + $0x20] sm:$0xff] %vm9169, %v9082
        %9175 = vst.msk [vmem:[#allocation6 + $0x28] sm:$0xff] %vm9169, %v9084
        %9176 = vst.msk [vmem:[#allocation6 + $0x30] sm:$0xff] %vm9169, %v9086
        %9177 = vst.msk [vmem:[#allocation6 + $0x38] sm:$0xff] %vm9169, %v9088
        %9178 = vst.msk [vmem:[#allocation6 + $0x40] sm:$0xff] %vm9169, %v9090
        %9179 = vst.msk [vmem:[#allocation6 + $0x48] sm:$0xff] %vm9169, %v9092
        %9180 = vst.msk [vmem:[#allocation6 + $0x50] sm:$0xff] %vm9169, %v9094
        %9181 = vst.msk [vmem:[#allocation6 + $0x58] sm:$0xff] %vm9169, %v9096
        %9182 = vst.msk [vmem:[#allocation6 + $0x60] sm:$0xff] %vm9169, %v9098
        %9183 = vst.msk [vmem:[#allocation6 + $0x68] sm:$0xff] %vm9169, %v9100
        %9184 = vst.msk [vmem:[#allocation6 + $0x70] sm:$0xff] %vm9169, %v9102
        %9185 = vst.msk [vmem:[#allocation6 + $0x78] sm:$0xff] %vm9169, %v9104
        %9186 = vst.msk [vmem:[#allocation6 + $0x80] sm:$0xff] %vm9169, %v9106
        %9187 = vst.msk [vmem:[#allocation6 + $0x88] sm:$0xff] %vm9169, %v9108
        %9188 = vst.msk [vmem:[#allocation6 + $0x90] sm:$0xff] %vm9169, %v9110
        %9189 = vst.msk [vmem:[#allocation6 + $0x98] sm:$0xff] %vm9169, %v9112
        %9190 = vst.msk [vmem:[#allocation6 + $0xa0] sm:$0xff] %vm9169, %v9114
        %9191 = vst.msk [vmem:[#allocation6 + $0xa8] sm:$0xff] %vm9169, %v9116
        %9192 = vst.msk [vmem:[#allocation6 + $0xb0] sm:$0xff] %vm9169, %v9118
        %9193 = vst.msk [vmem:[#allocation6 + $0xb8] sm:$0xff] %vm9169, %v9120
        %9194 = vst.msk [vmem:[#allocation6 + $0xc0] sm:$0xff] %vm9169, %v9122
        %9195 = vst.msk [vmem:[#allocation6 + $0xc8] sm:$0xff] %vm9169, %v9124
        %9196 = vst.msk [vmem:[#allocation6 + $0xd0] sm:$0xff] %vm9169, %v9126
        %9197 = vst.msk [vmem:[#allocation6 + $0xd8] sm:$0xff] %vm9169, %v9128
        %9198 = vst.msk [vmem:[#allocation6 + $0xe0] sm:$0xff] %vm9169, %v9130
        %9199 = vst.msk [vmem:[#allocation6 + $0xe8] sm:$0xff] %vm9169, %v9132
        %9200 = vst.msk [vmem:[#allocation6 + $0xf0] sm:$0xff] %vm9169, %v9134
        %9201 = vst.msk [vmem:[#allocation6 + $0xf8] sm:$0xff] %vm9169, %v9136
        %v9203 = vrot.slane %v8567, 1
        %v9204 = vrot.slane %v8568, 1
        %v9205 = vsel %vm4476, %v9203, %v9204
        %v9206 = vrot.slane %v8569, 1
        %v9207 = vsel %vm4476, %v9204, %v9206
        %9208 = vrot.lane.b32.xlu0 %v8660, 16
        %v9209 = vpop.permute.xlu0 %9208
        %9210 = vrot.lane.b32.xlu0 %v8662, 16
        %v9211 = vpop.permute.xlu0 %9210
        %9212 = vrot.lane.b32.xlu0 %v8665, 16
        %v9213 = vpop.permute.xlu0 %9212
        %9214 = vrot.lane.b32.xlu0 %v8667, 16
        %v9215 = vpop.permute.xlu0 %9214
        %9216 = vrot.lane.b32.xlu0 %v8670, 16
        %v9217 = vpop.permute.xlu0 %9216
        %9218 = vrot.lane.b32.xlu0 %v8672, 16
        %v9219 = vpop.permute.xlu0 %9218
        %9220 = vrot.lane.b32.xlu0 %v8675, 16
        %v9221 = vpop.permute.xlu0 %9220
        %9222 = vrot.lane.b32.xlu0 %v8677, 16
        %v9223 = vpop.permute.xlu0 %9222
        %9224 = vrot.lane.b32.xlu0 %v8680, 16
        %v9225 = vpop.permute.xlu0 %9224
        %9226 = vrot.lane.b32.xlu0 %v8682, 16
        %v9227 = vpop.permute.xlu0 %9226
        %9228 = vrot.lane.b32.xlu0 %v8685, 16
        %v9229 = vpop.permute.xlu0 %9228
        %9230 = vrot.lane.b32.xlu0 %v8687, 16
        %v9231 = vpop.permute.xlu0 %9230
        %9232 = vrot.lane.b32.xlu0 %v8690, 16
        %v9233 = vpop.permute.xlu0 %9232
        %9234 = vrot.lane.b32.xlu0 %v8692, 16
        %v9235 = vpop.permute.xlu0 %9234
        %9236 = vrot.lane.b32.xlu0 %v8695, 16
        %v9237 = vpop.permute.xlu0 %9236
        %9238 = vrot.lane.b32.xlu0 %v8697, 16
        %v9239 = vpop.permute.xlu0 %9238
        %9240 = vrot.lane.b32.xlu0 %v8700, 16
        %v9241 = vpop.permute.xlu0 %9240
        %9242 = vrot.lane.b32.xlu0 %v8702, 16
        %v9243 = vpop.permute.xlu0 %9242
        %9244 = vrot.lane.b32.xlu0 %v8705, 16
        %v9245 = vpop.permute.xlu0 %9244
        %9246 = vrot.lane.b32.xlu0 %v8707, 16
        %v9247 = vpop.permute.xlu0 %9246
        %9248 = vrot.lane.b32.xlu0 %v8710, 16
        %v9249 = vpop.permute.xlu0 %9248
        %9250 = vrot.lane.b32.xlu0 %v8712, 16
        %v9251 = vpop.permute.xlu0 %9250
        %9252 = vrot.lane.b32.xlu0 %v8715, 16
        %v9253 = vpop.permute.xlu0 %9252
        %9254 = vrot.lane.b32.xlu0 %v8717, 16
        %v9255 = vpop.permute.xlu0 %9254
        %9256 = vrot.lane.b32.xlu0 %v8720, 16
        %v9257 = vpop.permute.xlu0 %9256
        %9258 = vrot.lane.b32.xlu0 %v8722, 16
        %v9259 = vpop.permute.xlu0 %9258
        %9260 = vrot.lane.b32.xlu0 %v8725, 16
        %v9261 = vpop.permute.xlu0 %9260
        %9262 = vrot.lane.b32.xlu0 %v8727, 16
        %v9263 = vpop.permute.xlu0 %9262
        %9264 = vrot.lane.b32.xlu0 %v8730, 16
        %v9265 = vpop.permute.xlu0 %9264
        %9266 = vrot.lane.b32.xlu0 %v8732, 16
        %v9267 = vpop.permute.xlu0 %9266
        %9268 = vrot.lane.b32.xlu0 %v9205, 16
        %v9269 = vpop.permute.xlu0 %9268
        %9270 = vrot.lane.b32.xlu0 %v9207, 16
        %v9271 = vpop.permute.xlu0 %9270
        %vm9304 = vcmask 162944
        %9305 = vst.msk [vmem:[#allocation6] sm:$0xff] %vm9304, %v9209
        %9306 = vst.msk [vmem:[#allocation6 + $0x8] sm:$0xff] %vm9304, %v9211
        %9307 = vst.msk [vmem:[#allocation6 + $0x10] sm:$0xff] %vm9304, %v9213
        %9308 = vst.msk [vmem:[#allocation6 + $0x18] sm:$0xff] %vm9304, %v9215
        %9309 = vst.msk [vmem:[#allocation6 + $0x20] sm:$0xff] %vm9304, %v9217
        %9310 = vst.msk [vmem:[#allocation6 + $0x28] sm:$0xff] %vm9304, %v9219
        %9311 = vst.msk [vmem:[#allocation6 + $0x30] sm:$0xff] %vm9304, %v9221
        %9312 = vst.msk [vmem:[#allocation6 + $0x38] sm:$0xff] %vm9304, %v9223
        %9313 = vst.msk [vmem:[#allocation6 + $0x40] sm:$0xff] %vm9304, %v9225
        %9314 = vst.msk [vmem:[#allocation6 + $0x48] sm:$0xff] %vm9304, %v9227
        %9315 = vst.msk [vmem:[#allocation6 + $0x50] sm:$0xff] %vm9304, %v9229
        %9316 = vst.msk [vmem:[#allocation6 + $0x58] sm:$0xff] %vm9304, %v9231
        %9317 = vst.msk [vmem:[#allocation6 + $0x60] sm:$0xff] %vm9304, %v9233
        %9318 = vst.msk [vmem:[#allocation6 + $0x68] sm:$0xff] %vm9304, %v9235
        %9319 = vst.msk [vmem:[#allocation6 + $0x70] sm:$0xff] %vm9304, %v9237
        %9320 = vst.msk [vmem:[#allocation6 + $0x78] sm:$0xff] %vm9304, %v9239
        %9321 = vst.msk [vmem:[#allocation6 + $0x80] sm:$0xff] %vm9304, %v9241
        %9322 = vst.msk [vmem:[#allocation6 + $0x88] sm:$0xff] %vm9304, %v9243
        %9323 = vst.msk [vmem:[#allocation6 + $0x90] sm:$0xff] %vm9304, %v9245
        %9324 = vst.msk [vmem:[#allocation6 + $0x98] sm:$0xff] %vm9304, %v9247
        %9325 = vst.msk [vmem:[#allocation6 + $0xa0] sm:$0xff] %vm9304, %v9249
        %9326 = vst.msk [vmem:[#allocation6 + $0xa8] sm:$0xff] %vm9304, %v9251
        %9327 = vst.msk [vmem:[#allocation6 + $0xb0] sm:$0xff] %vm9304, %v9253
        %9328 = vst.msk [vmem:[#allocation6 + $0xb8] sm:$0xff] %vm9304, %v9255
        %9329 = vst.msk [vmem:[#allocation6 + $0xc0] sm:$0xff] %vm9304, %v9257
        %9330 = vst.msk [vmem:[#allocation6 + $0xc8] sm:$0xff] %vm9304, %v9259
        %9331 = vst.msk [vmem:[#allocation6 + $0xd0] sm:$0xff] %vm9304, %v9261
        %9332 = vst.msk [vmem:[#allocation6 + $0xd8] sm:$0xff] %vm9304, %v9263
        %9333 = vst.msk [vmem:[#allocation6 + $0xe0] sm:$0xff] %vm9304, %v9265
        %9334 = vst.msk [vmem:[#allocation6 + $0xe8] sm:$0xff] %vm9304, %v9267
        %9335 = vst.msk [vmem:[#allocation6 + $0xf0] sm:$0xff] %vm9304, %v9269
        %9336 = vst.msk [vmem:[#allocation6 + $0xf8] sm:$0xff] %vm9304, %v9271
        %v9337 = vrot.slane %v8567, 2
        %v9338 = vrot.slane %v8568, 2
        %v9339 = vsel %vm5359, %v9337, %v9338
        %v9340 = vrot.slane %v8569, 2
        %v9341 = vsel %vm5359, %v9338, %v9340
        %9342 = vrot.lane.b32.xlu0 %v8869, 20
        %v9343 = vpop.permute.xlu0 %9342
        %9344 = vrot.lane.b32.xlu0 %v8871, 20
        %v9345 = vpop.permute.xlu0 %9344
        %9346 = vrot.lane.b32.xlu0 %v8874, 20
        %v9347 = vpop.permute.xlu0 %9346
        %9348 = vrot.lane.b32.xlu0 %v8876, 20
        %v9349 = vpop.permute.xlu0 %9348
        %9350 = vrot.lane.b32.xlu0 %v8879, 20
        %v9351 = vpop.permute.xlu0 %9350
        %9352 = vrot.lane.b32.xlu0 %v8881, 20
        %v9353 = vpop.permute.xlu0 %9352
        %9354 = vrot.lane.b32.xlu0 %v8884, 20
        %v9355 = vpop.permute.xlu0 %9354
        %9356 = vrot.lane.b32.xlu0 %v8886, 20
        %v9357 = vpop.permute.xlu0 %9356
        %9358 = vrot.lane.b32.xlu0 %v8889, 20
        %v9359 = vpop.permute.xlu0 %9358
        %9360 = vrot.lane.b32.xlu0 %v8891, 20
        %v9361 = vpop.permute.xlu0 %9360
        %9362 = vrot.lane.b32.xlu0 %v8894, 20
        %v9363 = vpop.permute.xlu0 %9362
        %9364 = vrot.lane.b32.xlu0 %v8896, 20
        %v9365 = vpop.permute.xlu0 %9364
        %9366 = vrot.lane.b32.xlu0 %v8899, 20
        %v9367 = vpop.permute.xlu0 %9366
        %9368 = vrot.lane.b32.xlu0 %v8901, 20
        %v9369 = vpop.permute.xlu0 %9368
        %9370 = vrot.lane.b32.xlu0 %v8904, 20
        %v9371 = vpop.permute.xlu0 %9370
        %9372 = vrot.lane.b32.xlu0 %v8906, 20
        %v9373 = vpop.permute.xlu0 %9372
        %9374 = vrot.lane.b32.xlu0 %v8909, 20
        %v9375 = vpop.permute.xlu0 %9374
        %9376 = vrot.lane.b32.xlu0 %v8911, 20
        %v9377 = vpop.permute.xlu0 %9376
        %9378 = vrot.lane.b32.xlu0 %v8914, 20
        %v9379 = vpop.permute.xlu0 %9378
        %9380 = vrot.lane.b32.xlu0 %v8916, 20
        %v9381 = vpop.permute.xlu0 %9380
        %9382 = vrot.lane.b32.xlu0 %v8919, 20
        %v9383 = vpop.permute.xlu0 %9382
        %9384 = vrot.lane.b32.xlu0 %v8921, 20
        %v9385 = vpop.permute.xlu0 %9384
        %9386 = vrot.lane.b32.xlu0 %v8924, 20
        %v9387 = vpop.permute.xlu0 %9386
        %9388 = vrot.lane.b32.xlu0 %v8926, 20
        %v9389 = vpop.permute.xlu0 %9388
        %9390 = vrot.lane.b32.xlu0 %v8929, 20
        %v9391 = vpop.permute.xlu0 %9390
        %9392 = vrot.lane.b32.xlu0 %v8931, 20
        %v9393 = vpop.permute.xlu0 %9392
        %9394 = vrot.lane.b32.xlu0 %v8934, 20
        %v9395 = vpop.permute.xlu0 %9394
        %9396 = vrot.lane.b32.xlu0 %v8936, 20
        %v9397 = vpop.permute.xlu0 %9396
        %9398 = vrot.lane.b32.xlu0 %v8939, 20
        %v9399 = vpop.permute.xlu0 %9398
        %9400 = vrot.lane.b32.xlu0 %v8941, 20
        %v9401 = vpop.permute.xlu0 %9400
        %9402 = vrot.lane.b32.xlu0 %v9339, 20
        %v9403 = vpop.permute.xlu0 %9402
        %9404 = vrot.lane.b32.xlu0 %v9341, 20
        %v9405 = vpop.permute.xlu0 %9404
        %vm9438 = vcmask 195744
        %9439 = vst.msk [vmem:[#allocation6] sm:$0xff] %vm9438, %v9343
        %9440 = vst.msk [vmem:[#allocation6 + $0x8] sm:$0xff] %vm9438, %v9345
        %9441 = vst.msk [vmem:[#allocation6 + $0x10] sm:$0xff] %vm9438, %v9347
        %9442 = vst.msk [vmem:[#allocation6 + $0x18] sm:$0xff] %vm9438, %v9349
        %9443 = vst.msk [vmem:[#allocation6 + $0x20] sm:$0xff] %vm9438, %v9351
        %9444 = vst.msk [vmem:[#allocation6 + $0x28] sm:$0xff] %vm9438, %v9353
        %9445 = vst.msk [vmem:[#allocation6 + $0x30] sm:$0xff] %vm9438, %v9355
        %9446 = vst.msk [vmem:[#allocation6 + $0x38] sm:$0xff] %vm9438, %v9357
        %9447 = vst.msk [vmem:[#allocation6 + $0x40] sm:$0xff] %vm9438, %v9359
        %9448 = vst.msk [vmem:[#allocation6 + $0x48] sm:$0xff] %vm9438, %v9361
        %9449 = vst.msk [vmem:[#allocation6 + $0x50] sm:$0xff] %vm9438, %v9363
        %9450 = vst.msk [vmem:[#allocation6 + $0x58] sm:$0xff] %vm9438, %v9365
        %9451 = vst.msk [vmem:[#allocation6 + $0x60] sm:$0xff] %vm9438, %v9367
        %9452 = vst.msk [vmem:[#allocation6 + $0x68] sm:$0xff] %vm9438, %v9369
        %9453 = vst.msk [vmem:[#allocation6 + $0x70] sm:$0xff] %vm9438, %v9371
        %9454 = vst.msk [vmem:[#allocation6 + $0x78] sm:$0xff] %vm9438, %v9373
        %9455 = vst.msk [vmem:[#allocation6 + $0x80] sm:$0xff] %vm9438, %v9375
        %9456 = vst.msk [vmem:[#allocation6 + $0x88] sm:$0xff] %vm9438, %v9377
        %9457 = vst.msk [vmem:[#allocation6 + $0x90] sm:$0xff] %vm9438, %v9379
        %9458 = vst.msk [vmem:[#allocation6 + $0x98] sm:$0xff] %vm9438, %v9381
        %9459 = vst.msk [vmem:[#allocation6 + $0xa0] sm:$0xff] %vm9438, %v9383
        %9460 = vst.msk [vmem:[#allocation6 + $0xa8] sm:$0xff] %vm9438, %v9385
        %9461 = vst.msk [vmem:[#allocation6 + $0xb0] sm:$0xff] %vm9438, %v9387
        %9462 = vst.msk [vmem:[#allocation6 + $0xb8] sm:$0xff] %vm9438, %v9389
        %9463 = vst.msk [vmem:[#allocation6 + $0xc0] sm:$0xff] %vm9438, %v9391
        %9464 = vst.msk [vmem:[#allocation6 + $0xc8] sm:$0xff] %vm9438, %v9393
        %9465 = vst.msk [vmem:[#allocation6 + $0xd0] sm:$0xff] %vm9438, %v9395
        %9466 = vst.msk [vmem:[#allocation6 + $0xd8] sm:$0xff] %vm9438, %v9397
        %9467 = vst.msk [vmem:[#allocation6 + $0xe0] sm:$0xff] %vm9438, %v9399
        %9468 = vst.msk [vmem:[#allocation6 + $0xe8] sm:$0xff] %vm9438, %v9401
        %9469 = vst.msk [vmem:[#allocation6 + $0xf0] sm:$0xff] %vm9438, %v9403
        %9470 = vst.msk [vmem:[#allocation6 + $0xf8] sm:$0xff] %vm9438, %v9405
        %9473 = vrot.lane.b32.xlu0 %v8525, 24
        %v9474 = vpop.permute.xlu0 %9473
        %9475 = vrot.lane.b32.xlu0 %v8526, 24
        %v9476 = vpop.permute.xlu0 %9475
        %9477 = vrot.lane.b32.xlu0 %v8528, 24
        %v9478 = vpop.permute.xlu0 %9477
        %9479 = vrot.lane.b32.xlu0 %v8529, 24
        %v9480 = vpop.permute.xlu0 %9479
        %9481 = vrot.lane.b32.xlu0 %v8531, 24
        %v9482 = vpop.permute.xlu0 %9481
        %9483 = vrot.lane.b32.xlu0 %v8532, 24
        %v9484 = vpop.permute.xlu0 %9483
        %9485 = vrot.lane.b32.xlu0 %v8534, 24
        %v9486 = vpop.permute.xlu0 %9485
        %9487 = vrot.lane.b32.xlu0 %v8535, 24
        %v9488 = vpop.permute.xlu0 %9487
        %9489 = vrot.lane.b32.xlu0 %v8537, 24
        %v9490 = vpop.permute.xlu0 %9489
        %9491 = vrot.lane.b32.xlu0 %v8538, 24
        %v9492 = vpop.permute.xlu0 %9491
        %9493 = vrot.lane.b32.xlu0 %v8540, 24
        %v9494 = vpop.permute.xlu0 %9493
        %9495 = vrot.lane.b32.xlu0 %v8541, 24
        %v9496 = vpop.permute.xlu0 %9495
        %9497 = vrot.lane.b32.xlu0 %v8543, 24
        %v9498 = vpop.permute.xlu0 %9497
        %9499 = vrot.lane.b32.xlu0 %v8544, 24
        %v9500 = vpop.permute.xlu0 %9499
        %9501 = vrot.lane.b32.xlu0 %v8546, 24
        %v9502 = vpop.permute.xlu0 %9501
        %9503 = vrot.lane.b32.xlu0 %v8547, 24
        %v9504 = vpop.permute.xlu0 %9503
        %9505 = vrot.lane.b32.xlu0 %v8549, 24
        %v9506 = vpop.permute.xlu0 %9505
        %9507 = vrot.lane.b32.xlu0 %v8550, 24
        %v9508 = vpop.permute.xlu0 %9507
        %9509 = vrot.lane.b32.xlu0 %v8552, 24
        %v9510 = vpop.permute.xlu0 %9509
        %9511 = vrot.lane.b32.xlu0 %v8553, 24
        %v9512 = vpop.permute.xlu0 %9511
        %9513 = vrot.lane.b32.xlu0 %v8555, 24
        %v9514 = vpop.permute.xlu0 %9513
        %9515 = vrot.lane.b32.xlu0 %v8556, 24
        %v9516 = vpop.permute.xlu0 %9515
        %9517 = vrot.lane.b32.xlu0 %v8558, 24
        %v9518 = vpop.permute.xlu0 %9517
        %9519 = vrot.lane.b32.xlu0 %v8559, 24
        %v9520 = vpop.permute.xlu0 %9519
        %9521 = vrot.lane.b32.xlu0 %v8561, 24
        %v9522 = vpop.permute.xlu0 %9521
        %9523 = vrot.lane.b32.xlu0 %v8562, 24
        %v9524 = vpop.permute.xlu0 %9523
        %9525 = vrot.lane.b32.xlu0 %v8564, 24
        %v9526 = vpop.permute.xlu0 %9525
        %9527 = vrot.lane.b32.xlu0 %v8565, 24
        %v9528 = vpop.permute.xlu0 %9527
        %9529 = vrot.lane.b32.xlu0 %v8567, 24
        %v9530 = vpop.permute.xlu0 %9529
        %9531 = vrot.lane.b32.xlu0 %v8568, 24
        %v9532 = vpop.permute.xlu0 %9531
        %9533 = vrot.lane.b32.xlu0 %v8570, 24
        %v9534 = vpop.permute.xlu0 %9533
        %9535 = vrot.lane.b32.xlu0 %v8571, 24
        %v9536 = vpop.permute.xlu0 %9535
        %vm9569 = vcmask 228544
        %9570 = vst.msk [vmem:[#allocation6] sm:$0xff] %vm9569, %v9474
        %9571 = vst.msk [vmem:[#allocation6 + $0x8] sm:$0xff] %vm9569, %v9476
        %9572 = vst.msk [vmem:[#allocation6 + $0x10] sm:$0xff] %vm9569, %v9478
        %9573 = vst.msk [vmem:[#allocation6 + $0x18] sm:$0xff] %vm9569, %v9480
        %9574 = vst.msk [vmem:[#allocation6 + $0x20] sm:$0xff] %vm9569, %v9482
        %9575 = vst.msk [vmem:[#allocation6 + $0x28] sm:$0xff] %vm9569, %v9484
        %9576 = vst.msk [vmem:[#allocation6 + $0x30] sm:$0xff] %vm9569, %v9486
        %9577 = vst.msk [vmem:[#allocation6 + $0x38] sm:$0xff] %vm9569, %v9488
        %9578 = vst.msk [vmem:[#allocation6 + $0x40] sm:$0xff] %vm9569, %v9490
        %9579 = vst.msk [vmem:[#allocation6 + $0x48] sm:$0xff] %vm9569, %v9492
        %9580 = vst.msk [vmem:[#allocation6 + $0x50] sm:$0xff] %vm9569, %v9494
        %9581 = vst.msk [vmem:[#allocation6 + $0x58] sm:$0xff] %vm9569, %v9496
        %9582 = vst.msk [vmem:[#allocation6 + $0x60] sm:$0xff] %vm9569, %v9498
        %9583 = vst.msk [vmem:[#allocation6 + $0x68] sm:$0xff] %vm9569, %v9500
        %9584 = vst.msk [vmem:[#allocation6 + $0x70] sm:$0xff] %vm9569, %v9502
        %9585 = vst.msk [vmem:[#allocation6 + $0x78] sm:$0xff] %vm9569, %v9504
        %9586 = vst.msk [vmem:[#allocation6 + $0x80] sm:$0xff] %vm9569, %v9506
        %9587 = vst.msk [vmem:[#allocation6 + $0x88] sm:$0xff] %vm9569, %v9508
        %9588 = vst.msk [vmem:[#allocation6 + $0x90] sm:$0xff] %vm9569, %v9510
        %9589 = vst.msk [vmem:[#allocation6 + $0x98] sm:$0xff] %vm9569, %v9512
        %9590 = vst.msk [vmem:[#allocation6 + $0xa0] sm:$0xff] %vm9569, %v9514
        %9591 = vst.msk [vmem:[#allocation6 + $0xa8] sm:$0xff] %vm9569, %v9516
        %9592 = vst.msk [vmem:[#allocation6 + $0xb0] sm:$0xff] %vm9569, %v9518
        %9593 = vst.msk [vmem:[#allocation6 + $0xb8] sm:$0xff] %vm9569, %v9520
        %9594 = vst.msk [vmem:[#allocation6 + $0xc0] sm:$0xff] %vm9569, %v9522
        %9595 = vst.msk [vmem:[#allocation6 + $0xc8] sm:$0xff] %vm9569, %v9524
        %9596 = vst.msk [vmem:[#allocation6 + $0xd0] sm:$0xff] %vm9569, %v9526
        %9597 = vst.msk [vmem:[#allocation6 + $0xd8] sm:$0xff] %vm9569, %v9528
        %9598 = vst.msk [vmem:[#allocation6 + $0xe0] sm:$0xff] %vm9569, %v9530
        %9599 = vst.msk [vmem:[#allocation6 + $0xe8] sm:$0xff] %vm9569, %v9532
        %9600 = vst.msk [vmem:[#allocation6 + $0xf0] sm:$0xff] %vm9569, %v9534
        %9601 = vst.msk [vmem:[#allocation6 + $0xf8] sm:$0xff] %vm9569, %v9536
        %v9603 = vrot.slane %v8570, 1
        %v9604 = vrot.slane %v8571, 1
        %v9605 = vsel %vm4476, %v9603, %v9604
        %v9606 = vrot.slane %v8572, 1
        %v9607 = vsel %vm4476, %v9604, %v9606
        %9608 = vrot.lane.b32.xlu0 %v8665, 28
        %v9609 = vpop.permute.xlu0 %9608
        %9610 = vrot.lane.b32.xlu0 %v8667, 28
        %v9611 = vpop.permute.xlu0 %9610
        %9612 = vrot.lane.b32.xlu0 %v8670, 28
        %v9613 = vpop.permute.xlu0 %9612
        %9614 = vrot.lane.b32.xlu0 %v8672, 28
        %v9615 = vpop.permute.xlu0 %9614
        %9616 = vrot.lane.b32.xlu0 %v8675, 28
        %v9617 = vpop.permute.xlu0 %9616
        %9618 = vrot.lane.b32.xlu0 %v8677, 28
        %v9619 = vpop.permute.xlu0 %9618
        %9620 = vrot.lane.b32.xlu0 %v8680, 28
        %v9621 = vpop.permute.xlu0 %9620
        %9622 = vrot.lane.b32.xlu0 %v8682, 28
        %v9623 = vpop.permute.xlu0 %9622
        %9624 = vrot.lane.b32.xlu0 %v8685, 28
        %v9625 = vpop.permute.xlu0 %9624
        %9626 = vrot.lane.b32.xlu0 %v8687, 28
        %v9627 = vpop.permute.xlu0 %9626
        %9628 = vrot.lane.b32.xlu0 %v8690, 28
        %v9629 = vpop.permute.xlu0 %9628
        %9630 = vrot.lane.b32.xlu0 %v8692, 28
        %v9631 = vpop.permute.xlu0 %9630
        %9632 = vrot.lane.b32.xlu0 %v8695, 28
        %v9633 = vpop.permute.xlu0 %9632
        %9634 = vrot.lane.b32.xlu0 %v8697, 28
        %v9635 = vpop.permute.xlu0 %9634
        %9636 = vrot.lane.b32.xlu0 %v8700, 28
        %v9637 = vpop.permute.xlu0 %9636
        %9638 = vrot.lane.b32.xlu0 %v8702, 28
        %v9639 = vpop.permute.xlu0 %9638
        %9640 = vrot.lane.b32.xlu0 %v8705, 28
        %v9641 = vpop.permute.xlu0 %9640
        %9642 = vrot.lane.b32.xlu0 %v8707, 28
        %v9643 = vpop.permute.xlu0 %9642
        %9644 = vrot.lane.b32.xlu0 %v8710, 28
        %v9645 = vpop.permute.xlu0 %9644
        %9646 = vrot.lane.b32.xlu0 %v8712, 28
        %v9647 = vpop.permute.xlu0 %9646
        %9648 = vrot.lane.b32.xlu0 %v8715, 28
        %v9649 = vpop.permute.xlu0 %9648
        %9650 = vrot.lane.b32.xlu0 %v8717, 28
        %v9651 = vpop.permute.xlu0 %9650
        %9652 = vrot.lane.b32.xlu0 %v8720, 28
        %v9653 = vpop.permute.xlu0 %9652
        %9654 = vrot.lane.b32.xlu0 %v8722, 28
        %v9655 = vpop.permute.xlu0 %9654
        %9656 = vrot.lane.b32.xlu0 %v8725, 28
        %v9657 = vpop.permute.xlu0 %9656
        %9658 = vrot.lane.b32.xlu0 %v8727, 28
        %v9659 = vpop.permute.xlu0 %9658
        %9660 = vrot.lane.b32.xlu0 %v8730, 28
        %v9661 = vpop.permute.xlu0 %9660
        %9662 = vrot.lane.b32.xlu0 %v8732, 28
        %v9663 = vpop.permute.xlu0 %9662
        %9664 = vrot.lane.b32.xlu0 %v9205, 28
        %v9665 = vpop.permute.xlu0 %9664
        %9666 = vrot.lane.b32.xlu0 %v9207, 28
        %v9667 = vpop.permute.xlu0 %9666
        %9668 = vrot.lane.b32.xlu0 %v9605, 28
        %v9669 = vpop.permute.xlu0 %9668
        %9670 = vrot.lane.b32.xlu0 %v9607, 28
        %v9671 = vpop.permute.xlu0 %9670
        %vm9704 = vcmask 261344
        %9705 = vst.msk [vmem:[#allocation6] sm:$0xff] %vm9704, %v9609
        %9706 = vst.msk [vmem:[#allocation6 + $0x8] sm:$0xff] %vm9704, %v9611
        %9707 = vst.msk [vmem:[#allocation6 + $0x10] sm:$0xff] %vm9704, %v9613
        %9708 = vst.msk [vmem:[#allocation6 + $0x18] sm:$0xff] %vm9704, %v9615
        %9709 = vst.msk [vmem:[#allocation6 + $0x20] sm:$0xff] %vm9704, %v9617
        %9710 = vst.msk [vmem:[#allocation6 + $0x28] sm:$0xff] %vm9704, %v9619
        %9711 = vst.msk [vmem:[#allocation6 + $0x30] sm:$0xff] %vm9704, %v9621
        %9712 = vst.msk [vmem:[#allocation6 + $0x38] sm:$0xff] %vm9704, %v9623
        %9713 = vst.msk [vmem:[#allocation6 + $0x40] sm:$0xff] %vm9704, %v9625
        %9714 = vst.msk [vmem:[#allocation6 + $0x48] sm:$0xff] %vm9704, %v9627
        %9715 = vst.msk [vmem:[#allocation6 + $0x50] sm:$0xff] %vm9704, %v9629
        %9716 = vst.msk [vmem:[#allocation6 + $0x58] sm:$0xff] %vm9704, %v9631
        %9717 = vst.msk [vmem:[#allocation6 + $0x60] sm:$0xff] %vm9704, %v9633
        %9718 = vst.msk [vmem:[#allocation6 + $0x68] sm:$0xff] %vm9704, %v9635
        %9719 = vst.msk [vmem:[#allocation6 + $0x70] sm:$0xff] %vm9704, %v9637
        %9720 = vst.msk [vmem:[#allocation6 + $0x78] sm:$0xff] %vm9704, %v9639
        %9721 = vst.msk [vmem:[#allocation6 + $0x80] sm:$0xff] %vm9704, %v9641
        %9722 = vst.msk [vmem:[#allocation6 + $0x88] sm:$0xff] %vm9704, %v9643
        %9723 = vst.msk [vmem:[#allocation6 + $0x90] sm:$0xff] %vm9704, %v9645
        %9724 = vst.msk [vmem:[#allocation6 + $0x98] sm:$0xff] %vm9704, %v9647
        %9725 = vst.msk [vmem:[#allocation6 + $0xa0] sm:$0xff] %vm9704, %v9649
        %9726 = vst.msk [vmem:[#allocation6 + $0xa8] sm:$0xff] %vm9704, %v9651
        %9727 = vst.msk [vmem:[#allocation6 + $0xb0] sm:$0xff] %vm9704, %v9653
        %9728 = vst.msk [vmem:[#allocation6 + $0xb8] sm:$0xff] %vm9704, %v9655
        %9729 = vst.msk [vmem:[#allocation6 + $0xc0] sm:$0xff] %vm9704, %v9657
        %9730 = vst.msk [vmem:[#allocation6 + $0xc8] sm:$0xff] %vm9704, %v9659
        %9731 = vst.msk [vmem:[#allocation6 + $0xd0] sm:$0xff] %vm9704, %v9661
        %9732 = vst.msk [vmem:[#allocation6 + $0xd8] sm:$0xff] %vm9704, %v9663
        %9733 = vst.msk [vmem:[#allocation6 + $0xe0] sm:$0xff] %vm9704, %v9665
        %9734 = vst.msk [vmem:[#allocation6 + $0xe8] sm:$0xff] %vm9704, %v9667
        %9735 = vst.msk [vmem:[#allocation6 + $0xf0] sm:$0xff] %vm9704, %v9669
        %9736 = vst.msk [vmem:[#allocation6 + $0xf8] sm:$0xff] %vm9704, %v9671
        %v9737 = vrot.slane %v8570, 2
        %v9738 = vrot.slane %v8571, 2
        %v9739 = vsel %vm5359, %v9737, %v9738
        %v9740 = vrot.slane %v8572, 2
        %v9741 = vsel %vm5359, %v9738, %v9740
        %9742 = vrot.lane.b32.xlu0 %v8874, 32
        %v9743 = vpop.permute.xlu0 %9742
        %9744 = vrot.lane.b32.xlu0 %v8876, 32
        %v9745 = vpop.permute.xlu0 %9744
        %9746 = vrot.lane.b32.xlu0 %v8879, 32
        %v9747 = vpop.permute.xlu0 %9746
        %9748 = vrot.lane.b32.xlu0 %v8881, 32
        %v9749 = vpop.permute.xlu0 %9748
        %9750 = vrot.lane.b32.xlu0 %v8884, 32
        %v9751 = vpop.permute.xlu0 %9750
        %9752 = vrot.lane.b32.xlu0 %v8886, 32
        %v9753 = vpop.permute.xlu0 %9752
        %9754 = vrot.lane.b32.xlu0 %v8889, 32
        %v9755 = vpop.permute.xlu0 %9754
        %9756 = vrot.lane.b32.xlu0 %v8891, 32
        %v9757 = vpop.permute.xlu0 %9756
        %9758 = vrot.lane.b32.xlu0 %v8894, 32
        %v9759 = vpop.permute.xlu0 %9758
        %9760 = vrot.lane.b32.xlu0 %v8896, 32
        %v9761 = vpop.permute.xlu0 %9760
        %9762 = vrot.lane.b32.xlu0 %v8899, 32
        %v9763 = vpop.permute.xlu0 %9762
        %9764 = vrot.lane.b32.xlu0 %v8901, 32
        %v9765 = vpop.permute.xlu0 %9764
        %9766 = vrot.lane.b32.xlu0 %v8904, 32
        %v9767 = vpop.permute.xlu0 %9766
        %9768 = vrot.lane.b32.xlu0 %v8906, 32
        %v9769 = vpop.permute.xlu0 %9768
        %9770 = vrot.lane.b32.xlu0 %v8909, 32
        %v9771 = vpop.permute.xlu0 %9770
        %9772 = vrot.lane.b32.xlu0 %v8911, 32
        %v9773 = vpop.permute.xlu0 %9772
        %9774 = vrot.lane.b32.xlu0 %v8914, 32
        %v9775 = vpop.permute.xlu0 %9774
        %9776 = vrot.lane.b32.xlu0 %v8916, 32
        %v9777 = vpop.permute.xlu0 %9776
        %9778 = vrot.lane.b32.xlu0 %v8919, 32
        %v9779 = vpop.permute.xlu0 %9778
        %9780 = vrot.lane.b32.xlu0 %v8921, 32
        %v9781 = vpop.permute.xlu0 %9780
        %9782 = vrot.lane.b32.xlu0 %v8924, 32
        %v9783 = vpop.permute.xlu0 %9782
        %9784 = vrot.lane.b32.xlu0 %v8926, 32
        %v9785 = vpop.permute.xlu0 %9784
        %9786 = vrot.lane.b32.xlu0 %v8929, 32
        %v9787 = vpop.permute.xlu0 %9786
        %9788 = vrot.lane.b32.xlu0 %v8931, 32
        %v9789 = vpop.permute.xlu0 %9788
        %9790 = vrot.lane.b32.xlu0 %v8934, 32
        %v9791 = vpop.permute.xlu0 %9790
        %9792 = vrot.lane.b32.xlu0 %v8936, 32
        %v9793 = vpop.permute.xlu0 %9792
        %9794 = vrot.lane.b32.xlu0 %v8939, 32
        %v9795 = vpop.permute.xlu0 %9794
        %9796 = vrot.lane.b32.xlu0 %v8941, 32
        %v9797 = vpop.permute.xlu0 %9796
        %9798 = vrot.lane.b32.xlu0 %v9339, 32
        %v9799 = vpop.permute.xlu0 %9798
        %9800 = vrot.lane.b32.xlu0 %v9341, 32
        %v9801 = vpop.permute.xlu0 %9800
        %9802 = vrot.lane.b32.xlu0 %v9739, 32
        %v9803 = vpop.permute.xlu0 %9802
        %9804 = vrot.lane.b32.xlu0 %v9741, 32
        %v9805 = vpop.permute.xlu0 %9804
        %vm9838 = vcmask 294144
        %9839 = vst.msk [vmem:[#allocation6] sm:$0xff] %vm9838, %v9743
        %9840 = vst.msk [vmem:[#allocation6 + $0x8] sm:$0xff] %vm9838, %v9745
        %9841 = vst.msk [vmem:[#allocation6 + $0x10] sm:$0xff] %vm9838, %v9747
        %9842 = vst.msk [vmem:[#allocation6 + $0x18] sm:$0xff] %vm9838, %v9749
        %9843 = vst.msk [vmem:[#allocation6 + $0x20] sm:$0xff] %vm9838, %v9751
        %9844 = vst.msk [vmem:[#allocation6 + $0x28] sm:$0xff] %vm9838, %v9753
        %9845 = vst.msk [vmem:[#allocation6 + $0x30] sm:$0xff] %vm9838, %v9755
        %9846 = vst.msk [vmem:[#allocation6 + $0x38] sm:$0xff] %vm9838, %v9757
        %9847 = vst.msk [vmem:[#allocation6 + $0x40] sm:$0xff] %vm9838, %v9759
        %9848 = vst.msk [vmem:[#allocation6 + $0x48] sm:$0xff] %vm9838, %v9761
        %9849 = vst.msk [vmem:[#allocation6 + $0x50] sm:$0xff] %vm9838, %v9763
        %9850 = vst.msk [vmem:[#allocation6 + $0x58] sm:$0xff] %vm9838, %v9765
        %9851 = vst.msk [vmem:[#allocation6 + $0x60] sm:$0xff] %vm9838, %v9767
        %9852 = vst.msk [vmem:[#allocation6 + $0x68] sm:$0xff] %vm9838, %v9769
        %9853 = vst.msk [vmem:[#allocation6 + $0x70] sm:$0xff] %vm9838, %v9771
        %9854 = vst.msk [vmem:[#allocation6 + $0x78] sm:$0xff] %vm9838, %v9773
        %9855 = vst.msk [vmem:[#allocation6 + $0x80] sm:$0xff] %vm9838, %v9775
        %9856 = vst.msk [vmem:[#allocation6 + $0x88] sm:$0xff] %vm9838, %v9777
        %9857 = vst.msk [vmem:[#allocation6 + $0x90] sm:$0xff] %vm9838, %v9779
        %9858 = vst.msk [vmem:[#allocation6 + $0x98] sm:$0xff] %vm9838, %v9781
        %9859 = vst.msk [vmem:[#allocation6 + $0xa0] sm:$0xff] %vm9838, %v9783
        %9860 = vst.msk [vmem:[#allocation6 + $0xa8] sm:$0xff] %vm9838, %v9785
        %9861 = vst.msk [vmem:[#allocation6 + $0xb0] sm:$0xff] %vm9838, %v9787
        %9862 = vst.msk [vmem:[#allocation6 + $0xb8] sm:$0xff] %vm9838, %v9789
        %9863 = vst.msk [vmem:[#allocation6 + $0xc0] sm:$0xff] %vm9838, %v9791
        %9864 = vst.msk [vmem:[#allocation6 + $0xc8] sm:$0xff] %vm9838, %v9793
        %9865 = vst.msk [vmem:[#allocation6 + $0xd0] sm:$0xff] %vm9838, %v9795
        %9866 = vst.msk [vmem:[#allocation6 + $0xd8] sm:$0xff] %vm9838, %v9797
        %9867 = vst.msk [vmem:[#allocation6 + $0xe0] sm:$0xff] %vm9838, %v9799
        %9868 = vst.msk [vmem:[#allocation6 + $0xe8] sm:$0xff] %vm9838, %v9801
        %9869 = vst.msk [vmem:[#allocation6 + $0xf0] sm:$0xff] %vm9838, %v9803
        %9870 = vst.msk [vmem:[#allocation6 + $0xf8] sm:$0xff] %vm9838, %v9805
        %v9871 = vld [vmem:[#allocation6] sm:$0xff]
        %v9872 = vld [vmem:[#allocation6 + $0x8] sm:$0xff]
        %v9873 = vld [vmem:[#allocation6 + $0x10] sm:$0xff]
        %v9874 = vld [vmem:[#allocation6 + $0x18] sm:$0xff]
        %v9875 = vld [vmem:[#allocation6 + $0x20] sm:$0xff]
        %v9876 = vld [vmem:[#allocation6 + $0x28] sm:$0xff]
        %v9877 = vld [vmem:[#allocation6 + $0x30] sm:$0xff]
        %v9878 = vld [vmem:[#allocation6 + $0x38] sm:$0xff]
        %v9879 = vld [vmem:[#allocation6 + $0x40] sm:$0xff]
        %v9880 = vld [vmem:[#allocation6 + $0x48] sm:$0xff]
        %v9881 = vld [vmem:[#allocation6 + $0x50] sm:$0xff]
        %v9882 = vld [vmem:[#allocation6 + $0x58] sm:$0xff]
        %v9883 = vld [vmem:[#allocation6 + $0x60] sm:$0xff]
        %v9884 = vld [vmem:[#allocation6 + $0x68] sm:$0xff]
        %v9885 = vld [vmem:[#allocation6 + $0x70] sm:$0xff]
        %v9886 = vld [vmem:[#allocation6 + $0x78] sm:$0xff]
        %v9887 = vld [vmem:[#allocation6 + $0x80] sm:$0xff]
        %v9888 = vld [vmem:[#allocation6 + $0x88] sm:$0xff]
        %v9889 = vld [vmem:[#allocation6 + $0x90] sm:$0xff]
        %v9890 = vld [vmem:[#allocation6 + $0x98] sm:$0xff]
        %v9891 = vld [vmem:[#allocation6 + $0xa0] sm:$0xff]
        %v9892 = vld [vmem:[#allocation6 + $0xa8] sm:$0xff]
        %v9893 = vld [vmem:[#allocation6 + $0xb0] sm:$0xff]
        %v9894 = vld [vmem:[#allocation6 + $0xb8] sm:$0xff]
        %v9895 = vld [vmem:[#allocation6 + $0xc0] sm:$0xff]
        %v9896 = vld [vmem:[#allocation6 + $0xc8] sm:$0xff]
        %v9897 = vld [vmem:[#allocation6 + $0xd0] sm:$0xff]
        %v9898 = vld [vmem:[#allocation6 + $0xd8] sm:$0xff]
        %v9899 = vld [vmem:[#allocation6 + $0xe0] sm:$0xff]
        %v9900 = vld [vmem:[#allocation6 + $0xe8] sm:$0xff]
        %v9901 = vld [vmem:[#allocation6 + $0xf0] sm:$0xff]
        %v9902 = vld [vmem:[#allocation6 + $0xf8] sm:$0xff]
        %v9903 = vld [vmem:[%s6] sm:$0xff]
        %v9904 = vld [vmem:[%s6 + $0x8] sm:$0xff]
        %v9905 = vld [vmem:[%s6 + $0x10] sm:$0xff]
        %v9906 = vld [vmem:[%s6 + $0x18] sm:$0xff]
        %v9907 = vld [vmem:[%s6 + $0x20] sm:$0xf]
        %v9908 = vld [vmem:[%s7] sm:$0x1]
        %v9910 = vlaneseq
        %v9911 = vshrl.u32 %v9910, 7
        %v9912 = vsub.s32 0, %v9911
        %v9913 = vrot.slane %v9908, %v9912
        %v9916 = vsel %vm7459, %v9871, 0
        %v9919 = vsel %vm7459, %v9872, 0
        %v9922 = vsel %vm7459, %v9873, 0
        %v9925 = vsel %vm7459, %v9874, 0
        %v9928 = vsel %vm7459, %v9875, 0
        %v9931 = vsel %vm7459, %v9876, 0
        %v9934 = vsel %vm7459, %v9877, 0
        %v9937 = vsel %vm7459, %v9878, 0
        %v9940 = vsel %vm7459, %v9879, 0
        %v9943 = vsel %vm7459, %v9880, 0
        %v9946 = vsel %vm7459, %v9881, 0
        %v9949 = vsel %vm7459, %v9882, 0
        %v9952 = vsel %vm7459, %v9883, 0
        %v9955 = vsel %vm7459, %v9884, 0
        %v9958 = vsel %vm7459, %v9885, 0
        %v9961 = vsel %vm7459, %v9886, 0
        %v9964 = vsel %vm7459, %v9887, 0
        %v9967 = vsel %vm7459, %v9888, 0
        %v9970 = vsel %vm7459, %v9889, 0
        %v9973 = vsel %vm7459, %v9890, 0
        %v9976 = vsel %vm7459, %v9891, 0
        %v9979 = vsel %vm7459, %v9892, 0
        %v9982 = vsel %vm7459, %v9893, 0
        %v9985 = vsel %vm7459, %v9894, 0
        %v9988 = vsel %vm7459, %v9895, 0
        %v9991 = vsel %vm7459, %v9896, 0
        %v9994 = vsel %vm7459, %v9897, 0
        %v9997 = vsel %vm7459, %v9898, 0
        %v10000 = vsel %vm7459, %v9899, 0
        %v10003 = vsel %vm7459, %v9900, 0
        %v10006 = vsel %vm7459, %v9901, 0
        %v10009 = vsel %vm7459, %v9902, 0
        %v10012 = vsel %vm419, %v9907, 0
        %10014 = vmatprep.subr.mxu0 0.0
        %10015 = vmatpush1.msra.mxu0 %v9903
        %10016 = vmatprep.subr.mxu0 0.0
        %10017 = vmatpush1.msra.mxu0 %v9904
        %10018 = vmatprep.subr.mxu0 0.0
        %10019 = vmatpush1.msra.mxu0 %v9905
        %10020 = vmatprep.subr.mxu0 0.0
        %10021 = vmatpush1.msra.mxu0 %v9906
        %10022 = vmatprep.subr.mxu0 0.0
        %10023 = vmatpush1.msra.mxu0 %v10012
        %10024 = vmatprep.subr.mxu0 0.0
        %10025 = vmatpush1.msra.mxu0 0.0
        %10026 = vmatprep.subr.mxu0 0.0
        %10027 = vmatpush1.msra.mxu0 0.0
        %10028 = vmatprep.subr.mxu0 0.0
        %10029 = vmatpush1.msra.mxu0 0.0
        %10030 = vmatprep.subr.mxu0 0.0
        %10031 = vmatpush1.msra.mxu0 0.0
        %10032 = vmatprep.subr.mxu0 0.0
        %10033 = vmatpush1.msra.mxu0 0.0
        %10034 = vmatprep.subr.mxu0 0.0
        %10035 = vmatpush1.msra.mxu0 0.0
        %10036 = vmatprep.subr.mxu0 0.0
        %10037 = vmatpush1.msra.mxu0 0.0
        %10038 = vmatprep.subr.mxu0 0.0
        %10039 = vmatpush1.msra.mxu0 0.0
        %10040 = vmatprep.subr.mxu0 0.0
        %10041 = vmatpush1.msra.mxu0 0.0
        %10042 = vmatprep.subr.mxu0 0.0
        %10043 = vmatpush1.msra.mxu0 0.0
        %10044 = vmatprep.subr.mxu0 0.0
        %10045 = vmatpush1.msra.mxu0 0.0
        %10046 = vmatprep.subr.mxu0 0.0
        %10047 = vmatpush1.msra.mxu0 0.0
        %10048 = vmatprep.subr.mxu0 0.0
        %10049 = vmatpush1.msra.mxu0 0.0
        %10050 = vmatprep.subr.mxu0 0.0
        %10051 = vmatpush1.msra.mxu0 0.0
        %10052 = vmatprep.subr.mxu0 0.0
        %10053 = vmatpush1.msra.mxu0 0.0
        %10054 = vmatprep.subr.mxu0 0.0
        %10055 = vmatpush1.msra.mxu0 0.0
        %10056 = vmatprep.subr.mxu0 0.0
        %10057 = vmatpush1.msra.mxu0 0.0
        %10058 = vmatprep.subr.mxu0 0.0
        %10059 = vmatpush1.msra.mxu0 0.0
        %10060 = vmatprep.subr.mxu0 0.0
        %10061 = vmatpush1.msra.mxu0 0.0
        %10062 = vmatprep.subr.mxu0 0.0
        %10063 = vmatpush1.msra.mxu0 0.0
        %10064 = vmatprep.subr.mxu0 0.0
        %10065 = vmatpush1.msra.mxu0 0.0
        %10066 = vmatprep.subr.mxu0 0.0
        %10067 = vmatpush1.msra.mxu0 0.0
        %10068 = vmatprep.subr.mxu0 0.0
        %10069 = vmatpush1.msra.mxu0 0.0
        %10070 = vmatprep.subr.mxu0 0.0
        %10071 = vmatpush1.msra.mxu0 0.0
        %10072 = vmatprep.subr.mxu0 0.0
        %10073 = vmatpush1.msra.mxu0 0.0
        %10074 = vmatprep.subr.mxu0 0.0
        %10075 = vmatpush1.msra.mxu0 0.0
        %10076 = vmatprep.subr.mxu0 0.0
        %10077 = vmatpush1.msra.mxu0 0.0
        %10078 = vmatprep.mubr.f32.mxu0 0.0
        %10079 = vmatmul.mubr.f32.gmra.mrb[0].mxu0 %v9916
        %v10080 = vpop.f32.mrb[0].mxu0
        %v10081 = vadd.f32 %v9913, %v10080
        %v10082 = vpop.f32.mrb[0].mxu0
        %10083 = vmatprep.mubr.f32.mxu0 0.0
        %10084 = vmatmul.mubr.f32.gmra.mrb[0].mxu0 %v9919
        %v10085 = vpop.f32.mrb[0].mxu0
        %v10086 = vadd.f32 %v9913, %v10085
        %v10087 = vpop.f32.mrb[0].mxu0
        %10088 = vmatprep.mubr.f32.mxu0 0.0
        %10089 = vmatmul.mubr.f32.gmra.mrb[0].mxu0 %v9922
        %v10090 = vpop.f32.mrb[0].mxu0
        %v10091 = vadd.f32 %v9913, %v10090
        %v10092 = vpop.f32.mrb[0].mxu0
        %10093 = vmatprep.mubr.f32.mxu0 0.0
        %10094 = vmatmul.mubr.f32.gmra.mrb[0].mxu0 %v9925
        %v10095 = vpop.f32.mrb[0].mxu0
        %v10096 = vadd.f32 %v9913, %v10095
        %v10097 = vpop.f32.mrb[0].mxu0
        %10098 = vmatprep.mubr.f32.mxu0 0.0
        %10099 = vmatmul.mubr.f32.gmra.mrb[0].mxu0 %v9928
        %v10100 = vpop.f32.mrb[0].mxu0
        %v10101 = vadd.f32 %v9913, %v10100
        %v10102 = vpop.f32.mrb[0].mxu0
        %10103 = vmatprep.mubr.f32.mxu0 0.0
        %10104 = vmatmul.mubr.f32.gmra.mrb[0].mxu0 %v9931
        %v10105 = vpop.f32.mrb[0].mxu0
        %v10106 = vadd.f32 %v9913, %v10105
        %v10107 = vpop.f32.mrb[0].mxu0
        %10108 = vmatprep.mubr.f32.mxu0 0.0
        %10109 = vmatmul.mubr.f32.gmra.mrb[0].mxu0 %v9934
        %v10110 = vpop.f32.mrb[0].mxu0
        %v10111 = vadd.f32 %v9913, %v10110
        %v10112 = vpop.f32.mrb[0].mxu0
        %10113 = vmatprep.mubr.f32.mxu0 0.0
        %10114 = vmatmul.mubr.f32.gmra.mrb[0].mxu0 %v9937
        %v10115 = vpop.f32.mrb[0].mxu0
        %v10116 = vadd.f32 %v9913, %v10115
        %v10117 = vpop.f32.mrb[0].mxu0
        %10118 = vmatprep.mubr.f32.mxu0 0.0
        %10119 = vmatmul.mubr.f32.gmra.mrb[0].mxu0 %v9940
        %v10120 = vpop.f32.mrb[0].mxu0
        %v10121 = vadd.f32 %v9913, %v10120
        %v10122 = vpop.f32.mrb[0].mxu0
        %10123 = vmatprep.mubr.f32.mxu0 0.0
        %10124 = vmatmul.mubr.f32.gmra.mrb[0].mxu0 %v9943
        %v10125 = vpop.f32.mrb[0].mxu0
        %v10126 = vadd.f32 %v9913, %v10125
        %v10127 = vpop.f32.mrb[0].mxu0
        %10128 = vmatprep.mubr.f32.mxu0 0.0
        %10129 = vmatmul.mubr.f32.gmra.mrb[0].mxu0 %v9946
        %v10130 = vpop.f32.mrb[0].mxu0
        %v10131 = vadd.f32 %v9913, %v10130
        %v10132 = vpop.f32.mrb[0].mxu0
        %10133 = vmatprep.mubr.f32.mxu0 0.0
        %10134 = vmatmul.mubr.f32.gmra.mrb[0].mxu0 %v9949
        %v10135 = vpop.f32.mrb[0].mxu0
        %v10136 = vadd.f32 %v9913, %v10135
        %v10137 = vpop.f32.mrb[0].mxu0
        %10138 = vmatprep.mubr.f32.mxu0 0.0
        %10139 = vmatmul.mubr.f32.gmra.mrb[0].mxu0 %v9952
        %v10140 = vpop.f32.mrb[0].mxu0
        %v10141 = vadd.f32 %v9913, %v10140
        %v10142 = vpop.f32.mrb[0].mxu0
        %10143 = vmatprep.mubr.f32.mxu0 0.0
        %10144 = vmatmul.mubr.f32.gmra.mrb[0].mxu0 %v9955
        %v10145 = vpop.f32.mrb[0].mxu0
        %v10146 = vadd.f32 %v9913, %v10145
        %v10147 = vpop.f32.mrb[0].mxu0
        %10148 = vmatprep.mubr.f32.mxu0 0.0
        %10149 = vmatmul.mubr.f32.gmra.mrb[0].mxu0 %v9958
        %v10150 = vpop.f32.mrb[0].mxu0
        %v10151 = vadd.f32 %v9913, %v10150
        %v10152 = vpop.f32.mrb[0].mxu0
        %10153 = vmatprep.mubr.f32.mxu0 0.0
        %10154 = vmatmul.mubr.f32.gmra.mrb[0].mxu0 %v9961
        %v10155 = vpop.f32.mrb[0].mxu0
        %v10156 = vadd.f32 %v9913, %v10155
        %v10157 = vpop.f32.mrb[0].mxu0
        %10158 = vmatprep.mubr.f32.mxu0 0.0
        %10159 = vmatmul.mubr.f32.gmra.mrb[0].mxu0 %v9964
        %v10160 = vpop.f32.mrb[0].mxu0
        %v10161 = vadd.f32 %v9913, %v10160
        %v10162 = vpop.f32.mrb[0].mxu0
        %10163 = vmatprep.mubr.f32.mxu0 0.0
        %10164 = vmatmul.mubr.f32.gmra.mrb[0].mxu0 %v9967
        %v10165 = vpop.f32.mrb[0].mxu0
        %v10166 = vadd.f32 %v9913, %v10165
        %v10167 = vpop.f32.mrb[0].mxu0
        %10168 = vmatprep.mubr.f32.mxu0 0.0
        %10169 = vmatmul.mubr.f32.gmra.mrb[0].mxu0 %v9970
        %v10170 = vpop.f32.mrb[0].mxu0
        %v10171 = vadd.f32 %v9913, %v10170
        %v10172 = vpop.f32.mrb[0].mxu0
        %10173 = vmatprep.mubr.f32.mxu0 0.0
        %10174 = vmatmul.mubr.f32.gmra.mrb[0].mxu0 %v9973
        %v10175 = vpop.f32.mrb[0].mxu0
        %v10176 = vadd.f32 %v9913, %v10175
        %v10177 = vpop.f32.mrb[0].mxu0
        %10178 = vmatprep.mubr.f32.mxu0 0.0
        %10179 = vmatmul.mubr.f32.gmra.mrb[0].mxu0 %v9976
        %v10180 = vpop.f32.mrb[0].mxu0
        %v10181 = vadd.f32 %v9913, %v10180
        %v10182 = vpop.f32.mrb[0].mxu0
        %10183 = vmatprep.mubr.f32.mxu0 0.0
        %10184 = vmatmul.mubr.f32.gmra.mrb[0].mxu0 %v9979
        %v10185 = vpop.f32.mrb[0].mxu0
        %v10186 = vadd.f32 %v9913, %v10185
        %v10187 = vpop.f32.mrb[0].mxu0
        %10188 = vmatprep.mubr.f32.mxu0 0.0
        %10189 = vmatmul.mubr.f32.gmra.mrb[0].mxu0 %v9982
        %v10190 = vpop.f32.mrb[0].mxu0
        %v10191 = vadd.f32 %v9913, %v10190
        %v10192 = vpop.f32.mrb[0].mxu0
        %10193 = vmatprep.mubr.f32.mxu0 0.0
        %10194 = vmatmul.mubr.f32.gmra.mrb[0].mxu0 %v9985
        %v10195 = vpop.f32.mrb[0].mxu0
        %v10196 = vadd.f32 %v9913, %v10195
        %v10197 = vpop.f32.mrb[0].mxu0
        %10198 = vmatprep.mubr.f32.mxu0 0.0
        %10199 = vmatmul.mubr.f32.gmra.mrb[0].mxu0 %v9988
        %v10200 = vpop.f32.mrb[0].mxu0
        %v10201 = vadd.f32 %v9913, %v10200
        %v10202 = vpop.f32.mrb[0].mxu0
        %10203 = vmatprep.mubr.f32.mxu0 0.0
        %10204 = vmatmul.mubr.f32.gmra.mrb[0].mxu0 %v9991
        %v10205 = vpop.f32.mrb[0].mxu0
        %v10206 = vadd.f32 %v9913, %v10205
        %v10207 = vpop.f32.mrb[0].mxu0
        %10208 = vmatprep.mubr.f32.mxu0 0.0
        %10209 = vmatmul.mubr.f32.gmra.mrb[0].mxu0 %v9994
        %v10210 = vpop.f32.mrb[0].mxu0
        %v10211 = vadd.f32 %v9913, %v10210
        %v10212 = vpop.f32.mrb[0].mxu0
        %10213 = vmatprep.mubr.f32.mxu0 0.0
        %10214 = vmatmul.mubr.f32.gmra.mrb[0].mxu0 %v9997
        %v10215 = vpop.f32.mrb[0].mxu0
        %v10216 = vadd.f32 %v9913, %v10215
        %v10217 = vpop.f32.mrb[0].mxu0
        %10218 = vmatprep.mubr.f32.mxu0 0.0
        %10219 = vmatmul.mubr.f32.gmra.mrb[0].mxu0 %v10000
        %v10220 = vpop.f32.mrb[0].mxu0
        %v10221 = vadd.f32 %v9913, %v10220
        %v10222 = vpop.f32.mrb[0].mxu0
        %10223 = vmatprep.mubr.f32.mxu0 0.0
        %10224 = vmatmul.mubr.f32.gmra.mrb[0].mxu0 %v10003
        %v10225 = vpop.f32.mrb[0].mxu0
        %v10226 = vadd.f32 %v9913, %v10225
        %v10227 = vpop.f32.mrb[0].mxu0
        %10228 = vmatprep.mubr.f32.mxu0 0.0
        %10229 = vmatmul.mubr.f32.gmra.mrb[0].mxu0 %v10006
        %v10230 = vpop.f32.mrb[0].mxu0
        %v10231 = vadd.f32 %v9913, %v10230
        %v10232 = vpop.f32.mrb[0].mxu0
        %10233 = vmatprep.mubr.f32.mxu0 0.0
        %10234 = vmatmul.mubr.f32.gmra.mrb[0].mxu0 %v10009
        %v10235 = vpop.f32.mrb[0].mxu0
        %v10236 = vadd.f32 %v9913, %v10235
        %v10237 = vpop.f32.mrb[0].mxu0
        %10238 = vdwg.mxu0
        %v10239 = vadd.f32 %v10081, %v8409
        %v10240 = vadd.f32 %v10086, %v8410
        %v10241 = vadd.f32 %v10091, %v8411
        %v10242 = vadd.f32 %v10096, %v8412
        %v10243 = vadd.f32 %v10101, %v8413
        %v10244 = vadd.f32 %v10106, %v8414
        %v10245 = vadd.f32 %v10111, %v8415
        %v10246 = vadd.f32 %v10116, %v8416
        %v10247 = vadd.f32 %v10121, %v8417
        %v10248 = vadd.f32 %v10126, %v8418
        %v10249 = vadd.f32 %v10131, %v8419
        %v10250 = vadd.f32 %v10136, %v8420
        %v10251 = vadd.f32 %v10141, %v8421
        %v10252 = vadd.f32 %v10146, %v8422
        %v10253 = vadd.f32 %v10151, %v8423
        %v10254 = vadd.f32 %v10156, %v8424
        %v10255 = vadd.f32 %v10161, %v8425
        %v10256 = vadd.f32 %v10166, %v8426
        %v10257 = vadd.f32 %v10171, %v8427
        %v10258 = vadd.f32 %v10176, %v8428
        %v10259 = vadd.f32 %v10181, %v8429
        %v10260 = vadd.f32 %v10186, %v8430
        %v10261 = vadd.f32 %v10191, %v8431
        %v10262 = vadd.f32 %v10196, %v8432
        %v10263 = vadd.f32 %v10201, %v8433
        %v10264 = vadd.f32 %v10206, %v8434
        %v10265 = vadd.f32 %v10211, %v8435
        %v10266 = vadd.f32 %v10216, %v8436
        %v10267 = vadd.f32 %v10221, %v8437
        %v10268 = vadd.f32 %v10226, %v8438
        %v10269 = vadd.f32 %v10231, %v8439
        %v10270 = vadd.f32 %v10236, %v8440
        %v10271 = vmax.f32 %v10239, 0.0
        %v10272 = vmax.f32 %v10240, 0.0
        %v10273 = vmax.f32 %v10241, 0.0
        %v10274 = vmax.f32 %v10242, 0.0
        %v10275 = vmax.f32 %v10243, 0.0
        %v10276 = vmax.f32 %v10244, 0.0
        %v10277 = vmax.f32 %v10245, 0.0
        %v10278 = vmax.f32 %v10246, 0.0
        %v10279 = vmax.f32 %v10247, 0.0
        %v10280 = vmax.f32 %v10248, 0.0
        %v10281 = vmax.f32 %v10249, 0.0
        %v10282 = vmax.f32 %v10250, 0.0
        %v10283 = vmax.f32 %v10251, 0.0
        %v10284 = vmax.f32 %v10252, 0.0
        %v10285 = vmax.f32 %v10253, 0.0
        %v10286 = vmax.f32 %v10254, 0.0
        %v10287 = vmax.f32 %v10255, 0.0
        %v10288 = vmax.f32 %v10256, 0.0
        %v10289 = vmax.f32 %v10257, 0.0
        %v10290 = vmax.f32 %v10258, 0.0
        %v10291 = vmax.f32 %v10259, 0.0
        %v10292 = vmax.f32 %v10260, 0.0
        %v10293 = vmax.f32 %v10261, 0.0
        %v10294 = vmax.f32 %v10262, 0.0
        %v10295 = vmax.f32 %v10263, 0.0
        %v10296 = vmax.f32 %v10264, 0.0
        %v10297 = vmax.f32 %v10265, 0.0
        %v10298 = vmax.f32 %v10266, 0.0
        %v10299 = vmax.f32 %v10267, 0.0
        %v10300 = vmax.f32 %v10268, 0.0
        %v10301 = vmax.f32 %v10269, 0.0
        %v10302 = vmax.f32 %v10270, 0.0
        %10303 = vxpose.xlu0.b32.start [1/16] %v10271, 128
        %10304 = vxpose.xlu0.b32.cont [2/16] %v10272, 128
        %10305 = vxpose.xlu0.b32.cont [3/16] %v10273, 128
        %10306 = vxpose.xlu0.b32.cont [4/16] %v10274, 128
        %10307 = vxpose.xlu0.b32.cont [5/16] %v10275, 128
        %10308 = vxpose.xlu0.b32.cont [6/16] %v10276, 128
        %10309 = vxpose.xlu0.b32.cont [7/16] %v10277, 128
        %10310 = vxpose.xlu0.b32.cont [8/16] %v10278, 128
        %10311 = vxpose.xlu0.b32.cont [9/16] %v10279, 128
        %10312 = vxpose.xlu0.b32.cont [10/16] %v10280, 128
        %10313 = vxpose.xlu0.b32.cont [11/16] %v10281, 128
        %10314 = vxpose.xlu0.b32.cont [12/16] %v10282, 128
        %10315 = vxpose.xlu0.b32.cont [13/16] %v10283, 128
        %10316 = vxpose.xlu0.b32.cont [14/16] %v10284, 128
        %10317 = vxpose.xlu0.b32.cont [15/16] %v10285, 128
        %10318 = vxpose.xlu0.b32.end [16/16] %v10286, 128
        %v10319 = vpop.trf.xlu0
        %v10320 = vpop.trf.xlu0
        %v10321 = vpop.trf.xlu0
        %v10322 = vpop.trf.xlu0
        %v10323 = vpop.trf.xlu0
        %v10324 = vpop.trf.xlu0
        %v10325 = vpop.trf.xlu0
        %v10326 = vpop.trf.xlu0
        %v10327 = vpop.trf.xlu0
        %v10328 = vpop.trf.xlu0
        %v10329 = vpop.trf.xlu0
        %v10330 = vpop.trf.xlu0
        %v10331 = vpop.trf.xlu0
        %v10332 = vpop.trf.xlu0
        %v10333 = vpop.trf.xlu0
        %v10334 = vpop.trf.xlu0
        %10335 = vxpose.xlu0.b32.start [1/16] %v10287, 128
        %10336 = vxpose.xlu0.b32.cont [2/16] %v10288, 128
        %10337 = vxpose.xlu0.b32.cont [3/16] %v10289, 128
        %10338 = vxpose.xlu0.b32.cont [4/16] %v10290, 128
        %10339 = vxpose.xlu0.b32.cont [5/16] %v10291, 128
        %10340 = vxpose.xlu0.b32.cont [6/16] %v10292, 128
        %10341 = vxpose.xlu0.b32.cont [7/16] %v10293, 128
        %10342 = vxpose.xlu0.b32.cont [8/16] %v10294, 128
        %10343 = vxpose.xlu0.b32.cont [9/16] %v10295, 128
        %10344 = vxpose.xlu0.b32.cont [10/16] %v10296, 128
        %10345 = vxpose.xlu0.b32.cont [11/16] %v10297, 128
        %10346 = vxpose.xlu0.b32.cont [12/16] %v10298, 128
        %10347 = vxpose.xlu0.b32.cont [13/16] %v10299, 128
        %10348 = vxpose.xlu0.b32.cont [14/16] %v10300, 128
        %10349 = vxpose.xlu0.b32.cont [15/16] %v10301, 128
        %10350 = vxpose.xlu0.b32.end [16/16] %v10302, 128
        %v10351 = vpop.trf.xlu0
        %v10352 = vpop.trf.xlu0
        %v10353 = vpop.trf.xlu0
        %v10354 = vpop.trf.xlu0
        %v10355 = vpop.trf.xlu0
        %v10356 = vpop.trf.xlu0
        %v10357 = vpop.trf.xlu0
        %v10358 = vpop.trf.xlu0
        %v10359 = vpop.trf.xlu0
        %v10360 = vpop.trf.xlu0
        %v10361 = vpop.trf.xlu0
        %v10362 = vpop.trf.xlu0
        %v10363 = vpop.trf.xlu0
        %v10364 = vpop.trf.xlu0
        %v10365 = vpop.trf.xlu0
        %v10366 = vpop.trf.xlu0
        %v10369 = vcombine.low %v10319, %v10351
        %10371 = vst [vmem:[%s367] sm:$0xff] %v10369
        %s10372 = sand.u32 %s252, 1
        %s10373 = scalar_lea.sflag [#allocation8], %s10372
        %s10374 = sand.u32 %s252, 1
        %s10375 = smul.addr %s10374, 8
        %s10376 = scalar_lea.vmem [#allocation7], %s10375
        // Predicated region
        $region61: #{tpu_custom_call.1} parent=59 // pred_check
          %p10377 = pneg %p262
        $region62: #{tpu_custom_call.1} parent=59 // pred_check_branch
          %10379 = sbr.rel (%p10377) target = $region64
        $region63: #{tpu_custom_call.1} parent=59 // pred_region
          %s10381 = ssub.s32 128, 128
          %10382 = vsyncadd %s10373, %s10381
          %s10383 = smul.addr %s24, 2
          %s10384 = smul.addr %s10383, 64
          %s10385 = scalar_lea.hbm %s10, %s10384
          %s10387 = sshll.u32 %s10376, 4
          %s10388 = int_to_ptr.vmem [resolvable:$true] %s10387
          %10390 = dma.vmem_to_hbm [thread:$0]  %s10388, 128, %s10385, %s10373
        $region64: #{tpu_custom_call.1} parent=59 // pred_fallthru
          _
      $region60: #{tpu_custom_call.1} parent=5 // pred_fallthru
        _
      %p10391 = scmp.le.s32.totalorder 2, %s19
      // Predicated region
      $region65: #{tpu_custom_call.1} parent=5 // pred_check
        %p10392 = pneg %p10391
      $region66: #{tpu_custom_call.1} parent=5 // pred_check_branch
        %10394 = sbr.rel (%p10392) target = $region68
      $region67: #{tpu_custom_call.1} parent=5 // pred_region
        %s10395 = ssub.s32 %s19, 2
        // Predicated region
        $region69: #{tpu_custom_call.1} parent=67 // pred_check
          %p10396 = pneg %p268
        $region70: #{tpu_custom_call.1} parent=67 // pred_check_branch
          %10398 = sbr.rel (%p10396) target = $region72
        $region71: #{tpu_custom_call.1} parent=67 // pred_region
          %s10399 = sand.u32 %s253, 1
          %s10400 = scalar_lea.sflag [#allocation8], %s10399
          %s10401 = sand.u32 %s253, 1
          %s10402 = smul.addr %s10401, 8
          %s10403 = scalar_lea.vmem [#allocation7], %s10402
          %10404 = dma.done %s10400, 128
        $region72: #{tpu_custom_call.1} parent=67 // pred_fallthru
          _
      $region68: #{tpu_custom_call.1} parent=5 // pred_fallthru
        _
    $region6: #{tpu_custom_call.1} parent=1 // loop_footer
      %s23 = sadd.s32 1, %s19
    $region7: #{tpu_custom_call.1} parent=1 // loop_footer_branch
      %18 = sbr.rel target = $region3
    $region8: #{tpu_custom_call.1} parent=1 // loop_exit
      _
    %10405 = vsyncpa [#allocation8], 1
    %s10406 = scalar_lea.sflag [#allocation8], 1
    %10407 = vsyncpa %s10406, 1

</llo_original>
